<compile_context>
chip_gen: v7x
topology: tpu7x:2x2x1
jax: 0.10.0
libtpu: 0.0.40
codegen_flags: <defaults>
</compile_context>

<pallas_src>
import jax
import jax.numpy as jnp
from jax.experimental import pallas as pl
from jax.experimental.pallas import tpu as pltpu


LANES = 128  # vreg lane width; the batch axis is laid out along lanes.

# (in_hw, out_hw) per layer, from the PyTorch module.
LAYER_SIZES = [
    ((28, 28), (24, 24)),
    ((24, 24), (20, 20)),
    ((20, 20), (16, 16)),
    ((16, 16), (12, 12)),
    ((12, 12), (10, 10)),
    ((10, 10), (10, 10)),
]

# (k, ih, iw, oh, ow) per layer; k = ih - oh + 1 (stride 1, no padding).
_LAYER_META = tuple(
    (ih - oh + 1, ih, iw, oh, ow) for (ih, iw), (oh, ow) in LAYER_SIZES
)
# Layers actually executed inside the kernel: the k=1 layer 6 is folded into
# layer 5's weights at wrapper time, so only the first 5 layers remain.
_FUSED_META = _LAYER_META[:5]

IN_H, IN_W = LAYER_SIZES[0][0]
OUT_H, OUT_W = LAYER_SIZES[-1][1]


def _lc_layer(src, dst, w_ref, k, oh, ow, lane0):
    """One locally-connected layer on one 128-lane batch chunk.

    src : VMEM ref whose top-left [:ih, :iw, lane0:lane0+128] holds the input.
    dst : VMEM ref whose top-left [:oh, :ow, lane0:lane0+128] gets the output.
    w_ref: (k*k, oh, ow, 128) lane-broadcast unshared weights.
    Layout: lanes = batch, sublanes = W, outer dim = H, so di is a free row
    offset and dj is a sublane-only offset.
    """
    rs = 4 if oh % 4 == 0 else 2  # output rows per loop step (acc <= 12 vregs)

    def row_strip(s, carry):
        r0 = pl.multiple_of(s * rs, rs)
        acc = None
        # k*k shift-and-accumulate; all operands are VMEM-resident.
        for di in range(k):
            for dj in range(k):
                xs = src[pl.ds(r0 + di, rs), pl.ds(dj, ow), pl.ds(lane0, LANES)]
                wt = w_ref[di * k + dj, pl.ds(r0, rs), :, :]
                prod = xs * wt
                acc = prod if acc is None else acc + prod
        dst[pl.ds(r0, rs), pl.ds(0, ow), pl.ds(lane0, LANES)] = acc.astype(dst.dtype)
        return carry

    jax.lax.fori_loop(0, oh // rs, row_strip, 0)


def _fused_lc_kernel(x_ref, w1, w2, w3, w4, w5, o_ref, act_a, act_b):
    # Ping-pong plumbing: layer 1 reads the input block directly (no initial
    # copy); each layer's output becomes the next layer's input; the last
    # (folded 5+6) layer writes straight to the output block.  Shrinking maps
    # only ever read the freshly written [:oh, :ow] region of their source.
    plumbing = (
        (x_ref, act_a, w1),
        (act_a, act_b, w2),
        (act_b, act_a, w3),
        (act_a, act_b, w4),
        (act_b, o_ref, w5),
    )
    tb = x_ref.shape[-1]
    for c in range(tb // LANES):          # lane-chunk loop (1 iter for TB=128)
        lane0 = c * LANES
        for (k, ih, iw, oh, ow), (src, dst, w_ref) in zip(_FUSED_META, plumbing):
            _lc_layer(src, dst, w_ref, k, oh, ow, lane0)


def _prepare_kernel_weights(weights):
    """Fold layer 6 (k=1) into layer 5 and lane-broadcast all weights."""
    assert len(weights) == len(_LAYER_META)
    w5_folded = weights[4] * weights[5][0]        # (9,10,10) * (10,10)
    fused = [weights[0], weights[1], weights[2], weights[3], w5_folded]
    # (k*k, oh, ow) -> (k*k, oh, ow, 128): each weight value replicated across
    # the lane/batch axis so the in-kernel MAC is a pure elementwise multiply.
    return [jnp.broadcast_to(w[:, :, :, None], w.shape + (LANES,)) for w in fused]


def simple_locally_connected_forward(x_nchw, weights, *, batch_tile=128):
    """x_nchw: (B, 1, 28, 28) f32 -> (B, 100) f32 (== flatten(start_dim=1))."""
    B, C, H, W = x_nchw.shape
    assert (C, H, W) == (1, IN_H, IN_W), (C, H, W)

    w_lane = _prepare_kernel_weights(weights)

    # Batch goes into the lane (last) dimension: (H, W, B).
    x = jnp.transpose(x_nchw.reshape(B, H, W), (1, 2, 0))

    # Batch tile: a multiple of 128 lanes; pad B up (pad lanes are computed
    # but sliced off).  Sweepable for large B; 128 images per grid step.
    TB = max(LANES, (batch_tile // LANES) * LANES)
    n_tiles = pl.cdiv(B, TB)
    Bp = n_tiles * TB
    if Bp != B:
        x = jnp.pad(x, ((0, 0), (0, 0), (0, Bp - B)))

    in_specs = [pl.BlockSpec((IN_H, IN_W, TB), lambda b: (0, 0, b))]
    # Whole-array weight blocks with constant index maps: VMEM-resident across
    # the grid (Pallas skips re-copying blocks whose index does not change).
    in_specs += [pl.BlockSpec(w.shape, lambda b: (0, 0, 0, 0)) for w in w_lane]

    out = pl.pallas_call(
        _fused_lc_kernel,
        out_shape=jax.ShapeDtypeStruct((OUT_H, OUT_W, Bp), x.dtype),
        grid=(n_tiles,),
        in_specs=in_specs,
        out_specs=pl.BlockSpec((OUT_H, OUT_W, TB), lambda b: (0, 0, b)),
        scratch_shapes=[
            pltpu.VMEM((24, 24, TB), jnp.float32),   # layer 1 / layer 3 outputs
            pltpu.VMEM((20, 20, TB), jnp.float32),   # layer 2 / layer 4 outputs
        ],
        compiler_params=pltpu.CompilerParams(
            dimension_semantics=("parallel",),
            vmem_limit_bytes=48 * 1024 * 1024,
        ),
    )(x, *w_lane)

    # (10, 10, Bp) -> (B, 100), matching flatten(start_dim=1).
    return jnp.transpose(out, (2, 0, 1))[:B].reshape(B, OUT_H * OUT_W)


def init_params(key):
    """Deterministic per-layer unshared weights, laid out (k*k, oh, ow)."""
    params = []
    for (k, ih, iw, oh, ow) in _LAYER_META:
        key, sub = jax.random.split(key)
        w = jax.random.normal(sub, (k * k, oh, ow), jnp.float32) / float(k)
        params.append(w)
    return params


# ------------------- pure-JAX reference (im2col + einsum) -------------------
def _extract_patches(x, k):
    """x: (B, 1, H, W) -> (B, oh*ow, k*k) patches (stride 1, no padding)."""
    B, C, H, W = x.shape
    oh, ow = H - k + 1, W - k + 1
    cols = [x[:, :, di:di + oh, dj:dj + ow] for di in range(k) for dj in range(k)]
    patches = jnp.stack(cols, axis=-1)            # (B, 1, oh, ow, k*k)
    return patches.reshape(B, oh * ow, C * k * k)


def ref_forward(x_nchw, weights):
    h = x_nchw
    for (k, ih, iw, oh, ow), w in zip(_LAYER_META, weights):
        B = h.shape[0]
        p = _extract_patches(h, k)                 # (B, P, k*k)
        w_pc = w.reshape(k * k, oh * ow).T         # (P, k*k)
        o = jnp.einsum("bpc,pc->bp", p, w_pc)
        h = o.reshape(B, 1, oh, ow)
    return h.reshape(h.shape[0], -1)


if __name__ == "__main__":
    key = jax.random.PRNGKey(0)
    key_x, key_w = jax.random.split(key)

    batch_size = 2
    x = jax.random.normal(key_x, (batch_size, 1, IN_H, IN_W), jnp.float32)  # NCHW
    weights = init_params(key_w)

    fwd = jax.jit(lambda inp: simple_locally_connected_forward(inp, weights))
    out = fwd(x)
    jax.block_until_ready(out)

    assert out.shape == (batch_size, OUT_H * OUT_W), out.shape

    ref = ref_forward(x, weights)
    assert jnp.allclose(out, ref, atol=1e-4, rtol=1e-4), \
        float(jnp.max(jnp.abs(out - ref)))

    print("KERNEL_OK")
</pallas_src>

<mosaic_0001>
module attributes {stable_mosaic.version = 11 : i64} {
  func.func @_fused_lc_kernel(%arg0: i32, %arg1: memref<28x28x128xf32, #tpu.memory_space<vmem>>, %arg2: memref<25x24x24x128xf32, #tpu.memory_space<vmem>>, %arg3: memref<25x20x20x128xf32, #tpu.memory_space<vmem>>, %arg4: memref<25x16x16x128xf32, #tpu.memory_space<vmem>>, %arg5: memref<25x12x12x128xf32, #tpu.memory_space<vmem>>, %arg6: memref<9x10x10x128xf32, #tpu.memory_space<vmem>>, %arg7: memref<10x10x128xf32, #tpu.memory_space<vmem>>, %arg8: memref<24x24x128xf32, #tpu.memory_space<vmem>>, %arg9: memref<20x20x128xf32, #tpu.memory_space<vmem>>) attributes {dimension_semantics = [#tpu.dimension_semantics<parallel>], iteration_bounds = array<i64: 1>, scalar_prefetch = 0 : i64, scratch_operands = 2 : i64, tpu.core_type = #tpu.core_type<tc>, window_params = [{transform_indices = @transform_0, window_bounds = array<i64: 28, 28, 128>}, {pipeline_mode = #tpu.pipeline_mode<synchronous>, transform_indices = @transform_1, window_bounds = array<i64: 25, 24, 24, 128>}, {pipeline_mode = #tpu.pipeline_mode<synchronous>, transform_indices = @transform_2, window_bounds = array<i64: 25, 20, 20, 128>}, {pipeline_mode = #tpu.pipeline_mode<synchronous>, transform_indices = @transform_3, window_bounds = array<i64: 25, 16, 16, 128>}, {pipeline_mode = #tpu.pipeline_mode<synchronous>, transform_indices = @transform_4, window_bounds = array<i64: 25, 12, 12, 128>}, {pipeline_mode = #tpu.pipeline_mode<synchronous>, transform_indices = @transform_5, window_bounds = array<i64: 9, 10, 10, 128>}, {transform_indices = @transform_6, window_bounds = array<i64: 10, 10, 128>}]} {
    %c0_i32 = arith.constant 0 : i32
    %c6_i32 = arith.constant 6 : i32
    %0 = arith.addi %c0_i32, %c6_i32 : i32
    %c1_i32 = arith.constant 1 : i32
    scf.for %arg10 = %c0_i32 to %0 step %c1_i32  : i32 {
      %c4_i32_14 = arith.constant 4 : i32
      %5 = arith.muli %arg10, %c4_i32_14 : i32
      %6 = tpu.assume_multiple %5, 4 : i32
      %c0_i32_15 = arith.constant 0 : i32
      %7 = arith.addi %6, %c0_i32_15 : i32
      %8 = arith.index_cast %7 : i32 to index
      %c0 = arith.constant 0 : index
      %c0_16 = arith.constant 0 : index
      %9 = vector.load %arg1[%8, %c0, %c0_16] : memref<28x28x128xf32, #tpu.memory_space<vmem>>, vector<4x24x128xf32>
      %c0_17 = arith.constant 0 : index
      %10 = arith.index_cast %6 : i32 to index
      %c0_18 = arith.constant 0 : index
      %c0_19 = arith.constant 0 : index
      %11 = vector.load %arg2[%c0_17, %10, %c0_18, %c0_19] : memref<25x24x24x128xf32, #tpu.memory_space<vmem>>, vector<1x4x24x128xf32>
      %12 = vector.shape_cast %11 : vector<1x4x24x128xf32> to vector<4x24x128xf32>
      %13 = arith.mulf %9, %12 : vector<4x24x128xf32>
      %c0_i32_20 = arith.constant 0 : i32
      %14 = arith.addi %6, %c0_i32_20 : i32
      %15 = arith.index_cast %14 : i32 to index
      %c1 = arith.constant 1 : index
      %c0_21 = arith.constant 0 : index
      %16 = vector.load %arg1[%15, %c1, %c0_21] : memref<28x28x128xf32, #tpu.memory_space<vmem>>, vector<4x24x128xf32>
      %c1_22 = arith.constant 1 : index
      %17 = arith.index_cast %6 : i32 to index
      %c0_23 = arith.constant 0 : index
      %c0_24 = arith.constant 0 : index
      %18 = vector.load %arg2[%c1_22, %17, %c0_23, %c0_24] : memref<25x24x24x128xf32, #tpu.memory_space<vmem>>, vector<1x4x24x128xf32>
      %19 = vector.shape_cast %18 : vector<1x4x24x128xf32> to vector<4x24x128xf32>
      %20 = arith.mulf %16, %19 : vector<4x24x128xf32>
      %21 = arith.addf %13, %20 : vector<4x24x128xf32>
      %c0_i32_25 = arith.constant 0 : i32
      %22 = arith.addi %6, %c0_i32_25 : i32
      %23 = arith.index_cast %22 : i32 to index
      %c2 = arith.constant 2 : index
      %c0_26 = arith.constant 0 : index
      %24 = vector.load %arg1[%23, %c2, %c0_26] : memref<28x28x128xf32, #tpu.memory_space<vmem>>, vector<4x24x128xf32>
      %c2_27 = arith.constant 2 : index
      %25 = arith.index_cast %6 : i32 to index
      %c0_28 = arith.constant 0 : index
      %c0_29 = arith.constant 0 : index
      %26 = vector.load %arg2[%c2_27, %25, %c0_28, %c0_29] : memref<25x24x24x128xf32, #tpu.memory_space<vmem>>, vector<1x4x24x128xf32>
      %27 = vector.shape_cast %26 : vector<1x4x24x128xf32> to vector<4x24x128xf32>
      %28 = arith.mulf %24, %27 : vector<4x24x128xf32>
      %29 = arith.addf %21, %28 : vector<4x24x128xf32>
      %c0_i32_30 = arith.constant 0 : i32
      %30 = arith.addi %6, %c0_i32_30 : i32
      %31 = arith.index_cast %30 : i32 to index
      %c3 = arith.constant 3 : index
      %c0_31 = arith.constant 0 : index
      %32 = vector.load %arg1[%31, %c3, %c0_31] : memref<28x28x128xf32, #tpu.memory_space<vmem>>, vector<4x24x128xf32>
      %c3_32 = arith.constant 3 : index
      %33 = arith.index_cast %6 : i32 to index
      %c0_33 = arith.constant 0 : index
      %c0_34 = arith.constant 0 : index
      %34 = vector.load %arg2[%c3_32, %33, %c0_33, %c0_34] : memref<25x24x24x128xf32, #tpu.memory_space<vmem>>, vector<1x4x24x128xf32>
      %35 = vector.shape_cast %34 : vector<1x4x24x128xf32> to vector<4x24x128xf32>
      %36 = arith.mulf %32, %35 : vector<4x24x128xf32>
      %37 = arith.addf %29, %36 : vector<4x24x128xf32>
      %c0_i32_35 = arith.constant 0 : i32
      %38 = arith.addi %6, %c0_i32_35 : i32
      %39 = arith.index_cast %38 : i32 to index
      %c4 = arith.constant 4 : index
      %c0_36 = arith.constant 0 : index
      %40 = vector.load %arg1[%39, %c4, %c0_36] : memref<28x28x128xf32, #tpu.memory_space<vmem>>, vector<4x24x128xf32>
      %c4_37 = arith.constant 4 : index
      %41 = arith.index_cast %6 : i32 to index
      %c0_38 = arith.constant 0 : index
      %c0_39 = arith.constant 0 : index
      %42 = vector.load %arg2[%c4_37, %41, %c0_38, %c0_39] : memref<25x24x24x128xf32, #tpu.memory_space<vmem>>, vector<1x4x24x128xf32>
      %43 = vector.shape_cast %42 : vector<1x4x24x128xf32> to vector<4x24x128xf32>
      %44 = arith.mulf %40, %43 : vector<4x24x128xf32>
      %45 = arith.addf %37, %44 : vector<4x24x128xf32>
      %c1_i32_40 = arith.constant 1 : i32
      %46 = arith.addi %6, %c1_i32_40 : i32
      %47 = arith.index_cast %46 : i32 to index
      %c0_41 = arith.constant 0 : index
      %c0_42 = arith.constant 0 : index
      %48 = vector.load %arg1[%47, %c0_41, %c0_42] : memref<28x28x128xf32, #tpu.memory_space<vmem>>, vector<4x24x128xf32>
      %c5 = arith.constant 5 : index
      %49 = arith.index_cast %6 : i32 to index
      %c0_43 = arith.constant 0 : index
      %c0_44 = arith.constant 0 : index
      %50 = vector.load %arg2[%c5, %49, %c0_43, %c0_44] : memref<25x24x24x128xf32, #tpu.memory_space<vmem>>, vector<1x4x24x128xf32>
      %51 = vector.shape_cast %50 : vector<1x4x24x128xf32> to vector<4x24x128xf32>
      %52 = arith.mulf %48, %51 : vector<4x24x128xf32>
      %53 = arith.addf %45, %52 : vector<4x24x128xf32>
      %c1_i32_45 = arith.constant 1 : i32
      %54 = arith.addi %6, %c1_i32_45 : i32
      %55 = arith.index_cast %54 : i32 to index
      %c1_46 = arith.constant 1 : index
      %c0_47 = arith.constant 0 : index
      %56 = vector.load %arg1[%55, %c1_46, %c0_47] : memref<28x28x128xf32, #tpu.memory_space<vmem>>, vector<4x24x128xf32>
      %c6 = arith.constant 6 : index
      %57 = arith.index_cast %6 : i32 to index
      %c0_48 = arith.constant 0 : index
      %c0_49 = arith.constant 0 : index
      %58 = vector.load %arg2[%c6, %57, %c0_48, %c0_49] : memref<25x24x24x128xf32, #tpu.memory_space<vmem>>, vector<1x4x24x128xf32>
      %59 = vector.shape_cast %58 : vector<1x4x24x128xf32> to vector<4x24x128xf32>
      %60 = arith.mulf %56, %59 : vector<4x24x128xf32>
      %61 = arith.addf %53, %60 : vector<4x24x128xf32>
      %c1_i32_50 = arith.constant 1 : i32
      %62 = arith.addi %6, %c1_i32_50 : i32
      %63 = arith.index_cast %62 : i32 to index
      %c2_51 = arith.constant 2 : index
      %c0_52 = arith.constant 0 : index
      %64 = vector.load %arg1[%63, %c2_51, %c0_52] : memref<28x28x128xf32, #tpu.memory_space<vmem>>, vector<4x24x128xf32>
      %c7 = arith.constant 7 : index
      %65 = arith.index_cast %6 : i32 to index
      %c0_53 = arith.constant 0 : index
      %c0_54 = arith.constant 0 : index
      %66 = vector.load %arg2[%c7, %65, %c0_53, %c0_54] : memref<25x24x24x128xf32, #tpu.memory_space<vmem>>, vector<1x4x24x128xf32>
      %67 = vector.shape_cast %66 : vector<1x4x24x128xf32> to vector<4x24x128xf32>
      %68 = arith.mulf %64, %67 : vector<4x24x128xf32>
      %69 = arith.addf %61, %68 : vector<4x24x128xf32>
      %c1_i32_55 = arith.constant 1 : i32
      %70 = arith.addi %6, %c1_i32_55 : i32
      %71 = arith.index_cast %70 : i32 to index
      %c3_56 = arith.constant 3 : index
      %c0_57 = arith.constant 0 : index
      %72 = vector.load %arg1[%71, %c3_56, %c0_57] : memref<28x28x128xf32, #tpu.memory_space<vmem>>, vector<4x24x128xf32>
      %c8 = arith.constant 8 : index
      %73 = arith.index_cast %6 : i32 to index
      %c0_58 = arith.constant 0 : index
      %c0_59 = arith.constant 0 : index
      %74 = vector.load %arg2[%c8, %73, %c0_58, %c0_59] : memref<25x24x24x128xf32, #tpu.memory_space<vmem>>, vector<1x4x24x128xf32>
      %75 = vector.shape_cast %74 : vector<1x4x24x128xf32> to vector<4x24x128xf32>
      %76 = arith.mulf %72, %75 : vector<4x24x128xf32>
      %77 = arith.addf %69, %76 : vector<4x24x128xf32>
      %c1_i32_60 = arith.constant 1 : i32
      %78 = arith.addi %6, %c1_i32_60 : i32
      %79 = arith.index_cast %78 : i32 to index
      %c4_61 = arith.constant 4 : index
      %c0_62 = arith.constant 0 : index
      %80 = vector.load %arg1[%79, %c4_61, %c0_62] : memref<28x28x128xf32, #tpu.memory_space<vmem>>, vector<4x24x128xf32>
      %c9 = arith.constant 9 : index
      %81 = arith.index_cast %6 : i32 to index
      %c0_63 = arith.constant 0 : index
      %c0_64 = arith.constant 0 : index
      %82 = vector.load %arg2[%c9, %81, %c0_63, %c0_64] : memref<25x24x24x128xf32, #tpu.memory_space<vmem>>, vector<1x4x24x128xf32>
      %83 = vector.shape_cast %82 : vector<1x4x24x128xf32> to vector<4x24x128xf32>
      %84 = arith.mulf %80, %83 : vector<4x24x128xf32>
      %85 = arith.addf %77, %84 : vector<4x24x128xf32>
      %c2_i32 = arith.constant 2 : i32
      %86 = arith.addi %6, %c2_i32 : i32
      %87 = arith.index_cast %86 : i32 to index
      %c0_65 = arith.constant 0 : index
      %c0_66 = arith.constant 0 : index
      %88 = vector.load %arg1[%87, %c0_65, %c0_66] : memref<28x28x128xf32, #tpu.memory_space<vmem>>, vector<4x24x128xf32>
      %c10 = arith.constant 10 : index
      %89 = arith.index_cast %6 : i32 to index
      %c0_67 = arith.constant 0 : index
      %c0_68 = arith.constant 0 : index
      %90 = vector.load %arg2[%c10, %89, %c0_67, %c0_68] : memref<25x24x24x128xf32, #tpu.memory_space<vmem>>, vector<1x4x24x128xf32>
      %91 = vector.shape_cast %90 : vector<1x4x24x128xf32> to vector<4x24x128xf32>
      %92 = arith.mulf %88, %91 : vector<4x24x128xf32>
      %93 = arith.addf %85, %92 : vector<4x24x128xf32>
      %c2_i32_69 = arith.constant 2 : i32
      %94 = arith.addi %6, %c2_i32_69 : i32
      %95 = arith.index_cast %94 : i32 to index
      %c1_70 = arith.constant 1 : index
      %c0_71 = arith.constant 0 : index
      %96 = vector.load %arg1[%95, %c1_70, %c0_71] : memref<28x28x128xf32, #tpu.memory_space<vmem>>, vector<4x24x128xf32>
      %c11 = arith.constant 11 : index
      %97 = arith.index_cast %6 : i32 to index
      %c0_72 = arith.constant 0 : index
      %c0_73 = arith.constant 0 : index
      %98 = vector.load %arg2[%c11, %97, %c0_72, %c0_73] : memref<25x24x24x128xf32, #tpu.memory_space<vmem>>, vector<1x4x24x128xf32>
      %99 = vector.shape_cast %98 : vector<1x4x24x128xf32> to vector<4x24x128xf32>
      %100 = arith.mulf %96, %99 : vector<4x24x128xf32>
      %101 = arith.addf %93, %100 : vector<4x24x128xf32>
      %c2_i32_74 = arith.constant 2 : i32
      %102 = arith.addi %6, %c2_i32_74 : i32
      %103 = arith.index_cast %102 : i32 to index
      %c2_75 = arith.constant 2 : index
      %c0_76 = arith.constant 0 : index
      %104 = vector.load %arg1[%103, %c2_75, %c0_76] : memref<28x28x128xf32, #tpu.memory_space<vmem>>, vector<4x24x128xf32>
      %c12 = arith.constant 12 : index
      %105 = arith.index_cast %6 : i32 to index
      %c0_77 = arith.constant 0 : index
      %c0_78 = arith.constant 0 : index
      %106 = vector.load %arg2[%c12, %105, %c0_77, %c0_78] : memref<25x24x24x128xf32, #tpu.memory_space<vmem>>, vector<1x4x24x128xf32>
      %107 = vector.shape_cast %106 : vector<1x4x24x128xf32> to vector<4x24x128xf32>
      %108 = arith.mulf %104, %107 : vector<4x24x128xf32>
      %109 = arith.addf %101, %108 : vector<4x24x128xf32>
      %c2_i32_79 = arith.constant 2 : i32
      %110 = arith.addi %6, %c2_i32_79 : i32
      %111 = arith.index_cast %110 : i32 to index
      %c3_80 = arith.constant 3 : index
      %c0_81 = arith.constant 0 : index
      %112 = vector.load %arg1[%111, %c3_80, %c0_81] : memref<28x28x128xf32, #tpu.memory_space<vmem>>, vector<4x24x128xf32>
      %c13 = arith.constant 13 : index
      %113 = arith.index_cast %6 : i32 to index
      %c0_82 = arith.constant 0 : index
      %c0_83 = arith.constant 0 : index
      %114 = vector.load %arg2[%c13, %113, %c0_82, %c0_83] : memref<25x24x24x128xf32, #tpu.memory_space<vmem>>, vector<1x4x24x128xf32>
      %115 = vector.shape_cast %114 : vector<1x4x24x128xf32> to vector<4x24x128xf32>
      %116 = arith.mulf %112, %115 : vector<4x24x128xf32>
      %117 = arith.addf %109, %116 : vector<4x24x128xf32>
      %c2_i32_84 = arith.constant 2 : i32
      %118 = arith.addi %6, %c2_i32_84 : i32
      %119 = arith.index_cast %118 : i32 to index
      %c4_85 = arith.constant 4 : index
      %c0_86 = arith.constant 0 : index
      %120 = vector.load %arg1[%119, %c4_85, %c0_86] : memref<28x28x128xf32, #tpu.memory_space<vmem>>, vector<4x24x128xf32>
      %c14 = arith.constant 14 : index
      %121 = arith.index_cast %6 : i32 to index
      %c0_87 = arith.constant 0 : index
      %c0_88 = arith.constant 0 : index
      %122 = vector.load %arg2[%c14, %121, %c0_87, %c0_88] : memref<25x24x24x128xf32, #tpu.memory_space<vmem>>, vector<1x4x24x128xf32>
      %123 = vector.shape_cast %122 : vector<1x4x24x128xf32> to vector<4x24x128xf32>
      %124 = arith.mulf %120, %123 : vector<4x24x128xf32>
      %125 = arith.addf %117, %124 : vector<4x24x128xf32>
      %c3_i32_89 = arith.constant 3 : i32
      %126 = arith.addi %6, %c3_i32_89 : i32
      %127 = arith.index_cast %126 : i32 to index
      %c0_90 = arith.constant 0 : index
      %c0_91 = arith.constant 0 : index
      %128 = vector.load %arg1[%127, %c0_90, %c0_91] : memref<28x28x128xf32, #tpu.memory_space<vmem>>, vector<4x24x128xf32>
      %c15 = arith.constant 15 : index
      %129 = arith.index_cast %6 : i32 to index
      %c0_92 = arith.constant 0 : index
      %c0_93 = arith.constant 0 : index
      %130 = vector.load %arg2[%c15, %129, %c0_92, %c0_93] : memref<25x24x24x128xf32, #tpu.memory_space<vmem>>, vector<1x4x24x128xf32>
      %131 = vector.shape_cast %130 : vector<1x4x24x128xf32> to vector<4x24x128xf32>
      %132 = arith.mulf %128, %131 : vector<4x24x128xf32>
      %133 = arith.addf %125, %132 : vector<4x24x128xf32>
      %c3_i32_94 = arith.constant 3 : i32
      %134 = arith.addi %6, %c3_i32_94 : i32
      %135 = arith.index_cast %134 : i32 to index
      %c1_95 = arith.constant 1 : index
      %c0_96 = arith.constant 0 : index
      %136 = vector.load %arg1[%135, %c1_95, %c0_96] : memref<28x28x128xf32, #tpu.memory_space<vmem>>, vector<4x24x128xf32>
      %c16 = arith.constant 16 : index
      %137 = arith.index_cast %6 : i32 to index
      %c0_97 = arith.constant 0 : index
      %c0_98 = arith.constant 0 : index
      %138 = vector.load %arg2[%c16, %137, %c0_97, %c0_98] : memref<25x24x24x128xf32, #tpu.memory_space<vmem>>, vector<1x4x24x128xf32>
      %139 = vector.shape_cast %138 : vector<1x4x24x128xf32> to vector<4x24x128xf32>
      %140 = arith.mulf %136, %139 : vector<4x24x128xf32>
      %141 = arith.addf %133, %140 : vector<4x24x128xf32>
      %c3_i32_99 = arith.constant 3 : i32
      %142 = arith.addi %6, %c3_i32_99 : i32
      %143 = arith.index_cast %142 : i32 to index
      %c2_100 = arith.constant 2 : index
      %c0_101 = arith.constant 0 : index
      %144 = vector.load %arg1[%143, %c2_100, %c0_101] : memref<28x28x128xf32, #tpu.memory_space<vmem>>, vector<4x24x128xf32>
      %c17 = arith.constant 17 : index
      %145 = arith.index_cast %6 : i32 to index
      %c0_102 = arith.constant 0 : index
      %c0_103 = arith.constant 0 : index
      %146 = vector.load %arg2[%c17, %145, %c0_102, %c0_103] : memref<25x24x24x128xf32, #tpu.memory_space<vmem>>, vector<1x4x24x128xf32>
      %147 = vector.shape_cast %146 : vector<1x4x24x128xf32> to vector<4x24x128xf32>
      %148 = arith.mulf %144, %147 : vector<4x24x128xf32>
      %149 = arith.addf %141, %148 : vector<4x24x128xf32>
      %c3_i32_104 = arith.constant 3 : i32
      %150 = arith.addi %6, %c3_i32_104 : i32
      %151 = arith.index_cast %150 : i32 to index
      %c3_105 = arith.constant 3 : index
      %c0_106 = arith.constant 0 : index
      %152 = vector.load %arg1[%151, %c3_105, %c0_106] : memref<28x28x128xf32, #tpu.memory_space<vmem>>, vector<4x24x128xf32>
      %c18 = arith.constant 18 : index
      %153 = arith.index_cast %6 : i32 to index
      %c0_107 = arith.constant 0 : index
      %c0_108 = arith.constant 0 : index
      %154 = vector.load %arg2[%c18, %153, %c0_107, %c0_108] : memref<25x24x24x128xf32, #tpu.memory_space<vmem>>, vector<1x4x24x128xf32>
      %155 = vector.shape_cast %154 : vector<1x4x24x128xf32> to vector<4x24x128xf32>
      %156 = arith.mulf %152, %155 : vector<4x24x128xf32>
      %157 = arith.addf %149, %156 : vector<4x24x128xf32>
      %c3_i32_109 = arith.constant 3 : i32
      %158 = arith.addi %6, %c3_i32_109 : i32
      %159 = arith.index_cast %158 : i32 to index
      %c4_110 = arith.constant 4 : index
      %c0_111 = arith.constant 0 : index
      %160 = vector.load %arg1[%159, %c4_110, %c0_111] : memref<28x28x128xf32, #tpu.memory_space<vmem>>, vector<4x24x128xf32>
      %c19 = arith.constant 19 : index
      %161 = arith.index_cast %6 : i32 to index
      %c0_112 = arith.constant 0 : index
      %c0_113 = arith.constant 0 : index
      %162 = vector.load %arg2[%c19, %161, %c0_112, %c0_113] : memref<25x24x24x128xf32, #tpu.memory_space<vmem>>, vector<1x4x24x128xf32>
      %163 = vector.shape_cast %162 : vector<1x4x24x128xf32> to vector<4x24x128xf32>
      %164 = arith.mulf %160, %163 : vector<4x24x128xf32>
      %165 = arith.addf %157, %164 : vector<4x24x128xf32>
      %c4_i32_114 = arith.constant 4 : i32
      %166 = arith.addi %6, %c4_i32_114 : i32
      %167 = arith.index_cast %166 : i32 to index
      %c0_115 = arith.constant 0 : index
      %c0_116 = arith.constant 0 : index
      %168 = vector.load %arg1[%167, %c0_115, %c0_116] : memref<28x28x128xf32, #tpu.memory_space<vmem>>, vector<4x24x128xf32>
      %c20 = arith.constant 20 : index
      %169 = arith.index_cast %6 : i32 to index
      %c0_117 = arith.constant 0 : index
      %c0_118 = arith.constant 0 : index
      %170 = vector.load %arg2[%c20, %169, %c0_117, %c0_118] : memref<25x24x24x128xf32, #tpu.memory_space<vmem>>, vector<1x4x24x128xf32>
      %171 = vector.shape_cast %170 : vector<1x4x24x128xf32> to vector<4x24x128xf32>
      %172 = arith.mulf %168, %171 : vector<4x24x128xf32>
      %173 = arith.addf %165, %172 : vector<4x24x128xf32>
      %c4_i32_119 = arith.constant 4 : i32
      %174 = arith.addi %6, %c4_i32_119 : i32
      %175 = arith.index_cast %174 : i32 to index
      %c1_120 = arith.constant 1 : index
      %c0_121 = arith.constant 0 : index
      %176 = vector.load %arg1[%175, %c1_120, %c0_121] : memref<28x28x128xf32, #tpu.memory_space<vmem>>, vector<4x24x128xf32>
      %c21 = arith.constant 21 : index
      %177 = arith.index_cast %6 : i32 to index
      %c0_122 = arith.constant 0 : index
      %c0_123 = arith.constant 0 : index
      %178 = vector.load %arg2[%c21, %177, %c0_122, %c0_123] : memref<25x24x24x128xf32, #tpu.memory_space<vmem>>, vector<1x4x24x128xf32>
      %179 = vector.shape_cast %178 : vector<1x4x24x128xf32> to vector<4x24x128xf32>
      %180 = arith.mulf %176, %179 : vector<4x24x128xf32>
      %181 = arith.addf %173, %180 : vector<4x24x128xf32>
      %c4_i32_124 = arith.constant 4 : i32
      %182 = arith.addi %6, %c4_i32_124 : i32
      %183 = arith.index_cast %182 : i32 to index
      %c2_125 = arith.constant 2 : index
      %c0_126 = arith.constant 0 : index
      %184 = vector.load %arg1[%183, %c2_125, %c0_126] : memref<28x28x128xf32, #tpu.memory_space<vmem>>, vector<4x24x128xf32>
      %c22 = arith.constant 22 : index
      %185 = arith.index_cast %6 : i32 to index
      %c0_127 = arith.constant 0 : index
      %c0_128 = arith.constant 0 : index
      %186 = vector.load %arg2[%c22, %185, %c0_127, %c0_128] : memref<25x24x24x128xf32, #tpu.memory_space<vmem>>, vector<1x4x24x128xf32>
      %187 = vector.shape_cast %186 : vector<1x4x24x128xf32> to vector<4x24x128xf32>
      %188 = arith.mulf %184, %187 : vector<4x24x128xf32>
      %189 = arith.addf %181, %188 : vector<4x24x128xf32>
      %c4_i32_129 = arith.constant 4 : i32
      %190 = arith.addi %6, %c4_i32_129 : i32
      %191 = arith.index_cast %190 : i32 to index
      %c3_130 = arith.constant 3 : index
      %c0_131 = arith.constant 0 : index
      %192 = vector.load %arg1[%191, %c3_130, %c0_131] : memref<28x28x128xf32, #tpu.memory_space<vmem>>, vector<4x24x128xf32>
      %c23 = arith.constant 23 : index
      %193 = arith.index_cast %6 : i32 to index
      %c0_132 = arith.constant 0 : index
      %c0_133 = arith.constant 0 : index
      %194 = vector.load %arg2[%c23, %193, %c0_132, %c0_133] : memref<25x24x24x128xf32, #tpu.memory_space<vmem>>, vector<1x4x24x128xf32>
      %195 = vector.shape_cast %194 : vector<1x4x24x128xf32> to vector<4x24x128xf32>
      %196 = arith.mulf %192, %195 : vector<4x24x128xf32>
      %197 = arith.addf %189, %196 : vector<4x24x128xf32>
      %c4_i32_134 = arith.constant 4 : i32
      %198 = arith.addi %6, %c4_i32_134 : i32
      %199 = arith.index_cast %198 : i32 to index
      %c4_135 = arith.constant 4 : index
      %c0_136 = arith.constant 0 : index
      %200 = vector.load %arg1[%199, %c4_135, %c0_136] : memref<28x28x128xf32, #tpu.memory_space<vmem>>, vector<4x24x128xf32>
      %c24 = arith.constant 24 : index
      %201 = arith.index_cast %6 : i32 to index
      %c0_137 = arith.constant 0 : index
      %c0_138 = arith.constant 0 : index
      %202 = vector.load %arg2[%c24, %201, %c0_137, %c0_138] : memref<25x24x24x128xf32, #tpu.memory_space<vmem>>, vector<1x4x24x128xf32>
      %203 = vector.shape_cast %202 : vector<1x4x24x128xf32> to vector<4x24x128xf32>
      %204 = arith.mulf %200, %203 : vector<4x24x128xf32>
      %205 = arith.addf %197, %204 : vector<4x24x128xf32>
      %206 = arith.index_cast %6 : i32 to index
      %c0_139 = arith.constant 0 : index
      %c0_140 = arith.constant 0 : index
      %207 = vector.load %arg8[%206, %c0_139, %c0_140] : memref<24x24x128xf32, #tpu.memory_space<vmem>>, vector<4x24x128xf32>
      tpu.vector_store %arg8[%206, %c0_139, %c0_140], %205 {strides = array<i32>} : memref<24x24x128xf32, #tpu.memory_space<vmem>>, vector<4x24x128xf32>,
    }
    %c6_i32_0 = arith.constant 6 : i32
    %c0_i32_1 = arith.constant 0 : i32
    %c5_i32 = arith.constant 5 : i32
    %1 = arith.addi %c0_i32_1, %c5_i32 : i32
    %c1_i32_2 = arith.constant 1 : i32
    scf.for %arg10 = %c0_i32_1 to %1 step %c1_i32_2  : i32 {
      %c4_i32_14 = arith.constant 4 : i32
      %5 = arith.muli %arg10, %c4_i32_14 : i32
      %6 = tpu.assume_multiple %5, 4 : i32
      %c0_i32_15 = arith.constant 0 : i32
      %7 = arith.addi %6, %c0_i32_15 : i32
      %8 = arith.index_cast %7 : i32 to index
      %c0 = arith.constant 0 : index
      %c0_16 = arith.constant 0 : index
      %9 = vector.load %arg8[%8, %c0, %c0_16] : memref<24x24x128xf32, #tpu.memory_space<vmem>>, vector<4x20x128xf32>
      %c0_17 = arith.constant 0 : index
      %10 = arith.index_cast %6 : i32 to index
      %c0_18 = arith.constant 0 : index
      %c0_19 = arith.constant 0 : index
      %11 = vector.load %arg3[%c0_17, %10, %c0_18, %c0_19] : memref<25x20x20x128xf32, #tpu.memory_space<vmem>>, vector<1x4x20x128xf32>
      %12 = vector.shape_cast %11 : vector<1x4x20x128xf32> to vector<4x20x128xf32>
      %13 = arith.mulf %9, %12 : vector<4x20x128xf32>
      %c0_i32_20 = arith.constant 0 : i32
      %14 = arith.addi %6, %c0_i32_20 : i32
      %15 = arith.index_cast %14 : i32 to index
      %c1 = arith.constant 1 : index
      %c0_21 = arith.constant 0 : index
      %16 = vector.load %arg8[%15, %c1, %c0_21] : memref<24x24x128xf32, #tpu.memory_space<vmem>>, vector<4x20x128xf32>
      %c1_22 = arith.constant 1 : index
      %17 = arith.index_cast %6 : i32 to index
      %c0_23 = arith.constant 0 : index
      %c0_24 = arith.constant 0 : index
      %18 = vector.load %arg3[%c1_22, %17, %c0_23, %c0_24] : memref<25x20x20x128xf32, #tpu.memory_space<vmem>>, vector<1x4x20x128xf32>
      %19 = vector.shape_cast %18 : vector<1x4x20x128xf32> to vector<4x20x128xf32>
      %20 = arith.mulf %16, %19 : vector<4x20x128xf32>
      %21 = arith.addf %13, %20 : vector<4x20x128xf32>
      %c0_i32_25 = arith.constant 0 : i32
      %22 = arith.addi %6, %c0_i32_25 : i32
      %23 = arith.index_cast %22 : i32 to index
      %c2 = arith.constant 2 : index
      %c0_26 = arith.constant 0 : index
      %24 = vector.load %arg8[%23, %c2, %c0_26] : memref<24x24x128xf32, #tpu.memory_space<vmem>>, vector<4x20x128xf32>
      %c2_27 = arith.constant 2 : index
      %25 = arith.index_cast %6 : i32 to index
      %c0_28 = arith.constant 0 : index
      %c0_29 = arith.constant 0 : index
      %26 = vector.load %arg3[%c2_27, %25, %c0_28, %c0_29] : memref<25x20x20x128xf32, #tpu.memory_space<vmem>>, vector<1x4x20x128xf32>
      %27 = vector.shape_cast %26 : vector<1x4x20x128xf32> to vector<4x20x128xf32>
      %28 = arith.mulf %24, %27 : vector<4x20x128xf32>
      %29 = arith.addf %21, %28 : vector<4x20x128xf32>
      %c0_i32_30 = arith.constant 0 : i32
      %30 = arith.addi %6, %c0_i32_30 : i32
      %31 = arith.index_cast %30 : i32 to index
      %c3 = arith.constant 3 : index
      %c0_31 = arith.constant 0 : index
      %32 = vector.load %arg8[%31, %c3, %c0_31] : memref<24x24x128xf32, #tpu.memory_space<vmem>>, vector<4x20x128xf32>
      %c3_32 = arith.constant 3 : index
      %33 = arith.index_cast %6 : i32 to index
      %c0_33 = arith.constant 0 : index
      %c0_34 = arith.constant 0 : index
      %34 = vector.load %arg3[%c3_32, %33, %c0_33, %c0_34] : memref<25x20x20x128xf32, #tpu.memory_space<vmem>>, vector<1x4x20x128xf32>
      %35 = vector.shape_cast %34 : vector<1x4x20x128xf32> to vector<4x20x128xf32>
      %36 = arith.mulf %32, %35 : vector<4x20x128xf32>
      %37 = arith.addf %29, %36 : vector<4x20x128xf32>
      %c0_i32_35 = arith.constant 0 : i32
      %38 = arith.addi %6, %c0_i32_35 : i32
      %39 = arith.index_cast %38 : i32 to index
      %c4 = arith.constant 4 : index
      %c0_36 = arith.constant 0 : index
      %40 = vector.load %arg8[%39, %c4, %c0_36] : memref<24x24x128xf32, #tpu.memory_space<vmem>>, vector<4x20x128xf32>
      %c4_37 = arith.constant 4 : index
      %41 = arith.index_cast %6 : i32 to index
      %c0_38 = arith.constant 0 : index
      %c0_39 = arith.constant 0 : index
      %42 = vector.load %arg3[%c4_37, %41, %c0_38, %c0_39] : memref<25x20x20x128xf32, #tpu.memory_space<vmem>>, vector<1x4x20x128xf32>
      %43 = vector.shape_cast %42 : vector<1x4x20x128xf32> to vector<4x20x128xf32>
      %44 = arith.mulf %40, %43 : vector<4x20x128xf32>
      %45 = arith.addf %37, %44 : vector<4x20x128xf32>
      %c1_i32_40 = arith.constant 1 : i32
      %46 = arith.addi %6, %c1_i32_40 : i32
      %47 = arith.index_cast %46 : i32 to index
      %c0_41 = arith.constant 0 : index
      %c0_42 = arith.constant 0 : index
      %48 = vector.load %arg8[%47, %c0_41, %c0_42] : memref<24x24x128xf32, #tpu.memory_space<vmem>>, vector<4x20x128xf32>
      %c5 = arith.constant 5 : index
      %49 = arith.index_cast %6 : i32 to index
      %c0_43 = arith.constant 0 : index
      %c0_44 = arith.constant 0 : index
      %50 = vector.load %arg3[%c5, %49, %c0_43, %c0_44] : memref<25x20x20x128xf32, #tpu.memory_space<vmem>>, vector<1x4x20x128xf32>
      %51 = vector.shape_cast %50 : vector<1x4x20x128xf32> to vector<4x20x128xf32>
      %52 = arith.mulf %48, %51 : vector<4x20x128xf32>
      %53 = arith.addf %45, %52 : vector<4x20x128xf32>
      %c1_i32_45 = arith.constant 1 : i32
      %54 = arith.addi %6, %c1_i32_45 : i32
      %55 = arith.index_cast %54 : i32 to index
      %c1_46 = arith.constant 1 : index
      %c0_47 = arith.constant 0 : index
      %56 = vector.load %arg8[%55, %c1_46, %c0_47] : memref<24x24x128xf32, #tpu.memory_space<vmem>>, vector<4x20x128xf32>
      %c6 = arith.constant 6 : index
      %57 = arith.index_cast %6 : i32 to index
      %c0_48 = arith.constant 0 : index
      %c0_49 = arith.constant 0 : index
      %58 = vector.load %arg3[%c6, %57, %c0_48, %c0_49] : memref<25x20x20x128xf32, #tpu.memory_space<vmem>>, vector<1x4x20x128xf32>
      %59 = vector.shape_cast %58 : vector<1x4x20x128xf32> to vector<4x20x128xf32>
      %60 = arith.mulf %56, %59 : vector<4x20x128xf32>
      %61 = arith.addf %53, %60 : vector<4x20x128xf32>
      %c1_i32_50 = arith.constant 1 : i32
      %62 = arith.addi %6, %c1_i32_50 : i32
      %63 = arith.index_cast %62 : i32 to index
      %c2_51 = arith.constant 2 : index
      %c0_52 = arith.constant 0 : index
      %64 = vector.load %arg8[%63, %c2_51, %c0_52] : memref<24x24x128xf32, #tpu.memory_space<vmem>>, vector<4x20x128xf32>
      %c7 = arith.constant 7 : index
      %65 = arith.index_cast %6 : i32 to index
      %c0_53 = arith.constant 0 : index
      %c0_54 = arith.constant 0 : index
      %66 = vector.load %arg3[%c7, %65, %c0_53, %c0_54] : memref<25x20x20x128xf32, #tpu.memory_space<vmem>>, vector<1x4x20x128xf32>
      %67 = vector.shape_cast %66 : vector<1x4x20x128xf32> to vector<4x20x128xf32>
      %68 = arith.mulf %64, %67 : vector<4x20x128xf32>
      %69 = arith.addf %61, %68 : vector<4x20x128xf32>
      %c1_i32_55 = arith.constant 1 : i32
      %70 = arith.addi %6, %c1_i32_55 : i32
      %71 = arith.index_cast %70 : i32 to index
      %c3_56 = arith.constant 3 : index
      %c0_57 = arith.constant 0 : index
      %72 = vector.load %arg8[%71, %c3_56, %c0_57] : memref<24x24x128xf32, #tpu.memory_space<vmem>>, vector<4x20x128xf32>
      %c8 = arith.constant 8 : index
      %73 = arith.index_cast %6 : i32 to index
      %c0_58 = arith.constant 0 : index
      %c0_59 = arith.constant 0 : index
      %74 = vector.load %arg3[%c8, %73, %c0_58, %c0_59] : memref<25x20x20x128xf32, #tpu.memory_space<vmem>>, vector<1x4x20x128xf32>
      %75 = vector.shape_cast %74 : vector<1x4x20x128xf32> to vector<4x20x128xf32>
      %76 = arith.mulf %72, %75 : vector<4x20x128xf32>
      %77 = arith.addf %69, %76 : vector<4x20x128xf32>
      %c1_i32_60 = arith.constant 1 : i32
      %78 = arith.addi %6, %c1_i32_60 : i32
      %79 = arith.index_cast %78 : i32 to index
      %c4_61 = arith.constant 4 : index
      %c0_62 = arith.constant 0 : index
      %80 = vector.load %arg8[%79, %c4_61, %c0_62] : memref<24x24x128xf32, #tpu.memory_space<vmem>>, vector<4x20x128xf32>
      %c9 = arith.constant 9 : index
      %81 = arith.index_cast %6 : i32 to index
      %c0_63 = arith.constant 0 : index
      %c0_64 = arith.constant 0 : index
      %82 = vector.load %arg3[%c9, %81, %c0_63, %c0_64] : memref<25x20x20x128xf32, #tpu.memory_space<vmem>>, vector<1x4x20x128xf32>
      %83 = vector.shape_cast %82 : vector<1x4x20x128xf32> to vector<4x20x128xf32>
      %84 = arith.mulf %80, %83 : vector<4x20x128xf32>
      %85 = arith.addf %77, %84 : vector<4x20x128xf32>
      %c2_i32 = arith.constant 2 : i32
      %86 = arith.addi %6, %c2_i32 : i32
      %87 = arith.index_cast %86 : i32 to index
      %c0_65 = arith.constant 0 : index
      %c0_66 = arith.constant 0 : index
      %88 = vector.load %arg8[%87, %c0_65, %c0_66] : memref<24x24x128xf32, #tpu.memory_space<vmem>>, vector<4x20x128xf32>
      %c10 = arith.constant 10 : index
      %89 = arith.index_cast %6 : i32 to index
      %c0_67 = arith.constant 0 : index
      %c0_68 = arith.constant 0 : index
      %90 = vector.load %arg3[%c10, %89, %c0_67, %c0_68] : memref<25x20x20x128xf32, #tpu.memory_space<vmem>>, vector<1x4x20x128xf32>
      %91 = vector.shape_cast %90 : vector<1x4x20x128xf32> to vector<4x20x128xf32>
      %92 = arith.mulf %88, %91 : vector<4x20x128xf32>
      %93 = arith.addf %85, %92 : vector<4x20x128xf32>
      %c2_i32_69 = arith.constant 2 : i32
      %94 = arith.addi %6, %c2_i32_69 : i32
      %95 = arith.index_cast %94 : i32 to index
      %c1_70 = arith.constant 1 : index
      %c0_71 = arith.constant 0 : index
      %96 = vector.load %arg8[%95, %c1_70, %c0_71] : memref<24x24x128xf32, #tpu.memory_space<vmem>>, vector<4x20x128xf32>
      %c11 = arith.constant 11 : index
      %97 = arith.index_cast %6 : i32 to index
      %c0_72 = arith.constant 0 : index
      %c0_73 = arith.constant 0 : index
      %98 = vector.load %arg3[%c11, %97, %c0_72, %c0_73] : memref<25x20x20x128xf32, #tpu.memory_space<vmem>>, vector<1x4x20x128xf32>
      %99 = vector.shape_cast %98 : vector<1x4x20x128xf32> to vector<4x20x128xf32>
      %100 = arith.mulf %96, %99 : vector<4x20x128xf32>
      %101 = arith.addf %93, %100 : vector<4x20x128xf32>
      %c2_i32_74 = arith.constant 2 : i32
      %102 = arith.addi %6, %c2_i32_74 : i32
      %103 = arith.index_cast %102 : i32 to index
      %c2_75 = arith.constant 2 : index
      %c0_76 = arith.constant 0 : index
      %104 = vector.load %arg8[%103, %c2_75, %c0_76] : memref<24x24x128xf32, #tpu.memory_space<vmem>>, vector<4x20x128xf32>
      %c12 = arith.constant 12 : index
      %105 = arith.index_cast %6 : i32 to index
      %c0_77 = arith.constant 0 : index
      %c0_78 = arith.constant 0 : index
      %106 = vector.load %arg3[%c12, %105, %c0_77, %c0_78] : memref<25x20x20x128xf32, #tpu.memory_space<vmem>>, vector<1x4x20x128xf32>
      %107 = vector.shape_cast %106 : vector<1x4x20x128xf32> to vector<4x20x128xf32>
      %108 = arith.mulf %104, %107 : vector<4x20x128xf32>
      %109 = arith.addf %101, %108 : vector<4x20x128xf32>
      %c2_i32_79 = arith.constant 2 : i32
      %110 = arith.addi %6, %c2_i32_79 : i32
      %111 = arith.index_cast %110 : i32 to index
      %c3_80 = arith.constant 3 : index
      %c0_81 = arith.constant 0 : index
      %112 = vector.load %arg8[%111, %c3_80, %c0_81] : memref<24x24x128xf32, #tpu.memory_space<vmem>>, vector<4x20x128xf32>
      %c13 = arith.constant 13 : index
      %113 = arith.index_cast %6 : i32 to index
      %c0_82 = arith.constant 0 : index
      %c0_83 = arith.constant 0 : index
      %114 = vector.load %arg3[%c13, %113, %c0_82, %c0_83] : memref<25x20x20x128xf32, #tpu.memory_space<vmem>>, vector<1x4x20x128xf32>
      %115 = vector.shape_cast %114 : vector<1x4x20x128xf32> to vector<4x20x128xf32>
      %116 = arith.mulf %112, %115 : vector<4x20x128xf32>
      %117 = arith.addf %109, %116 : vector<4x20x128xf32>
      %c2_i32_84 = arith.constant 2 : i32
      %118 = arith.addi %6, %c2_i32_84 : i32
      %119 = arith.index_cast %118 : i32 to index
      %c4_85 = arith.constant 4 : index
      %c0_86 = arith.constant 0 : index
      %120 = vector.load %arg8[%119, %c4_85, %c0_86] : memref<24x24x128xf32, #tpu.memory_space<vmem>>, vector<4x20x128xf32>
      %c14 = arith.constant 14 : index
      %121 = arith.index_cast %6 : i32 to index
      %c0_87 = arith.constant 0 : index
      %c0_88 = arith.constant 0 : index
      %122 = vector.load %arg3[%c14, %121, %c0_87, %c0_88] : memref<25x20x20x128xf32, #tpu.memory_space<vmem>>, vector<1x4x20x128xf32>
      %123 = vector.shape_cast %122 : vector<1x4x20x128xf32> to vector<4x20x128xf32>
      %124 = arith.mulf %120, %123 : vector<4x20x128xf32>
      %125 = arith.addf %117, %124 : vector<4x20x128xf32>
      %c3_i32_89 = arith.constant 3 : i32
      %126 = arith.addi %6, %c3_i32_89 : i32
      %127 = arith.index_cast %126 : i32 to index
      %c0_90 = arith.constant 0 : index
      %c0_91 = arith.constant 0 : index
      %128 = vector.load %arg8[%127, %c0_90, %c0_91] : memref<24x24x128xf32, #tpu.memory_space<vmem>>, vector<4x20x128xf32>
      %c15 = arith.constant 15 : index
      %129 = arith.index_cast %6 : i32 to index
      %c0_92 = arith.constant 0 : index
      %c0_93 = arith.constant 0 : index
      %130 = vector.load %arg3[%c15, %129, %c0_92, %c0_93] : memref<25x20x20x128xf32, #tpu.memory_space<vmem>>, vector<1x4x20x128xf32>
      %131 = vector.shape_cast %130 : vector<1x4x20x128xf32> to vector<4x20x128xf32>
      %132 = arith.mulf %128, %131 : vector<4x20x128xf32>
      %133 = arith.addf %125, %132 : vector<4x20x128xf32>
      %c3_i32_94 = arith.constant 3 : i32
      %134 = arith.addi %6, %c3_i32_94 : i32
      %135 = arith.index_cast %134 : i32 to index
      %c1_95 = arith.constant 1 : index
      %c0_96 = arith.constant 0 : index
      %136 = vector.load %arg8[%135, %c1_95, %c0_96] : memref<24x24x128xf32, #tpu.memory_space<vmem>>, vector<4x20x128xf32>
      %c16 = arith.constant 16 : index
      %137 = arith.index_cast %6 : i32 to index
      %c0_97 = arith.constant 0 : index
      %c0_98 = arith.constant 0 : index
      %138 = vector.load %arg3[%c16, %137, %c0_97, %c0_98] : memref<25x20x20x128xf32, #tpu.memory_space<vmem>>, vector<1x4x20x128xf32>
      %139 = vector.shape_cast %138 : vector<1x4x20x128xf32> to vector<4x20x128xf32>
      %140 = arith.mulf %136, %139 : vector<4x20x128xf32>
      %141 = arith.addf %133, %140 : vector<4x20x128xf32>
      %c3_i32_99 = arith.constant 3 : i32
      %142 = arith.addi %6, %c3_i32_99 : i32
      %143 = arith.index_cast %142 : i32 to index
      %c2_100 = arith.constant 2 : index
      %c0_101 = arith.constant 0 : index
      %144 = vector.load %arg8[%143, %c2_100, %c0_101] : memref<24x24x128xf32, #tpu.memory_space<vmem>>, vector<4x20x128xf32>
      %c17 = arith.constant 17 : index
      %145 = arith.index_cast %6 : i32 to index
      %c0_102 = arith.constant 0 : index
      %c0_103 = arith.constant 0 : index
      %146 = vector.load %arg3[%c17, %145, %c0_102, %c0_103] : memref<25x20x20x128xf32, #tpu.memory_space<vmem>>, vector<1x4x20x128xf32>
      %147 = vector.shape_cast %146 : vector<1x4x20x128xf32> to vector<4x20x128xf32>
      %148 = arith.mulf %144, %147 : vector<4x20x128xf32>
      %149 = arith.addf %141, %148 : vector<4x20x128xf32>
      %c3_i32_104 = arith.constant 3 : i32
      %150 = arith.addi %6, %c3_i32_104 : i32
      %151 = arith.index_cast %150 : i32 to index
      %c3_105 = arith.constant 3 : index
      %c0_106 = arith.constant 0 : index
      %152 = vector.load %arg8[%151, %c3_105, %c0_106] : memref<24x24x128xf32, #tpu.memory_space<vmem>>, vector<4x20x128xf32>
      %c18 = arith.constant 18 : index
      %153 = arith.index_cast %6 : i32 to index
      %c0_107 = arith.constant 0 : index
      %c0_108 = arith.constant 0 : index
      %154 = vector.load %arg3[%c18, %153, %c0_107, %c0_108] : memref<25x20x20x128xf32, #tpu.memory_space<vmem>>, vector<1x4x20x128xf32>
      %155 = vector.shape_cast %154 : vector<1x4x20x128xf32> to vector<4x20x128xf32>
      %156 = arith.mulf %152, %155 : vector<4x20x128xf32>
      %157 = arith.addf %149, %156 : vector<4x20x128xf32>
      %c3_i32_109 = arith.constant 3 : i32
      %158 = arith.addi %6, %c3_i32_109 : i32
      %159 = arith.index_cast %158 : i32 to index
      %c4_110 = arith.constant 4 : index
      %c0_111 = arith.constant 0 : index
      %160 = vector.load %arg8[%159, %c4_110, %c0_111] : memref<24x24x128xf32, #tpu.memory_space<vmem>>, vector<4x20x128xf32>
      %c19 = arith.constant 19 : index
      %161 = arith.index_cast %6 : i32 to index
      %c0_112 = arith.constant 0 : index
      %c0_113 = arith.constant 0 : index
      %162 = vector.load %arg3[%c19, %161, %c0_112, %c0_113] : memref<25x20x20x128xf32, #tpu.memory_space<vmem>>, vector<1x4x20x128xf32>
      %163 = vector.shape_cast %162 : vector<1x4x20x128xf32> to vector<4x20x128xf32>
      %164 = arith.mulf %160, %163 : vector<4x20x128xf32>
      %165 = arith.addf %157, %164 : vector<4x20x128xf32>
      %c4_i32_114 = arith.constant 4 : i32
      %166 = arith.addi %6, %c4_i32_114 : i32
      %167 = arith.index_cast %166 : i32 to index
      %c0_115 = arith.constant 0 : index
      %c0_116 = arith.constant 0 : index
      %168 = vector.load %arg8[%167, %c0_115, %c0_116] : memref<24x24x128xf32, #tpu.memory_space<vmem>>, vector<4x20x128xf32>
      %c20 = arith.constant 20 : index
      %169 = arith.index_cast %6 : i32 to index
      %c0_117 = arith.constant 0 : index
      %c0_118 = arith.constant 0 : index
      %170 = vector.load %arg3[%c20, %169, %c0_117, %c0_118] : memref<25x20x20x128xf32, #tpu.memory_space<vmem>>, vector<1x4x20x128xf32>
      %171 = vector.shape_cast %170 : vector<1x4x20x128xf32> to vector<4x20x128xf32>
      %172 = arith.mulf %168, %171 : vector<4x20x128xf32>
      %173 = arith.addf %165, %172 : vector<4x20x128xf32>
      %c4_i32_119 = arith.constant 4 : i32
      %174 = arith.addi %6, %c4_i32_119 : i32
      %175 = arith.index_cast %174 : i32 to index
      %c1_120 = arith.constant 1 : index
      %c0_121 = arith.constant 0 : index
      %176 = vector.load %arg8[%175, %c1_120, %c0_121] : memref<24x24x128xf32, #tpu.memory_space<vmem>>, vector<4x20x128xf32>
      %c21 = arith.constant 21 : index
      %177 = arith.index_cast %6 : i32 to index
      %c0_122 = arith.constant 0 : index
      %c0_123 = arith.constant 0 : index
      %178 = vector.load %arg3[%c21, %177, %c0_122, %c0_123] : memref<25x20x20x128xf32, #tpu.memory_space<vmem>>, vector<1x4x20x128xf32>
      %179 = vector.shape_cast %178 : vector<1x4x20x128xf32> to vector<4x20x128xf32>
      %180 = arith.mulf %176, %179 : vector<4x20x128xf32>
      %181 = arith.addf %173, %180 : vector<4x20x128xf32>
      %c4_i32_124 = arith.constant 4 : i32
      %182 = arith.addi %6, %c4_i32_124 : i32
      %183 = arith.index_cast %182 : i32 to index
      %c2_125 = arith.constant 2 : index
      %c0_126 = arith.constant 0 : index
      %184 = vector.load %arg8[%183, %c2_125, %c0_126] : memref<24x24x128xf32, #tpu.memory_space<vmem>>, vector<4x20x128xf32>
      %c22 = arith.constant 22 : index
      %185 = arith.index_cast %6 : i32 to index
      %c0_127 = arith.constant 0 : index
      %c0_128 = arith.constant 0 : index
      %186 = vector.load %arg3[%c22, %185, %c0_127, %c0_128] : memref<25x20x20x128xf32, #tpu.memory_space<vmem>>, vector<1x4x20x128xf32>
      %187 = vector.shape_cast %186 : vector<1x4x20x128xf32> to vector<4x20x128xf32>
      %188 = arith.mulf %184, %187 : vector<4x20x128xf32>
      %189 = arith.addf %181, %188 : vector<4x20x128xf32>
      %c4_i32_129 = arith.constant 4 : i32
      %190 = arith.addi %6, %c4_i32_129 : i32
      %191 = arith.index_cast %190 : i32 to index
      %c3_130 = arith.constant 3 : index
      %c0_131 = arith.constant 0 : index
      %192 = vector.load %arg8[%191, %c3_130, %c0_131] : memref<24x24x128xf32, #tpu.memory_space<vmem>>, vector<4x20x128xf32>
      %c23 = arith.constant 23 : index
      %193 = arith.index_cast %6 : i32 to index
      %c0_132 = arith.constant 0 : index
      %c0_133 = arith.constant 0 : index
      %194 = vector.load %arg3[%c23, %193, %c0_132, %c0_133] : memref<25x20x20x128xf32, #tpu.memory_space<vmem>>, vector<1x4x20x128xf32>
      %195 = vector.shape_cast %194 : vector<1x4x20x128xf32> to vector<4x20x128xf32>
      %196 = arith.mulf %192, %195 : vector<4x20x128xf32>
      %197 = arith.addf %189, %196 : vector<4x20x128xf32>
      %c4_i32_134 = arith.constant 4 : i32
      %198 = arith.addi %6, %c4_i32_134 : i32
      %199 = arith.index_cast %198 : i32 to index
      %c4_135 = arith.constant 4 : index
      %c0_136 = arith.constant 0 : index
      %200 = vector.load %arg8[%199, %c4_135, %c0_136] : memref<24x24x128xf32, #tpu.memory_space<vmem>>, vector<4x20x128xf32>
      %c24 = arith.constant 24 : index
      %201 = arith.index_cast %6 : i32 to index
      %c0_137 = arith.constant 0 : index
      %c0_138 = arith.constant 0 : index
      %202 = vector.load %arg3[%c24, %201, %c0_137, %c0_138] : memref<25x20x20x128xf32, #tpu.memory_space<vmem>>, vector<1x4x20x128xf32>
      %203 = vector.shape_cast %202 : vector<1x4x20x128xf32> to vector<4x20x128xf32>
      %204 = arith.mulf %200, %203 : vector<4x20x128xf32>
      %205 = arith.addf %197, %204 : vector<4x20x128xf32>
      %206 = arith.index_cast %6 : i32 to index
      %c0_139 = arith.constant 0 : index
      %c0_140 = arith.constant 0 : index
      %207 = vector.load %arg9[%206, %c0_139, %c0_140] : memref<20x20x128xf32, #tpu.memory_space<vmem>>, vector<4x20x128xf32>
      tpu.vector_store %arg9[%206, %c0_139, %c0_140], %205 {strides = array<i32>} : memref<20x20x128xf32, #tpu.memory_space<vmem>>, vector<4x20x128xf32>,
    }
    %c5_i32_3 = arith.constant 5 : i32
    %c0_i32_4 = arith.constant 0 : i32
    %c4_i32 = arith.constant 4 : i32
    %2 = arith.addi %c0_i32_4, %c4_i32 : i32
    %c1_i32_5 = arith.constant 1 : i32
    scf.for %arg10 = %c0_i32_4 to %2 step %c1_i32_5  : i32 {
      %c4_i32_14 = arith.constant 4 : i32
      %5 = arith.muli %arg10, %c4_i32_14 : i32
      %6 = tpu.assume_multiple %5, 4 : i32
      %c0_i32_15 = arith.constant 0 : i32
      %7 = arith.addi %6, %c0_i32_15 : i32
      %8 = arith.index_cast %7 : i32 to index
      %c0 = arith.constant 0 : index
      %c0_16 = arith.constant 0 : index
      %9 = vector.load %arg9[%8, %c0, %c0_16] : memref<20x20x128xf32, #tpu.memory_space<vmem>>, vector<4x16x128xf32>
      %c0_17 = arith.constant 0 : index
      %10 = arith.index_cast %6 : i32 to index
      %c0_18 = arith.constant 0 : index
      %c0_19 = arith.constant 0 : index
      %11 = vector.load %arg4[%c0_17, %10, %c0_18, %c0_19] : memref<25x16x16x128xf32, #tpu.memory_space<vmem>>, vector<1x4x16x128xf32>
      %12 = vector.shape_cast %11 : vector<1x4x16x128xf32> to vector<4x16x128xf32>
      %13 = arith.mulf %9, %12 : vector<4x16x128xf32>
      %c0_i32_20 = arith.constant 0 : i32
      %14 = arith.addi %6, %c0_i32_20 : i32
      %15 = arith.index_cast %14 : i32 to index
      %c1 = arith.constant 1 : index
      %c0_21 = arith.constant 0 : index
      %16 = vector.load %arg9[%15, %c1, %c0_21] : memref<20x20x128xf32, #tpu.memory_space<vmem>>, vector<4x16x128xf32>
      %c1_22 = arith.constant 1 : index
      %17 = arith.index_cast %6 : i32 to index
      %c0_23 = arith.constant 0 : index
      %c0_24 = arith.constant 0 : index
      %18 = vector.load %arg4[%c1_22, %17, %c0_23, %c0_24] : memref<25x16x16x128xf32, #tpu.memory_space<vmem>>, vector<1x4x16x128xf32>
      %19 = vector.shape_cast %18 : vector<1x4x16x128xf32> to vector<4x16x128xf32>
      %20 = arith.mulf %16, %19 : vector<4x16x128xf32>
      %21 = arith.addf %13, %20 : vector<4x16x128xf32>
      %c0_i32_25 = arith.constant 0 : i32
      %22 = arith.addi %6, %c0_i32_25 : i32
      %23 = arith.index_cast %22 : i32 to index
      %c2 = arith.constant 2 : index
      %c0_26 = arith.constant 0 : index
      %24 = vector.load %arg9[%23, %c2, %c0_26] : memref<20x20x128xf32, #tpu.memory_space<vmem>>, vector<4x16x128xf32>
      %c2_27 = arith.constant 2 : index
      %25 = arith.index_cast %6 : i32 to index
      %c0_28 = arith.constant 0 : index
      %c0_29 = arith.constant 0 : index
      %26 = vector.load %arg4[%c2_27, %25, %c0_28, %c0_29] : memref<25x16x16x128xf32, #tpu.memory_space<vmem>>, vector<1x4x16x128xf32>
      %27 = vector.shape_cast %26 : vector<1x4x16x128xf32> to vector<4x16x128xf32>
      %28 = arith.mulf %24, %27 : vector<4x16x128xf32>
      %29 = arith.addf %21, %28 : vector<4x16x128xf32>
      %c0_i32_30 = arith.constant 0 : i32
      %30 = arith.addi %6, %c0_i32_30 : i32
      %31 = arith.index_cast %30 : i32 to index
      %c3 = arith.constant 3 : index
      %c0_31 = arith.constant 0 : index
      %32 = vector.load %arg9[%31, %c3, %c0_31] : memref<20x20x128xf32, #tpu.memory_space<vmem>>, vector<4x16x128xf32>
      %c3_32 = arith.constant 3 : index
      %33 = arith.index_cast %6 : i32 to index
      %c0_33 = arith.constant 0 : index
      %c0_34 = arith.constant 0 : index
      %34 = vector.load %arg4[%c3_32, %33, %c0_33, %c0_34] : memref<25x16x16x128xf32, #tpu.memory_space<vmem>>, vector<1x4x16x128xf32>
      %35 = vector.shape_cast %34 : vector<1x4x16x128xf32> to vector<4x16x128xf32>
      %36 = arith.mulf %32, %35 : vector<4x16x128xf32>
      %37 = arith.addf %29, %36 : vector<4x16x128xf32>
      %c0_i32_35 = arith.constant 0 : i32
      %38 = arith.addi %6, %c0_i32_35 : i32
      %39 = arith.index_cast %38 : i32 to index
      %c4 = arith.constant 4 : index
      %c0_36 = arith.constant 0 : index
      %40 = vector.load %arg9[%39, %c4, %c0_36] : memref<20x20x128xf32, #tpu.memory_space<vmem>>, vector<4x16x128xf32>
      %c4_37 = arith.constant 4 : index
      %41 = arith.index_cast %6 : i32 to index
      %c0_38 = arith.constant 0 : index
      %c0_39 = arith.constant 0 : index
      %42 = vector.load %arg4[%c4_37, %41, %c0_38, %c0_39] : memref<25x16x16x128xf32, #tpu.memory_space<vmem>>, vector<1x4x16x128xf32>
      %43 = vector.shape_cast %42 : vector<1x4x16x128xf32> to vector<4x16x128xf32>
      %44 = arith.mulf %40, %43 : vector<4x16x128xf32>
      %45 = arith.addf %37, %44 : vector<4x16x128xf32>
      %c1_i32_40 = arith.constant 1 : i32
      %46 = arith.addi %6, %c1_i32_40 : i32
      %47 = arith.index_cast %46 : i32 to index
      %c0_41 = arith.constant 0 : index
      %c0_42 = arith.constant 0 : index
      %48 = vector.load %arg9[%47, %c0_41, %c0_42] : memref<20x20x128xf32, #tpu.memory_space<vmem>>, vector<4x16x128xf32>
      %c5 = arith.constant 5 : index
      %49 = arith.index_cast %6 : i32 to index
      %c0_43 = arith.constant 0 : index
      %c0_44 = arith.constant 0 : index
      %50 = vector.load %arg4[%c5, %49, %c0_43, %c0_44] : memref<25x16x16x128xf32, #tpu.memory_space<vmem>>, vector<1x4x16x128xf32>
      %51 = vector.shape_cast %50 : vector<1x4x16x128xf32> to vector<4x16x128xf32>
      %52 = arith.mulf %48, %51 : vector<4x16x128xf32>
      %53 = arith.addf %45, %52 : vector<4x16x128xf32>
      %c1_i32_45 = arith.constant 1 : i32
      %54 = arith.addi %6, %c1_i32_45 : i32
      %55 = arith.index_cast %54 : i32 to index
      %c1_46 = arith.constant 1 : index
      %c0_47 = arith.constant 0 : index
      %56 = vector.load %arg9[%55, %c1_46, %c0_47] : memref<20x20x128xf32, #tpu.memory_space<vmem>>, vector<4x16x128xf32>
      %c6 = arith.constant 6 : index
      %57 = arith.index_cast %6 : i32 to index
      %c0_48 = arith.constant 0 : index
      %c0_49 = arith.constant 0 : index
      %58 = vector.load %arg4[%c6, %57, %c0_48, %c0_49] : memref<25x16x16x128xf32, #tpu.memory_space<vmem>>, vector<1x4x16x128xf32>
      %59 = vector.shape_cast %58 : vector<1x4x16x128xf32> to vector<4x16x128xf32>
      %60 = arith.mulf %56, %59 : vector<4x16x128xf32>
      %61 = arith.addf %53, %60 : vector<4x16x128xf32>
      %c1_i32_50 = arith.constant 1 : i32
      %62 = arith.addi %6, %c1_i32_50 : i32
      %63 = arith.index_cast %62 : i32 to index
      %c2_51 = arith.constant 2 : index
      %c0_52 = arith.constant 0 : index
      %64 = vector.load %arg9[%63, %c2_51, %c0_52] : memref<20x20x128xf32, #tpu.memory_space<vmem>>, vector<4x16x128xf32>
      %c7 = arith.constant 7 : index
      %65 = arith.index_cast %6 : i32 to index
      %c0_53 = arith.constant 0 : index
      %c0_54 = arith.constant 0 : index
      %66 = vector.load %arg4[%c7, %65, %c0_53, %c0_54] : memref<25x16x16x128xf32, #tpu.memory_space<vmem>>, vector<1x4x16x128xf32>
      %67 = vector.shape_cast %66 : vector<1x4x16x128xf32> to vector<4x16x128xf32>
      %68 = arith.mulf %64, %67 : vector<4x16x128xf32>
      %69 = arith.addf %61, %68 : vector<4x16x128xf32>
      %c1_i32_55 = arith.constant 1 : i32
      %70 = arith.addi %6, %c1_i32_55 : i32
      %71 = arith.index_cast %70 : i32 to index
      %c3_56 = arith.constant 3 : index
      %c0_57 = arith.constant 0 : index
      %72 = vector.load %arg9[%71, %c3_56, %c0_57] : memref<20x20x128xf32, #tpu.memory_space<vmem>>, vector<4x16x128xf32>
      %c8 = arith.constant 8 : index
      %73 = arith.index_cast %6 : i32 to index
      %c0_58 = arith.constant 0 : index
      %c0_59 = arith.constant 0 : index
      %74 = vector.load %arg4[%c8, %73, %c0_58, %c0_59] : memref<25x16x16x128xf32, #tpu.memory_space<vmem>>, vector<1x4x16x128xf32>
      %75 = vector.shape_cast %74 : vector<1x4x16x128xf32> to vector<4x16x128xf32>
      %76 = arith.mulf %72, %75 : vector<4x16x128xf32>
      %77 = arith.addf %69, %76 : vector<4x16x128xf32>
      %c1_i32_60 = arith.constant 1 : i32
      %78 = arith.addi %6, %c1_i32_60 : i32
      %79 = arith.index_cast %78 : i32 to index
      %c4_61 = arith.constant 4 : index
      %c0_62 = arith.constant 0 : index
      %80 = vector.load %arg9[%79, %c4_61, %c0_62] : memref<20x20x128xf32, #tpu.memory_space<vmem>>, vector<4x16x128xf32>
      %c9 = arith.constant 9 : index
      %81 = arith.index_cast %6 : i32 to index
      %c0_63 = arith.constant 0 : index
      %c0_64 = arith.constant 0 : index
      %82 = vector.load %arg4[%c9, %81, %c0_63, %c0_64] : memref<25x16x16x128xf32, #tpu.memory_space<vmem>>, vector<1x4x16x128xf32>
      %83 = vector.shape_cast %82 : vector<1x4x16x128xf32> to vector<4x16x128xf32>
      %84 = arith.mulf %80, %83 : vector<4x16x128xf32>
      %85 = arith.addf %77, %84 : vector<4x16x128xf32>
      %c2_i32 = arith.constant 2 : i32
      %86 = arith.addi %6, %c2_i32 : i32
      %87 = arith.index_cast %86 : i32 to index
      %c0_65 = arith.constant 0 : index
      %c0_66 = arith.constant 0 : index
      %88 = vector.load %arg9[%87, %c0_65, %c0_66] : memref<20x20x128xf32, #tpu.memory_space<vmem>>, vector<4x16x128xf32>
      %c10 = arith.constant 10 : index
      %89 = arith.index_cast %6 : i32 to index
      %c0_67 = arith.constant 0 : index
      %c0_68 = arith.constant 0 : index
      %90 = vector.load %arg4[%c10, %89, %c0_67, %c0_68] : memref<25x16x16x128xf32, #tpu.memory_space<vmem>>, vector<1x4x16x128xf32>
      %91 = vector.shape_cast %90 : vector<1x4x16x128xf32> to vector<4x16x128xf32>
      %92 = arith.mulf %88, %91 : vector<4x16x128xf32>
      %93 = arith.addf %85, %92 : vector<4x16x128xf32>
      %c2_i32_69 = arith.constant 2 : i32
      %94 = arith.addi %6, %c2_i32_69 : i32
      %95 = arith.index_cast %94 : i32 to index
      %c1_70 = arith.constant 1 : index
      %c0_71 = arith.constant 0 : index
      %96 = vector.load %arg9[%95, %c1_70, %c0_71] : memref<20x20x128xf32, #tpu.memory_space<vmem>>, vector<4x16x128xf32>
      %c11 = arith.constant 11 : index
      %97 = arith.index_cast %6 : i32 to index
      %c0_72 = arith.constant 0 : index
      %c0_73 = arith.constant 0 : index
      %98 = vector.load %arg4[%c11, %97, %c0_72, %c0_73] : memref<25x16x16x128xf32, #tpu.memory_space<vmem>>, vector<1x4x16x128xf32>
      %99 = vector.shape_cast %98 : vector<1x4x16x128xf32> to vector<4x16x128xf32>
      %100 = arith.mulf %96, %99 : vector<4x16x128xf32>
      %101 = arith.addf %93, %100 : vector<4x16x128xf32>
      %c2_i32_74 = arith.constant 2 : i32
      %102 = arith.addi %6, %c2_i32_74 : i32
      %103 = arith.index_cast %102 : i32 to index
      %c2_75 = arith.constant 2 : index
      %c0_76 = arith.constant 0 : index
      %104 = vector.load %arg9[%103, %c2_75, %c0_76] : memref<20x20x128xf32, #tpu.memory_space<vmem>>, vector<4x16x128xf32>
      %c12 = arith.constant 12 : index
      %105 = arith.index_cast %6 : i32 to index
      %c0_77 = arith.constant 0 : index
      %c0_78 = arith.constant 0 : index
      %106 = vector.load %arg4[%c12, %105, %c0_77, %c0_78] : memref<25x16x16x128xf32, #tpu.memory_space<vmem>>, vector<1x4x16x128xf32>
      %107 = vector.shape_cast %106 : vector<1x4x16x128xf32> to vector<4x16x128xf32>
      %108 = arith.mulf %104, %107 : vector<4x16x128xf32>
      %109 = arith.addf %101, %108 : vector<4x16x128xf32>
      %c2_i32_79 = arith.constant 2 : i32
      %110 = arith.addi %6, %c2_i32_79 : i32
      %111 = arith.index_cast %110 : i32 to index
      %c3_80 = arith.constant 3 : index
      %c0_81 = arith.constant 0 : index
      %112 = vector.load %arg9[%111, %c3_80, %c0_81] : memref<20x20x128xf32, #tpu.memory_space<vmem>>, vector<4x16x128xf32>
      %c13 = arith.constant 13 : index
      %113 = arith.index_cast %6 : i32 to index
      %c0_82 = arith.constant 0 : index
      %c0_83 = arith.constant 0 : index
      %114 = vector.load %arg4[%c13, %113, %c0_82, %c0_83] : memref<25x16x16x128xf32, #tpu.memory_space<vmem>>, vector<1x4x16x128xf32>
      %115 = vector.shape_cast %114 : vector<1x4x16x128xf32> to vector<4x16x128xf32>
      %116 = arith.mulf %112, %115 : vector<4x16x128xf32>
      %117 = arith.addf %109, %116 : vector<4x16x128xf32>
      %c2_i32_84 = arith.constant 2 : i32
      %118 = arith.addi %6, %c2_i32_84 : i32
      %119 = arith.index_cast %118 : i32 to index
      %c4_85 = arith.constant 4 : index
      %c0_86 = arith.constant 0 : index
      %120 = vector.load %arg9[%119, %c4_85, %c0_86] : memref<20x20x128xf32, #tpu.memory_space<vmem>>, vector<4x16x128xf32>
      %c14 = arith.constant 14 : index
      %121 = arith.index_cast %6 : i32 to index
      %c0_87 = arith.constant 0 : index
      %c0_88 = arith.constant 0 : index
      %122 = vector.load %arg4[%c14, %121, %c0_87, %c0_88] : memref<25x16x16x128xf32, #tpu.memory_space<vmem>>, vector<1x4x16x128xf32>
      %123 = vector.shape_cast %122 : vector<1x4x16x128xf32> to vector<4x16x128xf32>
      %124 = arith.mulf %120, %123 : vector<4x16x128xf32>
      %125 = arith.addf %117, %124 : vector<4x16x128xf32>
      %c3_i32_89 = arith.constant 3 : i32
      %126 = arith.addi %6, %c3_i32_89 : i32
      %127 = arith.index_cast %126 : i32 to index
      %c0_90 = arith.constant 0 : index
      %c0_91 = arith.constant 0 : index
      %128 = vector.load %arg9[%127, %c0_90, %c0_91] : memref<20x20x128xf32, #tpu.memory_space<vmem>>, vector<4x16x128xf32>
      %c15 = arith.constant 15 : index
      %129 = arith.index_cast %6 : i32 to index
      %c0_92 = arith.constant 0 : index
      %c0_93 = arith.constant 0 : index
      %130 = vector.load %arg4[%c15, %129, %c0_92, %c0_93] : memref<25x16x16x128xf32, #tpu.memory_space<vmem>>, vector<1x4x16x128xf32>
      %131 = vector.shape_cast %130 : vector<1x4x16x128xf32> to vector<4x16x128xf32>
      %132 = arith.mulf %128, %131 : vector<4x16x128xf32>
      %133 = arith.addf %125, %132 : vector<4x16x128xf32>
      %c3_i32_94 = arith.constant 3 : i32
      %134 = arith.addi %6, %c3_i32_94 : i32
      %135 = arith.index_cast %134 : i32 to index
      %c1_95 = arith.constant 1 : index
      %c0_96 = arith.constant 0 : index
      %136 = vector.load %arg9[%135, %c1_95, %c0_96] : memref<20x20x128xf32, #tpu.memory_space<vmem>>, vector<4x16x128xf32>
      %c16 = arith.constant 16 : index
      %137 = arith.index_cast %6 : i32 to index
      %c0_97 = arith.constant 0 : index
      %c0_98 = arith.constant 0 : index
      %138 = vector.load %arg4[%c16, %137, %c0_97, %c0_98] : memref<25x16x16x128xf32, #tpu.memory_space<vmem>>, vector<1x4x16x128xf32>
      %139 = vector.shape_cast %138 : vector<1x4x16x128xf32> to vector<4x16x128xf32>
      %140 = arith.mulf %136, %139 : vector<4x16x128xf32>
      %141 = arith.addf %133, %140 : vector<4x16x128xf32>
      %c3_i32_99 = arith.constant 3 : i32
      %142 = arith.addi %6, %c3_i32_99 : i32
      %143 = arith.index_cast %142 : i32 to index
      %c2_100 = arith.constant 2 : index
      %c0_101 = arith.constant 0 : index
      %144 = vector.load %arg9[%143, %c2_100, %c0_101] : memref<20x20x128xf32, #tpu.memory_space<vmem>>, vector<4x16x128xf32>
      %c17 = arith.constant 17 : index
      %145 = arith.index_cast %6 : i32 to index
      %c0_102 = arith.constant 0 : index
      %c0_103 = arith.constant 0 : index
      %146 = vector.load %arg4[%c17, %145, %c0_102, %c0_103] : memref<25x16x16x128xf32, #tpu.memory_space<vmem>>, vector<1x4x16x128xf32>
      %147 = vector.shape_cast %146 : vector<1x4x16x128xf32> to vector<4x16x128xf32>
      %148 = arith.mulf %144, %147 : vector<4x16x128xf32>
      %149 = arith.addf %141, %148 : vector<4x16x128xf32>
      %c3_i32_104 = arith.constant 3 : i32
      %150 = arith.addi %6, %c3_i32_104 : i32
      %151 = arith.index_cast %150 : i32 to index
      %c3_105 = arith.constant 3 : index
      %c0_106 = arith.constant 0 : index
      %152 = vector.load %arg9[%151, %c3_105, %c0_106] : memref<20x20x128xf32, #tpu.memory_space<vmem>>, vector<4x16x128xf32>
      %c18 = arith.constant 18 : index
      %153 = arith.index_cast %6 : i32 to index
      %c0_107 = arith.constant 0 : index
      %c0_108 = arith.constant 0 : index
      %154 = vector.load %arg4[%c18, %153, %c0_107, %c0_108] : memref<25x16x16x128xf32, #tpu.memory_space<vmem>>, vector<1x4x16x128xf32>
      %155 = vector.shape_cast %154 : vector<1x4x16x128xf32> to vector<4x16x128xf32>
      %156 = arith.mulf %152, %155 : vector<4x16x128xf32>
      %157 = arith.addf %149, %156 : vector<4x16x128xf32>
      %c3_i32_109 = arith.constant 3 : i32
      %158 = arith.addi %6, %c3_i32_109 : i32
      %159 = arith.index_cast %158 : i32 to index
      %c4_110 = arith.constant 4 : index
      %c0_111 = arith.constant 0 : index
      %160 = vector.load %arg9[%159, %c4_110, %c0_111] : memref<20x20x128xf32, #tpu.memory_space<vmem>>, vector<4x16x128xf32>
      %c19 = arith.constant 19 : index
      %161 = arith.index_cast %6 : i32 to index
      %c0_112 = arith.constant 0 : index
      %c0_113 = arith.constant 0 : index
      %162 = vector.load %arg4[%c19, %161, %c0_112, %c0_113] : memref<25x16x16x128xf32, #tpu.memory_space<vmem>>, vector<1x4x16x128xf32>
      %163 = vector.shape_cast %162 : vector<1x4x16x128xf32> to vector<4x16x128xf32>
      %164 = arith.mulf %160, %163 : vector<4x16x128xf32>
      %165 = arith.addf %157, %164 : vector<4x16x128xf32>
      %c4_i32_114 = arith.constant 4 : i32
      %166 = arith.addi %6, %c4_i32_114 : i32
      %167 = arith.index_cast %166 : i32 to index
      %c0_115 = arith.constant 0 : index
      %c0_116 = arith.constant 0 : index
      %168 = vector.load %arg9[%167, %c0_115, %c0_116] : memref<20x20x128xf32, #tpu.memory_space<vmem>>, vector<4x16x128xf32>
      %c20 = arith.constant 20 : index
      %169 = arith.index_cast %6 : i32 to index
      %c0_117 = arith.constant 0 : index
      %c0_118 = arith.constant 0 : index
      %170 = vector.load %arg4[%c20, %169, %c0_117, %c0_118] : memref<25x16x16x128xf32, #tpu.memory_space<vmem>>, vector<1x4x16x128xf32>
      %171 = vector.shape_cast %170 : vector<1x4x16x128xf32> to vector<4x16x128xf32>
      %172 = arith.mulf %168, %171 : vector<4x16x128xf32>
      %173 = arith.addf %165, %172 : vector<4x16x128xf32>
      %c4_i32_119 = arith.constant 4 : i32
      %174 = arith.addi %6, %c4_i32_119 : i32
      %175 = arith.index_cast %174 : i32 to index
      %c1_120 = arith.constant 1 : index
      %c0_121 = arith.constant 0 : index
      %176 = vector.load %arg9[%175, %c1_120, %c0_121] : memref<20x20x128xf32, #tpu.memory_space<vmem>>, vector<4x16x128xf32>
      %c21 = arith.constant 21 : index
      %177 = arith.index_cast %6 : i32 to index
      %c0_122 = arith.constant 0 : index
      %c0_123 = arith.constant 0 : index
      %178 = vector.load %arg4[%c21, %177, %c0_122, %c0_123] : memref<25x16x16x128xf32, #tpu.memory_space<vmem>>, vector<1x4x16x128xf32>
      %179 = vector.shape_cast %178 : vector<1x4x16x128xf32> to vector<4x16x128xf32>
      %180 = arith.mulf %176, %179 : vector<4x16x128xf32>
      %181 = arith.addf %173, %180 : vector<4x16x128xf32>
      %c4_i32_124 = arith.constant 4 : i32
      %182 = arith.addi %6, %c4_i32_124 : i32
      %183 = arith.index_cast %182 : i32 to index
      %c2_125 = arith.constant 2 : index
      %c0_126 = arith.constant 0 : index
      %184 = vector.load %arg9[%183, %c2_125, %c0_126] : memref<20x20x128xf32, #tpu.memory_space<vmem>>, vector<4x16x128xf32>
      %c22 = arith.constant 22 : index
      %185 = arith.index_cast %6 : i32 to index
      %c0_127 = arith.constant 0 : index
      %c0_128 = arith.constant 0 : index
      %186 = vector.load %arg4[%c22, %185, %c0_127, %c0_128] : memref<25x16x16x128xf32, #tpu.memory_space<vmem>>, vector<1x4x16x128xf32>
      %187 = vector.shape_cast %186 : vector<1x4x16x128xf32> to vector<4x16x128xf32>
      %188 = arith.mulf %184, %187 : vector<4x16x128xf32>
      %189 = arith.addf %181, %188 : vector<4x16x128xf32>
      %c4_i32_129 = arith.constant 4 : i32
      %190 = arith.addi %6, %c4_i32_129 : i32
      %191 = arith.index_cast %190 : i32 to index
      %c3_130 = arith.constant 3 : index
      %c0_131 = arith.constant 0 : index
      %192 = vector.load %arg9[%191, %c3_130, %c0_131] : memref<20x20x128xf32, #tpu.memory_space<vmem>>, vector<4x16x128xf32>
      %c23 = arith.constant 23 : index
      %193 = arith.index_cast %6 : i32 to index
      %c0_132 = arith.constant 0 : index
      %c0_133 = arith.constant 0 : index
      %194 = vector.load %arg4[%c23, %193, %c0_132, %c0_133] : memref<25x16x16x128xf32, #tpu.memory_space<vmem>>, vector<1x4x16x128xf32>
      %195 = vector.shape_cast %194 : vector<1x4x16x128xf32> to vector<4x16x128xf32>
      %196 = arith.mulf %192, %195 : vector<4x16x128xf32>
      %197 = arith.addf %189, %196 : vector<4x16x128xf32>
      %c4_i32_134 = arith.constant 4 : i32
      %198 = arith.addi %6, %c4_i32_134 : i32
      %199 = arith.index_cast %198 : i32 to index
      %c4_135 = arith.constant 4 : index
      %c0_136 = arith.constant 0 : index
      %200 = vector.load %arg9[%199, %c4_135, %c0_136] : memref<20x20x128xf32, #tpu.memory_space<vmem>>, vector<4x16x128xf32>
      %c24 = arith.constant 24 : index
      %201 = arith.index_cast %6 : i32 to index
      %c0_137 = arith.constant 0 : index
      %c0_138 = arith.constant 0 : index
      %202 = vector.load %arg4[%c24, %201, %c0_137, %c0_138] : memref<25x16x16x128xf32, #tpu.memory_space<vmem>>, vector<1x4x16x128xf32>
      %203 = vector.shape_cast %202 : vector<1x4x16x128xf32> to vector<4x16x128xf32>
      %204 = arith.mulf %200, %203 : vector<4x16x128xf32>
      %205 = arith.addf %197, %204 : vector<4x16x128xf32>
      %206 = arith.index_cast %6 : i32 to index
      %c0_139 = arith.constant 0 : index
      %c0_140 = arith.constant 0 : index
      %207 = vector.load %arg8[%206, %c0_139, %c0_140] : memref<24x24x128xf32, #tpu.memory_space<vmem>>, vector<4x16x128xf32>
      tpu.vector_store %arg8[%206, %c0_139, %c0_140], %205 {strides = array<i32>} : memref<24x24x128xf32, #tpu.memory_space<vmem>>, vector<4x16x128xf32>,
    }
    %c4_i32_6 = arith.constant 4 : i32
    %c0_i32_7 = arith.constant 0 : i32
    %c3_i32 = arith.constant 3 : i32
    %3 = arith.addi %c0_i32_7, %c3_i32 : i32
    %c1_i32_8 = arith.constant 1 : i32
    scf.for %arg10 = %c0_i32_7 to %3 step %c1_i32_8  : i32 {
      %c4_i32_14 = arith.constant 4 : i32
      %5 = arith.muli %arg10, %c4_i32_14 : i32
      %6 = tpu.assume_multiple %5, 4 : i32
      %c0_i32_15 = arith.constant 0 : i32
      %7 = arith.addi %6, %c0_i32_15 : i32
      %8 = arith.index_cast %7 : i32 to index
      %c0 = arith.constant 0 : index
      %c0_16 = arith.constant 0 : index
      %9 = vector.load %arg8[%8, %c0, %c0_16] : memref<24x24x128xf32, #tpu.memory_space<vmem>>, vector<4x12x128xf32>
      %c0_17 = arith.constant 0 : index
      %10 = arith.index_cast %6 : i32 to index
      %c0_18 = arith.constant 0 : index
      %c0_19 = arith.constant 0 : index
      %11 = vector.load %arg5[%c0_17, %10, %c0_18, %c0_19] : memref<25x12x12x128xf32, #tpu.memory_space<vmem>>, vector<1x4x12x128xf32>
      %12 = vector.shape_cast %11 : vector<1x4x12x128xf32> to vector<4x12x128xf32>
      %13 = arith.mulf %9, %12 : vector<4x12x128xf32>
      %c0_i32_20 = arith.constant 0 : i32
      %14 = arith.addi %6, %c0_i32_20 : i32
      %15 = arith.index_cast %14 : i32 to index
      %c1 = arith.constant 1 : index
      %c0_21 = arith.constant 0 : index
      %16 = vector.load %arg8[%15, %c1, %c0_21] : memref<24x24x128xf32, #tpu.memory_space<vmem>>, vector<4x12x128xf32>
      %c1_22 = arith.constant 1 : index
      %17 = arith.index_cast %6 : i32 to index
      %c0_23 = arith.constant 0 : index
      %c0_24 = arith.constant 0 : index
      %18 = vector.load %arg5[%c1_22, %17, %c0_23, %c0_24] : memref<25x12x12x128xf32, #tpu.memory_space<vmem>>, vector<1x4x12x128xf32>
      %19 = vector.shape_cast %18 : vector<1x4x12x128xf32> to vector<4x12x128xf32>
      %20 = arith.mulf %16, %19 : vector<4x12x128xf32>
      %21 = arith.addf %13, %20 : vector<4x12x128xf32>
      %c0_i32_25 = arith.constant 0 : i32
      %22 = arith.addi %6, %c0_i32_25 : i32
      %23 = arith.index_cast %22 : i32 to index
      %c2 = arith.constant 2 : index
      %c0_26 = arith.constant 0 : index
      %24 = vector.load %arg8[%23, %c2, %c0_26] : memref<24x24x128xf32, #tpu.memory_space<vmem>>, vector<4x12x128xf32>
      %c2_27 = arith.constant 2 : index
      %25 = arith.index_cast %6 : i32 to index
      %c0_28 = arith.constant 0 : index
      %c0_29 = arith.constant 0 : index
      %26 = vector.load %arg5[%c2_27, %25, %c0_28, %c0_29] : memref<25x12x12x128xf32, #tpu.memory_space<vmem>>, vector<1x4x12x128xf32>
      %27 = vector.shape_cast %26 : vector<1x4x12x128xf32> to vector<4x12x128xf32>
      %28 = arith.mulf %24, %27 : vector<4x12x128xf32>
      %29 = arith.addf %21, %28 : vector<4x12x128xf32>
      %c0_i32_30 = arith.constant 0 : i32
      %30 = arith.addi %6, %c0_i32_30 : i32
      %31 = arith.index_cast %30 : i32 to index
      %c3 = arith.constant 3 : index
      %c0_31 = arith.constant 0 : index
      %32 = vector.load %arg8[%31, %c3, %c0_31] : memref<24x24x128xf32, #tpu.memory_space<vmem>>, vector<4x12x128xf32>
      %c3_32 = arith.constant 3 : index
      %33 = arith.index_cast %6 : i32 to index
      %c0_33 = arith.constant 0 : index
      %c0_34 = arith.constant 0 : index
      %34 = vector.load %arg5[%c3_32, %33, %c0_33, %c0_34] : memref<25x12x12x128xf32, #tpu.memory_space<vmem>>, vector<1x4x12x128xf32>
      %35 = vector.shape_cast %34 : vector<1x4x12x128xf32> to vector<4x12x128xf32>
      %36 = arith.mulf %32, %35 : vector<4x12x128xf32>
      %37 = arith.addf %29, %36 : vector<4x12x128xf32>
      %c0_i32_35 = arith.constant 0 : i32
      %38 = arith.addi %6, %c0_i32_35 : i32
      %39 = arith.index_cast %38 : i32 to index
      %c4 = arith.constant 4 : index
      %c0_36 = arith.constant 0 : index
      %40 = vector.load %arg8[%39, %c4, %c0_36] : memref<24x24x128xf32, #tpu.memory_space<vmem>>, vector<4x12x128xf32>
      %c4_37 = arith.constant 4 : index
      %41 = arith.index_cast %6 : i32 to index
      %c0_38 = arith.constant 0 : index
      %c0_39 = arith.constant 0 : index
      %42 = vector.load %arg5[%c4_37, %41, %c0_38, %c0_39] : memref<25x12x12x128xf32, #tpu.memory_space<vmem>>, vector<1x4x12x128xf32>
      %43 = vector.shape_cast %42 : vector<1x4x12x128xf32> to vector<4x12x128xf32>
      %44 = arith.mulf %40, %43 : vector<4x12x128xf32>
      %45 = arith.addf %37, %44 : vector<4x12x128xf32>
      %c1_i32_40 = arith.constant 1 : i32
      %46 = arith.addi %6, %c1_i32_40 : i32
      %47 = arith.index_cast %46 : i32 to index
      %c0_41 = arith.constant 0 : index
      %c0_42 = arith.constant 0 : index
      %48 = vector.load %arg8[%47, %c0_41, %c0_42] : memref<24x24x128xf32, #tpu.memory_space<vmem>>, vector<4x12x128xf32>
      %c5 = arith.constant 5 : index
      %49 = arith.index_cast %6 : i32 to index
      %c0_43 = arith.constant 0 : index
      %c0_44 = arith.constant 0 : index
      %50 = vector.load %arg5[%c5, %49, %c0_43, %c0_44] : memref<25x12x12x128xf32, #tpu.memory_space<vmem>>, vector<1x4x12x128xf32>
      %51 = vector.shape_cast %50 : vector<1x4x12x128xf32> to vector<4x12x128xf32>
      %52 = arith.mulf %48, %51 : vector<4x12x128xf32>
      %53 = arith.addf %45, %52 : vector<4x12x128xf32>
      %c1_i32_45 = arith.constant 1 : i32
      %54 = arith.addi %6, %c1_i32_45 : i32
      %55 = arith.index_cast %54 : i32 to index
      %c1_46 = arith.constant 1 : index
      %c0_47 = arith.constant 0 : index
      %56 = vector.load %arg8[%55, %c1_46, %c0_47] : memref<24x24x128xf32, #tpu.memory_space<vmem>>, vector<4x12x128xf32>
      %c6 = arith.constant 6 : index
      %57 = arith.index_cast %6 : i32 to index
      %c0_48 = arith.constant 0 : index
      %c0_49 = arith.constant 0 : index
      %58 = vector.load %arg5[%c6, %57, %c0_48, %c0_49] : memref<25x12x12x128xf32, #tpu.memory_space<vmem>>, vector<1x4x12x128xf32>
      %59 = vector.shape_cast %58 : vector<1x4x12x128xf32> to vector<4x12x128xf32>
      %60 = arith.mulf %56, %59 : vector<4x12x128xf32>
      %61 = arith.addf %53, %60 : vector<4x12x128xf32>
      %c1_i32_50 = arith.constant 1 : i32
      %62 = arith.addi %6, %c1_i32_50 : i32
      %63 = arith.index_cast %62 : i32 to index
      %c2_51 = arith.constant 2 : index
      %c0_52 = arith.constant 0 : index
      %64 = vector.load %arg8[%63, %c2_51, %c0_52] : memref<24x24x128xf32, #tpu.memory_space<vmem>>, vector<4x12x128xf32>
      %c7 = arith.constant 7 : index
      %65 = arith.index_cast %6 : i32 to index
      %c0_53 = arith.constant 0 : index
      %c0_54 = arith.constant 0 : index
      %66 = vector.load %arg5[%c7, %65, %c0_53, %c0_54] : memref<25x12x12x128xf32, #tpu.memory_space<vmem>>, vector<1x4x12x128xf32>
      %67 = vector.shape_cast %66 : vector<1x4x12x128xf32> to vector<4x12x128xf32>
      %68 = arith.mulf %64, %67 : vector<4x12x128xf32>
      %69 = arith.addf %61, %68 : vector<4x12x128xf32>
      %c1_i32_55 = arith.constant 1 : i32
      %70 = arith.addi %6, %c1_i32_55 : i32
      %71 = arith.index_cast %70 : i32 to index
      %c3_56 = arith.constant 3 : index
      %c0_57 = arith.constant 0 : index
      %72 = vector.load %arg8[%71, %c3_56, %c0_57] : memref<24x24x128xf32, #tpu.memory_space<vmem>>, vector<4x12x128xf32>
      %c8 = arith.constant 8 : index
      %73 = arith.index_cast %6 : i32 to index
      %c0_58 = arith.constant 0 : index
      %c0_59 = arith.constant 0 : index
      %74 = vector.load %arg5[%c8, %73, %c0_58, %c0_59] : memref<25x12x12x128xf32, #tpu.memory_space<vmem>>, vector<1x4x12x128xf32>
      %75 = vector.shape_cast %74 : vector<1x4x12x128xf32> to vector<4x12x128xf32>
      %76 = arith.mulf %72, %75 : vector<4x12x128xf32>
      %77 = arith.addf %69, %76 : vector<4x12x128xf32>
      %c1_i32_60 = arith.constant 1 : i32
      %78 = arith.addi %6, %c1_i32_60 : i32
      %79 = arith.index_cast %78 : i32 to index
      %c4_61 = arith.constant 4 : index
      %c0_62 = arith.constant 0 : index
      %80 = vector.load %arg8[%79, %c4_61, %c0_62] : memref<24x24x128xf32, #tpu.memory_space<vmem>>, vector<4x12x128xf32>
      %c9 = arith.constant 9 : index
      %81 = arith.index_cast %6 : i32 to index
      %c0_63 = arith.constant 0 : index
      %c0_64 = arith.constant 0 : index
      %82 = vector.load %arg5[%c9, %81, %c0_63, %c0_64] : memref<25x12x12x128xf32, #tpu.memory_space<vmem>>, vector<1x4x12x128xf32>
      %83 = vector.shape_cast %82 : vector<1x4x12x128xf32> to vector<4x12x128xf32>
      %84 = arith.mulf %80, %83 : vector<4x12x128xf32>
      %85 = arith.addf %77, %84 : vector<4x12x128xf32>
      %c2_i32 = arith.constant 2 : i32
      %86 = arith.addi %6, %c2_i32 : i32
      %87 = arith.index_cast %86 : i32 to index
      %c0_65 = arith.constant 0 : index
      %c0_66 = arith.constant 0 : index
      %88 = vector.load %arg8[%87, %c0_65, %c0_66] : memref<24x24x128xf32, #tpu.memory_space<vmem>>, vector<4x12x128xf32>
      %c10 = arith.constant 10 : index
      %89 = arith.index_cast %6 : i32 to index
      %c0_67 = arith.constant 0 : index
      %c0_68 = arith.constant 0 : index
      %90 = vector.load %arg5[%c10, %89, %c0_67, %c0_68] : memref<25x12x12x128xf32, #tpu.memory_space<vmem>>, vector<1x4x12x128xf32>
      %91 = vector.shape_cast %90 : vector<1x4x12x128xf32> to vector<4x12x128xf32>
      %92 = arith.mulf %88, %91 : vector<4x12x128xf32>
      %93 = arith.addf %85, %92 : vector<4x12x128xf32>
      %c2_i32_69 = arith.constant 2 : i32
      %94 = arith.addi %6, %c2_i32_69 : i32
      %95 = arith.index_cast %94 : i32 to index
      %c1_70 = arith.constant 1 : index
      %c0_71 = arith.constant 0 : index
      %96 = vector.load %arg8[%95, %c1_70, %c0_71] : memref<24x24x128xf32, #tpu.memory_space<vmem>>, vector<4x12x128xf32>
      %c11 = arith.constant 11 : index
      %97 = arith.index_cast %6 : i32 to index
      %c0_72 = arith.constant 0 : index
      %c0_73 = arith.constant 0 : index
      %98 = vector.load %arg5[%c11, %97, %c0_72, %c0_73] : memref<25x12x12x128xf32, #tpu.memory_space<vmem>>, vector<1x4x12x128xf32>
      %99 = vector.shape_cast %98 : vector<1x4x12x128xf32> to vector<4x12x128xf32>
      %100 = arith.mulf %96, %99 : vector<4x12x128xf32>
      %101 = arith.addf %93, %100 : vector<4x12x128xf32>
      %c2_i32_74 = arith.constant 2 : i32
      %102 = arith.addi %6, %c2_i32_74 : i32
      %103 = arith.index_cast %102 : i32 to index
      %c2_75 = arith.constant 2 : index
      %c0_76 = arith.constant 0 : index
      %104 = vector.load %arg8[%103, %c2_75, %c0_76] : memref<24x24x128xf32, #tpu.memory_space<vmem>>, vector<4x12x128xf32>
      %c12 = arith.constant 12 : index
      %105 = arith.index_cast %6 : i32 to index
      %c0_77 = arith.constant 0 : index
      %c0_78 = arith.constant 0 : index
      %106 = vector.load %arg5[%c12, %105, %c0_77, %c0_78] : memref<25x12x12x128xf32, #tpu.memory_space<vmem>>, vector<1x4x12x128xf32>
      %107 = vector.shape_cast %106 : vector<1x4x12x128xf32> to vector<4x12x128xf32>
      %108 = arith.mulf %104, %107 : vector<4x12x128xf32>
      %109 = arith.addf %101, %108 : vector<4x12x128xf32>
      %c2_i32_79 = arith.constant 2 : i32
      %110 = arith.addi %6, %c2_i32_79 : i32
      %111 = arith.index_cast %110 : i32 to index
      %c3_80 = arith.constant 3 : index
      %c0_81 = arith.constant 0 : index
      %112 = vector.load %arg8[%111, %c3_80, %c0_81] : memref<24x24x128xf32, #tpu.memory_space<vmem>>, vector<4x12x128xf32>
      %c13 = arith.constant 13 : index
      %113 = arith.index_cast %6 : i32 to index
      %c0_82 = arith.constant 0 : index
      %c0_83 = arith.constant 0 : index
      %114 = vector.load %arg5[%c13, %113, %c0_82, %c0_83] : memref<25x12x12x128xf32, #tpu.memory_space<vmem>>, vector<1x4x12x128xf32>
      %115 = vector.shape_cast %114 : vector<1x4x12x128xf32> to vector<4x12x128xf32>
      %116 = arith.mulf %112, %115 : vector<4x12x128xf32>
      %117 = arith.addf %109, %116 : vector<4x12x128xf32>
      %c2_i32_84 = arith.constant 2 : i32
      %118 = arith.addi %6, %c2_i32_84 : i32
      %119 = arith.index_cast %118 : i32 to index
      %c4_85 = arith.constant 4 : index
      %c0_86 = arith.constant 0 : index
      %120 = vector.load %arg8[%119, %c4_85, %c0_86] : memref<24x24x128xf32, #tpu.memory_space<vmem>>, vector<4x12x128xf32>
      %c14 = arith.constant 14 : index
      %121 = arith.index_cast %6 : i32 to index
      %c0_87 = arith.constant 0 : index
      %c0_88 = arith.constant 0 : index
      %122 = vector.load %arg5[%c14, %121, %c0_87, %c0_88] : memref<25x12x12x128xf32, #tpu.memory_space<vmem>>, vector<1x4x12x128xf32>
      %123 = vector.shape_cast %122 : vector<1x4x12x128xf32> to vector<4x12x128xf32>
      %124 = arith.mulf %120, %123 : vector<4x12x128xf32>
      %125 = arith.addf %117, %124 : vector<4x12x128xf32>
      %c3_i32_89 = arith.constant 3 : i32
      %126 = arith.addi %6, %c3_i32_89 : i32
      %127 = arith.index_cast %126 : i32 to index
      %c0_90 = arith.constant 0 : index
      %c0_91 = arith.constant 0 : index
      %128 = vector.load %arg8[%127, %c0_90, %c0_91] : memref<24x24x128xf32, #tpu.memory_space<vmem>>, vector<4x12x128xf32>
      %c15 = arith.constant 15 : index
      %129 = arith.index_cast %6 : i32 to index
      %c0_92 = arith.constant 0 : index
      %c0_93 = arith.constant 0 : index
      %130 = vector.load %arg5[%c15, %129, %c0_92, %c0_93] : memref<25x12x12x128xf32, #tpu.memory_space<vmem>>, vector<1x4x12x128xf32>
      %131 = vector.shape_cast %130 : vector<1x4x12x128xf32> to vector<4x12x128xf32>
      %132 = arith.mulf %128, %131 : vector<4x12x128xf32>
      %133 = arith.addf %125, %132 : vector<4x12x128xf32>
      %c3_i32_94 = arith.constant 3 : i32
      %134 = arith.addi %6, %c3_i32_94 : i32
      %135 = arith.index_cast %134 : i32 to index
      %c1_95 = arith.constant 1 : index
      %c0_96 = arith.constant 0 : index
      %136 = vector.load %arg8[%135, %c1_95, %c0_96] : memref<24x24x128xf32, #tpu.memory_space<vmem>>, vector<4x12x128xf32>
      %c16 = arith.constant 16 : index
      %137 = arith.index_cast %6 : i32 to index
      %c0_97 = arith.constant 0 : index
      %c0_98 = arith.constant 0 : index
      %138 = vector.load %arg5[%c16, %137, %c0_97, %c0_98] : memref<25x12x12x128xf32, #tpu.memory_space<vmem>>, vector<1x4x12x128xf32>
      %139 = vector.shape_cast %138 : vector<1x4x12x128xf32> to vector<4x12x128xf32>
      %140 = arith.mulf %136, %139 : vector<4x12x128xf32>
      %141 = arith.addf %133, %140 : vector<4x12x128xf32>
      %c3_i32_99 = arith.constant 3 : i32
      %142 = arith.addi %6, %c3_i32_99 : i32
      %143 = arith.index_cast %142 : i32 to index
      %c2_100 = arith.constant 2 : index
      %c0_101 = arith.constant 0 : index
      %144 = vector.load %arg8[%143, %c2_100, %c0_101] : memref<24x24x128xf32, #tpu.memory_space<vmem>>, vector<4x12x128xf32>
      %c17 = arith.constant 17 : index
      %145 = arith.index_cast %6 : i32 to index
      %c0_102 = arith.constant 0 : index
      %c0_103 = arith.constant 0 : index
      %146 = vector.load %arg5[%c17, %145, %c0_102, %c0_103] : memref<25x12x12x128xf32, #tpu.memory_space<vmem>>, vector<1x4x12x128xf32>
      %147 = vector.shape_cast %146 : vector<1x4x12x128xf32> to vector<4x12x128xf32>
      %148 = arith.mulf %144, %147 : vector<4x12x128xf32>
      %149 = arith.addf %141, %148 : vector<4x12x128xf32>
      %c3_i32_104 = arith.constant 3 : i32
      %150 = arith.addi %6, %c3_i32_104 : i32
      %151 = arith.index_cast %150 : i32 to index
      %c3_105 = arith.constant 3 : index
      %c0_106 = arith.constant 0 : index
      %152 = vector.load %arg8[%151, %c3_105, %c0_106] : memref<24x24x128xf32, #tpu.memory_space<vmem>>, vector<4x12x128xf32>
      %c18 = arith.constant 18 : index
      %153 = arith.index_cast %6 : i32 to index
      %c0_107 = arith.constant 0 : index
      %c0_108 = arith.constant 0 : index
      %154 = vector.load %arg5[%c18, %153, %c0_107, %c0_108] : memref<25x12x12x128xf32, #tpu.memory_space<vmem>>, vector<1x4x12x128xf32>
      %155 = vector.shape_cast %154 : vector<1x4x12x128xf32> to vector<4x12x128xf32>
      %156 = arith.mulf %152, %155 : vector<4x12x128xf32>
      %157 = arith.addf %149, %156 : vector<4x12x128xf32>
      %c3_i32_109 = arith.constant 3 : i32
      %158 = arith.addi %6, %c3_i32_109 : i32
      %159 = arith.index_cast %158 : i32 to index
      %c4_110 = arith.constant 4 : index
      %c0_111 = arith.constant 0 : index
      %160 = vector.load %arg8[%159, %c4_110, %c0_111] : memref<24x24x128xf32, #tpu.memory_space<vmem>>, vector<4x12x128xf32>
      %c19 = arith.constant 19 : index
      %161 = arith.index_cast %6 : i32 to index
      %c0_112 = arith.constant 0 : index
      %c0_113 = arith.constant 0 : index
      %162 = vector.load %arg5[%c19, %161, %c0_112, %c0_113] : memref<25x12x12x128xf32, #tpu.memory_space<vmem>>, vector<1x4x12x128xf32>
      %163 = vector.shape_cast %162 : vector<1x4x12x128xf32> to vector<4x12x128xf32>
      %164 = arith.mulf %160, %163 : vector<4x12x128xf32>
      %165 = arith.addf %157, %164 : vector<4x12x128xf32>
      %c4_i32_114 = arith.constant 4 : i32
      %166 = arith.addi %6, %c4_i32_114 : i32
      %167 = arith.index_cast %166 : i32 to index
      %c0_115 = arith.constant 0 : index
      %c0_116 = arith.constant 0 : index
      %168 = vector.load %arg8[%167, %c0_115, %c0_116] : memref<24x24x128xf32, #tpu.memory_space<vmem>>, vector<4x12x128xf32>
      %c20 = arith.constant 20 : index
      %169 = arith.index_cast %6 : i32 to index
      %c0_117 = arith.constant 0 : index
      %c0_118 = arith.constant 0 : index
      %170 = vector.load %arg5[%c20, %169, %c0_117, %c0_118] : memref<25x12x12x128xf32, #tpu.memory_space<vmem>>, vector<1x4x12x128xf32>
      %171 = vector.shape_cast %170 : vector<1x4x12x128xf32> to vector<4x12x128xf32>
      %172 = arith.mulf %168, %171 : vector<4x12x128xf32>
      %173 = arith.addf %165, %172 : vector<4x12x128xf32>
      %c4_i32_119 = arith.constant 4 : i32
      %174 = arith.addi %6, %c4_i32_119 : i32
      %175 = arith.index_cast %174 : i32 to index
      %c1_120 = arith.constant 1 : index
      %c0_121 = arith.constant 0 : index
      %176 = vector.load %arg8[%175, %c1_120, %c0_121] : memref<24x24x128xf32, #tpu.memory_space<vmem>>, vector<4x12x128xf32>
      %c21 = arith.constant 21 : index
      %177 = arith.index_cast %6 : i32 to index
      %c0_122 = arith.constant 0 : index
      %c0_123 = arith.constant 0 : index
      %178 = vector.load %arg5[%c21, %177, %c0_122, %c0_123] : memref<25x12x12x128xf32, #tpu.memory_space<vmem>>, vector<1x4x12x128xf32>
      %179 = vector.shape_cast %178 : vector<1x4x12x128xf32> to vector<4x12x128xf32>
      %180 = arith.mulf %176, %179 : vector<4x12x128xf32>
      %181 = arith.addf %173, %180 : vector<4x12x128xf32>
      %c4_i32_124 = arith.constant 4 : i32
      %182 = arith.addi %6, %c4_i32_124 : i32
      %183 = arith.index_cast %182 : i32 to index
      %c2_125 = arith.constant 2 : index
      %c0_126 = arith.constant 0 : index
      %184 = vector.load %arg8[%183, %c2_125, %c0_126] : memref<24x24x128xf32, #tpu.memory_space<vmem>>, vector<4x12x128xf32>
      %c22 = arith.constant 22 : index
      %185 = arith.index_cast %6 : i32 to index
      %c0_127 = arith.constant 0 : index
      %c0_128 = arith.constant 0 : index
      %186 = vector.load %arg5[%c22, %185, %c0_127, %c0_128] : memref<25x12x12x128xf32, #tpu.memory_space<vmem>>, vector<1x4x12x128xf32>
      %187 = vector.shape_cast %186 : vector<1x4x12x128xf32> to vector<4x12x128xf32>
      %188 = arith.mulf %184, %187 : vector<4x12x128xf32>
      %189 = arith.addf %181, %188 : vector<4x12x128xf32>
      %c4_i32_129 = arith.constant 4 : i32
      %190 = arith.addi %6, %c4_i32_129 : i32
      %191 = arith.index_cast %190 : i32 to index
      %c3_130 = arith.constant 3 : index
      %c0_131 = arith.constant 0 : index
      %192 = vector.load %arg8[%191, %c3_130, %c0_131] : memref<24x24x128xf32, #tpu.memory_space<vmem>>, vector<4x12x128xf32>
      %c23 = arith.constant 23 : index
      %193 = arith.index_cast %6 : i32 to index
      %c0_132 = arith.constant 0 : index
      %c0_133 = arith.constant 0 : index
      %194 = vector.load %arg5[%c23, %193, %c0_132, %c0_133] : memref<25x12x12x128xf32, #tpu.memory_space<vmem>>, vector<1x4x12x128xf32>
      %195 = vector.shape_cast %194 : vector<1x4x12x128xf32> to vector<4x12x128xf32>
      %196 = arith.mulf %192, %195 : vector<4x12x128xf32>
      %197 = arith.addf %189, %196 : vector<4x12x128xf32>
      %c4_i32_134 = arith.constant 4 : i32
      %198 = arith.addi %6, %c4_i32_134 : i32
      %199 = arith.index_cast %198 : i32 to index
      %c4_135 = arith.constant 4 : index
      %c0_136 = arith.constant 0 : index
      %200 = vector.load %arg8[%199, %c4_135, %c0_136] : memref<24x24x128xf32, #tpu.memory_space<vmem>>, vector<4x12x128xf32>
      %c24 = arith.constant 24 : index
      %201 = arith.index_cast %6 : i32 to index
      %c0_137 = arith.constant 0 : index
      %c0_138 = arith.constant 0 : index
      %202 = vector.load %arg5[%c24, %201, %c0_137, %c0_138] : memref<25x12x12x128xf32, #tpu.memory_space<vmem>>, vector<1x4x12x128xf32>
      %203 = vector.shape_cast %202 : vector<1x4x12x128xf32> to vector<4x12x128xf32>
      %204 = arith.mulf %200, %203 : vector<4x12x128xf32>
      %205 = arith.addf %197, %204 : vector<4x12x128xf32>
      %206 = arith.index_cast %6 : i32 to index
      %c0_139 = arith.constant 0 : index
      %c0_140 = arith.constant 0 : index
      %207 = vector.load %arg9[%206, %c0_139, %c0_140] : memref<20x20x128xf32, #tpu.memory_space<vmem>>, vector<4x12x128xf32>
      tpu.vector_store %arg9[%206, %c0_139, %c0_140], %205 {strides = array<i32>} : memref<20x20x128xf32, #tpu.memory_space<vmem>>, vector<4x12x128xf32>,
    }
    %c3_i32_9 = arith.constant 3 : i32
    %c0_i32_10 = arith.constant 0 : i32
    %c5_i32_11 = arith.constant 5 : i32
    %4 = arith.addi %c0_i32_10, %c5_i32_11 : i32
    %c1_i32_12 = arith.constant 1 : i32
    scf.for %arg10 = %c0_i32_10 to %4 step %c1_i32_12  : i32 {
      %c2_i32 = arith.constant 2 : i32
      %5 = arith.muli %arg10, %c2_i32 : i32
      %6 = tpu.assume_multiple %5, 2 : i32
      %c0_i32_14 = arith.constant 0 : i32
      %7 = arith.addi %6, %c0_i32_14 : i32
      %8 = arith.index_cast %7 : i32 to index
      %c0 = arith.constant 0 : index
      %c0_15 = arith.constant 0 : index
      %9 = vector.load %arg9[%8, %c0, %c0_15] : memref<20x20x128xf32, #tpu.memory_space<vmem>>, vector<2x10x128xf32>
      %c0_16 = arith.constant 0 : index
      %10 = arith.index_cast %6 : i32 to index
      %c0_17 = arith.constant 0 : index
      %c0_18 = arith.constant 0 : index
      %11 = vector.load %arg6[%c0_16, %10, %c0_17, %c0_18] : memref<9x10x10x128xf32, #tpu.memory_space<vmem>>, vector<1x2x10x128xf32>
      %12 = vector.shape_cast %11 : vector<1x2x10x128xf32> to vector<2x10x128xf32>
      %13 = arith.mulf %9, %12 : vector<2x10x128xf32>
      %c0_i32_19 = arith.constant 0 : i32
      %14 = arith.addi %6, %c0_i32_19 : i32
      %15 = arith.index_cast %14 : i32 to index
      %c1 = arith.constant 1 : index
      %c0_20 = arith.constant 0 : index
      %16 = vector.load %arg9[%15, %c1, %c0_20] : memref<20x20x128xf32, #tpu.memory_space<vmem>>, vector<2x10x128xf32>
      %c1_21 = arith.constant 1 : index
      %17 = arith.index_cast %6 : i32 to index
      %c0_22 = arith.constant 0 : index
      %c0_23 = arith.constant 0 : index
      %18 = vector.load %arg6[%c1_21, %17, %c0_22, %c0_23] : memref<9x10x10x128xf32, #tpu.memory_space<vmem>>, vector<1x2x10x128xf32>
      %19 = vector.shape_cast %18 : vector<1x2x10x128xf32> to vector<2x10x128xf32>
      %20 = arith.mulf %16, %19 : vector<2x10x128xf32>
      %21 = arith.addf %13, %20 : vector<2x10x128xf32>
      %c0_i32_24 = arith.constant 0 : i32
      %22 = arith.addi %6, %c0_i32_24 : i32
      %23 = arith.index_cast %22 : i32 to index
      %c2 = arith.constant 2 : index
      %c0_25 = arith.constant 0 : index
      %24 = vector.load %arg9[%23, %c2, %c0_25] : memref<20x20x128xf32, #tpu.memory_space<vmem>>, vector<2x10x128xf32>
      %c2_26 = arith.constant 2 : index
      %25 = arith.index_cast %6 : i32 to index
      %c0_27 = arith.constant 0 : index
      %c0_28 = arith.constant 0 : index
      %26 = vector.load %arg6[%c2_26, %25, %c0_27, %c0_28] : memref<9x10x10x128xf32, #tpu.memory_space<vmem>>, vector<1x2x10x128xf32>
      %27 = vector.shape_cast %26 : vector<1x2x10x128xf32> to vector<2x10x128xf32>
      %28 = arith.mulf %24, %27 : vector<2x10x128xf32>
      %29 = arith.addf %21, %28 : vector<2x10x128xf32>
      %c1_i32_29 = arith.constant 1 : i32
      %30 = arith.addi %6, %c1_i32_29 : i32
      %31 = arith.index_cast %30 : i32 to index
      %c0_30 = arith.constant 0 : index
      %c0_31 = arith.constant 0 : index
      %32 = vector.load %arg9[%31, %c0_30, %c0_31] : memref<20x20x128xf32, #tpu.memory_space<vmem>>, vector<2x10x128xf32>
      %c3 = arith.constant 3 : index
      %33 = arith.index_cast %6 : i32 to index
      %c0_32 = arith.constant 0 : index
      %c0_33 = arith.constant 0 : index
      %34 = vector.load %arg6[%c3, %33, %c0_32, %c0_33] : memref<9x10x10x128xf32, #tpu.memory_space<vmem>>, vector<1x2x10x128xf32>
      %35 = vector.shape_cast %34 : vector<1x2x10x128xf32> to vector<2x10x128xf32>
      %36 = arith.mulf %32, %35 : vector<2x10x128xf32>
      %37 = arith.addf %29, %36 : vector<2x10x128xf32>
      %c1_i32_34 = arith.constant 1 : i32
      %38 = arith.addi %6, %c1_i32_34 : i32
      %39 = arith.index_cast %38 : i32 to index
      %c1_35 = arith.constant 1 : index
      %c0_36 = arith.constant 0 : index
      %40 = vector.load %arg9[%39, %c1_35, %c0_36] : memref<20x20x128xf32, #tpu.memory_space<vmem>>, vector<2x10x128xf32>
      %c4 = arith.constant 4 : index
      %41 = arith.index_cast %6 : i32 to index
      %c0_37 = arith.constant 0 : index
      %c0_38 = arith.constant 0 : index
      %42 = vector.load %arg6[%c4, %41, %c0_37, %c0_38] : memref<9x10x10x128xf32, #tpu.memory_space<vmem>>, vector<1x2x10x128xf32>
      %43 = vector.shape_cast %42 : vector<1x2x10x128xf32> to vector<2x10x128xf32>
      %44 = arith.mulf %40, %43 : vector<2x10x128xf32>
      %45 = arith.addf %37, %44 : vector<2x10x128xf32>
      %c1_i32_39 = arith.constant 1 : i32
      %46 = arith.addi %6, %c1_i32_39 : i32
      %47 = arith.index_cast %46 : i32 to index
      %c2_40 = arith.constant 2 : index
      %c0_41 = arith.constant 0 : index
      %48 = vector.load %arg9[%47, %c2_40, %c0_41] : memref<20x20x128xf32, #tpu.memory_space<vmem>>, vector<2x10x128xf32>
      %c5 = arith.constant 5 : index
      %49 = arith.index_cast %6 : i32 to index
      %c0_42 = arith.constant 0 : index
      %c0_43 = arith.constant 0 : index
      %50 = vector.load %arg6[%c5, %49, %c0_42, %c0_43] : memref<9x10x10x128xf32, #tpu.memory_space<vmem>>, vector<1x2x10x128xf32>
      %51 = vector.shape_cast %50 : vector<1x2x10x128xf32> to vector<2x10x128xf32>
      %52 = arith.mulf %48, %51 : vector<2x10x128xf32>
      %53 = arith.addf %45, %52 : vector<2x10x128xf32>
      %c2_i32_44 = arith.constant 2 : i32
      %54 = arith.addi %6, %c2_i32_44 : i32
      %55 = arith.index_cast %54 : i32 to index
      %c0_45 = arith.constant 0 : index
      %c0_46 = arith.constant 0 : index
      %56 = vector.load %arg9[%55, %c0_45, %c0_46] : memref<20x20x128xf32, #tpu.memory_space<vmem>>, vector<2x10x128xf32>
      %c6 = arith.constant 6 : index
      %57 = arith.index_cast %6 : i32 to index
      %c0_47 = arith.constant 0 : index
      %c0_48 = arith.constant 0 : index
      %58 = vector.load %arg6[%c6, %57, %c0_47, %c0_48] : memref<9x10x10x128xf32, #tpu.memory_space<vmem>>, vector<1x2x10x128xf32>
      %59 = vector.shape_cast %58 : vector<1x2x10x128xf32> to vector<2x10x128xf32>
      %60 = arith.mulf %56, %59 : vector<2x10x128xf32>
      %61 = arith.addf %53, %60 : vector<2x10x128xf32>
      %c2_i32_49 = arith.constant 2 : i32
      %62 = arith.addi %6, %c2_i32_49 : i32
      %63 = arith.index_cast %62 : i32 to index
      %c1_50 = arith.constant 1 : index
      %c0_51 = arith.constant 0 : index
      %64 = vector.load %arg9[%63, %c1_50, %c0_51] : memref<20x20x128xf32, #tpu.memory_space<vmem>>, vector<2x10x128xf32>
      %c7 = arith.constant 7 : index
      %65 = arith.index_cast %6 : i32 to index
      %c0_52 = arith.constant 0 : index
      %c0_53 = arith.constant 0 : index
      %66 = vector.load %arg6[%c7, %65, %c0_52, %c0_53] : memref<9x10x10x128xf32, #tpu.memory_space<vmem>>, vector<1x2x10x128xf32>
      %67 = vector.shape_cast %66 : vector<1x2x10x128xf32> to vector<2x10x128xf32>
      %68 = arith.mulf %64, %67 : vector<2x10x128xf32>
      %69 = arith.addf %61, %68 : vector<2x10x128xf32>
      %c2_i32_54 = arith.constant 2 : i32
      %70 = arith.addi %6, %c2_i32_54 : i32
      %71 = arith.index_cast %70 : i32 to index
      %c2_55 = arith.constant 2 : index
      %c0_56 = arith.constant 0 : index
      %72 = vector.load %arg9[%71, %c2_55, %c0_56] : memref<20x20x128xf32, #tpu.memory_space<vmem>>, vector<2x10x128xf32>
      %c8 = arith.constant 8 : index
      %73 = arith.index_cast %6 : i32 to index
      %c0_57 = arith.constant 0 : index
      %c0_58 = arith.constant 0 : index
      %74 = vector.load %arg6[%c8, %73, %c0_57, %c0_58] : memref<9x10x10x128xf32, #tpu.memory_space<vmem>>, vector<1x2x10x128xf32>
      %75 = vector.shape_cast %74 : vector<1x2x10x128xf32> to vector<2x10x128xf32>
      %76 = arith.mulf %72, %75 : vector<2x10x128xf32>
      %77 = arith.addf %69, %76 : vector<2x10x128xf32>
      %78 = arith.index_cast %6 : i32 to index
      %c0_59 = arith.constant 0 : index
      %c0_60 = arith.constant 0 : index
      %79 = vector.load %arg7[%78, %c0_59, %c0_60] : memref<10x10x128xf32, #tpu.memory_space<vmem>>, vector<2x10x128xf32>
      tpu.vector_store %arg7[%78, %c0_59, %c0_60], %77 {strides = array<i32>} : memref<10x10x128xf32, #tpu.memory_space<vmem>>, vector<2x10x128xf32>,
    }
    %c5_i32_13 = arith.constant 5 : i32
    return
  }
  func.func @transform_0(%arg0: i32) -> (i32, i32, i32) {
    %c0_i32 = arith.constant 0 : i32
    %c0_i32_0 = arith.constant 0 : i32
    %c0_i32_1 = arith.constant 0 : i32
    return %c0_i32, %c0_i32_0, %arg0 : i32, i32, i32
  }
  func.func @transform_1(%arg0: i32) -> (i32, i32, i32, i32) {
    %c0_i32 = arith.constant 0 : i32
    %c0_i32_0 = arith.constant 0 : i32
    %c0_i32_1 = arith.constant 0 : i32
    %c0_i32_2 = arith.constant 0 : i32
    %c0_i32_3 = arith.constant 0 : i32
    return %c0_i32, %c0_i32_0, %c0_i32_1, %c0_i32_2 : i32, i32, i32, i32
  }
  func.func @transform_2(%arg0: i32) -> (i32, i32, i32, i32) {
    %c0_i32 = arith.constant 0 : i32
    %c0_i32_0 = arith.constant 0 : i32
    %c0_i32_1 = arith.constant 0 : i32
    %c0_i32_2 = arith.constant 0 : i32
    %c0_i32_3 = arith.constant 0 : i32
    return %c0_i32, %c0_i32_0, %c0_i32_1, %c0_i32_2 : i32, i32, i32, i32
  }
  func.func @transform_3(%arg0: i32) -> (i32, i32, i32, i32) {
    %c0_i32 = arith.constant 0 : i32
    %c0_i32_0 = arith.constant 0 : i32
    %c0_i32_1 = arith.constant 0 : i32
    %c0_i32_2 = arith.constant 0 : i32
    %c0_i32_3 = arith.constant 0 : i32
    return %c0_i32, %c0_i32_0, %c0_i32_1, %c0_i32_2 : i32, i32, i32, i32
  }
  func.func @transform_4(%arg0: i32) -> (i32, i32, i32, i32) {
    %c0_i32 = arith.constant 0 : i32
    %c0_i32_0 = arith.constant 0 : i32
    %c0_i32_1 = arith.constant 0 : i32
    %c0_i32_2 = arith.constant 0 : i32
    %c0_i32_3 = arith.constant 0 : i32
    return %c0_i32, %c0_i32_0, %c0_i32_1, %c0_i32_2 : i32, i32, i32, i32
  }
  func.func @transform_5(%arg0: i32) -> (i32, i32, i32, i32) {
    %c0_i32 = arith.constant 0 : i32
    %c0_i32_0 = arith.constant 0 : i32
    %c0_i32_1 = arith.constant 0 : i32
    %c0_i32_2 = arith.constant 0 : i32
    %c0_i32_3 = arith.constant 0 : i32
    return %c0_i32, %c0_i32_0, %c0_i32_1, %c0_i32_2 : i32, i32, i32, i32
  }
  func.func @transform_6(%arg0: i32) -> (i32, i32, i32) {
    %c0_i32 = arith.constant 0 : i32
    %c0_i32_0 = arith.constant 0 : i32
    %c0_i32_1 = arith.constant 0 : i32
    return %c0_i32, %c0_i32_0, %arg0 : i32, i32, i32
  }
}

</mosaic_0001>

<llo_original>
// kernel: _lambda_.1
$region0: #{_lambda_.1}
  #allocation0 [shape = 'u32[]', space=smem, size = 0x4, offset = 0x4, fixed_abs, tag = 'smem constant byte address 0x4 - core index']
  #allocation1 [shape = 'u32[144,128]{1,0:T(1,128)}', space=vmem, size = 0x12000, scoped, tag = 'internal scratch']
  #allocation2 [shape = 'f32[24,24,128]{2,1,0:T(8,128)}', space=vmem, size = 0x48000, scoped, tag = 'scratch operand']
  #allocation3 [shape = 'f32[20,20,128]{2,1,0:T(8,128)}', space=vmem, size = 0x3c000, scoped, tag = 'scratch operand']
  %s0 = inlined_call_operand.hbm [shape: f32[28,28,128], index: 0, kind: input, shape index: {}]
  %s1 = inlined_call_operand.vmem [shape: f32[25,24,24,128], index: 1, kind: input, shape index: {}]
  %s2 = inlined_call_operand.vmem [shape: f32[25,20,20,128], index: 2, kind: input, shape index: {}]
  %s3 = inlined_call_operand.hbm [shape: f32[25,16,16,128], index: 3, kind: input, shape index: {}]
  %s4 = inlined_call_operand.vmem [shape: f32[25,12,12,128], index: 4, kind: input, shape index: {}]
  %s5 = inlined_call_operand.vmem [shape: f32[9,10,10,128], index: 5, kind: input, shape index: {}]
  %s6 = inlined_call_operand.hbm [shape: f32[10,10,128], index: 6, kind: output, shape index: {}]
  %s7 = sld [smem:[#allocation0]]
  $region77: #{_lambda_.1} parent=0
    _
  %s9 = ssub.s32 1, %s7
  %s10 = scalar_select 0, %s9, %s7
  $region1: #{_lambda_.1} parent=0
    #allocation4 [shape = 'u8[458752]{0}', space=vmem, size = 0x70000, scoped, tag = 'input window, operand 0, single buffered']
    #allocation5 [shape = 's32[1]{0}', space=sflag, size = 0x4, scoped, tag = 'scoped memory for _lambda_.1']
    #allocation6 [shape = 's32[1]{0}', space=sflag, size = 0x4, scoped, tag = 'scoped memory for _lambda_.1']
    #allocation7 [shape = 'u8[3276800]{0}', space=vmem, size = 0x320000, scoped, tag = 'input window, operand 3, single buffered']
    #allocation8 [shape = 's32[1]{0}', space=sflag, size = 0x4, scoped, tag = 'scoped memory for _lambda_.1']
    #allocation9 [shape = 'u8[81920]{0}', space=vmem, size = 0x14000, scoped, tag = 'output window, operand 0, single buffered']
    %11 = vsyncpa [#allocation5], 0
    %12 = vsyncpa [#allocation8], 0
    %13 = vsyncpa [#allocation6], 0
    // Predicated region
    $region2: #{_lambda_.1} parent=1 // pred_check
      _
    $region3: #{_lambda_.1} parent=1 // pred_check_branch
      %15 = sbr.rel (0) target = $region5
    $region4: #{_lambda_.1} parent=1 // pred_region
      %s17 = ssub.s32 14336, 14336
      %18 = vsyncadd [#allocation5], %s17
      %s19 = sshll.u32 [#allocation4], 4
      %s20 = int_to_ptr.vmem [resolvable:$true] %s19
      %25 = dma.hbm_to_vmem [thread:$0]  %s0, 14336, %s20, [#allocation5], 128, 128, 8
    $region5: #{_lambda_.1} parent=1 // pred_fallthru
      _
    // Predicated region
    $region6: #{_lambda_.1} parent=1 // pred_check
      _
    $region7: #{_lambda_.1} parent=1 // pred_check_branch
      %27 = sbr.rel (0) target = $region9
    $region8: #{_lambda_.1} parent=1 // pred_region
      _
    $region9: #{_lambda_.1} parent=1 // pred_fallthru
      _
    // Predicated region
    $region10: #{_lambda_.1} parent=1 // pred_check
      _
    $region11: #{_lambda_.1} parent=1 // pred_check_branch
      %29 = sbr.rel (0) target = $region13
    $region12: #{_lambda_.1} parent=1 // pred_region
      _
    $region13: #{_lambda_.1} parent=1 // pred_fallthru
      _
    // Predicated region
    $region14: #{_lambda_.1} parent=1 // pred_check
      _
    $region15: #{_lambda_.1} parent=1 // pred_check_branch
      %31 = sbr.rel (0) target = $region17
    $region16: #{_lambda_.1} parent=1 // pred_region
      %s33 = ssub.s32 102400, 102400
      %34 = vsyncadd [#allocation8], %s33
      %s35 = sshll.u32 [#allocation7], 4
      %s36 = int_to_ptr.vmem [resolvable:$true] %s35
      %41 = dma.hbm_to_vmem [thread:$0]  %s3, 102400, %s36, [#allocation8], 128, 128, 8
    $region17: #{_lambda_.1} parent=1 // pred_fallthru
      _
    // Predicated region
    $region18: #{_lambda_.1} parent=1 // pred_check
      _
    $region19: #{_lambda_.1} parent=1 // pred_check_branch
      %43 = sbr.rel (0) target = $region21
    $region20: #{_lambda_.1} parent=1 // pred_region
      _
    $region21: #{_lambda_.1} parent=1 // pred_fallthru
      _
    // Predicated region
    $region22: #{_lambda_.1} parent=1 // pred_check
      _
    $region23: #{_lambda_.1} parent=1 // pred_check_branch
      %45 = sbr.rel (0) target = $region25
    $region24: #{_lambda_.1} parent=1 // pred_region
      _
    $region25: #{_lambda_.1} parent=1 // pred_fallthru
      _
    // Predicated region
    $region26: #{_lambda_.1} parent=1 // pred_check
      _
    $region27: #{_lambda_.1} parent=1 // pred_check_branch
      %47 = sbr.rel (0) target = $region29
    $region28: #{_lambda_.1} parent=1 // pred_region
      %48 = dma.done [#allocation5], 14336
    $region29: #{_lambda_.1} parent=1 // pred_fallthru
      _
    // Predicated region
    $region30: #{_lambda_.1} parent=1 // pred_check
      _
    $region31: #{_lambda_.1} parent=1 // pred_check_branch
      %50 = sbr.rel (0) target = $region33
    $region32: #{_lambda_.1} parent=1 // pred_region
      %51 = dma.done [#allocation8], 102400
    $region33: #{_lambda_.1} parent=1 // pred_fallthru
      _
    loop: start=0, step=1, limit=6
    $region34: #{_lambda_.1} parent=1 // loop_pre_header
      _
    $region35: #{_lambda_.1} parent=1 // loop_header
      %s53 = sphi 0, %s57
      %p54 = scmp.ge.s32.totalorder %s53, 6
    $region36: #{_lambda_.1} parent=1 // loop_header_branch
      %56 = sbr.rel (%p54) target = $region40
    $region37: #{_lambda_.1} parent=1 // loop_body
      %s58 = smul.u32 %s53, 4
      %s59 = smul.u32 %s58, 32
      %s60 = scalar_lea.vmem [#allocation4], %s59
      %v61 = vld [vmem:[%s60] sm:$0xff]
      %v62 = vld [vmem:[%s60 + $0x8] sm:$0xff]
      %v63 = vld [vmem:[%s60 + $0x10] sm:$0xff]
      %v64 = vld [vmem:[%s60 + $0x20] sm:$0xff]
      %v65 = vld [vmem:[%s60 + $0x28] sm:$0xff]
      %v66 = vld [vmem:[%s60 + $0x30] sm:$0xff]
      %v67 = vld [vmem:[%s60 + $0x40] sm:$0xff]
      %v68 = vld [vmem:[%s60 + $0x48] sm:$0xff]
      %v69 = vld [vmem:[%s60 + $0x50] sm:$0xff]
      %v70 = vld [vmem:[%s60 + $0x60] sm:$0xff]
      %v71 = vld [vmem:[%s60 + $0x68] sm:$0xff]
      %v72 = vld [vmem:[%s60 + $0x70] sm:$0xff]
      %s73 = smul.u32 %s58, 24
      %s74 = scalar_lea.vmem %s1, %s73
      %v75 = vld [vmem:[%s74] sm:$0xff]
      %v76 = vld [vmem:[%s74 + $0x8] sm:$0xff]
      %v77 = vld [vmem:[%s74 + $0x10] sm:$0xff]
      %v78 = vld [vmem:[%s74 + $0x18] sm:$0xff]
      %v79 = vld [vmem:[%s74 + $0x20] sm:$0xff]
      %v80 = vld [vmem:[%s74 + $0x28] sm:$0xff]
      %v81 = vld [vmem:[%s74 + $0x30] sm:$0xff]
      %v82 = vld [vmem:[%s74 + $0x38] sm:$0xff]
      %v83 = vld [vmem:[%s74 + $0x40] sm:$0xff]
      %v84 = vld [vmem:[%s74 + $0x48] sm:$0xff]
      %v85 = vld [vmem:[%s74 + $0x50] sm:$0xff]
      %v86 = vld [vmem:[%s74 + $0x58] sm:$0xff]
      %v87 = vmul.f32 %v61, %v75
      %v88 = vmul.f32 %v62, %v76
      %v89 = vmul.f32 %v63, %v77
      %v90 = vmul.f32 %v64, %v78
      %v91 = vmul.f32 %v65, %v79
      %v92 = vmul.f32 %v66, %v80
      %v93 = vmul.f32 %v67, %v81
      %v94 = vmul.f32 %v68, %v82
      %v95 = vmul.f32 %v69, %v83
      %v96 = vmul.f32 %v70, %v84
      %v97 = vmul.f32 %v71, %v85
      %v98 = vmul.f32 %v72, %v86
      %v99 = vld [vmem:[%s60 + $0x1] sm:$0xff]
      %v100 = vld [vmem:[%s60 + $0x9] sm:$0xff]
      %v101 = vld [vmem:[%s60 + $0x11] sm:$0xff]
      %v102 = vld [vmem:[%s60 + $0x21] sm:$0xff]
      %v103 = vld [vmem:[%s60 + $0x29] sm:$0xff]
      %v104 = vld [vmem:[%s60 + $0x31] sm:$0xff]
      %v105 = vld [vmem:[%s60 + $0x41] sm:$0xff]
      %v106 = vld [vmem:[%s60 + $0x49] sm:$0xff]
      %v107 = vld [vmem:[%s60 + $0x51] sm:$0xff]
      %v108 = vld [vmem:[%s60 + $0x61] sm:$0xff]
      %v109 = vld [vmem:[%s60 + $0x69] sm:$0xff]
      %v110 = vld [vmem:[%s60 + $0x71] sm:$0xff]
      %s111 = sadd.s32 %s73, 576
      %s112 = scalar_lea.vmem %s1, %s111
      %v113 = vld [vmem:[%s112] sm:$0xff]
      %v114 = vld [vmem:[%s112 + $0x8] sm:$0xff]
      %v115 = vld [vmem:[%s112 + $0x10] sm:$0xff]
      %v116 = vld [vmem:[%s112 + $0x18] sm:$0xff]
      %v117 = vld [vmem:[%s112 + $0x20] sm:$0xff]
      %v118 = vld [vmem:[%s112 + $0x28] sm:$0xff]
      %v119 = vld [vmem:[%s112 + $0x30] sm:$0xff]
      %v120 = vld [vmem:[%s112 + $0x38] sm:$0xff]
      %v121 = vld [vmem:[%s112 + $0x40] sm:$0xff]
      %v122 = vld [vmem:[%s112 + $0x48] sm:$0xff]
      %v123 = vld [vmem:[%s112 + $0x50] sm:$0xff]
      %v124 = vld [vmem:[%s112 + $0x58] sm:$0xff]
      %v125 = vmul.f32 %v99, %v113
      %v126 = vmul.f32 %v100, %v114
      %v127 = vmul.f32 %v101, %v115
      %v128 = vmul.f32 %v102, %v116
      %v129 = vmul.f32 %v103, %v117
      %v130 = vmul.f32 %v104, %v118
      %v131 = vmul.f32 %v105, %v119
      %v132 = vmul.f32 %v106, %v120
      %v133 = vmul.f32 %v107, %v121
      %v134 = vmul.f32 %v108, %v122
      %v135 = vmul.f32 %v109, %v123
      %v136 = vmul.f32 %v110, %v124
      %v137 = vadd.f32 %v87, %v125
      %v138 = vadd.f32 %v88, %v126
      %v139 = vadd.f32 %v89, %v127
      %v140 = vadd.f32 %v90, %v128
      %v141 = vadd.f32 %v91, %v129
      %v142 = vadd.f32 %v92, %v130
      %v143 = vadd.f32 %v93, %v131
      %v144 = vadd.f32 %v94, %v132
      %v145 = vadd.f32 %v95, %v133
      %v146 = vadd.f32 %v96, %v134
      %v147 = vadd.f32 %v97, %v135
      %v148 = vadd.f32 %v98, %v136
      %v149 = vld [vmem:[%s60 + $0x2] sm:$0xff]
      %v150 = vld [vmem:[%s60 + $0xa] sm:$0xff]
      %v151 = vld [vmem:[%s60 + $0x12] sm:$0xff]
      %v152 = vld [vmem:[%s60 + $0x22] sm:$0xff]
      %v153 = vld [vmem:[%s60 + $0x2a] sm:$0xff]
      %v154 = vld [vmem:[%s60 + $0x32] sm:$0xff]
      %v155 = vld [vmem:[%s60 + $0x42] sm:$0xff]
      %v156 = vld [vmem:[%s60 + $0x4a] sm:$0xff]
      %v157 = vld [vmem:[%s60 + $0x52] sm:$0xff]
      %v158 = vld [vmem:[%s60 + $0x62] sm:$0xff]
      %v159 = vld [vmem:[%s60 + $0x6a] sm:$0xff]
      %v160 = vld [vmem:[%s60 + $0x72] sm:$0xff]
      %s161 = sadd.s32 %s73, 1152
      %s162 = scalar_lea.vmem %s1, %s161
      %v163 = vld [vmem:[%s162] sm:$0xff]
      %v164 = vld [vmem:[%s162 + $0x8] sm:$0xff]
      %v165 = vld [vmem:[%s162 + $0x10] sm:$0xff]
      %v166 = vld [vmem:[%s162 + $0x18] sm:$0xff]
      %v167 = vld [vmem:[%s162 + $0x20] sm:$0xff]
      %v168 = vld [vmem:[%s162 + $0x28] sm:$0xff]
      %v169 = vld [vmem:[%s162 + $0x30] sm:$0xff]
      %v170 = vld [vmem:[%s162 + $0x38] sm:$0xff]
      %v171 = vld [vmem:[%s162 + $0x40] sm:$0xff]
      %v172 = vld [vmem:[%s162 + $0x48] sm:$0xff]
      %v173 = vld [vmem:[%s162 + $0x50] sm:$0xff]
      %v174 = vld [vmem:[%s162 + $0x58] sm:$0xff]
      %v175 = vmul.f32 %v149, %v163
      %v176 = vmul.f32 %v150, %v164
      %v177 = vmul.f32 %v151, %v165
      %v178 = vmul.f32 %v152, %v166
      %v179 = vmul.f32 %v153, %v167
      %v180 = vmul.f32 %v154, %v168
      %v181 = vmul.f32 %v155, %v169
      %v182 = vmul.f32 %v156, %v170
      %v183 = vmul.f32 %v157, %v171
      %v184 = vmul.f32 %v158, %v172
      %v185 = vmul.f32 %v159, %v173
      %v186 = vmul.f32 %v160, %v174
      %v187 = vadd.f32 %v137, %v175
      %v188 = vadd.f32 %v138, %v176
      %v189 = vadd.f32 %v139, %v177
      %v190 = vadd.f32 %v140, %v178
      %v191 = vadd.f32 %v141, %v179
      %v192 = vadd.f32 %v142, %v180
      %v193 = vadd.f32 %v143, %v181
      %v194 = vadd.f32 %v144, %v182
      %v195 = vadd.f32 %v145, %v183
      %v196 = vadd.f32 %v146, %v184
      %v197 = vadd.f32 %v147, %v185
      %v198 = vadd.f32 %v148, %v186
      %v199 = vld [vmem:[%s60 + $0x3] sm:$0xff]
      %v200 = vld [vmem:[%s60 + $0xb] sm:$0xff]
      %v201 = vld [vmem:[%s60 + $0x13] sm:$0xff]
      %v202 = vld [vmem:[%s60 + $0x23] sm:$0xff]
      %v203 = vld [vmem:[%s60 + $0x2b] sm:$0xff]
      %v204 = vld [vmem:[%s60 + $0x33] sm:$0xff]
      %v205 = vld [vmem:[%s60 + $0x43] sm:$0xff]
      %v206 = vld [vmem:[%s60 + $0x4b] sm:$0xff]
      %v207 = vld [vmem:[%s60 + $0x53] sm:$0xff]
      %v208 = vld [vmem:[%s60 + $0x63] sm:$0xff]
      %v209 = vld [vmem:[%s60 + $0x6b] sm:$0xff]
      %v210 = vld [vmem:[%s60 + $0x73] sm:$0xff]
      %s211 = sadd.s32 %s73, 1728
      %s212 = scalar_lea.vmem %s1, %s211
      %v213 = vld [vmem:[%s212] sm:$0xff]
      %v214 = vld [vmem:[%s212 + $0x8] sm:$0xff]
      %v215 = vld [vmem:[%s212 + $0x10] sm:$0xff]
      %v216 = vld [vmem:[%s212 + $0x18] sm:$0xff]
      %v217 = vld [vmem:[%s212 + $0x20] sm:$0xff]
      %v218 = vld [vmem:[%s212 + $0x28] sm:$0xff]
      %v219 = vld [vmem:[%s212 + $0x30] sm:$0xff]
      %v220 = vld [vmem:[%s212 + $0x38] sm:$0xff]
      %v221 = vld [vmem:[%s212 + $0x40] sm:$0xff]
      %v222 = vld [vmem:[%s212 + $0x48] sm:$0xff]
      %v223 = vld [vmem:[%s212 + $0x50] sm:$0xff]
      %v224 = vld [vmem:[%s212 + $0x58] sm:$0xff]
      %v225 = vmul.f32 %v199, %v213
      %v226 = vmul.f32 %v200, %v214
      %v227 = vmul.f32 %v201, %v215
      %v228 = vmul.f32 %v202, %v216
      %v229 = vmul.f32 %v203, %v217
      %v230 = vmul.f32 %v204, %v218
      %v231 = vmul.f32 %v205, %v219
      %v232 = vmul.f32 %v206, %v220
      %v233 = vmul.f32 %v207, %v221
      %v234 = vmul.f32 %v208, %v222
      %v235 = vmul.f32 %v209, %v223
      %v236 = vmul.f32 %v210, %v224
      %v237 = vadd.f32 %v187, %v225
      %v238 = vadd.f32 %v188, %v226
      %v239 = vadd.f32 %v189, %v227
      %v240 = vadd.f32 %v190, %v228
      %v241 = vadd.f32 %v191, %v229
      %v242 = vadd.f32 %v192, %v230
      %v243 = vadd.f32 %v193, %v231
      %v244 = vadd.f32 %v194, %v232
      %v245 = vadd.f32 %v195, %v233
      %v246 = vadd.f32 %v196, %v234
      %v247 = vadd.f32 %v197, %v235
      %v248 = vadd.f32 %v198, %v236
      %v249 = vld [vmem:[%s60 + $0x4] sm:$0xff]
      %v250 = vld [vmem:[%s60 + $0xc] sm:$0xff]
      %v251 = vld [vmem:[%s60 + $0x14] sm:$0xff]
      %v252 = vld [vmem:[%s60 + $0x24] sm:$0xff]
      %v253 = vld [vmem:[%s60 + $0x2c] sm:$0xff]
      %v254 = vld [vmem:[%s60 + $0x34] sm:$0xff]
      %v255 = vld [vmem:[%s60 + $0x44] sm:$0xff]
      %v256 = vld [vmem:[%s60 + $0x4c] sm:$0xff]
      %v257 = vld [vmem:[%s60 + $0x54] sm:$0xff]
      %v258 = vld [vmem:[%s60 + $0x64] sm:$0xff]
      %v259 = vld [vmem:[%s60 + $0x6c] sm:$0xff]
      %v260 = vld [vmem:[%s60 + $0x74] sm:$0xff]
      %s261 = sadd.s32 %s73, 2304
      %s262 = scalar_lea.vmem %s1, %s261
      %v263 = vld [vmem:[%s262] sm:$0xff]
      %v264 = vld [vmem:[%s262 + $0x8] sm:$0xff]
      %v265 = vld [vmem:[%s262 + $0x10] sm:$0xff]
      %v266 = vld [vmem:[%s262 + $0x18] sm:$0xff]
      %v267 = vld [vmem:[%s262 + $0x20] sm:$0xff]
      %v268 = vld [vmem:[%s262 + $0x28] sm:$0xff]
      %v269 = vld [vmem:[%s262 + $0x30] sm:$0xff]
      %v270 = vld [vmem:[%s262 + $0x38] sm:$0xff]
      %v271 = vld [vmem:[%s262 + $0x40] sm:$0xff]
      %v272 = vld [vmem:[%s262 + $0x48] sm:$0xff]
      %v273 = vld [vmem:[%s262 + $0x50] sm:$0xff]
      %v274 = vld [vmem:[%s262 + $0x58] sm:$0xff]
      %v275 = vmul.f32 %v249, %v263
      %v276 = vmul.f32 %v250, %v264
      %v277 = vmul.f32 %v251, %v265
      %v278 = vmul.f32 %v252, %v266
      %v279 = vmul.f32 %v253, %v267
      %v280 = vmul.f32 %v254, %v268
      %v281 = vmul.f32 %v255, %v269
      %v282 = vmul.f32 %v256, %v270
      %v283 = vmul.f32 %v257, %v271
      %v284 = vmul.f32 %v258, %v272
      %v285 = vmul.f32 %v259, %v273
      %v286 = vmul.f32 %v260, %v274
      %v287 = vadd.f32 %v237, %v275
      %v288 = vadd.f32 %v238, %v276
      %v289 = vadd.f32 %v239, %v277
      %v290 = vadd.f32 %v240, %v278
      %v291 = vadd.f32 %v241, %v279
      %v292 = vadd.f32 %v242, %v280
      %v293 = vadd.f32 %v243, %v281
      %v294 = vadd.f32 %v244, %v282
      %v295 = vadd.f32 %v245, %v283
      %v296 = vadd.f32 %v246, %v284
      %v297 = vadd.f32 %v247, %v285
      %v298 = vadd.f32 %v248, %v286
      %s299 = sadd.s32 %s58, 1
      %s300 = smul.u32 %s299, 32
      %s301 = scalar_lea.vmem [#allocation4], %s300
      %v302 = vld [vmem:[%s301] sm:$0xff]
      %v303 = vld [vmem:[%s301 + $0x8] sm:$0xff]
      %v304 = vld [vmem:[%s301 + $0x10] sm:$0xff]
      %v305 = vld [vmem:[%s301 + $0x20] sm:$0xff]
      %v306 = vld [vmem:[%s301 + $0x28] sm:$0xff]
      %v307 = vld [vmem:[%s301 + $0x30] sm:$0xff]
      %v308 = vld [vmem:[%s301 + $0x40] sm:$0xff]
      %v309 = vld [vmem:[%s301 + $0x48] sm:$0xff]
      %v310 = vld [vmem:[%s301 + $0x50] sm:$0xff]
      %v311 = vld [vmem:[%s301 + $0x60] sm:$0xff]
      %v312 = vld [vmem:[%s301 + $0x68] sm:$0xff]
      %v313 = vld [vmem:[%s301 + $0x70] sm:$0xff]
      %s314 = sadd.s32 %s73, 2880
      %s315 = scalar_lea.vmem %s1, %s314
      %v316 = vld [vmem:[%s315] sm:$0xff]
      %v317 = vld [vmem:[%s315 + $0x8] sm:$0xff]
      %v318 = vld [vmem:[%s315 + $0x10] sm:$0xff]
      %v319 = vld [vmem:[%s315 + $0x18] sm:$0xff]
      %v320 = vld [vmem:[%s315 + $0x20] sm:$0xff]
      %v321 = vld [vmem:[%s315 + $0x28] sm:$0xff]
      %v322 = vld [vmem:[%s315 + $0x30] sm:$0xff]
      %v323 = vld [vmem:[%s315 + $0x38] sm:$0xff]
      %v324 = vld [vmem:[%s315 + $0x40] sm:$0xff]
      %v325 = vld [vmem:[%s315 + $0x48] sm:$0xff]
      %v326 = vld [vmem:[%s315 + $0x50] sm:$0xff]
      %v327 = vld [vmem:[%s315 + $0x58] sm:$0xff]
      %v328 = vmul.f32 %v302, %v316
      %v329 = vmul.f32 %v303, %v317
      %v330 = vmul.f32 %v304, %v318
      %v331 = vmul.f32 %v305, %v319
      %v332 = vmul.f32 %v306, %v320
      %v333 = vmul.f32 %v307, %v321
      %v334 = vmul.f32 %v308, %v322
      %v335 = vmul.f32 %v309, %v323
      %v336 = vmul.f32 %v310, %v324
      %v337 = vmul.f32 %v311, %v325
      %v338 = vmul.f32 %v312, %v326
      %v339 = vmul.f32 %v313, %v327
      %v340 = vadd.f32 %v287, %v328
      %v341 = vadd.f32 %v288, %v329
      %v342 = vadd.f32 %v289, %v330
      %v343 = vadd.f32 %v290, %v331
      %v344 = vadd.f32 %v291, %v332
      %v345 = vadd.f32 %v292, %v333
      %v346 = vadd.f32 %v293, %v334
      %v347 = vadd.f32 %v294, %v335
      %v348 = vadd.f32 %v295, %v336
      %v349 = vadd.f32 %v296, %v337
      %v350 = vadd.f32 %v297, %v338
      %v351 = vadd.f32 %v298, %v339
      %v352 = vld [vmem:[%s301 + $0x1] sm:$0xff]
      %v353 = vld [vmem:[%s301 + $0x9] sm:$0xff]
      %v354 = vld [vmem:[%s301 + $0x11] sm:$0xff]
      %v355 = vld [vmem:[%s301 + $0x21] sm:$0xff]
      %v356 = vld [vmem:[%s301 + $0x29] sm:$0xff]
      %v357 = vld [vmem:[%s301 + $0x31] sm:$0xff]
      %v358 = vld [vmem:[%s301 + $0x41] sm:$0xff]
      %v359 = vld [vmem:[%s301 + $0x49] sm:$0xff]
      %v360 = vld [vmem:[%s301 + $0x51] sm:$0xff]
      %v361 = vld [vmem:[%s301 + $0x61] sm:$0xff]
      %v362 = vld [vmem:[%s301 + $0x69] sm:$0xff]
      %v363 = vld [vmem:[%s301 + $0x71] sm:$0xff]
      %s364 = sadd.s32 %s73, 3456
      %s365 = scalar_lea.vmem %s1, %s364
      %v366 = vld [vmem:[%s365] sm:$0xff]
      %v367 = vld [vmem:[%s365 + $0x8] sm:$0xff]
      %v368 = vld [vmem:[%s365 + $0x10] sm:$0xff]
      %v369 = vld [vmem:[%s365 + $0x18] sm:$0xff]
      %v370 = vld [vmem:[%s365 + $0x20] sm:$0xff]
      %v371 = vld [vmem:[%s365 + $0x28] sm:$0xff]
      %v372 = vld [vmem:[%s365 + $0x30] sm:$0xff]
      %v373 = vld [vmem:[%s365 + $0x38] sm:$0xff]
      %v374 = vld [vmem:[%s365 + $0x40] sm:$0xff]
      %v375 = vld [vmem:[%s365 + $0x48] sm:$0xff]
      %v376 = vld [vmem:[%s365 + $0x50] sm:$0xff]
      %v377 = vld [vmem:[%s365 + $0x58] sm:$0xff]
      %v378 = vmul.f32 %v352, %v366
      %v379 = vmul.f32 %v353, %v367
      %v380 = vmul.f32 %v354, %v368
      %v381 = vmul.f32 %v355, %v369
      %v382 = vmul.f32 %v356, %v370
      %v383 = vmul.f32 %v357, %v371
      %v384 = vmul.f32 %v358, %v372
      %v385 = vmul.f32 %v359, %v373
      %v386 = vmul.f32 %v360, %v374
      %v387 = vmul.f32 %v361, %v375
      %v388 = vmul.f32 %v362, %v376
      %v389 = vmul.f32 %v363, %v377
      %v390 = vadd.f32 %v340, %v378
      %v391 = vadd.f32 %v341, %v379
      %v392 = vadd.f32 %v342, %v380
      %v393 = vadd.f32 %v343, %v381
      %v394 = vadd.f32 %v344, %v382
      %v395 = vadd.f32 %v345, %v383
      %v396 = vadd.f32 %v346, %v384
      %v397 = vadd.f32 %v347, %v385
      %v398 = vadd.f32 %v348, %v386
      %v399 = vadd.f32 %v349, %v387
      %v400 = vadd.f32 %v350, %v388
      %v401 = vadd.f32 %v351, %v389
      %v402 = vld [vmem:[%s301 + $0x2] sm:$0xff]
      %v403 = vld [vmem:[%s301 + $0xa] sm:$0xff]
      %v404 = vld [vmem:[%s301 + $0x12] sm:$0xff]
      %v405 = vld [vmem:[%s301 + $0x22] sm:$0xff]
      %v406 = vld [vmem:[%s301 + $0x2a] sm:$0xff]
      %v407 = vld [vmem:[%s301 + $0x32] sm:$0xff]
      %v408 = vld [vmem:[%s301 + $0x42] sm:$0xff]
      %v409 = vld [vmem:[%s301 + $0x4a] sm:$0xff]
      %v410 = vld [vmem:[%s301 + $0x52] sm:$0xff]
      %v411 = vld [vmem:[%s301 + $0x62] sm:$0xff]
      %v412 = vld [vmem:[%s301 + $0x6a] sm:$0xff]
      %v413 = vld [vmem:[%s301 + $0x72] sm:$0xff]
      %s414 = sadd.s32 %s73, 4032
      %s415 = scalar_lea.vmem %s1, %s414
      %v416 = vld [vmem:[%s415] sm:$0xff]
      %v417 = vld [vmem:[%s415 + $0x8] sm:$0xff]
      %v418 = vld [vmem:[%s415 + $0x10] sm:$0xff]
      %v419 = vld [vmem:[%s415 + $0x18] sm:$0xff]
      %v420 = vld [vmem:[%s415 + $0x20] sm:$0xff]
      %v421 = vld [vmem:[%s415 + $0x28] sm:$0xff]
      %v422 = vld [vmem:[%s415 + $0x30] sm:$0xff]
      %v423 = vld [vmem:[%s415 + $0x38] sm:$0xff]
      %v424 = vld [vmem:[%s415 + $0x40] sm:$0xff]
      %v425 = vld [vmem:[%s415 + $0x48] sm:$0xff]
      %v426 = vld [vmem:[%s415 + $0x50] sm:$0xff]
      %v427 = vld [vmem:[%s415 + $0x58] sm:$0xff]
      %v428 = vmul.f32 %v402, %v416
      %v429 = vmul.f32 %v403, %v417
      %v430 = vmul.f32 %v404, %v418
      %v431 = vmul.f32 %v405, %v419
      %v432 = vmul.f32 %v406, %v420
      %v433 = vmul.f32 %v407, %v421
      %v434 = vmul.f32 %v408, %v422
      %v435 = vmul.f32 %v409, %v423
      %v436 = vmul.f32 %v410, %v424
      %v437 = vmul.f32 %v411, %v425
      %v438 = vmul.f32 %v412, %v426
      %v439 = vmul.f32 %v413, %v427
      %v440 = vadd.f32 %v390, %v428
      %v441 = vadd.f32 %v391, %v429
      %v442 = vadd.f32 %v392, %v430
      %v443 = vadd.f32 %v393, %v431
      %v444 = vadd.f32 %v394, %v432
      %v445 = vadd.f32 %v395, %v433
      %v446 = vadd.f32 %v396, %v434
      %v447 = vadd.f32 %v397, %v435
      %v448 = vadd.f32 %v398, %v436
      %v449 = vadd.f32 %v399, %v437
      %v450 = vadd.f32 %v400, %v438
      %v451 = vadd.f32 %v401, %v439
      %v452 = vld [vmem:[%s301 + $0x3] sm:$0xff]
      %v453 = vld [vmem:[%s301 + $0xb] sm:$0xff]
      %v454 = vld [vmem:[%s301 + $0x13] sm:$0xff]
      %v455 = vld [vmem:[%s301 + $0x23] sm:$0xff]
      %v456 = vld [vmem:[%s301 + $0x2b] sm:$0xff]
      %v457 = vld [vmem:[%s301 + $0x33] sm:$0xff]
      %v458 = vld [vmem:[%s301 + $0x43] sm:$0xff]
      %v459 = vld [vmem:[%s301 + $0x4b] sm:$0xff]
      %v460 = vld [vmem:[%s301 + $0x53] sm:$0xff]
      %v461 = vld [vmem:[%s301 + $0x63] sm:$0xff]
      %v462 = vld [vmem:[%s301 + $0x6b] sm:$0xff]
      %v463 = vld [vmem:[%s301 + $0x73] sm:$0xff]
      %s464 = sadd.s32 %s73, 4608
      %s465 = scalar_lea.vmem %s1, %s464
      %v466 = vld [vmem:[%s465] sm:$0xff]
      %v467 = vld [vmem:[%s465 + $0x8] sm:$0xff]
      %v468 = vld [vmem:[%s465 + $0x10] sm:$0xff]
      %v469 = vld [vmem:[%s465 + $0x18] sm:$0xff]
      %v470 = vld [vmem:[%s465 + $0x20] sm:$0xff]
      %v471 = vld [vmem:[%s465 + $0x28] sm:$0xff]
      %v472 = vld [vmem:[%s465 + $0x30] sm:$0xff]
      %v473 = vld [vmem:[%s465 + $0x38] sm:$0xff]
      %v474 = vld [vmem:[%s465 + $0x40] sm:$0xff]
      %v475 = vld [vmem:[%s465 + $0x48] sm:$0xff]
      %v476 = vld [vmem:[%s465 + $0x50] sm:$0xff]
      %v477 = vld [vmem:[%s465 + $0x58] sm:$0xff]
      %v478 = vmul.f32 %v452, %v466
      %v479 = vmul.f32 %v453, %v467
      %v480 = vmul.f32 %v454, %v468
      %v481 = vmul.f32 %v455, %v469
      %v482 = vmul.f32 %v456, %v470
      %v483 = vmul.f32 %v457, %v471
      %v484 = vmul.f32 %v458, %v472
      %v485 = vmul.f32 %v459, %v473
      %v486 = vmul.f32 %v460, %v474
      %v487 = vmul.f32 %v461, %v475
      %v488 = vmul.f32 %v462, %v476
      %v489 = vmul.f32 %v463, %v477
      %v490 = vadd.f32 %v440, %v478
      %v491 = vadd.f32 %v441, %v479
      %v492 = vadd.f32 %v442, %v480
      %v493 = vadd.f32 %v443, %v481
      %v494 = vadd.f32 %v444, %v482
      %v495 = vadd.f32 %v445, %v483
      %v496 = vadd.f32 %v446, %v484
      %v497 = vadd.f32 %v447, %v485
      %v498 = vadd.f32 %v448, %v486
      %v499 = vadd.f32 %v449, %v487
      %v500 = vadd.f32 %v450, %v488
      %v501 = vadd.f32 %v451, %v489
      %v502 = vld [vmem:[%s301 + $0x4] sm:$0xff]
      %v503 = vld [vmem:[%s301 + $0xc] sm:$0xff]
      %v504 = vld [vmem:[%s301 + $0x14] sm:$0xff]
      %v505 = vld [vmem:[%s301 + $0x24] sm:$0xff]
      %v506 = vld [vmem:[%s301 + $0x2c] sm:$0xff]
      %v507 = vld [vmem:[%s301 + $0x34] sm:$0xff]
      %v508 = vld [vmem:[%s301 + $0x44] sm:$0xff]
      %v509 = vld [vmem:[%s301 + $0x4c] sm:$0xff]
      %v510 = vld [vmem:[%s301 + $0x54] sm:$0xff]
      %v511 = vld [vmem:[%s301 + $0x64] sm:$0xff]
      %v512 = vld [vmem:[%s301 + $0x6c] sm:$0xff]
      %v513 = vld [vmem:[%s301 + $0x74] sm:$0xff]
      %s514 = sadd.s32 %s73, 5184
      %s515 = scalar_lea.vmem %s1, %s514
      %v516 = vld [vmem:[%s515] sm:$0xff]
      %v517 = vld [vmem:[%s515 + $0x8] sm:$0xff]
      %v518 = vld [vmem:[%s515 + $0x10] sm:$0xff]
      %v519 = vld [vmem:[%s515 + $0x18] sm:$0xff]
      %v520 = vld [vmem:[%s515 + $0x20] sm:$0xff]
      %v521 = vld [vmem:[%s515 + $0x28] sm:$0xff]
      %v522 = vld [vmem:[%s515 + $0x30] sm:$0xff]
      %v523 = vld [vmem:[%s515 + $0x38] sm:$0xff]
      %v524 = vld [vmem:[%s515 + $0x40] sm:$0xff]
      %v525 = vld [vmem:[%s515 + $0x48] sm:$0xff]
      %v526 = vld [vmem:[%s515 + $0x50] sm:$0xff]
      %v527 = vld [vmem:[%s515 + $0x58] sm:$0xff]
      %v528 = vmul.f32 %v502, %v516
      %v529 = vmul.f32 %v503, %v517
      %v530 = vmul.f32 %v504, %v518
      %v531 = vmul.f32 %v505, %v519
      %v532 = vmul.f32 %v506, %v520
      %v533 = vmul.f32 %v507, %v521
      %v534 = vmul.f32 %v508, %v522
      %v535 = vmul.f32 %v509, %v523
      %v536 = vmul.f32 %v510, %v524
      %v537 = vmul.f32 %v511, %v525
      %v538 = vmul.f32 %v512, %v526
      %v539 = vmul.f32 %v513, %v527
      %v540 = vadd.f32 %v490, %v528
      %v541 = vadd.f32 %v491, %v529
      %v542 = vadd.f32 %v492, %v530
      %v543 = vadd.f32 %v493, %v531
      %v544 = vadd.f32 %v494, %v532
      %v545 = vadd.f32 %v495, %v533
      %v546 = vadd.f32 %v496, %v534
      %v547 = vadd.f32 %v497, %v535
      %v548 = vadd.f32 %v498, %v536
      %v549 = vadd.f32 %v499, %v537
      %v550 = vadd.f32 %v500, %v538
      %v551 = vadd.f32 %v501, %v539
      %s552 = sadd.s32 %s58, 2
      %s553 = smul.u32 %s552, 32
      %s554 = scalar_lea.vmem [#allocation4], %s553
      %v555 = vld [vmem:[%s554] sm:$0xff]
      %v556 = vld [vmem:[%s554 + $0x8] sm:$0xff]
      %v557 = vld [vmem:[%s554 + $0x10] sm:$0xff]
      %v558 = vld [vmem:[%s554 + $0x20] sm:$0xff]
      %v559 = vld [vmem:[%s554 + $0x28] sm:$0xff]
      %v560 = vld [vmem:[%s554 + $0x30] sm:$0xff]
      %v561 = vld [vmem:[%s554 + $0x40] sm:$0xff]
      %v562 = vld [vmem:[%s554 + $0x48] sm:$0xff]
      %v563 = vld [vmem:[%s554 + $0x50] sm:$0xff]
      %v564 = vld [vmem:[%s554 + $0x60] sm:$0xff]
      %v565 = vld [vmem:[%s554 + $0x68] sm:$0xff]
      %v566 = vld [vmem:[%s554 + $0x70] sm:$0xff]
      %s567 = sadd.s32 %s73, 5760
      %s568 = scalar_lea.vmem %s1, %s567
      %v569 = vld [vmem:[%s568] sm:$0xff]
      %v570 = vld [vmem:[%s568 + $0x8] sm:$0xff]
      %v571 = vld [vmem:[%s568 + $0x10] sm:$0xff]
      %v572 = vld [vmem:[%s568 + $0x18] sm:$0xff]
      %v573 = vld [vmem:[%s568 + $0x20] sm:$0xff]
      %v574 = vld [vmem:[%s568 + $0x28] sm:$0xff]
      %v575 = vld [vmem:[%s568 + $0x30] sm:$0xff]
      %v576 = vld [vmem:[%s568 + $0x38] sm:$0xff]
      %v577 = vld [vmem:[%s568 + $0x40] sm:$0xff]
      %v578 = vld [vmem:[%s568 + $0x48] sm:$0xff]
      %v579 = vld [vmem:[%s568 + $0x50] sm:$0xff]
      %v580 = vld [vmem:[%s568 + $0x58] sm:$0xff]
      %v581 = vmul.f32 %v555, %v569
      %v582 = vmul.f32 %v556, %v570
      %v583 = vmul.f32 %v557, %v571
      %v584 = vmul.f32 %v558, %v572
      %v585 = vmul.f32 %v559, %v573
      %v586 = vmul.f32 %v560, %v574
      %v587 = vmul.f32 %v561, %v575
      %v588 = vmul.f32 %v562, %v576
      %v589 = vmul.f32 %v563, %v577
      %v590 = vmul.f32 %v564, %v578
      %v591 = vmul.f32 %v565, %v579
      %v592 = vmul.f32 %v566, %v580
      %v593 = vadd.f32 %v540, %v581
      %v594 = vadd.f32 %v541, %v582
      %v595 = vadd.f32 %v542, %v583
      %v596 = vadd.f32 %v543, %v584
      %v597 = vadd.f32 %v544, %v585
      %v598 = vadd.f32 %v545, %v586
      %v599 = vadd.f32 %v546, %v587
      %v600 = vadd.f32 %v547, %v588
      %v601 = vadd.f32 %v548, %v589
      %v602 = vadd.f32 %v549, %v590
      %v603 = vadd.f32 %v550, %v591
      %v604 = vadd.f32 %v551, %v592
      %v605 = vld [vmem:[%s554 + $0x1] sm:$0xff]
      %v606 = vld [vmem:[%s554 + $0x9] sm:$0xff]
      %v607 = vld [vmem:[%s554 + $0x11] sm:$0xff]
      %v608 = vld [vmem:[%s554 + $0x21] sm:$0xff]
      %v609 = vld [vmem:[%s554 + $0x29] sm:$0xff]
      %v610 = vld [vmem:[%s554 + $0x31] sm:$0xff]
      %v611 = vld [vmem:[%s554 + $0x41] sm:$0xff]
      %v612 = vld [vmem:[%s554 + $0x49] sm:$0xff]
      %v613 = vld [vmem:[%s554 + $0x51] sm:$0xff]
      %v614 = vld [vmem:[%s554 + $0x61] sm:$0xff]
      %v615 = vld [vmem:[%s554 + $0x69] sm:$0xff]
      %v616 = vld [vmem:[%s554 + $0x71] sm:$0xff]
      %s617 = sadd.s32 %s73, 6336
      %s618 = scalar_lea.vmem %s1, %s617
      %v619 = vld [vmem:[%s618] sm:$0xff]
      %v620 = vld [vmem:[%s618 + $0x8] sm:$0xff]
      %v621 = vld [vmem:[%s618 + $0x10] sm:$0xff]
      %v622 = vld [vmem:[%s618 + $0x18] sm:$0xff]
      %v623 = vld [vmem:[%s618 + $0x20] sm:$0xff]
      %v624 = vld [vmem:[%s618 + $0x28] sm:$0xff]
      %v625 = vld [vmem:[%s618 + $0x30] sm:$0xff]
      %v626 = vld [vmem:[%s618 + $0x38] sm:$0xff]
      %v627 = vld [vmem:[%s618 + $0x40] sm:$0xff]
      %v628 = vld [vmem:[%s618 + $0x48] sm:$0xff]
      %v629 = vld [vmem:[%s618 + $0x50] sm:$0xff]
      %v630 = vld [vmem:[%s618 + $0x58] sm:$0xff]
      %v631 = vmul.f32 %v605, %v619
      %v632 = vmul.f32 %v606, %v620
      %v633 = vmul.f32 %v607, %v621
      %v634 = vmul.f32 %v608, %v622
      %v635 = vmul.f32 %v609, %v623
      %v636 = vmul.f32 %v610, %v624
      %v637 = vmul.f32 %v611, %v625
      %v638 = vmul.f32 %v612, %v626
      %v639 = vmul.f32 %v613, %v627
      %v640 = vmul.f32 %v614, %v628
      %v641 = vmul.f32 %v615, %v629
      %v642 = vmul.f32 %v616, %v630
      %v643 = vadd.f32 %v593, %v631
      %v644 = vadd.f32 %v594, %v632
      %v645 = vadd.f32 %v595, %v633
      %v646 = vadd.f32 %v596, %v634
      %v647 = vadd.f32 %v597, %v635
      %v648 = vadd.f32 %v598, %v636
      %v649 = vadd.f32 %v599, %v637
      %v650 = vadd.f32 %v600, %v638
      %v651 = vadd.f32 %v601, %v639
      %v652 = vadd.f32 %v602, %v640
      %v653 = vadd.f32 %v603, %v641
      %v654 = vadd.f32 %v604, %v642
      %v655 = vld [vmem:[%s554 + $0x2] sm:$0xff]
      %v656 = vld [vmem:[%s554 + $0xa] sm:$0xff]
      %v657 = vld [vmem:[%s554 + $0x12] sm:$0xff]
      %v658 = vld [vmem:[%s554 + $0x22] sm:$0xff]
      %v659 = vld [vmem:[%s554 + $0x2a] sm:$0xff]
      %v660 = vld [vmem:[%s554 + $0x32] sm:$0xff]
      %v661 = vld [vmem:[%s554 + $0x42] sm:$0xff]
      %v662 = vld [vmem:[%s554 + $0x4a] sm:$0xff]
      %v663 = vld [vmem:[%s554 + $0x52] sm:$0xff]
      %v664 = vld [vmem:[%s554 + $0x62] sm:$0xff]
      %v665 = vld [vmem:[%s554 + $0x6a] sm:$0xff]
      %v666 = vld [vmem:[%s554 + $0x72] sm:$0xff]
      %s667 = sadd.s32 %s73, 6912
      %s668 = scalar_lea.vmem %s1, %s667
      %v669 = vld [vmem:[%s668] sm:$0xff]
      %v670 = vld [vmem:[%s668 + $0x8] sm:$0xff]
      %v671 = vld [vmem:[%s668 + $0x10] sm:$0xff]
      %v672 = vld [vmem:[%s668 + $0x18] sm:$0xff]
      %v673 = vld [vmem:[%s668 + $0x20] sm:$0xff]
      %v674 = vld [vmem:[%s668 + $0x28] sm:$0xff]
      %v675 = vld [vmem:[%s668 + $0x30] sm:$0xff]
      %v676 = vld [vmem:[%s668 + $0x38] sm:$0xff]
      %v677 = vld [vmem:[%s668 + $0x40] sm:$0xff]
      %v678 = vld [vmem:[%s668 + $0x48] sm:$0xff]
      %v679 = vld [vmem:[%s668 + $0x50] sm:$0xff]
      %v680 = vld [vmem:[%s668 + $0x58] sm:$0xff]
      %v681 = vmul.f32 %v655, %v669
      %v682 = vmul.f32 %v656, %v670
      %v683 = vmul.f32 %v657, %v671
      %v684 = vmul.f32 %v658, %v672
      %v685 = vmul.f32 %v659, %v673
      %v686 = vmul.f32 %v660, %v674
      %v687 = vmul.f32 %v661, %v675
      %v688 = vmul.f32 %v662, %v676
      %v689 = vmul.f32 %v663, %v677
      %v690 = vmul.f32 %v664, %v678
      %v691 = vmul.f32 %v665, %v679
      %v692 = vmul.f32 %v666, %v680
      %v693 = vadd.f32 %v643, %v681
      %v694 = vadd.f32 %v644, %v682
      %v695 = vadd.f32 %v645, %v683
      %v696 = vadd.f32 %v646, %v684
      %v697 = vadd.f32 %v647, %v685
      %v698 = vadd.f32 %v648, %v686
      %v699 = vadd.f32 %v649, %v687
      %v700 = vadd.f32 %v650, %v688
      %v701 = vadd.f32 %v651, %v689
      %v702 = vadd.f32 %v652, %v690
      %v703 = vadd.f32 %v653, %v691
      %v704 = vadd.f32 %v654, %v692
      %v705 = vld [vmem:[%s554 + $0x3] sm:$0xff]
      %v706 = vld [vmem:[%s554 + $0xb] sm:$0xff]
      %v707 = vld [vmem:[%s554 + $0x13] sm:$0xff]
      %v708 = vld [vmem:[%s554 + $0x23] sm:$0xff]
      %v709 = vld [vmem:[%s554 + $0x2b] sm:$0xff]
      %v710 = vld [vmem:[%s554 + $0x33] sm:$0xff]
      %v711 = vld [vmem:[%s554 + $0x43] sm:$0xff]
      %v712 = vld [vmem:[%s554 + $0x4b] sm:$0xff]
      %v713 = vld [vmem:[%s554 + $0x53] sm:$0xff]
      %v714 = vld [vmem:[%s554 + $0x63] sm:$0xff]
      %v715 = vld [vmem:[%s554 + $0x6b] sm:$0xff]
      %v716 = vld [vmem:[%s554 + $0x73] sm:$0xff]
      %s717 = sadd.s32 %s73, 7488
      %s718 = scalar_lea.vmem %s1, %s717
      %v719 = vld [vmem:[%s718] sm:$0xff]
      %v720 = vld [vmem:[%s718 + $0x8] sm:$0xff]
      %v721 = vld [vmem:[%s718 + $0x10] sm:$0xff]
      %v722 = vld [vmem:[%s718 + $0x18] sm:$0xff]
      %v723 = vld [vmem:[%s718 + $0x20] sm:$0xff]
      %v724 = vld [vmem:[%s718 + $0x28] sm:$0xff]
      %v725 = vld [vmem:[%s718 + $0x30] sm:$0xff]
      %v726 = vld [vmem:[%s718 + $0x38] sm:$0xff]
      %v727 = vld [vmem:[%s718 + $0x40] sm:$0xff]
      %v728 = vld [vmem:[%s718 + $0x48] sm:$0xff]
      %v729 = vld [vmem:[%s718 + $0x50] sm:$0xff]
      %v730 = vld [vmem:[%s718 + $0x58] sm:$0xff]
      %v731 = vmul.f32 %v705, %v719
      %v732 = vmul.f32 %v706, %v720
      %v733 = vmul.f32 %v707, %v721
      %v734 = vmul.f32 %v708, %v722
      %v735 = vmul.f32 %v709, %v723
      %v736 = vmul.f32 %v710, %v724
      %v737 = vmul.f32 %v711, %v725
      %v738 = vmul.f32 %v712, %v726
      %v739 = vmul.f32 %v713, %v727
      %v740 = vmul.f32 %v714, %v728
      %v741 = vmul.f32 %v715, %v729
      %v742 = vmul.f32 %v716, %v730
      %v743 = vadd.f32 %v693, %v731
      %v744 = vadd.f32 %v694, %v732
      %v745 = vadd.f32 %v695, %v733
      %v746 = vadd.f32 %v696, %v734
      %v747 = vadd.f32 %v697, %v735
      %v748 = vadd.f32 %v698, %v736
      %v749 = vadd.f32 %v699, %v737
      %v750 = vadd.f32 %v700, %v738
      %v751 = vadd.f32 %v701, %v739
      %v752 = vadd.f32 %v702, %v740
      %v753 = vadd.f32 %v703, %v741
      %v754 = vadd.f32 %v704, %v742
      %v755 = vld [vmem:[%s554 + $0x4] sm:$0xff]
      %v756 = vld [vmem:[%s554 + $0xc] sm:$0xff]
      %v757 = vld [vmem:[%s554 + $0x14] sm:$0xff]
      %v758 = vld [vmem:[%s554 + $0x24] sm:$0xff]
      %v759 = vld [vmem:[%s554 + $0x2c] sm:$0xff]
      %v760 = vld [vmem:[%s554 + $0x34] sm:$0xff]
      %v761 = vld [vmem:[%s554 + $0x44] sm:$0xff]
      %v762 = vld [vmem:[%s554 + $0x4c] sm:$0xff]
      %v763 = vld [vmem:[%s554 + $0x54] sm:$0xff]
      %v764 = vld [vmem:[%s554 + $0x64] sm:$0xff]
      %v765 = vld [vmem:[%s554 + $0x6c] sm:$0xff]
      %v766 = vld [vmem:[%s554 + $0x74] sm:$0xff]
      %s767 = sadd.s32 %s73, 8064
      %s768 = scalar_lea.vmem %s1, %s767
      %v769 = vld [vmem:[%s768] sm:$0xff]
      %v770 = vld [vmem:[%s768 + $0x8] sm:$0xff]
      %v771 = vld [vmem:[%s768 + $0x10] sm:$0xff]
      %v772 = vld [vmem:[%s768 + $0x18] sm:$0xff]
      %v773 = vld [vmem:[%s768 + $0x20] sm:$0xff]
      %v774 = vld [vmem:[%s768 + $0x28] sm:$0xff]
      %v775 = vld [vmem:[%s768 + $0x30] sm:$0xff]
      %v776 = vld [vmem:[%s768 + $0x38] sm:$0xff]
      %v777 = vld [vmem:[%s768 + $0x40] sm:$0xff]
      %v778 = vld [vmem:[%s768 + $0x48] sm:$0xff]
      %v779 = vld [vmem:[%s768 + $0x50] sm:$0xff]
      %v780 = vld [vmem:[%s768 + $0x58] sm:$0xff]
      %v781 = vmul.f32 %v755, %v769
      %v782 = vmul.f32 %v756, %v770
      %v783 = vmul.f32 %v757, %v771
      %v784 = vmul.f32 %v758, %v772
      %v785 = vmul.f32 %v759, %v773
      %v786 = vmul.f32 %v760, %v774
      %v787 = vmul.f32 %v761, %v775
      %v788 = vmul.f32 %v762, %v776
      %v789 = vmul.f32 %v763, %v777
      %v790 = vmul.f32 %v764, %v778
      %v791 = vmul.f32 %v765, %v779
      %v792 = vmul.f32 %v766, %v780
      %v793 = vadd.f32 %v743, %v781
      %v794 = vadd.f32 %v744, %v782
      %v795 = vadd.f32 %v745, %v783
      %v796 = vadd.f32 %v746, %v784
      %v797 = vadd.f32 %v747, %v785
      %v798 = vadd.f32 %v748, %v786
      %v799 = vadd.f32 %v749, %v787
      %v800 = vadd.f32 %v750, %v788
      %v801 = vadd.f32 %v751, %v789
      %v802 = vadd.f32 %v752, %v790
      %v803 = vadd.f32 %v753, %v791
      %v804 = vadd.f32 %v754, %v792
      %s805 = sadd.s32 %s58, 3
      %s806 = smul.u32 %s805, 32
      %s807 = scalar_lea.vmem [#allocation4], %s806
      %v808 = vld [vmem:[%s807] sm:$0xff]
      %v809 = vld [vmem:[%s807 + $0x8] sm:$0xff]
      %v810 = vld [vmem:[%s807 + $0x10] sm:$0xff]
      %v811 = vld [vmem:[%s807 + $0x20] sm:$0xff]
      %v812 = vld [vmem:[%s807 + $0x28] sm:$0xff]
      %v813 = vld [vmem:[%s807 + $0x30] sm:$0xff]
      %v814 = vld [vmem:[%s807 + $0x40] sm:$0xff]
      %v815 = vld [vmem:[%s807 + $0x48] sm:$0xff]
      %v816 = vld [vmem:[%s807 + $0x50] sm:$0xff]
      %v817 = vld [vmem:[%s807 + $0x60] sm:$0xff]
      %v818 = vld [vmem:[%s807 + $0x68] sm:$0xff]
      %v819 = vld [vmem:[%s807 + $0x70] sm:$0xff]
      %s820 = sadd.s32 %s73, 8640
      %s821 = scalar_lea.vmem %s1, %s820
      %v822 = vld [vmem:[%s821] sm:$0xff]
      %v823 = vld [vmem:[%s821 + $0x8] sm:$0xff]
      %v824 = vld [vmem:[%s821 + $0x10] sm:$0xff]
      %v825 = vld [vmem:[%s821 + $0x18] sm:$0xff]
      %v826 = vld [vmem:[%s821 + $0x20] sm:$0xff]
      %v827 = vld [vmem:[%s821 + $0x28] sm:$0xff]
      %v828 = vld [vmem:[%s821 + $0x30] sm:$0xff]
      %v829 = vld [vmem:[%s821 + $0x38] sm:$0xff]
      %v830 = vld [vmem:[%s821 + $0x40] sm:$0xff]
      %v831 = vld [vmem:[%s821 + $0x48] sm:$0xff]
      %v832 = vld [vmem:[%s821 + $0x50] sm:$0xff]
      %v833 = vld [vmem:[%s821 + $0x58] sm:$0xff]
      %v834 = vmul.f32 %v808, %v822
      %v835 = vmul.f32 %v809, %v823
      %v836 = vmul.f32 %v810, %v824
      %v837 = vmul.f32 %v811, %v825
      %v838 = vmul.f32 %v812, %v826
      %v839 = vmul.f32 %v813, %v827
      %v840 = vmul.f32 %v814, %v828
      %v841 = vmul.f32 %v815, %v829
      %v842 = vmul.f32 %v816, %v830
      %v843 = vmul.f32 %v817, %v831
      %v844 = vmul.f32 %v818, %v832
      %v845 = vmul.f32 %v819, %v833
      %v846 = vadd.f32 %v793, %v834
      %v847 = vadd.f32 %v794, %v835
      %v848 = vadd.f32 %v795, %v836
      %v849 = vadd.f32 %v796, %v837
      %v850 = vadd.f32 %v797, %v838
      %v851 = vadd.f32 %v798, %v839
      %v852 = vadd.f32 %v799, %v840
      %v853 = vadd.f32 %v800, %v841
      %v854 = vadd.f32 %v801, %v842
      %v855 = vadd.f32 %v802, %v843
      %v856 = vadd.f32 %v803, %v844
      %v857 = vadd.f32 %v804, %v845
      %v858 = vld [vmem:[%s807 + $0x1] sm:$0xff]
      %v859 = vld [vmem:[%s807 + $0x9] sm:$0xff]
      %v860 = vld [vmem:[%s807 + $0x11] sm:$0xff]
      %v861 = vld [vmem:[%s807 + $0x21] sm:$0xff]
      %v862 = vld [vmem:[%s807 + $0x29] sm:$0xff]
      %v863 = vld [vmem:[%s807 + $0x31] sm:$0xff]
      %v864 = vld [vmem:[%s807 + $0x41] sm:$0xff]
      %v865 = vld [vmem:[%s807 + $0x49] sm:$0xff]
      %v866 = vld [vmem:[%s807 + $0x51] sm:$0xff]
      %v867 = vld [vmem:[%s807 + $0x61] sm:$0xff]
      %v868 = vld [vmem:[%s807 + $0x69] sm:$0xff]
      %v869 = vld [vmem:[%s807 + $0x71] sm:$0xff]
      %s870 = sadd.s32 %s73, 9216
      %s871 = scalar_lea.vmem %s1, %s870
      %v872 = vld [vmem:[%s871] sm:$0xff]
      %v873 = vld [vmem:[%s871 + $0x8] sm:$0xff]
      %v874 = vld [vmem:[%s871 + $0x10] sm:$0xff]
      %v875 = vld [vmem:[%s871 + $0x18] sm:$0xff]
      %v876 = vld [vmem:[%s871 + $0x20] sm:$0xff]
      %v877 = vld [vmem:[%s871 + $0x28] sm:$0xff]
      %v878 = vld [vmem:[%s871 + $0x30] sm:$0xff]
      %v879 = vld [vmem:[%s871 + $0x38] sm:$0xff]
      %v880 = vld [vmem:[%s871 + $0x40] sm:$0xff]
      %v881 = vld [vmem:[%s871 + $0x48] sm:$0xff]
      %v882 = vld [vmem:[%s871 + $0x50] sm:$0xff]
      %v883 = vld [vmem:[%s871 + $0x58] sm:$0xff]
      %v884 = vmul.f32 %v858, %v872
      %v885 = vmul.f32 %v859, %v873
      %v886 = vmul.f32 %v860, %v874
      %v887 = vmul.f32 %v861, %v875
      %v888 = vmul.f32 %v862, %v876
      %v889 = vmul.f32 %v863, %v877
      %v890 = vmul.f32 %v864, %v878
      %v891 = vmul.f32 %v865, %v879
      %v892 = vmul.f32 %v866, %v880
      %v893 = vmul.f32 %v867, %v881
      %v894 = vmul.f32 %v868, %v882
      %v895 = vmul.f32 %v869, %v883
      %v896 = vadd.f32 %v846, %v884
      %v897 = vadd.f32 %v847, %v885
      %v898 = vadd.f32 %v848, %v886
      %v899 = vadd.f32 %v849, %v887
      %v900 = vadd.f32 %v850, %v888
      %v901 = vadd.f32 %v851, %v889
      %v902 = vadd.f32 %v852, %v890
      %v903 = vadd.f32 %v853, %v891
      %v904 = vadd.f32 %v854, %v892
      %v905 = vadd.f32 %v855, %v893
      %v906 = vadd.f32 %v856, %v894
      %v907 = vadd.f32 %v857, %v895
      %v908 = vld [vmem:[%s807 + $0x2] sm:$0xff]
      %v909 = vld [vmem:[%s807 + $0xa] sm:$0xff]
      %v910 = vld [vmem:[%s807 + $0x12] sm:$0xff]
      %v911 = vld [vmem:[%s807 + $0x22] sm:$0xff]
      %v912 = vld [vmem:[%s807 + $0x2a] sm:$0xff]
      %v913 = vld [vmem:[%s807 + $0x32] sm:$0xff]
      %v914 = vld [vmem:[%s807 + $0x42] sm:$0xff]
      %v915 = vld [vmem:[%s807 + $0x4a] sm:$0xff]
      %v916 = vld [vmem:[%s807 + $0x52] sm:$0xff]
      %v917 = vld [vmem:[%s807 + $0x62] sm:$0xff]
      %v918 = vld [vmem:[%s807 + $0x6a] sm:$0xff]
      %v919 = vld [vmem:[%s807 + $0x72] sm:$0xff]
      %s920 = sadd.s32 %s73, 9792
      %s921 = scalar_lea.vmem %s1, %s920
      %v922 = vld [vmem:[%s921] sm:$0xff]
      %v923 = vld [vmem:[%s921 + $0x8] sm:$0xff]
      %v924 = vld [vmem:[%s921 + $0x10] sm:$0xff]
      %v925 = vld [vmem:[%s921 + $0x18] sm:$0xff]
      %v926 = vld [vmem:[%s921 + $0x20] sm:$0xff]
      %v927 = vld [vmem:[%s921 + $0x28] sm:$0xff]
      %v928 = vld [vmem:[%s921 + $0x30] sm:$0xff]
      %v929 = vld [vmem:[%s921 + $0x38] sm:$0xff]
      %v930 = vld [vmem:[%s921 + $0x40] sm:$0xff]
      %v931 = vld [vmem:[%s921 + $0x48] sm:$0xff]
      %v932 = vld [vmem:[%s921 + $0x50] sm:$0xff]
      %v933 = vld [vmem:[%s921 + $0x58] sm:$0xff]
      %v934 = vmul.f32 %v908, %v922
      %v935 = vmul.f32 %v909, %v923
      %v936 = vmul.f32 %v910, %v924
      %v937 = vmul.f32 %v911, %v925
      %v938 = vmul.f32 %v912, %v926
      %v939 = vmul.f32 %v913, %v927
      %v940 = vmul.f32 %v914, %v928
      %v941 = vmul.f32 %v915, %v929
      %v942 = vmul.f32 %v916, %v930
      %v943 = vmul.f32 %v917, %v931
      %v944 = vmul.f32 %v918, %v932
      %v945 = vmul.f32 %v919, %v933
      %v946 = vadd.f32 %v896, %v934
      %v947 = vadd.f32 %v897, %v935
      %v948 = vadd.f32 %v898, %v936
      %v949 = vadd.f32 %v899, %v937
      %v950 = vadd.f32 %v900, %v938
      %v951 = vadd.f32 %v901, %v939
      %v952 = vadd.f32 %v902, %v940
      %v953 = vadd.f32 %v903, %v941
      %v954 = vadd.f32 %v904, %v942
      %v955 = vadd.f32 %v905, %v943
      %v956 = vadd.f32 %v906, %v944
      %v957 = vadd.f32 %v907, %v945
      %v958 = vld [vmem:[%s807 + $0x3] sm:$0xff]
      %v959 = vld [vmem:[%s807 + $0xb] sm:$0xff]
      %v960 = vld [vmem:[%s807 + $0x13] sm:$0xff]
      %v961 = vld [vmem:[%s807 + $0x23] sm:$0xff]
      %v962 = vld [vmem:[%s807 + $0x2b] sm:$0xff]
      %v963 = vld [vmem:[%s807 + $0x33] sm:$0xff]
      %v964 = vld [vmem:[%s807 + $0x43] sm:$0xff]
      %v965 = vld [vmem:[%s807 + $0x4b] sm:$0xff]
      %v966 = vld [vmem:[%s807 + $0x53] sm:$0xff]
      %v967 = vld [vmem:[%s807 + $0x63] sm:$0xff]
      %v968 = vld [vmem:[%s807 + $0x6b] sm:$0xff]
      %v969 = vld [vmem:[%s807 + $0x73] sm:$0xff]
      %s970 = sadd.s32 %s73, 10368
      %s971 = scalar_lea.vmem %s1, %s970
      %v972 = vld [vmem:[%s971] sm:$0xff]
      %v973 = vld [vmem:[%s971 + $0x8] sm:$0xff]
      %v974 = vld [vmem:[%s971 + $0x10] sm:$0xff]
      %v975 = vld [vmem:[%s971 + $0x18] sm:$0xff]
      %v976 = vld [vmem:[%s971 + $0x20] sm:$0xff]
      %v977 = vld [vmem:[%s971 + $0x28] sm:$0xff]
      %v978 = vld [vmem:[%s971 + $0x30] sm:$0xff]
      %v979 = vld [vmem:[%s971 + $0x38] sm:$0xff]
      %v980 = vld [vmem:[%s971 + $0x40] sm:$0xff]
      %v981 = vld [vmem:[%s971 + $0x48] sm:$0xff]
      %v982 = vld [vmem:[%s971 + $0x50] sm:$0xff]
      %v983 = vld [vmem:[%s971 + $0x58] sm:$0xff]
      %v984 = vmul.f32 %v958, %v972
      %v985 = vmul.f32 %v959, %v973
      %v986 = vmul.f32 %v960, %v974
      %v987 = vmul.f32 %v961, %v975
      %v988 = vmul.f32 %v962, %v976
      %v989 = vmul.f32 %v963, %v977
      %v990 = vmul.f32 %v964, %v978
      %v991 = vmul.f32 %v965, %v979
      %v992 = vmul.f32 %v966, %v980
      %v993 = vmul.f32 %v967, %v981
      %v994 = vmul.f32 %v968, %v982
      %v995 = vmul.f32 %v969, %v983
      %v996 = vadd.f32 %v946, %v984
      %v997 = vadd.f32 %v947, %v985
      %v998 = vadd.f32 %v948, %v986
      %v999 = vadd.f32 %v949, %v987
      %v1000 = vadd.f32 %v950, %v988
      %v1001 = vadd.f32 %v951, %v989
      %v1002 = vadd.f32 %v952, %v990
      %v1003 = vadd.f32 %v953, %v991
      %v1004 = vadd.f32 %v954, %v992
      %v1005 = vadd.f32 %v955, %v993
      %v1006 = vadd.f32 %v956, %v994
      %v1007 = vadd.f32 %v957, %v995
      %v1008 = vld [vmem:[%s807 + $0x4] sm:$0xff]
      %v1009 = vld [vmem:[%s807 + $0xc] sm:$0xff]
      %v1010 = vld [vmem:[%s807 + $0x14] sm:$0xff]
      %v1011 = vld [vmem:[%s807 + $0x24] sm:$0xff]
      %v1012 = vld [vmem:[%s807 + $0x2c] sm:$0xff]
      %v1013 = vld [vmem:[%s807 + $0x34] sm:$0xff]
      %v1014 = vld [vmem:[%s807 + $0x44] sm:$0xff]
      %v1015 = vld [vmem:[%s807 + $0x4c] sm:$0xff]
      %v1016 = vld [vmem:[%s807 + $0x54] sm:$0xff]
      %v1017 = vld [vmem:[%s807 + $0x64] sm:$0xff]
      %v1018 = vld [vmem:[%s807 + $0x6c] sm:$0xff]
      %v1019 = vld [vmem:[%s807 + $0x74] sm:$0xff]
      %s1020 = sadd.s32 %s73, 10944
      %s1021 = scalar_lea.vmem %s1, %s1020
      %v1022 = vld [vmem:[%s1021] sm:$0xff]
      %v1023 = vld [vmem:[%s1021 + $0x8] sm:$0xff]
      %v1024 = vld [vmem:[%s1021 + $0x10] sm:$0xff]
      %v1025 = vld [vmem:[%s1021 + $0x18] sm:$0xff]
      %v1026 = vld [vmem:[%s1021 + $0x20] sm:$0xff]
      %v1027 = vld [vmem:[%s1021 + $0x28] sm:$0xff]
      %v1028 = vld [vmem:[%s1021 + $0x30] sm:$0xff]
      %v1029 = vld [vmem:[%s1021 + $0x38] sm:$0xff]
      %v1030 = vld [vmem:[%s1021 + $0x40] sm:$0xff]
      %v1031 = vld [vmem:[%s1021 + $0x48] sm:$0xff]
      %v1032 = vld [vmem:[%s1021 + $0x50] sm:$0xff]
      %v1033 = vld [vmem:[%s1021 + $0x58] sm:$0xff]
      %v1034 = vmul.f32 %v1008, %v1022
      %v1035 = vmul.f32 %v1009, %v1023
      %v1036 = vmul.f32 %v1010, %v1024
      %v1037 = vmul.f32 %v1011, %v1025
      %v1038 = vmul.f32 %v1012, %v1026
      %v1039 = vmul.f32 %v1013, %v1027
      %v1040 = vmul.f32 %v1014, %v1028
      %v1041 = vmul.f32 %v1015, %v1029
      %v1042 = vmul.f32 %v1016, %v1030
      %v1043 = vmul.f32 %v1017, %v1031
      %v1044 = vmul.f32 %v1018, %v1032
      %v1045 = vmul.f32 %v1019, %v1033
      %v1046 = vadd.f32 %v996, %v1034
      %v1047 = vadd.f32 %v997, %v1035
      %v1048 = vadd.f32 %v998, %v1036
      %v1049 = vadd.f32 %v999, %v1037
      %v1050 = vadd.f32 %v1000, %v1038
      %v1051 = vadd.f32 %v1001, %v1039
      %v1052 = vadd.f32 %v1002, %v1040
      %v1053 = vadd.f32 %v1003, %v1041
      %v1054 = vadd.f32 %v1004, %v1042
      %v1055 = vadd.f32 %v1005, %v1043
      %v1056 = vadd.f32 %v1006, %v1044
      %v1057 = vadd.f32 %v1007, %v1045
      %s1058 = sadd.s32 %s58, 4
      %s1059 = smul.u32 %s1058, 32
      %s1060 = scalar_lea.vmem [#allocation4], %s1059
      %v1061 = vld [vmem:[%s1060] sm:$0xff]
      %v1062 = vld [vmem:[%s1060 + $0x8] sm:$0xff]
      %v1063 = vld [vmem:[%s1060 + $0x10] sm:$0xff]
      %v1064 = vld [vmem:[%s1060 + $0x20] sm:$0xff]
      %v1065 = vld [vmem:[%s1060 + $0x28] sm:$0xff]
      %v1066 = vld [vmem:[%s1060 + $0x30] sm:$0xff]
      %v1067 = vld [vmem:[%s1060 + $0x40] sm:$0xff]
      %v1068 = vld [vmem:[%s1060 + $0x48] sm:$0xff]
      %v1069 = vld [vmem:[%s1060 + $0x50] sm:$0xff]
      %v1070 = vld [vmem:[%s1060 + $0x60] sm:$0xff]
      %v1071 = vld [vmem:[%s1060 + $0x68] sm:$0xff]
      %v1072 = vld [vmem:[%s1060 + $0x70] sm:$0xff]
      %s1073 = sadd.s32 %s73, 11520
      %s1074 = scalar_lea.vmem %s1, %s1073
      %v1075 = vld [vmem:[%s1074] sm:$0xff]
      %v1076 = vld [vmem:[%s1074 + $0x8] sm:$0xff]
      %v1077 = vld [vmem:[%s1074 + $0x10] sm:$0xff]
      %v1078 = vld [vmem:[%s1074 + $0x18] sm:$0xff]
      %v1079 = vld [vmem:[%s1074 + $0x20] sm:$0xff]
      %v1080 = vld [vmem:[%s1074 + $0x28] sm:$0xff]
      %v1081 = vld [vmem:[%s1074 + $0x30] sm:$0xff]
      %v1082 = vld [vmem:[%s1074 + $0x38] sm:$0xff]
      %v1083 = vld [vmem:[%s1074 + $0x40] sm:$0xff]
      %v1084 = vld [vmem:[%s1074 + $0x48] sm:$0xff]
      %v1085 = vld [vmem:[%s1074 + $0x50] sm:$0xff]
      %v1086 = vld [vmem:[%s1074 + $0x58] sm:$0xff]
      %v1087 = vmul.f32 %v1061, %v1075
      %v1088 = vmul.f32 %v1062, %v1076
      %v1089 = vmul.f32 %v1063, %v1077
      %v1090 = vmul.f32 %v1064, %v1078
      %v1091 = vmul.f32 %v1065, %v1079
      %v1092 = vmul.f32 %v1066, %v1080
      %v1093 = vmul.f32 %v1067, %v1081
      %v1094 = vmul.f32 %v1068, %v1082
      %v1095 = vmul.f32 %v1069, %v1083
      %v1096 = vmul.f32 %v1070, %v1084
      %v1097 = vmul.f32 %v1071, %v1085
      %v1098 = vmul.f32 %v1072, %v1086
      %v1099 = vadd.f32 %v1046, %v1087
      %v1100 = vadd.f32 %v1047, %v1088
      %v1101 = vadd.f32 %v1048, %v1089
      %v1102 = vadd.f32 %v1049, %v1090
      %v1103 = vadd.f32 %v1050, %v1091
      %v1104 = vadd.f32 %v1051, %v1092
      %v1105 = vadd.f32 %v1052, %v1093
      %v1106 = vadd.f32 %v1053, %v1094
      %v1107 = vadd.f32 %v1054, %v1095
      %v1108 = vadd.f32 %v1055, %v1096
      %v1109 = vadd.f32 %v1056, %v1097
      %v1110 = vadd.f32 %v1057, %v1098
      %v1111 = vld [vmem:[%s1060 + $0x1] sm:$0xff]
      %v1112 = vld [vmem:[%s1060 + $0x9] sm:$0xff]
      %v1113 = vld [vmem:[%s1060 + $0x11] sm:$0xff]
      %v1114 = vld [vmem:[%s1060 + $0x21] sm:$0xff]
      %v1115 = vld [vmem:[%s1060 + $0x29] sm:$0xff]
      %v1116 = vld [vmem:[%s1060 + $0x31] sm:$0xff]
      %v1117 = vld [vmem:[%s1060 + $0x41] sm:$0xff]
      %v1118 = vld [vmem:[%s1060 + $0x49] sm:$0xff]
      %v1119 = vld [vmem:[%s1060 + $0x51] sm:$0xff]
      %v1120 = vld [vmem:[%s1060 + $0x61] sm:$0xff]
      %v1121 = vld [vmem:[%s1060 + $0x69] sm:$0xff]
      %v1122 = vld [vmem:[%s1060 + $0x71] sm:$0xff]
      %s1123 = sadd.s32 %s73, 12096
      %s1124 = scalar_lea.vmem %s1, %s1123
      %v1125 = vld [vmem:[%s1124] sm:$0xff]
      %v1126 = vld [vmem:[%s1124 + $0x8] sm:$0xff]
      %v1127 = vld [vmem:[%s1124 + $0x10] sm:$0xff]
      %v1128 = vld [vmem:[%s1124 + $0x18] sm:$0xff]
      %v1129 = vld [vmem:[%s1124 + $0x20] sm:$0xff]
      %v1130 = vld [vmem:[%s1124 + $0x28] sm:$0xff]
      %v1131 = vld [vmem:[%s1124 + $0x30] sm:$0xff]
      %v1132 = vld [vmem:[%s1124 + $0x38] sm:$0xff]
      %v1133 = vld [vmem:[%s1124 + $0x40] sm:$0xff]
      %v1134 = vld [vmem:[%s1124 + $0x48] sm:$0xff]
      %v1135 = vld [vmem:[%s1124 + $0x50] sm:$0xff]
      %v1136 = vld [vmem:[%s1124 + $0x58] sm:$0xff]
      %v1137 = vmul.f32 %v1111, %v1125
      %v1138 = vmul.f32 %v1112, %v1126
      %v1139 = vmul.f32 %v1113, %v1127
      %v1140 = vmul.f32 %v1114, %v1128
      %v1141 = vmul.f32 %v1115, %v1129
      %v1142 = vmul.f32 %v1116, %v1130
      %v1143 = vmul.f32 %v1117, %v1131
      %v1144 = vmul.f32 %v1118, %v1132
      %v1145 = vmul.f32 %v1119, %v1133
      %v1146 = vmul.f32 %v1120, %v1134
      %v1147 = vmul.f32 %v1121, %v1135
      %v1148 = vmul.f32 %v1122, %v1136
      %v1149 = vadd.f32 %v1099, %v1137
      %v1150 = vadd.f32 %v1100, %v1138
      %v1151 = vadd.f32 %v1101, %v1139
      %v1152 = vadd.f32 %v1102, %v1140
      %v1153 = vadd.f32 %v1103, %v1141
      %v1154 = vadd.f32 %v1104, %v1142
      %v1155 = vadd.f32 %v1105, %v1143
      %v1156 = vadd.f32 %v1106, %v1144
      %v1157 = vadd.f32 %v1107, %v1145
      %v1158 = vadd.f32 %v1108, %v1146
      %v1159 = vadd.f32 %v1109, %v1147
      %v1160 = vadd.f32 %v1110, %v1148
      %v1161 = vld [vmem:[%s1060 + $0x2] sm:$0xff]
      %v1162 = vld [vmem:[%s1060 + $0xa] sm:$0xff]
      %v1163 = vld [vmem:[%s1060 + $0x12] sm:$0xff]
      %v1164 = vld [vmem:[%s1060 + $0x22] sm:$0xff]
      %v1165 = vld [vmem:[%s1060 + $0x2a] sm:$0xff]
      %v1166 = vld [vmem:[%s1060 + $0x32] sm:$0xff]
      %v1167 = vld [vmem:[%s1060 + $0x42] sm:$0xff]
      %v1168 = vld [vmem:[%s1060 + $0x4a] sm:$0xff]
      %v1169 = vld [vmem:[%s1060 + $0x52] sm:$0xff]
      %v1170 = vld [vmem:[%s1060 + $0x62] sm:$0xff]
      %v1171 = vld [vmem:[%s1060 + $0x6a] sm:$0xff]
      %v1172 = vld [vmem:[%s1060 + $0x72] sm:$0xff]
      %s1173 = sadd.s32 %s73, 12672
      %s1174 = scalar_lea.vmem %s1, %s1173
      %v1175 = vld [vmem:[%s1174] sm:$0xff]
      %v1176 = vld [vmem:[%s1174 + $0x8] sm:$0xff]
      %v1177 = vld [vmem:[%s1174 + $0x10] sm:$0xff]
      %v1178 = vld [vmem:[%s1174 + $0x18] sm:$0xff]
      %v1179 = vld [vmem:[%s1174 + $0x20] sm:$0xff]
      %v1180 = vld [vmem:[%s1174 + $0x28] sm:$0xff]
      %v1181 = vld [vmem:[%s1174 + $0x30] sm:$0xff]
      %v1182 = vld [vmem:[%s1174 + $0x38] sm:$0xff]
      %v1183 = vld [vmem:[%s1174 + $0x40] sm:$0xff]
      %v1184 = vld [vmem:[%s1174 + $0x48] sm:$0xff]
      %v1185 = vld [vmem:[%s1174 + $0x50] sm:$0xff]
      %v1186 = vld [vmem:[%s1174 + $0x58] sm:$0xff]
      %v1187 = vmul.f32 %v1161, %v1175
      %v1188 = vmul.f32 %v1162, %v1176
      %v1189 = vmul.f32 %v1163, %v1177
      %v1190 = vmul.f32 %v1164, %v1178
      %v1191 = vmul.f32 %v1165, %v1179
      %v1192 = vmul.f32 %v1166, %v1180
      %v1193 = vmul.f32 %v1167, %v1181
      %v1194 = vmul.f32 %v1168, %v1182
      %v1195 = vmul.f32 %v1169, %v1183
      %v1196 = vmul.f32 %v1170, %v1184
      %v1197 = vmul.f32 %v1171, %v1185
      %v1198 = vmul.f32 %v1172, %v1186
      %v1199 = vadd.f32 %v1149, %v1187
      %v1200 = vadd.f32 %v1150, %v1188
      %v1201 = vadd.f32 %v1151, %v1189
      %v1202 = vadd.f32 %v1152, %v1190
      %v1203 = vadd.f32 %v1153, %v1191
      %v1204 = vadd.f32 %v1154, %v1192
      %v1205 = vadd.f32 %v1155, %v1193
      %v1206 = vadd.f32 %v1156, %v1194
      %v1207 = vadd.f32 %v1157, %v1195
      %v1208 = vadd.f32 %v1158, %v1196
      %v1209 = vadd.f32 %v1159, %v1197
      %v1210 = vadd.f32 %v1160, %v1198
      %v1211 = vld [vmem:[%s1060 + $0x3] sm:$0xff]
      %v1212 = vld [vmem:[%s1060 + $0xb] sm:$0xff]
      %v1213 = vld [vmem:[%s1060 + $0x13] sm:$0xff]
      %v1214 = vld [vmem:[%s1060 + $0x23] sm:$0xff]
      %v1215 = vld [vmem:[%s1060 + $0x2b] sm:$0xff]
      %v1216 = vld [vmem:[%s1060 + $0x33] sm:$0xff]
      %v1217 = vld [vmem:[%s1060 + $0x43] sm:$0xff]
      %v1218 = vld [vmem:[%s1060 + $0x4b] sm:$0xff]
      %v1219 = vld [vmem:[%s1060 + $0x53] sm:$0xff]
      %v1220 = vld [vmem:[%s1060 + $0x63] sm:$0xff]
      %v1221 = vld [vmem:[%s1060 + $0x6b] sm:$0xff]
      %v1222 = vld [vmem:[%s1060 + $0x73] sm:$0xff]
      %s1223 = sadd.s32 %s73, 13248
      %s1224 = scalar_lea.vmem %s1, %s1223
      %v1225 = vld [vmem:[%s1224] sm:$0xff]
      %v1226 = vld [vmem:[%s1224 + $0x8] sm:$0xff]
      %v1227 = vld [vmem:[%s1224 + $0x10] sm:$0xff]
      %v1228 = vld [vmem:[%s1224 + $0x18] sm:$0xff]
      %v1229 = vld [vmem:[%s1224 + $0x20] sm:$0xff]
      %v1230 = vld [vmem:[%s1224 + $0x28] sm:$0xff]
      %v1231 = vld [vmem:[%s1224 + $0x30] sm:$0xff]
      %v1232 = vld [vmem:[%s1224 + $0x38] sm:$0xff]
      %v1233 = vld [vmem:[%s1224 + $0x40] sm:$0xff]
      %v1234 = vld [vmem:[%s1224 + $0x48] sm:$0xff]
      %v1235 = vld [vmem:[%s1224 + $0x50] sm:$0xff]
      %v1236 = vld [vmem:[%s1224 + $0x58] sm:$0xff]
      %v1237 = vmul.f32 %v1211, %v1225
      %v1238 = vmul.f32 %v1212, %v1226
      %v1239 = vmul.f32 %v1213, %v1227
      %v1240 = vmul.f32 %v1214, %v1228
      %v1241 = vmul.f32 %v1215, %v1229
      %v1242 = vmul.f32 %v1216, %v1230
      %v1243 = vmul.f32 %v1217, %v1231
      %v1244 = vmul.f32 %v1218, %v1232
      %v1245 = vmul.f32 %v1219, %v1233
      %v1246 = vmul.f32 %v1220, %v1234
      %v1247 = vmul.f32 %v1221, %v1235
      %v1248 = vmul.f32 %v1222, %v1236
      %v1249 = vadd.f32 %v1199, %v1237
      %v1250 = vadd.f32 %v1200, %v1238
      %v1251 = vadd.f32 %v1201, %v1239
      %v1252 = vadd.f32 %v1202, %v1240
      %v1253 = vadd.f32 %v1203, %v1241
      %v1254 = vadd.f32 %v1204, %v1242
      %v1255 = vadd.f32 %v1205, %v1243
      %v1256 = vadd.f32 %v1206, %v1244
      %v1257 = vadd.f32 %v1207, %v1245
      %v1258 = vadd.f32 %v1208, %v1246
      %v1259 = vadd.f32 %v1209, %v1247
      %v1260 = vadd.f32 %v1210, %v1248
      %v1261 = vld [vmem:[%s1060 + $0x4] sm:$0xff]
      %v1262 = vld [vmem:[%s1060 + $0xc] sm:$0xff]
      %v1263 = vld [vmem:[%s1060 + $0x14] sm:$0xff]
      %v1264 = vld [vmem:[%s1060 + $0x24] sm:$0xff]
      %v1265 = vld [vmem:[%s1060 + $0x2c] sm:$0xff]
      %v1266 = vld [vmem:[%s1060 + $0x34] sm:$0xff]
      %v1267 = vld [vmem:[%s1060 + $0x44] sm:$0xff]
      %v1268 = vld [vmem:[%s1060 + $0x4c] sm:$0xff]
      %v1269 = vld [vmem:[%s1060 + $0x54] sm:$0xff]
      %v1270 = vld [vmem:[%s1060 + $0x64] sm:$0xff]
      %v1271 = vld [vmem:[%s1060 + $0x6c] sm:$0xff]
      %v1272 = vld [vmem:[%s1060 + $0x74] sm:$0xff]
      %s1273 = sadd.s32 %s73, 13824
      %s1274 = scalar_lea.vmem %s1, %s1273
      %v1275 = vld [vmem:[%s1274] sm:$0xff]
      %v1276 = vld [vmem:[%s1274 + $0x8] sm:$0xff]
      %v1277 = vld [vmem:[%s1274 + $0x10] sm:$0xff]
      %v1278 = vld [vmem:[%s1274 + $0x18] sm:$0xff]
      %v1279 = vld [vmem:[%s1274 + $0x20] sm:$0xff]
      %v1280 = vld [vmem:[%s1274 + $0x28] sm:$0xff]
      %v1281 = vld [vmem:[%s1274 + $0x30] sm:$0xff]
      %v1282 = vld [vmem:[%s1274 + $0x38] sm:$0xff]
      %v1283 = vld [vmem:[%s1274 + $0x40] sm:$0xff]
      %v1284 = vld [vmem:[%s1274 + $0x48] sm:$0xff]
      %v1285 = vld [vmem:[%s1274 + $0x50] sm:$0xff]
      %v1286 = vld [vmem:[%s1274 + $0x58] sm:$0xff]
      %v1287 = vmul.f32 %v1261, %v1275
      %v1288 = vmul.f32 %v1262, %v1276
      %v1289 = vmul.f32 %v1263, %v1277
      %v1290 = vmul.f32 %v1264, %v1278
      %v1291 = vmul.f32 %v1265, %v1279
      %v1292 = vmul.f32 %v1266, %v1280
      %v1293 = vmul.f32 %v1267, %v1281
      %v1294 = vmul.f32 %v1268, %v1282
      %v1295 = vmul.f32 %v1269, %v1283
      %v1296 = vmul.f32 %v1270, %v1284
      %v1297 = vmul.f32 %v1271, %v1285
      %v1298 = vmul.f32 %v1272, %v1286
      %v1299 = vadd.f32 %v1249, %v1287
      %v1300 = vadd.f32 %v1250, %v1288
      %v1301 = vadd.f32 %v1251, %v1289
      %v1302 = vadd.f32 %v1252, %v1290
      %v1303 = vadd.f32 %v1253, %v1291
      %v1304 = vadd.f32 %v1254, %v1292
      %v1305 = vadd.f32 %v1255, %v1293
      %v1306 = vadd.f32 %v1256, %v1294
      %v1307 = vadd.f32 %v1257, %v1295
      %v1308 = vadd.f32 %v1258, %v1296
      %v1309 = vadd.f32 %v1259, %v1297
      %v1310 = vadd.f32 %v1260, %v1298
      %s1311 = scalar_lea.vmem [#allocation2], %s73
      %1312 = vst [vmem:[%s1311] sm:$0xff] %v1299
      %1313 = vst [vmem:[%s1311 + $0x8] sm:$0xff] %v1300
      %1314 = vst [vmem:[%s1311 + $0x10] sm:$0xff] %v1301
      %1315 = vst [vmem:[%s1311 + $0x18] sm:$0xff] %v1302
      %1316 = vst [vmem:[%s1311 + $0x20] sm:$0xff] %v1303
      %1317 = vst [vmem:[%s1311 + $0x28] sm:$0xff] %v1304
      %1318 = vst [vmem:[%s1311 + $0x30] sm:$0xff] %v1305
      %1319 = vst [vmem:[%s1311 + $0x38] sm:$0xff] %v1306
      %1320 = vst [vmem:[%s1311 + $0x40] sm:$0xff] %v1307
      %1321 = vst [vmem:[%s1311 + $0x48] sm:$0xff] %v1308
      %1322 = vst [vmem:[%s1311 + $0x50] sm:$0xff] %v1309
      %1323 = vst [vmem:[%s1311 + $0x58] sm:$0xff] %v1310
    $region38: #{_lambda_.1} parent=1 // loop_footer
      %s57 = sadd.s32 1, %s53
    $region39: #{_lambda_.1} parent=1 // loop_footer_branch
      %52 = sbr.rel target = $region35
    $region40: #{_lambda_.1} parent=1 // loop_exit
      _
    loop: start=0, step=1, limit=5
    $region41: #{_lambda_.1} parent=1 // loop_pre_header
      _
    $region42: #{_lambda_.1} parent=1 // loop_header
      %s1325 = sphi 0, %s1329
      %p1326 = scmp.ge.s32.totalorder %s1325, 5
    $region43: #{_lambda_.1} parent=1 // loop_header_branch
      %1328 = sbr.rel (%p1326) target = $region47
    $region44: #{_lambda_.1} parent=1 // loop_body
      %s1330 = smul.u32 %s1325, 4
      %s1331 = smul.u32 %s1330, 24
      %s1332 = scalar_lea.vmem [#allocation2], %s1331
      %v1333 = vld [vmem:[%s1332] sm:$0xff]
      %v1334 = vld [vmem:[%s1332 + $0x8] sm:$0xff]
      %v1335 = vld [vmem:[%s1332 + $0x10] sm:$0xf]
      %v1336 = vld [vmem:[%s1332 + $0x18] sm:$0xff]
      %v1337 = vld [vmem:[%s1332 + $0x20] sm:$0xff]
      %v1338 = vld [vmem:[%s1332 + $0x28] sm:$0xf]
      %v1339 = vld [vmem:[%s1332 + $0x30] sm:$0xff]
      %v1340 = vld [vmem:[%s1332 + $0x38] sm:$0xff]
      %v1341 = vld [vmem:[%s1332 + $0x40] sm:$0xf]
      %v1342 = vld [vmem:[%s1332 + $0x48] sm:$0xff]
      %v1343 = vld [vmem:[%s1332 + $0x50] sm:$0xff]
      %v1344 = vld [vmem:[%s1332 + $0x58] sm:$0xf]
      %s1345 = scalar_lea.vmem %s2, %s1331
      %v1346 = vld [vmem:[%s1345] sm:$0xff]
      %v1347 = vld [vmem:[%s1345 + $0x8] sm:$0xff]
      %v1348 = vld [vmem:[%s1345 + $0x10] sm:$0xf]
      %v1349 = vld [vmem:[%s1345 + $0x18] sm:$0xff]
      %v1350 = vld [vmem:[%s1345 + $0x20] sm:$0xff]
      %v1351 = vld [vmem:[%s1345 + $0x28] sm:$0xf]
      %v1352 = vld [vmem:[%s1345 + $0x30] sm:$0xff]
      %v1353 = vld [vmem:[%s1345 + $0x38] sm:$0xff]
      %v1354 = vld [vmem:[%s1345 + $0x40] sm:$0xf]
      %v1355 = vld [vmem:[%s1345 + $0x48] sm:$0xff]
      %v1356 = vld [vmem:[%s1345 + $0x50] sm:$0xff]
      %v1357 = vld [vmem:[%s1345 + $0x58] sm:$0xf]
      %v1358 = vmul.f32 %v1333, %v1346
      %v1359 = vmul.f32 %v1334, %v1347
      %v1360 = vmul.f32 %v1335, %v1348
      %v1361 = vmul.f32 %v1336, %v1349
      %v1362 = vmul.f32 %v1337, %v1350
      %v1363 = vmul.f32 %v1338, %v1351
      %v1364 = vmul.f32 %v1339, %v1352
      %v1365 = vmul.f32 %v1340, %v1353
      %v1366 = vmul.f32 %v1341, %v1354
      %v1367 = vmul.f32 %v1342, %v1355
      %v1368 = vmul.f32 %v1343, %v1356
      %v1369 = vmul.f32 %v1344, %v1357
      %v1370 = vld [vmem:[%s1332 + $0x1] sm:$0xff]
      %v1371 = vld [vmem:[%s1332 + $0x9] sm:$0xff]
      %v1372 = vld [vmem:[%s1332 + $0x11] sm:$0xf]
      %v1373 = vld [vmem:[%s1332 + $0x19] sm:$0xff]
      %v1374 = vld [vmem:[%s1332 + $0x21] sm:$0xff]
      %v1375 = vld [vmem:[%s1332 + $0x29] sm:$0xf]
      %v1376 = vld [vmem:[%s1332 + $0x31] sm:$0xff]
      %v1377 = vld [vmem:[%s1332 + $0x39] sm:$0xff]
      %v1378 = vld [vmem:[%s1332 + $0x41] sm:$0xf]
      %v1379 = vld [vmem:[%s1332 + $0x49] sm:$0xff]
      %v1380 = vld [vmem:[%s1332 + $0x51] sm:$0xff]
      %v1381 = vld [vmem:[%s1332 + $0x59] sm:$0xf]
      %s1382 = sadd.s32 %s1331, 480
      %s1383 = scalar_lea.vmem %s2, %s1382
      %v1384 = vld [vmem:[%s1383] sm:$0xff]
      %v1385 = vld [vmem:[%s1383 + $0x8] sm:$0xff]
      %v1386 = vld [vmem:[%s1383 + $0x10] sm:$0xf]
      %v1387 = vld [vmem:[%s1383 + $0x18] sm:$0xff]
      %v1388 = vld [vmem:[%s1383 + $0x20] sm:$0xff]
      %v1389 = vld [vmem:[%s1383 + $0x28] sm:$0xf]
      %v1390 = vld [vmem:[%s1383 + $0x30] sm:$0xff]
      %v1391 = vld [vmem:[%s1383 + $0x38] sm:$0xff]
      %v1392 = vld [vmem:[%s1383 + $0x40] sm:$0xf]
      %v1393 = vld [vmem:[%s1383 + $0x48] sm:$0xff]
      %v1394 = vld [vmem:[%s1383 + $0x50] sm:$0xff]
      %v1395 = vld [vmem:[%s1383 + $0x58] sm:$0xf]
      %v1396 = vmul.f32 %v1370, %v1384
      %v1397 = vmul.f32 %v1371, %v1385
      %v1398 = vmul.f32 %v1372, %v1386
      %v1399 = vmul.f32 %v1373, %v1387
      %v1400 = vmul.f32 %v1374, %v1388
      %v1401 = vmul.f32 %v1375, %v1389
      %v1402 = vmul.f32 %v1376, %v1390
      %v1403 = vmul.f32 %v1377, %v1391
      %v1404 = vmul.f32 %v1378, %v1392
      %v1405 = vmul.f32 %v1379, %v1393
      %v1406 = vmul.f32 %v1380, %v1394
      %v1407 = vmul.f32 %v1381, %v1395
      %v1408 = vadd.f32 %v1358, %v1396
      %v1409 = vadd.f32 %v1359, %v1397
      %v1410 = vadd.f32 %v1360, %v1398
      %v1411 = vadd.f32 %v1361, %v1399
      %v1412 = vadd.f32 %v1362, %v1400
      %v1413 = vadd.f32 %v1363, %v1401
      %v1414 = vadd.f32 %v1364, %v1402
      %v1415 = vadd.f32 %v1365, %v1403
      %v1416 = vadd.f32 %v1366, %v1404
      %v1417 = vadd.f32 %v1367, %v1405
      %v1418 = vadd.f32 %v1368, %v1406
      %v1419 = vadd.f32 %v1369, %v1407
      %v1420 = vld [vmem:[%s1332 + $0x2] sm:$0xff]
      %v1421 = vld [vmem:[%s1332 + $0xa] sm:$0xff]
      %v1422 = vld [vmem:[%s1332 + $0x12] sm:$0xf]
      %v1423 = vld [vmem:[%s1332 + $0x1a] sm:$0xff]
      %v1424 = vld [vmem:[%s1332 + $0x22] sm:$0xff]
      %v1425 = vld [vmem:[%s1332 + $0x2a] sm:$0xf]
      %v1426 = vld [vmem:[%s1332 + $0x32] sm:$0xff]
      %v1427 = vld [vmem:[%s1332 + $0x3a] sm:$0xff]
      %v1428 = vld [vmem:[%s1332 + $0x42] sm:$0xf]
      %v1429 = vld [vmem:[%s1332 + $0x4a] sm:$0xff]
      %v1430 = vld [vmem:[%s1332 + $0x52] sm:$0xff]
      %v1431 = vld [vmem:[%s1332 + $0x5a] sm:$0xf]
      %s1432 = sadd.s32 %s1331, 960
      %s1433 = scalar_lea.vmem %s2, %s1432
      %v1434 = vld [vmem:[%s1433] sm:$0xff]
      %v1435 = vld [vmem:[%s1433 + $0x8] sm:$0xff]
      %v1436 = vld [vmem:[%s1433 + $0x10] sm:$0xf]
      %v1437 = vld [vmem:[%s1433 + $0x18] sm:$0xff]
      %v1438 = vld [vmem:[%s1433 + $0x20] sm:$0xff]
      %v1439 = vld [vmem:[%s1433 + $0x28] sm:$0xf]
      %v1440 = vld [vmem:[%s1433 + $0x30] sm:$0xff]
      %v1441 = vld [vmem:[%s1433 + $0x38] sm:$0xff]
      %v1442 = vld [vmem:[%s1433 + $0x40] sm:$0xf]
      %v1443 = vld [vmem:[%s1433 + $0x48] sm:$0xff]
      %v1444 = vld [vmem:[%s1433 + $0x50] sm:$0xff]
      %v1445 = vld [vmem:[%s1433 + $0x58] sm:$0xf]
      %v1446 = vmul.f32 %v1420, %v1434
      %v1447 = vmul.f32 %v1421, %v1435
      %v1448 = vmul.f32 %v1422, %v1436
      %v1449 = vmul.f32 %v1423, %v1437
      %v1450 = vmul.f32 %v1424, %v1438
      %v1451 = vmul.f32 %v1425, %v1439
      %v1452 = vmul.f32 %v1426, %v1440
      %v1453 = vmul.f32 %v1427, %v1441
      %v1454 = vmul.f32 %v1428, %v1442
      %v1455 = vmul.f32 %v1429, %v1443
      %v1456 = vmul.f32 %v1430, %v1444
      %v1457 = vmul.f32 %v1431, %v1445
      %v1458 = vadd.f32 %v1408, %v1446
      %v1459 = vadd.f32 %v1409, %v1447
      %v1460 = vadd.f32 %v1410, %v1448
      %v1461 = vadd.f32 %v1411, %v1449
      %v1462 = vadd.f32 %v1412, %v1450
      %v1463 = vadd.f32 %v1413, %v1451
      %v1464 = vadd.f32 %v1414, %v1452
      %v1465 = vadd.f32 %v1415, %v1453
      %v1466 = vadd.f32 %v1416, %v1454
      %v1467 = vadd.f32 %v1417, %v1455
      %v1468 = vadd.f32 %v1418, %v1456
      %v1469 = vadd.f32 %v1419, %v1457
      %v1470 = vld [vmem:[%s1332 + $0x3] sm:$0xff]
      %v1471 = vld [vmem:[%s1332 + $0xb] sm:$0xff]
      %v1472 = vld [vmem:[%s1332 + $0x13] sm:$0xf]
      %v1473 = vld [vmem:[%s1332 + $0x1b] sm:$0xff]
      %v1474 = vld [vmem:[%s1332 + $0x23] sm:$0xff]
      %v1475 = vld [vmem:[%s1332 + $0x2b] sm:$0xf]
      %v1476 = vld [vmem:[%s1332 + $0x33] sm:$0xff]
      %v1477 = vld [vmem:[%s1332 + $0x3b] sm:$0xff]
      %v1478 = vld [vmem:[%s1332 + $0x43] sm:$0xf]
      %v1479 = vld [vmem:[%s1332 + $0x4b] sm:$0xff]
      %v1480 = vld [vmem:[%s1332 + $0x53] sm:$0xff]
      %v1481 = vld [vmem:[%s1332 + $0x5b] sm:$0xf]
      %s1482 = sadd.s32 %s1331, 1440
      %s1483 = scalar_lea.vmem %s2, %s1482
      %v1484 = vld [vmem:[%s1483] sm:$0xff]
      %v1485 = vld [vmem:[%s1483 + $0x8] sm:$0xff]
      %v1486 = vld [vmem:[%s1483 + $0x10] sm:$0xf]
      %v1487 = vld [vmem:[%s1483 + $0x18] sm:$0xff]
      %v1488 = vld [vmem:[%s1483 + $0x20] sm:$0xff]
      %v1489 = vld [vmem:[%s1483 + $0x28] sm:$0xf]
      %v1490 = vld [vmem:[%s1483 + $0x30] sm:$0xff]
      %v1491 = vld [vmem:[%s1483 + $0x38] sm:$0xff]
      %v1492 = vld [vmem:[%s1483 + $0x40] sm:$0xf]
      %v1493 = vld [vmem:[%s1483 + $0x48] sm:$0xff]
      %v1494 = vld [vmem:[%s1483 + $0x50] sm:$0xff]
      %v1495 = vld [vmem:[%s1483 + $0x58] sm:$0xf]
      %v1496 = vmul.f32 %v1470, %v1484
      %v1497 = vmul.f32 %v1471, %v1485
      %v1498 = vmul.f32 %v1472, %v1486
      %v1499 = vmul.f32 %v1473, %v1487
      %v1500 = vmul.f32 %v1474, %v1488
      %v1501 = vmul.f32 %v1475, %v1489
      %v1502 = vmul.f32 %v1476, %v1490
      %v1503 = vmul.f32 %v1477, %v1491
      %v1504 = vmul.f32 %v1478, %v1492
      %v1505 = vmul.f32 %v1479, %v1493
      %v1506 = vmul.f32 %v1480, %v1494
      %v1507 = vmul.f32 %v1481, %v1495
      %v1508 = vadd.f32 %v1458, %v1496
      %v1509 = vadd.f32 %v1459, %v1497
      %v1510 = vadd.f32 %v1460, %v1498
      %v1511 = vadd.f32 %v1461, %v1499
      %v1512 = vadd.f32 %v1462, %v1500
      %v1513 = vadd.f32 %v1463, %v1501
      %v1514 = vadd.f32 %v1464, %v1502
      %v1515 = vadd.f32 %v1465, %v1503
      %v1516 = vadd.f32 %v1466, %v1504
      %v1517 = vadd.f32 %v1467, %v1505
      %v1518 = vadd.f32 %v1468, %v1506
      %v1519 = vadd.f32 %v1469, %v1507
      %v1520 = vld [vmem:[%s1332 + $0x4] sm:$0xff]
      %v1521 = vld [vmem:[%s1332 + $0xc] sm:$0xff]
      %v1522 = vld [vmem:[%s1332 + $0x14] sm:$0xf]
      %v1523 = vld [vmem:[%s1332 + $0x1c] sm:$0xff]
      %v1524 = vld [vmem:[%s1332 + $0x24] sm:$0xff]
      %v1525 = vld [vmem:[%s1332 + $0x2c] sm:$0xf]
      %v1526 = vld [vmem:[%s1332 + $0x34] sm:$0xff]
      %v1527 = vld [vmem:[%s1332 + $0x3c] sm:$0xff]
      %v1528 = vld [vmem:[%s1332 + $0x44] sm:$0xf]
      %v1529 = vld [vmem:[%s1332 + $0x4c] sm:$0xff]
      %v1530 = vld [vmem:[%s1332 + $0x54] sm:$0xff]
      %v1531 = vld [vmem:[%s1332 + $0x5c] sm:$0xf]
      %s1532 = sadd.s32 %s1331, 1920
      %s1533 = scalar_lea.vmem %s2, %s1532
      %v1534 = vld [vmem:[%s1533] sm:$0xff]
      %v1535 = vld [vmem:[%s1533 + $0x8] sm:$0xff]
      %v1536 = vld [vmem:[%s1533 + $0x10] sm:$0xf]
      %v1537 = vld [vmem:[%s1533 + $0x18] sm:$0xff]
      %v1538 = vld [vmem:[%s1533 + $0x20] sm:$0xff]
      %v1539 = vld [vmem:[%s1533 + $0x28] sm:$0xf]
      %v1540 = vld [vmem:[%s1533 + $0x30] sm:$0xff]
      %v1541 = vld [vmem:[%s1533 + $0x38] sm:$0xff]
      %v1542 = vld [vmem:[%s1533 + $0x40] sm:$0xf]
      %v1543 = vld [vmem:[%s1533 + $0x48] sm:$0xff]
      %v1544 = vld [vmem:[%s1533 + $0x50] sm:$0xff]
      %v1545 = vld [vmem:[%s1533 + $0x58] sm:$0xf]
      %v1546 = vmul.f32 %v1520, %v1534
      %v1547 = vmul.f32 %v1521, %v1535
      %v1548 = vmul.f32 %v1522, %v1536
      %v1549 = vmul.f32 %v1523, %v1537
      %v1550 = vmul.f32 %v1524, %v1538
      %v1551 = vmul.f32 %v1525, %v1539
      %v1552 = vmul.f32 %v1526, %v1540
      %v1553 = vmul.f32 %v1527, %v1541
      %v1554 = vmul.f32 %v1528, %v1542
      %v1555 = vmul.f32 %v1529, %v1543
      %v1556 = vmul.f32 %v1530, %v1544
      %v1557 = vmul.f32 %v1531, %v1545
      %v1558 = vadd.f32 %v1508, %v1546
      %v1559 = vadd.f32 %v1509, %v1547
      %v1560 = vadd.f32 %v1510, %v1548
      %v1561 = vadd.f32 %v1511, %v1549
      %v1562 = vadd.f32 %v1512, %v1550
      %v1563 = vadd.f32 %v1513, %v1551
      %v1564 = vadd.f32 %v1514, %v1552
      %v1565 = vadd.f32 %v1515, %v1553
      %v1566 = vadd.f32 %v1516, %v1554
      %v1567 = vadd.f32 %v1517, %v1555
      %v1568 = vadd.f32 %v1518, %v1556
      %v1569 = vadd.f32 %v1519, %v1557
      %s1570 = sadd.s32 %s1330, 1
      %s1571 = smul.u32 %s1570, 24
      %s1572 = scalar_lea.vmem [#allocation2], %s1571
      %v1573 = vld [vmem:[%s1572] sm:$0xff]
      %v1574 = vld [vmem:[%s1572 + $0x8] sm:$0xff]
      %v1575 = vld [vmem:[%s1572 + $0x10] sm:$0xf]
      %v1576 = vld [vmem:[%s1572 + $0x18] sm:$0xff]
      %v1577 = vld [vmem:[%s1572 + $0x20] sm:$0xff]
      %v1578 = vld [vmem:[%s1572 + $0x28] sm:$0xf]
      %v1579 = vld [vmem:[%s1572 + $0x30] sm:$0xff]
      %v1580 = vld [vmem:[%s1572 + $0x38] sm:$0xff]
      %v1581 = vld [vmem:[%s1572 + $0x40] sm:$0xf]
      %v1582 = vld [vmem:[%s1572 + $0x48] sm:$0xff]
      %v1583 = vld [vmem:[%s1572 + $0x50] sm:$0xff]
      %v1584 = vld [vmem:[%s1572 + $0x58] sm:$0xf]
      %s1585 = sadd.s32 %s1331, 2400
      %s1586 = scalar_lea.vmem %s2, %s1585
      %v1587 = vld [vmem:[%s1586] sm:$0xff]
      %v1588 = vld [vmem:[%s1586 + $0x8] sm:$0xff]
      %v1589 = vld [vmem:[%s1586 + $0x10] sm:$0xf]
      %v1590 = vld [vmem:[%s1586 + $0x18] sm:$0xff]
      %v1591 = vld [vmem:[%s1586 + $0x20] sm:$0xff]
      %v1592 = vld [vmem:[%s1586 + $0x28] sm:$0xf]
      %v1593 = vld [vmem:[%s1586 + $0x30] sm:$0xff]
      %v1594 = vld [vmem:[%s1586 + $0x38] sm:$0xff]
      %v1595 = vld [vmem:[%s1586 + $0x40] sm:$0xf]
      %v1596 = vld [vmem:[%s1586 + $0x48] sm:$0xff]
      %v1597 = vld [vmem:[%s1586 + $0x50] sm:$0xff]
      %v1598 = vld [vmem:[%s1586 + $0x58] sm:$0xf]
      %v1599 = vmul.f32 %v1573, %v1587
      %v1600 = vmul.f32 %v1574, %v1588
      %v1601 = vmul.f32 %v1575, %v1589
      %v1602 = vmul.f32 %v1576, %v1590
      %v1603 = vmul.f32 %v1577, %v1591
      %v1604 = vmul.f32 %v1578, %v1592
      %v1605 = vmul.f32 %v1579, %v1593
      %v1606 = vmul.f32 %v1580, %v1594
      %v1607 = vmul.f32 %v1581, %v1595
      %v1608 = vmul.f32 %v1582, %v1596
      %v1609 = vmul.f32 %v1583, %v1597
      %v1610 = vmul.f32 %v1584, %v1598
      %v1611 = vadd.f32 %v1558, %v1599
      %v1612 = vadd.f32 %v1559, %v1600
      %v1613 = vadd.f32 %v1560, %v1601
      %v1614 = vadd.f32 %v1561, %v1602
      %v1615 = vadd.f32 %v1562, %v1603
      %v1616 = vadd.f32 %v1563, %v1604
      %v1617 = vadd.f32 %v1564, %v1605
      %v1618 = vadd.f32 %v1565, %v1606
      %v1619 = vadd.f32 %v1566, %v1607
      %v1620 = vadd.f32 %v1567, %v1608
      %v1621 = vadd.f32 %v1568, %v1609
      %v1622 = vadd.f32 %v1569, %v1610
      %v1623 = vld [vmem:[%s1572 + $0x1] sm:$0xff]
      %v1624 = vld [vmem:[%s1572 + $0x9] sm:$0xff]
      %v1625 = vld [vmem:[%s1572 + $0x11] sm:$0xf]
      %v1626 = vld [vmem:[%s1572 + $0x19] sm:$0xff]
      %v1627 = vld [vmem:[%s1572 + $0x21] sm:$0xff]
      %v1628 = vld [vmem:[%s1572 + $0x29] sm:$0xf]
      %v1629 = vld [vmem:[%s1572 + $0x31] sm:$0xff]
      %v1630 = vld [vmem:[%s1572 + $0x39] sm:$0xff]
      %v1631 = vld [vmem:[%s1572 + $0x41] sm:$0xf]
      %v1632 = vld [vmem:[%s1572 + $0x49] sm:$0xff]
      %v1633 = vld [vmem:[%s1572 + $0x51] sm:$0xff]
      %v1634 = vld [vmem:[%s1572 + $0x59] sm:$0xf]
      %s1635 = sadd.s32 %s1331, 2880
      %s1636 = scalar_lea.vmem %s2, %s1635
      %v1637 = vld [vmem:[%s1636] sm:$0xff]
      %v1638 = vld [vmem:[%s1636 + $0x8] sm:$0xff]
      %v1639 = vld [vmem:[%s1636 + $0x10] sm:$0xf]
      %v1640 = vld [vmem:[%s1636 + $0x18] sm:$0xff]
      %v1641 = vld [vmem:[%s1636 + $0x20] sm:$0xff]
      %v1642 = vld [vmem:[%s1636 + $0x28] sm:$0xf]
      %v1643 = vld [vmem:[%s1636 + $0x30] sm:$0xff]
      %v1644 = vld [vmem:[%s1636 + $0x38] sm:$0xff]
      %v1645 = vld [vmem:[%s1636 + $0x40] sm:$0xf]
      %v1646 = vld [vmem:[%s1636 + $0x48] sm:$0xff]
      %v1647 = vld [vmem:[%s1636 + $0x50] sm:$0xff]
      %v1648 = vld [vmem:[%s1636 + $0x58] sm:$0xf]
      %v1649 = vmul.f32 %v1623, %v1637
      %v1650 = vmul.f32 %v1624, %v1638
      %v1651 = vmul.f32 %v1625, %v1639
      %v1652 = vmul.f32 %v1626, %v1640
      %v1653 = vmul.f32 %v1627, %v1641
      %v1654 = vmul.f32 %v1628, %v1642
      %v1655 = vmul.f32 %v1629, %v1643
      %v1656 = vmul.f32 %v1630, %v1644
      %v1657 = vmul.f32 %v1631, %v1645
      %v1658 = vmul.f32 %v1632, %v1646
      %v1659 = vmul.f32 %v1633, %v1647
      %v1660 = vmul.f32 %v1634, %v1648
      %v1661 = vadd.f32 %v1611, %v1649
      %v1662 = vadd.f32 %v1612, %v1650
      %v1663 = vadd.f32 %v1613, %v1651
      %v1664 = vadd.f32 %v1614, %v1652
      %v1665 = vadd.f32 %v1615, %v1653
      %v1666 = vadd.f32 %v1616, %v1654
      %v1667 = vadd.f32 %v1617, %v1655
      %v1668 = vadd.f32 %v1618, %v1656
      %v1669 = vadd.f32 %v1619, %v1657
      %v1670 = vadd.f32 %v1620, %v1658
      %v1671 = vadd.f32 %v1621, %v1659
      %v1672 = vadd.f32 %v1622, %v1660
      %v1673 = vld [vmem:[%s1572 + $0x2] sm:$0xff]
      %v1674 = vld [vmem:[%s1572 + $0xa] sm:$0xff]
      %v1675 = vld [vmem:[%s1572 + $0x12] sm:$0xf]
      %v1676 = vld [vmem:[%s1572 + $0x1a] sm:$0xff]
      %v1677 = vld [vmem:[%s1572 + $0x22] sm:$0xff]
      %v1678 = vld [vmem:[%s1572 + $0x2a] sm:$0xf]
      %v1679 = vld [vmem:[%s1572 + $0x32] sm:$0xff]
      %v1680 = vld [vmem:[%s1572 + $0x3a] sm:$0xff]
      %v1681 = vld [vmem:[%s1572 + $0x42] sm:$0xf]
      %v1682 = vld [vmem:[%s1572 + $0x4a] sm:$0xff]
      %v1683 = vld [vmem:[%s1572 + $0x52] sm:$0xff]
      %v1684 = vld [vmem:[%s1572 + $0x5a] sm:$0xf]
      %s1685 = sadd.s32 %s1331, 3360
      %s1686 = scalar_lea.vmem %s2, %s1685
      %v1687 = vld [vmem:[%s1686] sm:$0xff]
      %v1688 = vld [vmem:[%s1686 + $0x8] sm:$0xff]
      %v1689 = vld [vmem:[%s1686 + $0x10] sm:$0xf]
      %v1690 = vld [vmem:[%s1686 + $0x18] sm:$0xff]
      %v1691 = vld [vmem:[%s1686 + $0x20] sm:$0xff]
      %v1692 = vld [vmem:[%s1686 + $0x28] sm:$0xf]
      %v1693 = vld [vmem:[%s1686 + $0x30] sm:$0xff]
      %v1694 = vld [vmem:[%s1686 + $0x38] sm:$0xff]
      %v1695 = vld [vmem:[%s1686 + $0x40] sm:$0xf]
      %v1696 = vld [vmem:[%s1686 + $0x48] sm:$0xff]
      %v1697 = vld [vmem:[%s1686 + $0x50] sm:$0xff]
      %v1698 = vld [vmem:[%s1686 + $0x58] sm:$0xf]
      %v1699 = vmul.f32 %v1673, %v1687
      %v1700 = vmul.f32 %v1674, %v1688
      %v1701 = vmul.f32 %v1675, %v1689
      %v1702 = vmul.f32 %v1676, %v1690
      %v1703 = vmul.f32 %v1677, %v1691
      %v1704 = vmul.f32 %v1678, %v1692
      %v1705 = vmul.f32 %v1679, %v1693
      %v1706 = vmul.f32 %v1680, %v1694
      %v1707 = vmul.f32 %v1681, %v1695
      %v1708 = vmul.f32 %v1682, %v1696
      %v1709 = vmul.f32 %v1683, %v1697
      %v1710 = vmul.f32 %v1684, %v1698
      %v1711 = vadd.f32 %v1661, %v1699
      %v1712 = vadd.f32 %v1662, %v1700
      %v1713 = vadd.f32 %v1663, %v1701
      %v1714 = vadd.f32 %v1664, %v1702
      %v1715 = vadd.f32 %v1665, %v1703
      %v1716 = vadd.f32 %v1666, %v1704
      %v1717 = vadd.f32 %v1667, %v1705
      %v1718 = vadd.f32 %v1668, %v1706
      %v1719 = vadd.f32 %v1669, %v1707
      %v1720 = vadd.f32 %v1670, %v1708
      %v1721 = vadd.f32 %v1671, %v1709
      %v1722 = vadd.f32 %v1672, %v1710
      %v1723 = vld [vmem:[%s1572 + $0x3] sm:$0xff]
      %v1724 = vld [vmem:[%s1572 + $0xb] sm:$0xff]
      %v1725 = vld [vmem:[%s1572 + $0x13] sm:$0xf]
      %v1726 = vld [vmem:[%s1572 + $0x1b] sm:$0xff]
      %v1727 = vld [vmem:[%s1572 + $0x23] sm:$0xff]
      %v1728 = vld [vmem:[%s1572 + $0x2b] sm:$0xf]
      %v1729 = vld [vmem:[%s1572 + $0x33] sm:$0xff]
      %v1730 = vld [vmem:[%s1572 + $0x3b] sm:$0xff]
      %v1731 = vld [vmem:[%s1572 + $0x43] sm:$0xf]
      %v1732 = vld [vmem:[%s1572 + $0x4b] sm:$0xff]
      %v1733 = vld [vmem:[%s1572 + $0x53] sm:$0xff]
      %v1734 = vld [vmem:[%s1572 + $0x5b] sm:$0xf]
      %s1735 = sadd.s32 %s1331, 3840
      %s1736 = scalar_lea.vmem %s2, %s1735
      %v1737 = vld [vmem:[%s1736] sm:$0xff]
      %v1738 = vld [vmem:[%s1736 + $0x8] sm:$0xff]
      %v1739 = vld [vmem:[%s1736 + $0x10] sm:$0xf]
      %v1740 = vld [vmem:[%s1736 + $0x18] sm:$0xff]
      %v1741 = vld [vmem:[%s1736 + $0x20] sm:$0xff]
      %v1742 = vld [vmem:[%s1736 + $0x28] sm:$0xf]
      %v1743 = vld [vmem:[%s1736 + $0x30] sm:$0xff]
      %v1744 = vld [vmem:[%s1736 + $0x38] sm:$0xff]
      %v1745 = vld [vmem:[%s1736 + $0x40] sm:$0xf]
      %v1746 = vld [vmem:[%s1736 + $0x48] sm:$0xff]
      %v1747 = vld [vmem:[%s1736 + $0x50] sm:$0xff]
      %v1748 = vld [vmem:[%s1736 + $0x58] sm:$0xf]
      %v1749 = vmul.f32 %v1723, %v1737
      %v1750 = vmul.f32 %v1724, %v1738
      %v1751 = vmul.f32 %v1725, %v1739
      %v1752 = vmul.f32 %v1726, %v1740
      %v1753 = vmul.f32 %v1727, %v1741
      %v1754 = vmul.f32 %v1728, %v1742
      %v1755 = vmul.f32 %v1729, %v1743
      %v1756 = vmul.f32 %v1730, %v1744
      %v1757 = vmul.f32 %v1731, %v1745
      %v1758 = vmul.f32 %v1732, %v1746
      %v1759 = vmul.f32 %v1733, %v1747
      %v1760 = vmul.f32 %v1734, %v1748
      %v1761 = vadd.f32 %v1711, %v1749
      %v1762 = vadd.f32 %v1712, %v1750
      %v1763 = vadd.f32 %v1713, %v1751
      %v1764 = vadd.f32 %v1714, %v1752
      %v1765 = vadd.f32 %v1715, %v1753
      %v1766 = vadd.f32 %v1716, %v1754
      %v1767 = vadd.f32 %v1717, %v1755
      %v1768 = vadd.f32 %v1718, %v1756
      %v1769 = vadd.f32 %v1719, %v1757
      %v1770 = vadd.f32 %v1720, %v1758
      %v1771 = vadd.f32 %v1721, %v1759
      %v1772 = vadd.f32 %v1722, %v1760
      %v1773 = vld [vmem:[%s1572 + $0x4] sm:$0xff]
      %v1774 = vld [vmem:[%s1572 + $0xc] sm:$0xff]
      %v1775 = vld [vmem:[%s1572 + $0x14] sm:$0xf]
      %v1776 = vld [vmem:[%s1572 + $0x1c] sm:$0xff]
      %v1777 = vld [vmem:[%s1572 + $0x24] sm:$0xff]
      %v1778 = vld [vmem:[%s1572 + $0x2c] sm:$0xf]
      %v1779 = vld [vmem:[%s1572 + $0x34] sm:$0xff]
      %v1780 = vld [vmem:[%s1572 + $0x3c] sm:$0xff]
      %v1781 = vld [vmem:[%s1572 + $0x44] sm:$0xf]
      %v1782 = vld [vmem:[%s1572 + $0x4c] sm:$0xff]
      %v1783 = vld [vmem:[%s1572 + $0x54] sm:$0xff]
      %v1784 = vld [vmem:[%s1572 + $0x5c] sm:$0xf]
      %s1785 = sadd.s32 %s1331, 4320
      %s1786 = scalar_lea.vmem %s2, %s1785
      %v1787 = vld [vmem:[%s1786] sm:$0xff]
      %v1788 = vld [vmem:[%s1786 + $0x8] sm:$0xff]
      %v1789 = vld [vmem:[%s1786 + $0x10] sm:$0xf]
      %v1790 = vld [vmem:[%s1786 + $0x18] sm:$0xff]
      %v1791 = vld [vmem:[%s1786 + $0x20] sm:$0xff]
      %v1792 = vld [vmem:[%s1786 + $0x28] sm:$0xf]
      %v1793 = vld [vmem:[%s1786 + $0x30] sm:$0xff]
      %v1794 = vld [vmem:[%s1786 + $0x38] sm:$0xff]
      %v1795 = vld [vmem:[%s1786 + $0x40] sm:$0xf]
      %v1796 = vld [vmem:[%s1786 + $0x48] sm:$0xff]
      %v1797 = vld [vmem:[%s1786 + $0x50] sm:$0xff]
      %v1798 = vld [vmem:[%s1786 + $0x58] sm:$0xf]
      %v1799 = vmul.f32 %v1773, %v1787
      %v1800 = vmul.f32 %v1774, %v1788
      %v1801 = vmul.f32 %v1775, %v1789
      %v1802 = vmul.f32 %v1776, %v1790
      %v1803 = vmul.f32 %v1777, %v1791
      %v1804 = vmul.f32 %v1778, %v1792
      %v1805 = vmul.f32 %v1779, %v1793
      %v1806 = vmul.f32 %v1780, %v1794
      %v1807 = vmul.f32 %v1781, %v1795
      %v1808 = vmul.f32 %v1782, %v1796
      %v1809 = vmul.f32 %v1783, %v1797
      %v1810 = vmul.f32 %v1784, %v1798
      %v1811 = vadd.f32 %v1761, %v1799
      %v1812 = vadd.f32 %v1762, %v1800
      %v1813 = vadd.f32 %v1763, %v1801
      %v1814 = vadd.f32 %v1764, %v1802
      %v1815 = vadd.f32 %v1765, %v1803
      %v1816 = vadd.f32 %v1766, %v1804
      %v1817 = vadd.f32 %v1767, %v1805
      %v1818 = vadd.f32 %v1768, %v1806
      %v1819 = vadd.f32 %v1769, %v1807
      %v1820 = vadd.f32 %v1770, %v1808
      %v1821 = vadd.f32 %v1771, %v1809
      %v1822 = vadd.f32 %v1772, %v1810
      %s1823 = sadd.s32 %s1330, 2
      %s1824 = smul.u32 %s1823, 24
      %s1825 = scalar_lea.vmem [#allocation2], %s1824
      %v1826 = vld [vmem:[%s1825] sm:$0xff]
      %v1827 = vld [vmem:[%s1825 + $0x8] sm:$0xff]
      %v1828 = vld [vmem:[%s1825 + $0x10] sm:$0xf]
      %v1829 = vld [vmem:[%s1825 + $0x18] sm:$0xff]
      %v1830 = vld [vmem:[%s1825 + $0x20] sm:$0xff]
      %v1831 = vld [vmem:[%s1825 + $0x28] sm:$0xf]
      %v1832 = vld [vmem:[%s1825 + $0x30] sm:$0xff]
      %v1833 = vld [vmem:[%s1825 + $0x38] sm:$0xff]
      %v1834 = vld [vmem:[%s1825 + $0x40] sm:$0xf]
      %v1835 = vld [vmem:[%s1825 + $0x48] sm:$0xff]
      %v1836 = vld [vmem:[%s1825 + $0x50] sm:$0xff]
      %v1837 = vld [vmem:[%s1825 + $0x58] sm:$0xf]
      %s1838 = sadd.s32 %s1331, 4800
      %s1839 = scalar_lea.vmem %s2, %s1838
      %v1840 = vld [vmem:[%s1839] sm:$0xff]
      %v1841 = vld [vmem:[%s1839 + $0x8] sm:$0xff]
      %v1842 = vld [vmem:[%s1839 + $0x10] sm:$0xf]
      %v1843 = vld [vmem:[%s1839 + $0x18] sm:$0xff]
      %v1844 = vld [vmem:[%s1839 + $0x20] sm:$0xff]
      %v1845 = vld [vmem:[%s1839 + $0x28] sm:$0xf]
      %v1846 = vld [vmem:[%s1839 + $0x30] sm:$0xff]
      %v1847 = vld [vmem:[%s1839 + $0x38] sm:$0xff]
      %v1848 = vld [vmem:[%s1839 + $0x40] sm:$0xf]
      %v1849 = vld [vmem:[%s1839 + $0x48] sm:$0xff]
      %v1850 = vld [vmem:[%s1839 + $0x50] sm:$0xff]
      %v1851 = vld [vmem:[%s1839 + $0x58] sm:$0xf]
      %v1852 = vmul.f32 %v1826, %v1840
      %v1853 = vmul.f32 %v1827, %v1841
      %v1854 = vmul.f32 %v1828, %v1842
      %v1855 = vmul.f32 %v1829, %v1843
      %v1856 = vmul.f32 %v1830, %v1844
      %v1857 = vmul.f32 %v1831, %v1845
      %v1858 = vmul.f32 %v1832, %v1846
      %v1859 = vmul.f32 %v1833, %v1847
      %v1860 = vmul.f32 %v1834, %v1848
      %v1861 = vmul.f32 %v1835, %v1849
      %v1862 = vmul.f32 %v1836, %v1850
      %v1863 = vmul.f32 %v1837, %v1851
      %v1864 = vadd.f32 %v1811, %v1852
      %v1865 = vadd.f32 %v1812, %v1853
      %v1866 = vadd.f32 %v1813, %v1854
      %v1867 = vadd.f32 %v1814, %v1855
      %v1868 = vadd.f32 %v1815, %v1856
      %v1869 = vadd.f32 %v1816, %v1857
      %v1870 = vadd.f32 %v1817, %v1858
      %v1871 = vadd.f32 %v1818, %v1859
      %v1872 = vadd.f32 %v1819, %v1860
      %v1873 = vadd.f32 %v1820, %v1861
      %v1874 = vadd.f32 %v1821, %v1862
      %v1875 = vadd.f32 %v1822, %v1863
      %v1876 = vld [vmem:[%s1825 + $0x1] sm:$0xff]
      %v1877 = vld [vmem:[%s1825 + $0x9] sm:$0xff]
      %v1878 = vld [vmem:[%s1825 + $0x11] sm:$0xf]
      %v1879 = vld [vmem:[%s1825 + $0x19] sm:$0xff]
      %v1880 = vld [vmem:[%s1825 + $0x21] sm:$0xff]
      %v1881 = vld [vmem:[%s1825 + $0x29] sm:$0xf]
      %v1882 = vld [vmem:[%s1825 + $0x31] sm:$0xff]
      %v1883 = vld [vmem:[%s1825 + $0x39] sm:$0xff]
      %v1884 = vld [vmem:[%s1825 + $0x41] sm:$0xf]
      %v1885 = vld [vmem:[%s1825 + $0x49] sm:$0xff]
      %v1886 = vld [vmem:[%s1825 + $0x51] sm:$0xff]
      %v1887 = vld [vmem:[%s1825 + $0x59] sm:$0xf]
      %s1888 = sadd.s32 %s1331, 5280
      %s1889 = scalar_lea.vmem %s2, %s1888
      %v1890 = vld [vmem:[%s1889] sm:$0xff]
      %v1891 = vld [vmem:[%s1889 + $0x8] sm:$0xff]
      %v1892 = vld [vmem:[%s1889 + $0x10] sm:$0xf]
      %v1893 = vld [vmem:[%s1889 + $0x18] sm:$0xff]
      %v1894 = vld [vmem:[%s1889 + $0x20] sm:$0xff]
      %v1895 = vld [vmem:[%s1889 + $0x28] sm:$0xf]
      %v1896 = vld [vmem:[%s1889 + $0x30] sm:$0xff]
      %v1897 = vld [vmem:[%s1889 + $0x38] sm:$0xff]
      %v1898 = vld [vmem:[%s1889 + $0x40] sm:$0xf]
      %v1899 = vld [vmem:[%s1889 + $0x48] sm:$0xff]
      %v1900 = vld [vmem:[%s1889 + $0x50] sm:$0xff]
      %v1901 = vld [vmem:[%s1889 + $0x58] sm:$0xf]
      %v1902 = vmul.f32 %v1876, %v1890
      %v1903 = vmul.f32 %v1877, %v1891
      %v1904 = vmul.f32 %v1878, %v1892
      %v1905 = vmul.f32 %v1879, %v1893
      %v1906 = vmul.f32 %v1880, %v1894
      %v1907 = vmul.f32 %v1881, %v1895
      %v1908 = vmul.f32 %v1882, %v1896
      %v1909 = vmul.f32 %v1883, %v1897
      %v1910 = vmul.f32 %v1884, %v1898
      %v1911 = vmul.f32 %v1885, %v1899
      %v1912 = vmul.f32 %v1886, %v1900
      %v1913 = vmul.f32 %v1887, %v1901
      %v1914 = vadd.f32 %v1864, %v1902
      %v1915 = vadd.f32 %v1865, %v1903
      %v1916 = vadd.f32 %v1866, %v1904
      %v1917 = vadd.f32 %v1867, %v1905
      %v1918 = vadd.f32 %v1868, %v1906
      %v1919 = vadd.f32 %v1869, %v1907
      %v1920 = vadd.f32 %v1870, %v1908
      %v1921 = vadd.f32 %v1871, %v1909
      %v1922 = vadd.f32 %v1872, %v1910
      %v1923 = vadd.f32 %v1873, %v1911
      %v1924 = vadd.f32 %v1874, %v1912
      %v1925 = vadd.f32 %v1875, %v1913
      %v1926 = vld [vmem:[%s1825 + $0x2] sm:$0xff]
      %v1927 = vld [vmem:[%s1825 + $0xa] sm:$0xff]
      %v1928 = vld [vmem:[%s1825 + $0x12] sm:$0xf]
      %v1929 = vld [vmem:[%s1825 + $0x1a] sm:$0xff]
      %v1930 = vld [vmem:[%s1825 + $0x22] sm:$0xff]
      %v1931 = vld [vmem:[%s1825 + $0x2a] sm:$0xf]
      %v1932 = vld [vmem:[%s1825 + $0x32] sm:$0xff]
      %v1933 = vld [vmem:[%s1825 + $0x3a] sm:$0xff]
      %v1934 = vld [vmem:[%s1825 + $0x42] sm:$0xf]
      %v1935 = vld [vmem:[%s1825 + $0x4a] sm:$0xff]
      %v1936 = vld [vmem:[%s1825 + $0x52] sm:$0xff]
      %v1937 = vld [vmem:[%s1825 + $0x5a] sm:$0xf]
      %s1938 = sadd.s32 %s1331, 5760
      %s1939 = scalar_lea.vmem %s2, %s1938
      %v1940 = vld [vmem:[%s1939] sm:$0xff]
      %v1941 = vld [vmem:[%s1939 + $0x8] sm:$0xff]
      %v1942 = vld [vmem:[%s1939 + $0x10] sm:$0xf]
      %v1943 = vld [vmem:[%s1939 + $0x18] sm:$0xff]
      %v1944 = vld [vmem:[%s1939 + $0x20] sm:$0xff]
      %v1945 = vld [vmem:[%s1939 + $0x28] sm:$0xf]
      %v1946 = vld [vmem:[%s1939 + $0x30] sm:$0xff]
      %v1947 = vld [vmem:[%s1939 + $0x38] sm:$0xff]
      %v1948 = vld [vmem:[%s1939 + $0x40] sm:$0xf]
      %v1949 = vld [vmem:[%s1939 + $0x48] sm:$0xff]
      %v1950 = vld [vmem:[%s1939 + $0x50] sm:$0xff]
      %v1951 = vld [vmem:[%s1939 + $0x58] sm:$0xf]
      %v1952 = vmul.f32 %v1926, %v1940
      %v1953 = vmul.f32 %v1927, %v1941
      %v1954 = vmul.f32 %v1928, %v1942
      %v1955 = vmul.f32 %v1929, %v1943
      %v1956 = vmul.f32 %v1930, %v1944
      %v1957 = vmul.f32 %v1931, %v1945
      %v1958 = vmul.f32 %v1932, %v1946
      %v1959 = vmul.f32 %v1933, %v1947
      %v1960 = vmul.f32 %v1934, %v1948
      %v1961 = vmul.f32 %v1935, %v1949
      %v1962 = vmul.f32 %v1936, %v1950
      %v1963 = vmul.f32 %v1937, %v1951
      %v1964 = vadd.f32 %v1914, %v1952
      %v1965 = vadd.f32 %v1915, %v1953
      %v1966 = vadd.f32 %v1916, %v1954
      %v1967 = vadd.f32 %v1917, %v1955
      %v1968 = vadd.f32 %v1918, %v1956
      %v1969 = vadd.f32 %v1919, %v1957
      %v1970 = vadd.f32 %v1920, %v1958
      %v1971 = vadd.f32 %v1921, %v1959
      %v1972 = vadd.f32 %v1922, %v1960
      %v1973 = vadd.f32 %v1923, %v1961
      %v1974 = vadd.f32 %v1924, %v1962
      %v1975 = vadd.f32 %v1925, %v1963
      %v1976 = vld [vmem:[%s1825 + $0x3] sm:$0xff]
      %v1977 = vld [vmem:[%s1825 + $0xb] sm:$0xff]
      %v1978 = vld [vmem:[%s1825 + $0x13] sm:$0xf]
      %v1979 = vld [vmem:[%s1825 + $0x1b] sm:$0xff]
      %v1980 = vld [vmem:[%s1825 + $0x23] sm:$0xff]
      %v1981 = vld [vmem:[%s1825 + $0x2b] sm:$0xf]
      %v1982 = vld [vmem:[%s1825 + $0x33] sm:$0xff]
      %v1983 = vld [vmem:[%s1825 + $0x3b] sm:$0xff]
      %v1984 = vld [vmem:[%s1825 + $0x43] sm:$0xf]
      %v1985 = vld [vmem:[%s1825 + $0x4b] sm:$0xff]
      %v1986 = vld [vmem:[%s1825 + $0x53] sm:$0xff]
      %v1987 = vld [vmem:[%s1825 + $0x5b] sm:$0xf]
      %s1988 = sadd.s32 %s1331, 6240
      %s1989 = scalar_lea.vmem %s2, %s1988
      %v1990 = vld [vmem:[%s1989] sm:$0xff]
      %v1991 = vld [vmem:[%s1989 + $0x8] sm:$0xff]
      %v1992 = vld [vmem:[%s1989 + $0x10] sm:$0xf]
      %v1993 = vld [vmem:[%s1989 + $0x18] sm:$0xff]
      %v1994 = vld [vmem:[%s1989 + $0x20] sm:$0xff]
      %v1995 = vld [vmem:[%s1989 + $0x28] sm:$0xf]
      %v1996 = vld [vmem:[%s1989 + $0x30] sm:$0xff]
      %v1997 = vld [vmem:[%s1989 + $0x38] sm:$0xff]
      %v1998 = vld [vmem:[%s1989 + $0x40] sm:$0xf]
      %v1999 = vld [vmem:[%s1989 + $0x48] sm:$0xff]
      %v2000 = vld [vmem:[%s1989 + $0x50] sm:$0xff]
      %v2001 = vld [vmem:[%s1989 + $0x58] sm:$0xf]
      %v2002 = vmul.f32 %v1976, %v1990
      %v2003 = vmul.f32 %v1977, %v1991
      %v2004 = vmul.f32 %v1978, %v1992
      %v2005 = vmul.f32 %v1979, %v1993
      %v2006 = vmul.f32 %v1980, %v1994
      %v2007 = vmul.f32 %v1981, %v1995
      %v2008 = vmul.f32 %v1982, %v1996
      %v2009 = vmul.f32 %v1983, %v1997
      %v2010 = vmul.f32 %v1984, %v1998
      %v2011 = vmul.f32 %v1985, %v1999
      %v2012 = vmul.f32 %v1986, %v2000
      %v2013 = vmul.f32 %v1987, %v2001
      %v2014 = vadd.f32 %v1964, %v2002
      %v2015 = vadd.f32 %v1965, %v2003
      %v2016 = vadd.f32 %v1966, %v2004
      %v2017 = vadd.f32 %v1967, %v2005
      %v2018 = vadd.f32 %v1968, %v2006
      %v2019 = vadd.f32 %v1969, %v2007
      %v2020 = vadd.f32 %v1970, %v2008
      %v2021 = vadd.f32 %v1971, %v2009
      %v2022 = vadd.f32 %v1972, %v2010
      %v2023 = vadd.f32 %v1973, %v2011
      %v2024 = vadd.f32 %v1974, %v2012
      %v2025 = vadd.f32 %v1975, %v2013
      %v2026 = vld [vmem:[%s1825 + $0x4] sm:$0xff]
      %v2027 = vld [vmem:[%s1825 + $0xc] sm:$0xff]
      %v2028 = vld [vmem:[%s1825 + $0x14] sm:$0xf]
      %v2029 = vld [vmem:[%s1825 + $0x1c] sm:$0xff]
      %v2030 = vld [vmem:[%s1825 + $0x24] sm:$0xff]
      %v2031 = vld [vmem:[%s1825 + $0x2c] sm:$0xf]
      %v2032 = vld [vmem:[%s1825 + $0x34] sm:$0xff]
      %v2033 = vld [vmem:[%s1825 + $0x3c] sm:$0xff]
      %v2034 = vld [vmem:[%s1825 + $0x44] sm:$0xf]
      %v2035 = vld [vmem:[%s1825 + $0x4c] sm:$0xff]
      %v2036 = vld [vmem:[%s1825 + $0x54] sm:$0xff]
      %v2037 = vld [vmem:[%s1825 + $0x5c] sm:$0xf]
      %s2038 = sadd.s32 %s1331, 6720
      %s2039 = scalar_lea.vmem %s2, %s2038
      %v2040 = vld [vmem:[%s2039] sm:$0xff]
      %v2041 = vld [vmem:[%s2039 + $0x8] sm:$0xff]
      %v2042 = vld [vmem:[%s2039 + $0x10] sm:$0xf]
      %v2043 = vld [vmem:[%s2039 + $0x18] sm:$0xff]
      %v2044 = vld [vmem:[%s2039 + $0x20] sm:$0xff]
      %v2045 = vld [vmem:[%s2039 + $0x28] sm:$0xf]
      %v2046 = vld [vmem:[%s2039 + $0x30] sm:$0xff]
      %v2047 = vld [vmem:[%s2039 + $0x38] sm:$0xff]
      %v2048 = vld [vmem:[%s2039 + $0x40] sm:$0xf]
      %v2049 = vld [vmem:[%s2039 + $0x48] sm:$0xff]
      %v2050 = vld [vmem:[%s2039 + $0x50] sm:$0xff]
      %v2051 = vld [vmem:[%s2039 + $0x58] sm:$0xf]
      %v2052 = vmul.f32 %v2026, %v2040
      %v2053 = vmul.f32 %v2027, %v2041
      %v2054 = vmul.f32 %v2028, %v2042
      %v2055 = vmul.f32 %v2029, %v2043
      %v2056 = vmul.f32 %v2030, %v2044
      %v2057 = vmul.f32 %v2031, %v2045
      %v2058 = vmul.f32 %v2032, %v2046
      %v2059 = vmul.f32 %v2033, %v2047
      %v2060 = vmul.f32 %v2034, %v2048
      %v2061 = vmul.f32 %v2035, %v2049
      %v2062 = vmul.f32 %v2036, %v2050
      %v2063 = vmul.f32 %v2037, %v2051
      %v2064 = vadd.f32 %v2014, %v2052
      %v2065 = vadd.f32 %v2015, %v2053
      %v2066 = vadd.f32 %v2016, %v2054
      %v2067 = vadd.f32 %v2017, %v2055
      %v2068 = vadd.f32 %v2018, %v2056
      %v2069 = vadd.f32 %v2019, %v2057
      %v2070 = vadd.f32 %v2020, %v2058
      %v2071 = vadd.f32 %v2021, %v2059
      %v2072 = vadd.f32 %v2022, %v2060
      %v2073 = vadd.f32 %v2023, %v2061
      %v2074 = vadd.f32 %v2024, %v2062
      %v2075 = vadd.f32 %v2025, %v2063
      %s2076 = sadd.s32 %s1330, 3
      %s2077 = smul.u32 %s2076, 24
      %s2078 = scalar_lea.vmem [#allocation2], %s2077
      %v2079 = vld [vmem:[%s2078] sm:$0xff]
      %v2080 = vld [vmem:[%s2078 + $0x8] sm:$0xff]
      %v2081 = vld [vmem:[%s2078 + $0x10] sm:$0xf]
      %v2082 = vld [vmem:[%s2078 + $0x18] sm:$0xff]
      %v2083 = vld [vmem:[%s2078 + $0x20] sm:$0xff]
      %v2084 = vld [vmem:[%s2078 + $0x28] sm:$0xf]
      %v2085 = vld [vmem:[%s2078 + $0x30] sm:$0xff]
      %v2086 = vld [vmem:[%s2078 + $0x38] sm:$0xff]
      %v2087 = vld [vmem:[%s2078 + $0x40] sm:$0xf]
      %v2088 = vld [vmem:[%s2078 + $0x48] sm:$0xff]
      %v2089 = vld [vmem:[%s2078 + $0x50] sm:$0xff]
      %v2090 = vld [vmem:[%s2078 + $0x58] sm:$0xf]
      %s2091 = sadd.s32 %s1331, 7200
      %s2092 = scalar_lea.vmem %s2, %s2091
      %v2093 = vld [vmem:[%s2092] sm:$0xff]
      %v2094 = vld [vmem:[%s2092 + $0x8] sm:$0xff]
      %v2095 = vld [vmem:[%s2092 + $0x10] sm:$0xf]
      %v2096 = vld [vmem:[%s2092 + $0x18] sm:$0xff]
      %v2097 = vld [vmem:[%s2092 + $0x20] sm:$0xff]
      %v2098 = vld [vmem:[%s2092 + $0x28] sm:$0xf]
      %v2099 = vld [vmem:[%s2092 + $0x30] sm:$0xff]
      %v2100 = vld [vmem:[%s2092 + $0x38] sm:$0xff]
      %v2101 = vld [vmem:[%s2092 + $0x40] sm:$0xf]
      %v2102 = vld [vmem:[%s2092 + $0x48] sm:$0xff]
      %v2103 = vld [vmem:[%s2092 + $0x50] sm:$0xff]
      %v2104 = vld [vmem:[%s2092 + $0x58] sm:$0xf]
      %v2105 = vmul.f32 %v2079, %v2093
      %v2106 = vmul.f32 %v2080, %v2094
      %v2107 = vmul.f32 %v2081, %v2095
      %v2108 = vmul.f32 %v2082, %v2096
      %v2109 = vmul.f32 %v2083, %v2097
      %v2110 = vmul.f32 %v2084, %v2098
      %v2111 = vmul.f32 %v2085, %v2099
      %v2112 = vmul.f32 %v2086, %v2100
      %v2113 = vmul.f32 %v2087, %v2101
      %v2114 = vmul.f32 %v2088, %v2102
      %v2115 = vmul.f32 %v2089, %v2103
      %v2116 = vmul.f32 %v2090, %v2104
      %v2117 = vadd.f32 %v2064, %v2105
      %v2118 = vadd.f32 %v2065, %v2106
      %v2119 = vadd.f32 %v2066, %v2107
      %v2120 = vadd.f32 %v2067, %v2108
      %v2121 = vadd.f32 %v2068, %v2109
      %v2122 = vadd.f32 %v2069, %v2110
      %v2123 = vadd.f32 %v2070, %v2111
      %v2124 = vadd.f32 %v2071, %v2112
      %v2125 = vadd.f32 %v2072, %v2113
      %v2126 = vadd.f32 %v2073, %v2114
      %v2127 = vadd.f32 %v2074, %v2115
      %v2128 = vadd.f32 %v2075, %v2116
      %v2129 = vld [vmem:[%s2078 + $0x1] sm:$0xff]
      %v2130 = vld [vmem:[%s2078 + $0x9] sm:$0xff]
      %v2131 = vld [vmem:[%s2078 + $0x11] sm:$0xf]
      %v2132 = vld [vmem:[%s2078 + $0x19] sm:$0xff]
      %v2133 = vld [vmem:[%s2078 + $0x21] sm:$0xff]
      %v2134 = vld [vmem:[%s2078 + $0x29] sm:$0xf]
      %v2135 = vld [vmem:[%s2078 + $0x31] sm:$0xff]
      %v2136 = vld [vmem:[%s2078 + $0x39] sm:$0xff]
      %v2137 = vld [vmem:[%s2078 + $0x41] sm:$0xf]
      %v2138 = vld [vmem:[%s2078 + $0x49] sm:$0xff]
      %v2139 = vld [vmem:[%s2078 + $0x51] sm:$0xff]
      %v2140 = vld [vmem:[%s2078 + $0x59] sm:$0xf]
      %s2141 = sadd.s32 %s1331, 7680
      %s2142 = scalar_lea.vmem %s2, %s2141
      %v2143 = vld [vmem:[%s2142] sm:$0xff]
      %v2144 = vld [vmem:[%s2142 + $0x8] sm:$0xff]
      %v2145 = vld [vmem:[%s2142 + $0x10] sm:$0xf]
      %v2146 = vld [vmem:[%s2142 + $0x18] sm:$0xff]
      %v2147 = vld [vmem:[%s2142 + $0x20] sm:$0xff]
      %v2148 = vld [vmem:[%s2142 + $0x28] sm:$0xf]
      %v2149 = vld [vmem:[%s2142 + $0x30] sm:$0xff]
      %v2150 = vld [vmem:[%s2142 + $0x38] sm:$0xff]
      %v2151 = vld [vmem:[%s2142 + $0x40] sm:$0xf]
      %v2152 = vld [vmem:[%s2142 + $0x48] sm:$0xff]
      %v2153 = vld [vmem:[%s2142 + $0x50] sm:$0xff]
      %v2154 = vld [vmem:[%s2142 + $0x58] sm:$0xf]
      %v2155 = vmul.f32 %v2129, %v2143
      %v2156 = vmul.f32 %v2130, %v2144
      %v2157 = vmul.f32 %v2131, %v2145
      %v2158 = vmul.f32 %v2132, %v2146
      %v2159 = vmul.f32 %v2133, %v2147
      %v2160 = vmul.f32 %v2134, %v2148
      %v2161 = vmul.f32 %v2135, %v2149
      %v2162 = vmul.f32 %v2136, %v2150
      %v2163 = vmul.f32 %v2137, %v2151
      %v2164 = vmul.f32 %v2138, %v2152
      %v2165 = vmul.f32 %v2139, %v2153
      %v2166 = vmul.f32 %v2140, %v2154
      %v2167 = vadd.f32 %v2117, %v2155
      %v2168 = vadd.f32 %v2118, %v2156
      %v2169 = vadd.f32 %v2119, %v2157
      %v2170 = vadd.f32 %v2120, %v2158
      %v2171 = vadd.f32 %v2121, %v2159
      %v2172 = vadd.f32 %v2122, %v2160
      %v2173 = vadd.f32 %v2123, %v2161
      %v2174 = vadd.f32 %v2124, %v2162
      %v2175 = vadd.f32 %v2125, %v2163
      %v2176 = vadd.f32 %v2126, %v2164
      %v2177 = vadd.f32 %v2127, %v2165
      %v2178 = vadd.f32 %v2128, %v2166
      %v2179 = vld [vmem:[%s2078 + $0x2] sm:$0xff]
      %v2180 = vld [vmem:[%s2078 + $0xa] sm:$0xff]
      %v2181 = vld [vmem:[%s2078 + $0x12] sm:$0xf]
      %v2182 = vld [vmem:[%s2078 + $0x1a] sm:$0xff]
      %v2183 = vld [vmem:[%s2078 + $0x22] sm:$0xff]
      %v2184 = vld [vmem:[%s2078 + $0x2a] sm:$0xf]
      %v2185 = vld [vmem:[%s2078 + $0x32] sm:$0xff]
      %v2186 = vld [vmem:[%s2078 + $0x3a] sm:$0xff]
      %v2187 = vld [vmem:[%s2078 + $0x42] sm:$0xf]
      %v2188 = vld [vmem:[%s2078 + $0x4a] sm:$0xff]
      %v2189 = vld [vmem:[%s2078 + $0x52] sm:$0xff]
      %v2190 = vld [vmem:[%s2078 + $0x5a] sm:$0xf]
      %s2191 = sadd.s32 %s1331, 8160
      %s2192 = scalar_lea.vmem %s2, %s2191
      %v2193 = vld [vmem:[%s2192] sm:$0xff]
      %v2194 = vld [vmem:[%s2192 + $0x8] sm:$0xff]
      %v2195 = vld [vmem:[%s2192 + $0x10] sm:$0xf]
      %v2196 = vld [vmem:[%s2192 + $0x18] sm:$0xff]
      %v2197 = vld [vmem:[%s2192 + $0x20] sm:$0xff]
      %v2198 = vld [vmem:[%s2192 + $0x28] sm:$0xf]
      %v2199 = vld [vmem:[%s2192 + $0x30] sm:$0xff]
      %v2200 = vld [vmem:[%s2192 + $0x38] sm:$0xff]
      %v2201 = vld [vmem:[%s2192 + $0x40] sm:$0xf]
      %v2202 = vld [vmem:[%s2192 + $0x48] sm:$0xff]
      %v2203 = vld [vmem:[%s2192 + $0x50] sm:$0xff]
      %v2204 = vld [vmem:[%s2192 + $0x58] sm:$0xf]
      %v2205 = vmul.f32 %v2179, %v2193
      %v2206 = vmul.f32 %v2180, %v2194
      %v2207 = vmul.f32 %v2181, %v2195
      %v2208 = vmul.f32 %v2182, %v2196
      %v2209 = vmul.f32 %v2183, %v2197
      %v2210 = vmul.f32 %v2184, %v2198
      %v2211 = vmul.f32 %v2185, %v2199
      %v2212 = vmul.f32 %v2186, %v2200
      %v2213 = vmul.f32 %v2187, %v2201
      %v2214 = vmul.f32 %v2188, %v2202
      %v2215 = vmul.f32 %v2189, %v2203
      %v2216 = vmul.f32 %v2190, %v2204
      %v2217 = vadd.f32 %v2167, %v2205
      %v2218 = vadd.f32 %v2168, %v2206
      %v2219 = vadd.f32 %v2169, %v2207
      %v2220 = vadd.f32 %v2170, %v2208
      %v2221 = vadd.f32 %v2171, %v2209
      %v2222 = vadd.f32 %v2172, %v2210
      %v2223 = vadd.f32 %v2173, %v2211
      %v2224 = vadd.f32 %v2174, %v2212
      %v2225 = vadd.f32 %v2175, %v2213
      %v2226 = vadd.f32 %v2176, %v2214
      %v2227 = vadd.f32 %v2177, %v2215
      %v2228 = vadd.f32 %v2178, %v2216
      %v2229 = vld [vmem:[%s2078 + $0x3] sm:$0xff]
      %v2230 = vld [vmem:[%s2078 + $0xb] sm:$0xff]
      %v2231 = vld [vmem:[%s2078 + $0x13] sm:$0xf]
      %v2232 = vld [vmem:[%s2078 + $0x1b] sm:$0xff]
      %v2233 = vld [vmem:[%s2078 + $0x23] sm:$0xff]
      %v2234 = vld [vmem:[%s2078 + $0x2b] sm:$0xf]
      %v2235 = vld [vmem:[%s2078 + $0x33] sm:$0xff]
      %v2236 = vld [vmem:[%s2078 + $0x3b] sm:$0xff]
      %v2237 = vld [vmem:[%s2078 + $0x43] sm:$0xf]
      %v2238 = vld [vmem:[%s2078 + $0x4b] sm:$0xff]
      %v2239 = vld [vmem:[%s2078 + $0x53] sm:$0xff]
      %v2240 = vld [vmem:[%s2078 + $0x5b] sm:$0xf]
      %s2241 = sadd.s32 %s1331, 8640
      %s2242 = scalar_lea.vmem %s2, %s2241
      %v2243 = vld [vmem:[%s2242] sm:$0xff]
      %v2244 = vld [vmem:[%s2242 + $0x8] sm:$0xff]
      %v2245 = vld [vmem:[%s2242 + $0x10] sm:$0xf]
      %v2246 = vld [vmem:[%s2242 + $0x18] sm:$0xff]
      %v2247 = vld [vmem:[%s2242 + $0x20] sm:$0xff]
      %v2248 = vld [vmem:[%s2242 + $0x28] sm:$0xf]
      %v2249 = vld [vmem:[%s2242 + $0x30] sm:$0xff]
      %v2250 = vld [vmem:[%s2242 + $0x38] sm:$0xff]
      %v2251 = vld [vmem:[%s2242 + $0x40] sm:$0xf]
      %v2252 = vld [vmem:[%s2242 + $0x48] sm:$0xff]
      %v2253 = vld [vmem:[%s2242 + $0x50] sm:$0xff]
      %v2254 = vld [vmem:[%s2242 + $0x58] sm:$0xf]
      %v2255 = vmul.f32 %v2229, %v2243
      %v2256 = vmul.f32 %v2230, %v2244
      %v2257 = vmul.f32 %v2231, %v2245
      %v2258 = vmul.f32 %v2232, %v2246
      %v2259 = vmul.f32 %v2233, %v2247
      %v2260 = vmul.f32 %v2234, %v2248
      %v2261 = vmul.f32 %v2235, %v2249
      %v2262 = vmul.f32 %v2236, %v2250
      %v2263 = vmul.f32 %v2237, %v2251
      %v2264 = vmul.f32 %v2238, %v2252
      %v2265 = vmul.f32 %v2239, %v2253
      %v2266 = vmul.f32 %v2240, %v2254
      %v2267 = vadd.f32 %v2217, %v2255
      %v2268 = vadd.f32 %v2218, %v2256
      %v2269 = vadd.f32 %v2219, %v2257
      %v2270 = vadd.f32 %v2220, %v2258
      %v2271 = vadd.f32 %v2221, %v2259
      %v2272 = vadd.f32 %v2222, %v2260
      %v2273 = vadd.f32 %v2223, %v2261
      %v2274 = vadd.f32 %v2224, %v2262
      %v2275 = vadd.f32 %v2225, %v2263
      %v2276 = vadd.f32 %v2226, %v2264
      %v2277 = vadd.f32 %v2227, %v2265
      %v2278 = vadd.f32 %v2228, %v2266
      %v2279 = vld [vmem:[%s2078 + $0x4] sm:$0xff]
      %v2280 = vld [vmem:[%s2078 + $0xc] sm:$0xff]
      %v2281 = vld [vmem:[%s2078 + $0x14] sm:$0xf]
      %v2282 = vld [vmem:[%s2078 + $0x1c] sm:$0xff]
      %v2283 = vld [vmem:[%s2078 + $0x24] sm:$0xff]
      %v2284 = vld [vmem:[%s2078 + $0x2c] sm:$0xf]
      %v2285 = vld [vmem:[%s2078 + $0x34] sm:$0xff]
      %v2286 = vld [vmem:[%s2078 + $0x3c] sm:$0xff]
      %v2287 = vld [vmem:[%s2078 + $0x44] sm:$0xf]
      %v2288 = vld [vmem:[%s2078 + $0x4c] sm:$0xff]
      %v2289 = vld [vmem:[%s2078 + $0x54] sm:$0xff]
      %v2290 = vld [vmem:[%s2078 + $0x5c] sm:$0xf]
      %s2291 = sadd.s32 %s1331, 9120
      %s2292 = scalar_lea.vmem %s2, %s2291
      %v2293 = vld [vmem:[%s2292] sm:$0xff]
      %v2294 = vld [vmem:[%s2292 + $0x8] sm:$0xff]
      %v2295 = vld [vmem:[%s2292 + $0x10] sm:$0xf]
      %v2296 = vld [vmem:[%s2292 + $0x18] sm:$0xff]
      %v2297 = vld [vmem:[%s2292 + $0x20] sm:$0xff]
      %v2298 = vld [vmem:[%s2292 + $0x28] sm:$0xf]
      %v2299 = vld [vmem:[%s2292 + $0x30] sm:$0xff]
      %v2300 = vld [vmem:[%s2292 + $0x38] sm:$0xff]
      %v2301 = vld [vmem:[%s2292 + $0x40] sm:$0xf]
      %v2302 = vld [vmem:[%s2292 + $0x48] sm:$0xff]
      %v2303 = vld [vmem:[%s2292 + $0x50] sm:$0xff]
      %v2304 = vld [vmem:[%s2292 + $0x58] sm:$0xf]
      %v2305 = vmul.f32 %v2279, %v2293
      %v2306 = vmul.f32 %v2280, %v2294
      %v2307 = vmul.f32 %v2281, %v2295
      %v2308 = vmul.f32 %v2282, %v2296
      %v2309 = vmul.f32 %v2283, %v2297
      %v2310 = vmul.f32 %v2284, %v2298
      %v2311 = vmul.f32 %v2285, %v2299
      %v2312 = vmul.f32 %v2286, %v2300
      %v2313 = vmul.f32 %v2287, %v2301
      %v2314 = vmul.f32 %v2288, %v2302
      %v2315 = vmul.f32 %v2289, %v2303
      %v2316 = vmul.f32 %v2290, %v2304
      %v2317 = vadd.f32 %v2267, %v2305
      %v2318 = vadd.f32 %v2268, %v2306
      %v2319 = vadd.f32 %v2269, %v2307
      %v2320 = vadd.f32 %v2270, %v2308
      %v2321 = vadd.f32 %v2271, %v2309
      %v2322 = vadd.f32 %v2272, %v2310
      %v2323 = vadd.f32 %v2273, %v2311
      %v2324 = vadd.f32 %v2274, %v2312
      %v2325 = vadd.f32 %v2275, %v2313
      %v2326 = vadd.f32 %v2276, %v2314
      %v2327 = vadd.f32 %v2277, %v2315
      %v2328 = vadd.f32 %v2278, %v2316
      %s2329 = sadd.s32 %s1330, 4
      %s2330 = smul.u32 %s2329, 24
      %s2331 = scalar_lea.vmem [#allocation2], %s2330
      %v2332 = vld [vmem:[%s2331] sm:$0xff]
      %v2333 = vld [vmem:[%s2331 + $0x8] sm:$0xff]
      %v2334 = vld [vmem:[%s2331 + $0x10] sm:$0xf]
      %v2335 = vld [vmem:[%s2331 + $0x18] sm:$0xff]
      %v2336 = vld [vmem:[%s2331 + $0x20] sm:$0xff]
      %v2337 = vld [vmem:[%s2331 + $0x28] sm:$0xf]
      %v2338 = vld [vmem:[%s2331 + $0x30] sm:$0xff]
      %v2339 = vld [vmem:[%s2331 + $0x38] sm:$0xff]
      %v2340 = vld [vmem:[%s2331 + $0x40] sm:$0xf]
      %v2341 = vld [vmem:[%s2331 + $0x48] sm:$0xff]
      %v2342 = vld [vmem:[%s2331 + $0x50] sm:$0xff]
      %v2343 = vld [vmem:[%s2331 + $0x58] sm:$0xf]
      %s2344 = sadd.s32 %s1331, 9600
      %s2345 = scalar_lea.vmem %s2, %s2344
      %v2346 = vld [vmem:[%s2345] sm:$0xff]
      %v2347 = vld [vmem:[%s2345 + $0x8] sm:$0xff]
      %v2348 = vld [vmem:[%s2345 + $0x10] sm:$0xf]
      %v2349 = vld [vmem:[%s2345 + $0x18] sm:$0xff]
      %v2350 = vld [vmem:[%s2345 + $0x20] sm:$0xff]
      %v2351 = vld [vmem:[%s2345 + $0x28] sm:$0xf]
      %v2352 = vld [vmem:[%s2345 + $0x30] sm:$0xff]
      %v2353 = vld [vmem:[%s2345 + $0x38] sm:$0xff]
      %v2354 = vld [vmem:[%s2345 + $0x40] sm:$0xf]
      %v2355 = vld [vmem:[%s2345 + $0x48] sm:$0xff]
      %v2356 = vld [vmem:[%s2345 + $0x50] sm:$0xff]
      %v2357 = vld [vmem:[%s2345 + $0x58] sm:$0xf]
      %v2358 = vmul.f32 %v2332, %v2346
      %v2359 = vmul.f32 %v2333, %v2347
      %v2360 = vmul.f32 %v2334, %v2348
      %v2361 = vmul.f32 %v2335, %v2349
      %v2362 = vmul.f32 %v2336, %v2350
      %v2363 = vmul.f32 %v2337, %v2351
      %v2364 = vmul.f32 %v2338, %v2352
      %v2365 = vmul.f32 %v2339, %v2353
      %v2366 = vmul.f32 %v2340, %v2354
      %v2367 = vmul.f32 %v2341, %v2355
      %v2368 = vmul.f32 %v2342, %v2356
      %v2369 = vmul.f32 %v2343, %v2357
      %v2370 = vadd.f32 %v2317, %v2358
      %v2371 = vadd.f32 %v2318, %v2359
      %v2372 = vadd.f32 %v2319, %v2360
      %v2373 = vadd.f32 %v2320, %v2361
      %v2374 = vadd.f32 %v2321, %v2362
      %v2375 = vadd.f32 %v2322, %v2363
      %v2376 = vadd.f32 %v2323, %v2364
      %v2377 = vadd.f32 %v2324, %v2365
      %v2378 = vadd.f32 %v2325, %v2366
      %v2379 = vadd.f32 %v2326, %v2367
      %v2380 = vadd.f32 %v2327, %v2368
      %v2381 = vadd.f32 %v2328, %v2369
      %v2382 = vld [vmem:[%s2331 + $0x1] sm:$0xff]
      %v2383 = vld [vmem:[%s2331 + $0x9] sm:$0xff]
      %v2384 = vld [vmem:[%s2331 + $0x11] sm:$0xf]
      %v2385 = vld [vmem:[%s2331 + $0x19] sm:$0xff]
      %v2386 = vld [vmem:[%s2331 + $0x21] sm:$0xff]
      %v2387 = vld [vmem:[%s2331 + $0x29] sm:$0xf]
      %v2388 = vld [vmem:[%s2331 + $0x31] sm:$0xff]
      %v2389 = vld [vmem:[%s2331 + $0x39] sm:$0xff]
      %v2390 = vld [vmem:[%s2331 + $0x41] sm:$0xf]
      %v2391 = vld [vmem:[%s2331 + $0x49] sm:$0xff]
      %v2392 = vld [vmem:[%s2331 + $0x51] sm:$0xff]
      %v2393 = vld [vmem:[%s2331 + $0x59] sm:$0xf]
      %s2394 = sadd.s32 %s1331, 10080
      %s2395 = scalar_lea.vmem %s2, %s2394
      %v2396 = vld [vmem:[%s2395] sm:$0xff]
      %v2397 = vld [vmem:[%s2395 + $0x8] sm:$0xff]
      %v2398 = vld [vmem:[%s2395 + $0x10] sm:$0xf]
      %v2399 = vld [vmem:[%s2395 + $0x18] sm:$0xff]
      %v2400 = vld [vmem:[%s2395 + $0x20] sm:$0xff]
      %v2401 = vld [vmem:[%s2395 + $0x28] sm:$0xf]
      %v2402 = vld [vmem:[%s2395 + $0x30] sm:$0xff]
      %v2403 = vld [vmem:[%s2395 + $0x38] sm:$0xff]
      %v2404 = vld [vmem:[%s2395 + $0x40] sm:$0xf]
      %v2405 = vld [vmem:[%s2395 + $0x48] sm:$0xff]
      %v2406 = vld [vmem:[%s2395 + $0x50] sm:$0xff]
      %v2407 = vld [vmem:[%s2395 + $0x58] sm:$0xf]
      %v2408 = vmul.f32 %v2382, %v2396
      %v2409 = vmul.f32 %v2383, %v2397
      %v2410 = vmul.f32 %v2384, %v2398
      %v2411 = vmul.f32 %v2385, %v2399
      %v2412 = vmul.f32 %v2386, %v2400
      %v2413 = vmul.f32 %v2387, %v2401
      %v2414 = vmul.f32 %v2388, %v2402
      %v2415 = vmul.f32 %v2389, %v2403
      %v2416 = vmul.f32 %v2390, %v2404
      %v2417 = vmul.f32 %v2391, %v2405
      %v2418 = vmul.f32 %v2392, %v2406
      %v2419 = vmul.f32 %v2393, %v2407
      %v2420 = vadd.f32 %v2370, %v2408
      %v2421 = vadd.f32 %v2371, %v2409
      %v2422 = vadd.f32 %v2372, %v2410
      %v2423 = vadd.f32 %v2373, %v2411
      %v2424 = vadd.f32 %v2374, %v2412
      %v2425 = vadd.f32 %v2375, %v2413
      %v2426 = vadd.f32 %v2376, %v2414
      %v2427 = vadd.f32 %v2377, %v2415
      %v2428 = vadd.f32 %v2378, %v2416
      %v2429 = vadd.f32 %v2379, %v2417
      %v2430 = vadd.f32 %v2380, %v2418
      %v2431 = vadd.f32 %v2381, %v2419
      %v2432 = vld [vmem:[%s2331 + $0x2] sm:$0xff]
      %v2433 = vld [vmem:[%s2331 + $0xa] sm:$0xff]
      %v2434 = vld [vmem:[%s2331 + $0x12] sm:$0xf]
      %v2435 = vld [vmem:[%s2331 + $0x1a] sm:$0xff]
      %v2436 = vld [vmem:[%s2331 + $0x22] sm:$0xff]
      %v2437 = vld [vmem:[%s2331 + $0x2a] sm:$0xf]
      %v2438 = vld [vmem:[%s2331 + $0x32] sm:$0xff]
      %v2439 = vld [vmem:[%s2331 + $0x3a] sm:$0xff]
      %v2440 = vld [vmem:[%s2331 + $0x42] sm:$0xf]
      %v2441 = vld [vmem:[%s2331 + $0x4a] sm:$0xff]
      %v2442 = vld [vmem:[%s2331 + $0x52] sm:$0xff]
      %v2443 = vld [vmem:[%s2331 + $0x5a] sm:$0xf]
      %s2444 = sadd.s32 %s1331, 10560
      %s2445 = scalar_lea.vmem %s2, %s2444
      %v2446 = vld [vmem:[%s2445] sm:$0xff]
      %v2447 = vld [vmem:[%s2445 + $0x8] sm:$0xff]
      %v2448 = vld [vmem:[%s2445 + $0x10] sm:$0xf]
      %v2449 = vld [vmem:[%s2445 + $0x18] sm:$0xff]
      %v2450 = vld [vmem:[%s2445 + $0x20] sm:$0xff]
      %v2451 = vld [vmem:[%s2445 + $0x28] sm:$0xf]
      %v2452 = vld [vmem:[%s2445 + $0x30] sm:$0xff]
      %v2453 = vld [vmem:[%s2445 + $0x38] sm:$0xff]
      %v2454 = vld [vmem:[%s2445 + $0x40] sm:$0xf]
      %v2455 = vld [vmem:[%s2445 + $0x48] sm:$0xff]
      %v2456 = vld [vmem:[%s2445 + $0x50] sm:$0xff]
      %v2457 = vld [vmem:[%s2445 + $0x58] sm:$0xf]
      %v2458 = vmul.f32 %v2432, %v2446
      %v2459 = vmul.f32 %v2433, %v2447
      %v2460 = vmul.f32 %v2434, %v2448
      %v2461 = vmul.f32 %v2435, %v2449
      %v2462 = vmul.f32 %v2436, %v2450
      %v2463 = vmul.f32 %v2437, %v2451
      %v2464 = vmul.f32 %v2438, %v2452
      %v2465 = vmul.f32 %v2439, %v2453
      %v2466 = vmul.f32 %v2440, %v2454
      %v2467 = vmul.f32 %v2441, %v2455
      %v2468 = vmul.f32 %v2442, %v2456
      %v2469 = vmul.f32 %v2443, %v2457
      %v2470 = vadd.f32 %v2420, %v2458
      %v2471 = vadd.f32 %v2421, %v2459
      %v2472 = vadd.f32 %v2422, %v2460
      %v2473 = vadd.f32 %v2423, %v2461
      %v2474 = vadd.f32 %v2424, %v2462
      %v2475 = vadd.f32 %v2425, %v2463
      %v2476 = vadd.f32 %v2426, %v2464
      %v2477 = vadd.f32 %v2427, %v2465
      %v2478 = vadd.f32 %v2428, %v2466
      %v2479 = vadd.f32 %v2429, %v2467
      %v2480 = vadd.f32 %v2430, %v2468
      %v2481 = vadd.f32 %v2431, %v2469
      %v2482 = vld [vmem:[%s2331 + $0x3] sm:$0xff]
      %v2483 = vld [vmem:[%s2331 + $0xb] sm:$0xff]
      %v2484 = vld [vmem:[%s2331 + $0x13] sm:$0xf]
      %v2485 = vld [vmem:[%s2331 + $0x1b] sm:$0xff]
      %v2486 = vld [vmem:[%s2331 + $0x23] sm:$0xff]
      %v2487 = vld [vmem:[%s2331 + $0x2b] sm:$0xf]
      %v2488 = vld [vmem:[%s2331 + $0x33] sm:$0xff]
      %v2489 = vld [vmem:[%s2331 + $0x3b] sm:$0xff]
      %v2490 = vld [vmem:[%s2331 + $0x43] sm:$0xf]
      %v2491 = vld [vmem:[%s2331 + $0x4b] sm:$0xff]
      %v2492 = vld [vmem:[%s2331 + $0x53] sm:$0xff]
      %v2493 = vld [vmem:[%s2331 + $0x5b] sm:$0xf]
      %s2494 = sadd.s32 %s1331, 11040
      %s2495 = scalar_lea.vmem %s2, %s2494
      %v2496 = vld [vmem:[%s2495] sm:$0xff]
      %v2497 = vld [vmem:[%s2495 + $0x8] sm:$0xff]
      %v2498 = vld [vmem:[%s2495 + $0x10] sm:$0xf]
      %v2499 = vld [vmem:[%s2495 + $0x18] sm:$0xff]
      %v2500 = vld [vmem:[%s2495 + $0x20] sm:$0xff]
      %v2501 = vld [vmem:[%s2495 + $0x28] sm:$0xf]
      %v2502 = vld [vmem:[%s2495 + $0x30] sm:$0xff]
      %v2503 = vld [vmem:[%s2495 + $0x38] sm:$0xff]
      %v2504 = vld [vmem:[%s2495 + $0x40] sm:$0xf]
      %v2505 = vld [vmem:[%s2495 + $0x48] sm:$0xff]
      %v2506 = vld [vmem:[%s2495 + $0x50] sm:$0xff]
      %v2507 = vld [vmem:[%s2495 + $0x58] sm:$0xf]
      %v2508 = vmul.f32 %v2482, %v2496
      %v2509 = vmul.f32 %v2483, %v2497
      %v2510 = vmul.f32 %v2484, %v2498
      %v2511 = vmul.f32 %v2485, %v2499
      %v2512 = vmul.f32 %v2486, %v2500
      %v2513 = vmul.f32 %v2487, %v2501
      %v2514 = vmul.f32 %v2488, %v2502
      %v2515 = vmul.f32 %v2489, %v2503
      %v2516 = vmul.f32 %v2490, %v2504
      %v2517 = vmul.f32 %v2491, %v2505
      %v2518 = vmul.f32 %v2492, %v2506
      %v2519 = vmul.f32 %v2493, %v2507
      %v2520 = vadd.f32 %v2470, %v2508
      %v2521 = vadd.f32 %v2471, %v2509
      %v2522 = vadd.f32 %v2472, %v2510
      %v2523 = vadd.f32 %v2473, %v2511
      %v2524 = vadd.f32 %v2474, %v2512
      %v2525 = vadd.f32 %v2475, %v2513
      %v2526 = vadd.f32 %v2476, %v2514
      %v2527 = vadd.f32 %v2477, %v2515
      %v2528 = vadd.f32 %v2478, %v2516
      %v2529 = vadd.f32 %v2479, %v2517
      %v2530 = vadd.f32 %v2480, %v2518
      %v2531 = vadd.f32 %v2481, %v2519
      %v2532 = vld [vmem:[%s2331 + $0x4] sm:$0xff]
      %v2533 = vld [vmem:[%s2331 + $0xc] sm:$0xff]
      %v2534 = vld [vmem:[%s2331 + $0x14] sm:$0xf]
      %v2535 = vld [vmem:[%s2331 + $0x1c] sm:$0xff]
      %v2536 = vld [vmem:[%s2331 + $0x24] sm:$0xff]
      %v2537 = vld [vmem:[%s2331 + $0x2c] sm:$0xf]
      %v2538 = vld [vmem:[%s2331 + $0x34] sm:$0xff]
      %v2539 = vld [vmem:[%s2331 + $0x3c] sm:$0xff]
      %v2540 = vld [vmem:[%s2331 + $0x44] sm:$0xf]
      %v2541 = vld [vmem:[%s2331 + $0x4c] sm:$0xff]
      %v2542 = vld [vmem:[%s2331 + $0x54] sm:$0xff]
      %v2543 = vld [vmem:[%s2331 + $0x5c] sm:$0xf]
      %s2544 = sadd.s32 %s1331, 11520
      %s2545 = scalar_lea.vmem %s2, %s2544
      %v2546 = vld [vmem:[%s2545] sm:$0xff]
      %v2547 = vld [vmem:[%s2545 + $0x8] sm:$0xff]
      %v2548 = vld [vmem:[%s2545 + $0x10] sm:$0xf]
      %v2549 = vld [vmem:[%s2545 + $0x18] sm:$0xff]
      %v2550 = vld [vmem:[%s2545 + $0x20] sm:$0xff]
      %v2551 = vld [vmem:[%s2545 + $0x28] sm:$0xf]
      %v2552 = vld [vmem:[%s2545 + $0x30] sm:$0xff]
      %v2553 = vld [vmem:[%s2545 + $0x38] sm:$0xff]
      %v2554 = vld [vmem:[%s2545 + $0x40] sm:$0xf]
      %v2555 = vld [vmem:[%s2545 + $0x48] sm:$0xff]
      %v2556 = vld [vmem:[%s2545 + $0x50] sm:$0xff]
      %v2557 = vld [vmem:[%s2545 + $0x58] sm:$0xf]
      %v2558 = vmul.f32 %v2532, %v2546
      %v2559 = vmul.f32 %v2533, %v2547
      %v2560 = vmul.f32 %v2534, %v2548
      %v2561 = vmul.f32 %v2535, %v2549
      %v2562 = vmul.f32 %v2536, %v2550
      %v2563 = vmul.f32 %v2537, %v2551
      %v2564 = vmul.f32 %v2538, %v2552
      %v2565 = vmul.f32 %v2539, %v2553
      %v2566 = vmul.f32 %v2540, %v2554
      %v2567 = vmul.f32 %v2541, %v2555
      %v2568 = vmul.f32 %v2542, %v2556
      %v2569 = vmul.f32 %v2543, %v2557
      %v2570 = vadd.f32 %v2520, %v2558
      %v2571 = vadd.f32 %v2521, %v2559
      %v2572 = vadd.f32 %v2522, %v2560
      %v2573 = vadd.f32 %v2523, %v2561
      %v2574 = vadd.f32 %v2524, %v2562
      %v2575 = vadd.f32 %v2525, %v2563
      %v2576 = vadd.f32 %v2526, %v2564
      %v2577 = vadd.f32 %v2527, %v2565
      %v2578 = vadd.f32 %v2528, %v2566
      %v2579 = vadd.f32 %v2529, %v2567
      %v2580 = vadd.f32 %v2530, %v2568
      %v2581 = vadd.f32 %v2531, %v2569
      %s2582 = scalar_lea.vmem [#allocation3], %s1331
      %2583 = vst [vmem:[%s2582] sm:$0xff] %v2570
      %2584 = vst [vmem:[%s2582 + $0x8] sm:$0xff] %v2571
      %2585 = vst [vmem:[%s2582 + $0x10] sm:$0xf] %v2572
      %2586 = vst [vmem:[%s2582 + $0x18] sm:$0xff] %v2573
      %2587 = vst [vmem:[%s2582 + $0x20] sm:$0xff] %v2574
      %2588 = vst [vmem:[%s2582 + $0x28] sm:$0xf] %v2575
      %2589 = vst [vmem:[%s2582 + $0x30] sm:$0xff] %v2576
      %2590 = vst [vmem:[%s2582 + $0x38] sm:$0xff] %v2577
      %2591 = vst [vmem:[%s2582 + $0x40] sm:$0xf] %v2578
      %2592 = vst [vmem:[%s2582 + $0x48] sm:$0xff] %v2579
      %2593 = vst [vmem:[%s2582 + $0x50] sm:$0xff] %v2580
      %2594 = vst [vmem:[%s2582 + $0x58] sm:$0xf] %v2581
    $region45: #{_lambda_.1} parent=1 // loop_footer
      %s1329 = sadd.s32 1, %s1325
    $region46: #{_lambda_.1} parent=1 // loop_footer_branch
      %1324 = sbr.rel target = $region42
    $region47: #{_lambda_.1} parent=1 // loop_exit
      _
    loop: start=0, step=1, limit=4
    $region48: #{_lambda_.1} parent=1 // loop_pre_header
      _
    $region49: #{_lambda_.1} parent=1 // loop_header
      %s2596 = sphi 0, %s2600
      %p2597 = scmp.ge.s32.totalorder %s2596, 4
    $region50: #{_lambda_.1} parent=1 // loop_header_branch
      %2599 = sbr.rel (%p2597) target = $region54
    $region51: #{_lambda_.1} parent=1 // loop_body
      %s2601 = smul.u32 %s2596, 4
      %s2602 = smul.u32 %s2601, 24
      %s2603 = scalar_lea.vmem [#allocation3], %s2602
      %v2604 = vld [vmem:[%s2603] sm:$0xff]
      %v2605 = vld [vmem:[%s2603 + $0x8] sm:$0xff]
      %v2606 = vld [vmem:[%s2603 + $0x18] sm:$0xff]
      %v2607 = vld [vmem:[%s2603 + $0x20] sm:$0xff]
      %v2608 = vld [vmem:[%s2603 + $0x30] sm:$0xff]
      %v2609 = vld [vmem:[%s2603 + $0x38] sm:$0xff]
      %v2610 = vld [vmem:[%s2603 + $0x48] sm:$0xff]
      %v2611 = vld [vmem:[%s2603 + $0x50] sm:$0xff]
      %s2612 = smul.u32 %s2601, 16
      %s2613 = scalar_lea.vmem [#allocation7], %s2612
      %v2614 = vld [vmem:[%s2613] sm:$0xff]
      %v2615 = vld [vmem:[%s2613 + $0x8] sm:$0xff]
      %v2616 = vld [vmem:[%s2613 + $0x10] sm:$0xff]
      %v2617 = vld [vmem:[%s2613 + $0x18] sm:$0xff]
      %v2618 = vld [vmem:[%s2613 + $0x20] sm:$0xff]
      %v2619 = vld [vmem:[%s2613 + $0x28] sm:$0xff]
      %v2620 = vld [vmem:[%s2613 + $0x30] sm:$0xff]
      %v2621 = vld [vmem:[%s2613 + $0x38] sm:$0xff]
      %v2622 = vmul.f32 %v2604, %v2614
      %v2623 = vmul.f32 %v2605, %v2615
      %v2624 = vmul.f32 %v2606, %v2616
      %v2625 = vmul.f32 %v2607, %v2617
      %v2626 = vmul.f32 %v2608, %v2618
      %v2627 = vmul.f32 %v2609, %v2619
      %v2628 = vmul.f32 %v2610, %v2620
      %v2629 = vmul.f32 %v2611, %v2621
      %v2630 = vld [vmem:[%s2603 + $0x1] sm:$0xff]
      %v2631 = vld [vmem:[%s2603 + $0x9] sm:$0xff]
      %v2632 = vld [vmem:[%s2603 + $0x19] sm:$0xff]
      %v2633 = vld [vmem:[%s2603 + $0x21] sm:$0xff]
      %v2634 = vld [vmem:[%s2603 + $0x31] sm:$0xff]
      %v2635 = vld [vmem:[%s2603 + $0x39] sm:$0xff]
      %v2636 = vld [vmem:[%s2603 + $0x49] sm:$0xff]
      %v2637 = vld [vmem:[%s2603 + $0x51] sm:$0xff]
      %s2638 = sadd.s32 %s2612, 256
      %s2639 = scalar_lea.vmem [#allocation7], %s2638
      %v2640 = vld [vmem:[%s2639] sm:$0xff]
      %v2641 = vld [vmem:[%s2639 + $0x8] sm:$0xff]
      %v2642 = vld [vmem:[%s2639 + $0x10] sm:$0xff]
      %v2643 = vld [vmem:[%s2639 + $0x18] sm:$0xff]
      %v2644 = vld [vmem:[%s2639 + $0x20] sm:$0xff]
      %v2645 = vld [vmem:[%s2639 + $0x28] sm:$0xff]
      %v2646 = vld [vmem:[%s2639 + $0x30] sm:$0xff]
      %v2647 = vld [vmem:[%s2639 + $0x38] sm:$0xff]
      %v2648 = vmul.f32 %v2630, %v2640
      %v2649 = vmul.f32 %v2631, %v2641
      %v2650 = vmul.f32 %v2632, %v2642
      %v2651 = vmul.f32 %v2633, %v2643
      %v2652 = vmul.f32 %v2634, %v2644
      %v2653 = vmul.f32 %v2635, %v2645
      %v2654 = vmul.f32 %v2636, %v2646
      %v2655 = vmul.f32 %v2637, %v2647
      %v2656 = vadd.f32 %v2622, %v2648
      %v2657 = vadd.f32 %v2623, %v2649
      %v2658 = vadd.f32 %v2624, %v2650
      %v2659 = vadd.f32 %v2625, %v2651
      %v2660 = vadd.f32 %v2626, %v2652
      %v2661 = vadd.f32 %v2627, %v2653
      %v2662 = vadd.f32 %v2628, %v2654
      %v2663 = vadd.f32 %v2629, %v2655
      %v2664 = vld [vmem:[%s2603 + $0x2] sm:$0xff]
      %v2665 = vld [vmem:[%s2603 + $0xa] sm:$0xff]
      %v2666 = vld [vmem:[%s2603 + $0x1a] sm:$0xff]
      %v2667 = vld [vmem:[%s2603 + $0x22] sm:$0xff]
      %v2668 = vld [vmem:[%s2603 + $0x32] sm:$0xff]
      %v2669 = vld [vmem:[%s2603 + $0x3a] sm:$0xff]
      %v2670 = vld [vmem:[%s2603 + $0x4a] sm:$0xff]
      %v2671 = vld [vmem:[%s2603 + $0x52] sm:$0xff]
      %s2672 = sadd.s32 %s2612, 512
      %s2673 = scalar_lea.vmem [#allocation7], %s2672
      %v2674 = vld [vmem:[%s2673] sm:$0xff]
      %v2675 = vld [vmem:[%s2673 + $0x8] sm:$0xff]
      %v2676 = vld [vmem:[%s2673 + $0x10] sm:$0xff]
      %v2677 = vld [vmem:[%s2673 + $0x18] sm:$0xff]
      %v2678 = vld [vmem:[%s2673 + $0x20] sm:$0xff]
      %v2679 = vld [vmem:[%s2673 + $0x28] sm:$0xff]
      %v2680 = vld [vmem:[%s2673 + $0x30] sm:$0xff]
      %v2681 = vld [vmem:[%s2673 + $0x38] sm:$0xff]
      %v2682 = vmul.f32 %v2664, %v2674
      %v2683 = vmul.f32 %v2665, %v2675
      %v2684 = vmul.f32 %v2666, %v2676
      %v2685 = vmul.f32 %v2667, %v2677
      %v2686 = vmul.f32 %v2668, %v2678
      %v2687 = vmul.f32 %v2669, %v2679
      %v2688 = vmul.f32 %v2670, %v2680
      %v2689 = vmul.f32 %v2671, %v2681
      %v2690 = vadd.f32 %v2656, %v2682
      %v2691 = vadd.f32 %v2657, %v2683
      %v2692 = vadd.f32 %v2658, %v2684
      %v2693 = vadd.f32 %v2659, %v2685
      %v2694 = vadd.f32 %v2660, %v2686
      %v2695 = vadd.f32 %v2661, %v2687
      %v2696 = vadd.f32 %v2662, %v2688
      %v2697 = vadd.f32 %v2663, %v2689
      %v2698 = vld [vmem:[%s2603 + $0x3] sm:$0xff]
      %v2699 = vld [vmem:[%s2603 + $0xb] sm:$0xff]
      %v2700 = vld [vmem:[%s2603 + $0x1b] sm:$0xff]
      %v2701 = vld [vmem:[%s2603 + $0x23] sm:$0xff]
      %v2702 = vld [vmem:[%s2603 + $0x33] sm:$0xff]
      %v2703 = vld [vmem:[%s2603 + $0x3b] sm:$0xff]
      %v2704 = vld [vmem:[%s2603 + $0x4b] sm:$0xff]
      %v2705 = vld [vmem:[%s2603 + $0x53] sm:$0xff]
      %s2706 = sadd.s32 %s2612, 768
      %s2707 = scalar_lea.vmem [#allocation7], %s2706
      %v2708 = vld [vmem:[%s2707] sm:$0xff]
      %v2709 = vld [vmem:[%s2707 + $0x8] sm:$0xff]
      %v2710 = vld [vmem:[%s2707 + $0x10] sm:$0xff]
      %v2711 = vld [vmem:[%s2707 + $0x18] sm:$0xff]
      %v2712 = vld [vmem:[%s2707 + $0x20] sm:$0xff]
      %v2713 = vld [vmem:[%s2707 + $0x28] sm:$0xff]
      %v2714 = vld [vmem:[%s2707 + $0x30] sm:$0xff]
      %v2715 = vld [vmem:[%s2707 + $0x38] sm:$0xff]
      %v2716 = vmul.f32 %v2698, %v2708
      %v2717 = vmul.f32 %v2699, %v2709
      %v2718 = vmul.f32 %v2700, %v2710
      %v2719 = vmul.f32 %v2701, %v2711
      %v2720 = vmul.f32 %v2702, %v2712
      %v2721 = vmul.f32 %v2703, %v2713
      %v2722 = vmul.f32 %v2704, %v2714
      %v2723 = vmul.f32 %v2705, %v2715
      %v2724 = vadd.f32 %v2690, %v2716
      %v2725 = vadd.f32 %v2691, %v2717
      %v2726 = vadd.f32 %v2692, %v2718
      %v2727 = vadd.f32 %v2693, %v2719
      %v2728 = vadd.f32 %v2694, %v2720
      %v2729 = vadd.f32 %v2695, %v2721
      %v2730 = vadd.f32 %v2696, %v2722
      %v2731 = vadd.f32 %v2697, %v2723
      %v2732 = vld [vmem:[%s2603 + $0x4] sm:$0xff]
      %v2733 = vld [vmem:[%s2603 + $0xc] sm:$0xff]
      %v2734 = vld [vmem:[%s2603 + $0x1c] sm:$0xff]
      %v2735 = vld [vmem:[%s2603 + $0x24] sm:$0xff]
      %v2736 = vld [vmem:[%s2603 + $0x34] sm:$0xff]
      %v2737 = vld [vmem:[%s2603 + $0x3c] sm:$0xff]
      %v2738 = vld [vmem:[%s2603 + $0x4c] sm:$0xff]
      %v2739 = vld [vmem:[%s2603 + $0x54] sm:$0xff]
      %s2740 = sadd.s32 %s2612, 1024
      %s2741 = scalar_lea.vmem [#allocation7], %s2740
      %v2742 = vld [vmem:[%s2741] sm:$0xff]
      %v2743 = vld [vmem:[%s2741 + $0x8] sm:$0xff]
      %v2744 = vld [vmem:[%s2741 + $0x10] sm:$0xff]
      %v2745 = vld [vmem:[%s2741 + $0x18] sm:$0xff]
      %v2746 = vld [vmem:[%s2741 + $0x20] sm:$0xff]
      %v2747 = vld [vmem:[%s2741 + $0x28] sm:$0xff]
      %v2748 = vld [vmem:[%s2741 + $0x30] sm:$0xff]
      %v2749 = vld [vmem:[%s2741 + $0x38] sm:$0xff]
      %v2750 = vmul.f32 %v2732, %v2742
      %v2751 = vmul.f32 %v2733, %v2743
      %v2752 = vmul.f32 %v2734, %v2744
      %v2753 = vmul.f32 %v2735, %v2745
      %v2754 = vmul.f32 %v2736, %v2746
      %v2755 = vmul.f32 %v2737, %v2747
      %v2756 = vmul.f32 %v2738, %v2748
      %v2757 = vmul.f32 %v2739, %v2749
      %v2758 = vadd.f32 %v2724, %v2750
      %v2759 = vadd.f32 %v2725, %v2751
      %v2760 = vadd.f32 %v2726, %v2752
      %v2761 = vadd.f32 %v2727, %v2753
      %v2762 = vadd.f32 %v2728, %v2754
      %v2763 = vadd.f32 %v2729, %v2755
      %v2764 = vadd.f32 %v2730, %v2756
      %v2765 = vadd.f32 %v2731, %v2757
      %s2766 = sadd.s32 %s2601, 1
      %s2767 = smul.u32 %s2766, 24
      %s2768 = scalar_lea.vmem [#allocation3], %s2767
      %v2769 = vld [vmem:[%s2768] sm:$0xff]
      %v2770 = vld [vmem:[%s2768 + $0x8] sm:$0xff]
      %v2771 = vld [vmem:[%s2768 + $0x18] sm:$0xff]
      %v2772 = vld [vmem:[%s2768 + $0x20] sm:$0xff]
      %v2773 = vld [vmem:[%s2768 + $0x30] sm:$0xff]
      %v2774 = vld [vmem:[%s2768 + $0x38] sm:$0xff]
      %v2775 = vld [vmem:[%s2768 + $0x48] sm:$0xff]
      %v2776 = vld [vmem:[%s2768 + $0x50] sm:$0xff]
      %s2777 = sadd.s32 %s2612, 1280
      %s2778 = scalar_lea.vmem [#allocation7], %s2777
      %v2779 = vld [vmem:[%s2778] sm:$0xff]
      %v2780 = vld [vmem:[%s2778 + $0x8] sm:$0xff]
      %v2781 = vld [vmem:[%s2778 + $0x10] sm:$0xff]
      %v2782 = vld [vmem:[%s2778 + $0x18] sm:$0xff]
      %v2783 = vld [vmem:[%s2778 + $0x20] sm:$0xff]
      %v2784 = vld [vmem:[%s2778 + $0x28] sm:$0xff]
      %v2785 = vld [vmem:[%s2778 + $0x30] sm:$0xff]
      %v2786 = vld [vmem:[%s2778 + $0x38] sm:$0xff]
      %v2787 = vmul.f32 %v2769, %v2779
      %v2788 = vmul.f32 %v2770, %v2780
      %v2789 = vmul.f32 %v2771, %v2781
      %v2790 = vmul.f32 %v2772, %v2782
      %v2791 = vmul.f32 %v2773, %v2783
      %v2792 = vmul.f32 %v2774, %v2784
      %v2793 = vmul.f32 %v2775, %v2785
      %v2794 = vmul.f32 %v2776, %v2786
      %v2795 = vadd.f32 %v2758, %v2787
      %v2796 = vadd.f32 %v2759, %v2788
      %v2797 = vadd.f32 %v2760, %v2789
      %v2798 = vadd.f32 %v2761, %v2790
      %v2799 = vadd.f32 %v2762, %v2791
      %v2800 = vadd.f32 %v2763, %v2792
      %v2801 = vadd.f32 %v2764, %v2793
      %v2802 = vadd.f32 %v2765, %v2794
      %v2803 = vld [vmem:[%s2768 + $0x1] sm:$0xff]
      %v2804 = vld [vmem:[%s2768 + $0x9] sm:$0xff]
      %v2805 = vld [vmem:[%s2768 + $0x19] sm:$0xff]
      %v2806 = vld [vmem:[%s2768 + $0x21] sm:$0xff]
      %v2807 = vld [vmem:[%s2768 + $0x31] sm:$0xff]
      %v2808 = vld [vmem:[%s2768 + $0x39] sm:$0xff]
      %v2809 = vld [vmem:[%s2768 + $0x49] sm:$0xff]
      %v2810 = vld [vmem:[%s2768 + $0x51] sm:$0xff]
      %s2811 = sadd.s32 %s2612, 1536
      %s2812 = scalar_lea.vmem [#allocation7], %s2811
      %v2813 = vld [vmem:[%s2812] sm:$0xff]
      %v2814 = vld [vmem:[%s2812 + $0x8] sm:$0xff]
      %v2815 = vld [vmem:[%s2812 + $0x10] sm:$0xff]
      %v2816 = vld [vmem:[%s2812 + $0x18] sm:$0xff]
      %v2817 = vld [vmem:[%s2812 + $0x20] sm:$0xff]
      %v2818 = vld [vmem:[%s2812 + $0x28] sm:$0xff]
      %v2819 = vld [vmem:[%s2812 + $0x30] sm:$0xff]
      %v2820 = vld [vmem:[%s2812 + $0x38] sm:$0xff]
      %v2821 = vmul.f32 %v2803, %v2813
      %v2822 = vmul.f32 %v2804, %v2814
      %v2823 = vmul.f32 %v2805, %v2815
      %v2824 = vmul.f32 %v2806, %v2816
      %v2825 = vmul.f32 %v2807, %v2817
      %v2826 = vmul.f32 %v2808, %v2818
      %v2827 = vmul.f32 %v2809, %v2819
      %v2828 = vmul.f32 %v2810, %v2820
      %v2829 = vadd.f32 %v2795, %v2821
      %v2830 = vadd.f32 %v2796, %v2822
      %v2831 = vadd.f32 %v2797, %v2823
      %v2832 = vadd.f32 %v2798, %v2824
      %v2833 = vadd.f32 %v2799, %v2825
      %v2834 = vadd.f32 %v2800, %v2826
      %v2835 = vadd.f32 %v2801, %v2827
      %v2836 = vadd.f32 %v2802, %v2828
      %v2837 = vld [vmem:[%s2768 + $0x2] sm:$0xff]
      %v2838 = vld [vmem:[%s2768 + $0xa] sm:$0xff]
      %v2839 = vld [vmem:[%s2768 + $0x1a] sm:$0xff]
      %v2840 = vld [vmem:[%s2768 + $0x22] sm:$0xff]
      %v2841 = vld [vmem:[%s2768 + $0x32] sm:$0xff]
      %v2842 = vld [vmem:[%s2768 + $0x3a] sm:$0xff]
      %v2843 = vld [vmem:[%s2768 + $0x4a] sm:$0xff]
      %v2844 = vld [vmem:[%s2768 + $0x52] sm:$0xff]
      %s2845 = sadd.s32 %s2612, 1792
      %s2846 = scalar_lea.vmem [#allocation7], %s2845
      %v2847 = vld [vmem:[%s2846] sm:$0xff]
      %v2848 = vld [vmem:[%s2846 + $0x8] sm:$0xff]
      %v2849 = vld [vmem:[%s2846 + $0x10] sm:$0xff]
      %v2850 = vld [vmem:[%s2846 + $0x18] sm:$0xff]
      %v2851 = vld [vmem:[%s2846 + $0x20] sm:$0xff]
      %v2852 = vld [vmem:[%s2846 + $0x28] sm:$0xff]
      %v2853 = vld [vmem:[%s2846 + $0x30] sm:$0xff]
      %v2854 = vld [vmem:[%s2846 + $0x38] sm:$0xff]
      %v2855 = vmul.f32 %v2837, %v2847
      %v2856 = vmul.f32 %v2838, %v2848
      %v2857 = vmul.f32 %v2839, %v2849
      %v2858 = vmul.f32 %v2840, %v2850
      %v2859 = vmul.f32 %v2841, %v2851
      %v2860 = vmul.f32 %v2842, %v2852
      %v2861 = vmul.f32 %v2843, %v2853
      %v2862 = vmul.f32 %v2844, %v2854
      %v2863 = vadd.f32 %v2829, %v2855
      %v2864 = vadd.f32 %v2830, %v2856
      %v2865 = vadd.f32 %v2831, %v2857
      %v2866 = vadd.f32 %v2832, %v2858
      %v2867 = vadd.f32 %v2833, %v2859
      %v2868 = vadd.f32 %v2834, %v2860
      %v2869 = vadd.f32 %v2835, %v2861
      %v2870 = vadd.f32 %v2836, %v2862
      %v2871 = vld [vmem:[%s2768 + $0x3] sm:$0xff]
      %v2872 = vld [vmem:[%s2768 + $0xb] sm:$0xff]
      %v2873 = vld [vmem:[%s2768 + $0x1b] sm:$0xff]
      %v2874 = vld [vmem:[%s2768 + $0x23] sm:$0xff]
      %v2875 = vld [vmem:[%s2768 + $0x33] sm:$0xff]
      %v2876 = vld [vmem:[%s2768 + $0x3b] sm:$0xff]
      %v2877 = vld [vmem:[%s2768 + $0x4b] sm:$0xff]
      %v2878 = vld [vmem:[%s2768 + $0x53] sm:$0xff]
      %s2879 = sadd.s32 %s2612, 2048
      %s2880 = scalar_lea.vmem [#allocation7], %s2879
      %v2881 = vld [vmem:[%s2880] sm:$0xff]
      %v2882 = vld [vmem:[%s2880 + $0x8] sm:$0xff]
      %v2883 = vld [vmem:[%s2880 + $0x10] sm:$0xff]
      %v2884 = vld [vmem:[%s2880 + $0x18] sm:$0xff]
      %v2885 = vld [vmem:[%s2880 + $0x20] sm:$0xff]
      %v2886 = vld [vmem:[%s2880 + $0x28] sm:$0xff]
      %v2887 = vld [vmem:[%s2880 + $0x30] sm:$0xff]
      %v2888 = vld [vmem:[%s2880 + $0x38] sm:$0xff]
      %v2889 = vmul.f32 %v2871, %v2881
      %v2890 = vmul.f32 %v2872, %v2882
      %v2891 = vmul.f32 %v2873, %v2883
      %v2892 = vmul.f32 %v2874, %v2884
      %v2893 = vmul.f32 %v2875, %v2885
      %v2894 = vmul.f32 %v2876, %v2886
      %v2895 = vmul.f32 %v2877, %v2887
      %v2896 = vmul.f32 %v2878, %v2888
      %v2897 = vadd.f32 %v2863, %v2889
      %v2898 = vadd.f32 %v2864, %v2890
      %v2899 = vadd.f32 %v2865, %v2891
      %v2900 = vadd.f32 %v2866, %v2892
      %v2901 = vadd.f32 %v2867, %v2893
      %v2902 = vadd.f32 %v2868, %v2894
      %v2903 = vadd.f32 %v2869, %v2895
      %v2904 = vadd.f32 %v2870, %v2896
      %v2905 = vld [vmem:[%s2768 + $0x4] sm:$0xff]
      %v2906 = vld [vmem:[%s2768 + $0xc] sm:$0xff]
      %v2907 = vld [vmem:[%s2768 + $0x1c] sm:$0xff]
      %v2908 = vld [vmem:[%s2768 + $0x24] sm:$0xff]
      %v2909 = vld [vmem:[%s2768 + $0x34] sm:$0xff]
      %v2910 = vld [vmem:[%s2768 + $0x3c] sm:$0xff]
      %v2911 = vld [vmem:[%s2768 + $0x4c] sm:$0xff]
      %v2912 = vld [vmem:[%s2768 + $0x54] sm:$0xff]
      %s2913 = sadd.s32 %s2612, 2304
      %s2914 = scalar_lea.vmem [#allocation7], %s2913
      %v2915 = vld [vmem:[%s2914] sm:$0xff]
      %v2916 = vld [vmem:[%s2914 + $0x8] sm:$0xff]
      %v2917 = vld [vmem:[%s2914 + $0x10] sm:$0xff]
      %v2918 = vld [vmem:[%s2914 + $0x18] sm:$0xff]
      %v2919 = vld [vmem:[%s2914 + $0x20] sm:$0xff]
      %v2920 = vld [vmem:[%s2914 + $0x28] sm:$0xff]
      %v2921 = vld [vmem:[%s2914 + $0x30] sm:$0xff]
      %v2922 = vld [vmem:[%s2914 + $0x38] sm:$0xff]
      %v2923 = vmul.f32 %v2905, %v2915
      %v2924 = vmul.f32 %v2906, %v2916
      %v2925 = vmul.f32 %v2907, %v2917
      %v2926 = vmul.f32 %v2908, %v2918
      %v2927 = vmul.f32 %v2909, %v2919
      %v2928 = vmul.f32 %v2910, %v2920
      %v2929 = vmul.f32 %v2911, %v2921
      %v2930 = vmul.f32 %v2912, %v2922
      %v2931 = vadd.f32 %v2897, %v2923
      %v2932 = vadd.f32 %v2898, %v2924
      %v2933 = vadd.f32 %v2899, %v2925
      %v2934 = vadd.f32 %v2900, %v2926
      %v2935 = vadd.f32 %v2901, %v2927
      %v2936 = vadd.f32 %v2902, %v2928
      %v2937 = vadd.f32 %v2903, %v2929
      %v2938 = vadd.f32 %v2904, %v2930
      %s2939 = sadd.s32 %s2601, 2
      %s2940 = smul.u32 %s2939, 24
      %s2941 = scalar_lea.vmem [#allocation3], %s2940
      %v2942 = vld [vmem:[%s2941] sm:$0xff]
      %v2943 = vld [vmem:[%s2941 + $0x8] sm:$0xff]
      %v2944 = vld [vmem:[%s2941 + $0x18] sm:$0xff]
      %v2945 = vld [vmem:[%s2941 + $0x20] sm:$0xff]
      %v2946 = vld [vmem:[%s2941 + $0x30] sm:$0xff]
      %v2947 = vld [vmem:[%s2941 + $0x38] sm:$0xff]
      %v2948 = vld [vmem:[%s2941 + $0x48] sm:$0xff]
      %v2949 = vld [vmem:[%s2941 + $0x50] sm:$0xff]
      %s2950 = sadd.s32 %s2612, 2560
      %s2951 = scalar_lea.vmem [#allocation7], %s2950
      %v2952 = vld [vmem:[%s2951] sm:$0xff]
      %v2953 = vld [vmem:[%s2951 + $0x8] sm:$0xff]
      %v2954 = vld [vmem:[%s2951 + $0x10] sm:$0xff]
      %v2955 = vld [vmem:[%s2951 + $0x18] sm:$0xff]
      %v2956 = vld [vmem:[%s2951 + $0x20] sm:$0xff]
      %v2957 = vld [vmem:[%s2951 + $0x28] sm:$0xff]
      %v2958 = vld [vmem:[%s2951 + $0x30] sm:$0xff]
      %v2959 = vld [vmem:[%s2951 + $0x38] sm:$0xff]
      %v2960 = vmul.f32 %v2942, %v2952
      %v2961 = vmul.f32 %v2943, %v2953
      %v2962 = vmul.f32 %v2944, %v2954
      %v2963 = vmul.f32 %v2945, %v2955
      %v2964 = vmul.f32 %v2946, %v2956
      %v2965 = vmul.f32 %v2947, %v2957
      %v2966 = vmul.f32 %v2948, %v2958
      %v2967 = vmul.f32 %v2949, %v2959
      %v2968 = vadd.f32 %v2931, %v2960
      %v2969 = vadd.f32 %v2932, %v2961
      %v2970 = vadd.f32 %v2933, %v2962
      %v2971 = vadd.f32 %v2934, %v2963
      %v2972 = vadd.f32 %v2935, %v2964
      %v2973 = vadd.f32 %v2936, %v2965
      %v2974 = vadd.f32 %v2937, %v2966
      %v2975 = vadd.f32 %v2938, %v2967
      %v2976 = vld [vmem:[%s2941 + $0x1] sm:$0xff]
      %v2977 = vld [vmem:[%s2941 + $0x9] sm:$0xff]
      %v2978 = vld [vmem:[%s2941 + $0x19] sm:$0xff]
      %v2979 = vld [vmem:[%s2941 + $0x21] sm:$0xff]
      %v2980 = vld [vmem:[%s2941 + $0x31] sm:$0xff]
      %v2981 = vld [vmem:[%s2941 + $0x39] sm:$0xff]
      %v2982 = vld [vmem:[%s2941 + $0x49] sm:$0xff]
      %v2983 = vld [vmem:[%s2941 + $0x51] sm:$0xff]
      %s2984 = sadd.s32 %s2612, 2816
      %s2985 = scalar_lea.vmem [#allocation7], %s2984
      %v2986 = vld [vmem:[%s2985] sm:$0xff]
      %v2987 = vld [vmem:[%s2985 + $0x8] sm:$0xff]
      %v2988 = vld [vmem:[%s2985 + $0x10] sm:$0xff]
      %v2989 = vld [vmem:[%s2985 + $0x18] sm:$0xff]
      %v2990 = vld [vmem:[%s2985 + $0x20] sm:$0xff]
      %v2991 = vld [vmem:[%s2985 + $0x28] sm:$0xff]
      %v2992 = vld [vmem:[%s2985 + $0x30] sm:$0xff]
      %v2993 = vld [vmem:[%s2985 + $0x38] sm:$0xff]
      %v2994 = vmul.f32 %v2976, %v2986
      %v2995 = vmul.f32 %v2977, %v2987
      %v2996 = vmul.f32 %v2978, %v2988
      %v2997 = vmul.f32 %v2979, %v2989
      %v2998 = vmul.f32 %v2980, %v2990
      %v2999 = vmul.f32 %v2981, %v2991
      %v3000 = vmul.f32 %v2982, %v2992
      %v3001 = vmul.f32 %v2983, %v2993
      %v3002 = vadd.f32 %v2968, %v2994
      %v3003 = vadd.f32 %v2969, %v2995
      %v3004 = vadd.f32 %v2970, %v2996
      %v3005 = vadd.f32 %v2971, %v2997
      %v3006 = vadd.f32 %v2972, %v2998
      %v3007 = vadd.f32 %v2973, %v2999
      %v3008 = vadd.f32 %v2974, %v3000
      %v3009 = vadd.f32 %v2975, %v3001
      %v3010 = vld [vmem:[%s2941 + $0x2] sm:$0xff]
      %v3011 = vld [vmem:[%s2941 + $0xa] sm:$0xff]
      %v3012 = vld [vmem:[%s2941 + $0x1a] sm:$0xff]
      %v3013 = vld [vmem:[%s2941 + $0x22] sm:$0xff]
      %v3014 = vld [vmem:[%s2941 + $0x32] sm:$0xff]
      %v3015 = vld [vmem:[%s2941 + $0x3a] sm:$0xff]
      %v3016 = vld [vmem:[%s2941 + $0x4a] sm:$0xff]
      %v3017 = vld [vmem:[%s2941 + $0x52] sm:$0xff]
      %s3018 = sadd.s32 %s2612, 3072
      %s3019 = scalar_lea.vmem [#allocation7], %s3018
      %v3020 = vld [vmem:[%s3019] sm:$0xff]
      %v3021 = vld [vmem:[%s3019 + $0x8] sm:$0xff]
      %v3022 = vld [vmem:[%s3019 + $0x10] sm:$0xff]
      %v3023 = vld [vmem:[%s3019 + $0x18] sm:$0xff]
      %v3024 = vld [vmem:[%s3019 + $0x20] sm:$0xff]
      %v3025 = vld [vmem:[%s3019 + $0x28] sm:$0xff]
      %v3026 = vld [vmem:[%s3019 + $0x30] sm:$0xff]
      %v3027 = vld [vmem:[%s3019 + $0x38] sm:$0xff]
      %v3028 = vmul.f32 %v3010, %v3020
      %v3029 = vmul.f32 %v3011, %v3021
      %v3030 = vmul.f32 %v3012, %v3022
      %v3031 = vmul.f32 %v3013, %v3023
      %v3032 = vmul.f32 %v3014, %v3024
      %v3033 = vmul.f32 %v3015, %v3025
      %v3034 = vmul.f32 %v3016, %v3026
      %v3035 = vmul.f32 %v3017, %v3027
      %v3036 = vadd.f32 %v3002, %v3028
      %v3037 = vadd.f32 %v3003, %v3029
      %v3038 = vadd.f32 %v3004, %v3030
      %v3039 = vadd.f32 %v3005, %v3031
      %v3040 = vadd.f32 %v3006, %v3032
      %v3041 = vadd.f32 %v3007, %v3033
      %v3042 = vadd.f32 %v3008, %v3034
      %v3043 = vadd.f32 %v3009, %v3035
      %v3044 = vld [vmem:[%s2941 + $0x3] sm:$0xff]
      %v3045 = vld [vmem:[%s2941 + $0xb] sm:$0xff]
      %v3046 = vld [vmem:[%s2941 + $0x1b] sm:$0xff]
      %v3047 = vld [vmem:[%s2941 + $0x23] sm:$0xff]
      %v3048 = vld [vmem:[%s2941 + $0x33] sm:$0xff]
      %v3049 = vld [vmem:[%s2941 + $0x3b] sm:$0xff]
      %v3050 = vld [vmem:[%s2941 + $0x4b] sm:$0xff]
      %v3051 = vld [vmem:[%s2941 + $0x53] sm:$0xff]
      %s3052 = sadd.s32 %s2612, 3328
      %s3053 = scalar_lea.vmem [#allocation7], %s3052
      %v3054 = vld [vmem:[%s3053] sm:$0xff]
      %v3055 = vld [vmem:[%s3053 + $0x8] sm:$0xff]
      %v3056 = vld [vmem:[%s3053 + $0x10] sm:$0xff]
      %v3057 = vld [vmem:[%s3053 + $0x18] sm:$0xff]
      %v3058 = vld [vmem:[%s3053 + $0x20] sm:$0xff]
      %v3059 = vld [vmem:[%s3053 + $0x28] sm:$0xff]
      %v3060 = vld [vmem:[%s3053 + $0x30] sm:$0xff]
      %v3061 = vld [vmem:[%s3053 + $0x38] sm:$0xff]
      %v3062 = vmul.f32 %v3044, %v3054
      %v3063 = vmul.f32 %v3045, %v3055
      %v3064 = vmul.f32 %v3046, %v3056
      %v3065 = vmul.f32 %v3047, %v3057
      %v3066 = vmul.f32 %v3048, %v3058
      %v3067 = vmul.f32 %v3049, %v3059
      %v3068 = vmul.f32 %v3050, %v3060
      %v3069 = vmul.f32 %v3051, %v3061
      %v3070 = vadd.f32 %v3036, %v3062
      %v3071 = vadd.f32 %v3037, %v3063
      %v3072 = vadd.f32 %v3038, %v3064
      %v3073 = vadd.f32 %v3039, %v3065
      %v3074 = vadd.f32 %v3040, %v3066
      %v3075 = vadd.f32 %v3041, %v3067
      %v3076 = vadd.f32 %v3042, %v3068
      %v3077 = vadd.f32 %v3043, %v3069
      %v3078 = vld [vmem:[%s2941 + $0x4] sm:$0xff]
      %v3079 = vld [vmem:[%s2941 + $0xc] sm:$0xff]
      %v3080 = vld [vmem:[%s2941 + $0x1c] sm:$0xff]
      %v3081 = vld [vmem:[%s2941 + $0x24] sm:$0xff]
      %v3082 = vld [vmem:[%s2941 + $0x34] sm:$0xff]
      %v3083 = vld [vmem:[%s2941 + $0x3c] sm:$0xff]
      %v3084 = vld [vmem:[%s2941 + $0x4c] sm:$0xff]
      %v3085 = vld [vmem:[%s2941 + $0x54] sm:$0xff]
      %s3086 = sadd.s32 %s2612, 3584
      %s3087 = scalar_lea.vmem [#allocation7], %s3086
      %v3088 = vld [vmem:[%s3087] sm:$0xff]
      %v3089 = vld [vmem:[%s3087 + $0x8] sm:$0xff]
      %v3090 = vld [vmem:[%s3087 + $0x10] sm:$0xff]
      %v3091 = vld [vmem:[%s3087 + $0x18] sm:$0xff]
      %v3092 = vld [vmem:[%s3087 + $0x20] sm:$0xff]
      %v3093 = vld [vmem:[%s3087 + $0x28] sm:$0xff]
      %v3094 = vld [vmem:[%s3087 + $0x30] sm:$0xff]
      %v3095 = vld [vmem:[%s3087 + $0x38] sm:$0xff]
      %v3096 = vmul.f32 %v3078, %v3088
      %v3097 = vmul.f32 %v3079, %v3089
      %v3098 = vmul.f32 %v3080, %v3090
      %v3099 = vmul.f32 %v3081, %v3091
      %v3100 = vmul.f32 %v3082, %v3092
      %v3101 = vmul.f32 %v3083, %v3093
      %v3102 = vmul.f32 %v3084, %v3094
      %v3103 = vmul.f32 %v3085, %v3095
      %v3104 = vadd.f32 %v3070, %v3096
      %v3105 = vadd.f32 %v3071, %v3097
      %v3106 = vadd.f32 %v3072, %v3098
      %v3107 = vadd.f32 %v3073, %v3099
      %v3108 = vadd.f32 %v3074, %v3100
      %v3109 = vadd.f32 %v3075, %v3101
      %v3110 = vadd.f32 %v3076, %v3102
      %v3111 = vadd.f32 %v3077, %v3103
      %s3112 = sadd.s32 %s2601, 3
      %s3113 = smul.u32 %s3112, 24
      %s3114 = scalar_lea.vmem [#allocation3], %s3113
      %v3115 = vld [vmem:[%s3114] sm:$0xff]
      %v3116 = vld [vmem:[%s3114 + $0x8] sm:$0xff]
      %v3117 = vld [vmem:[%s3114 + $0x18] sm:$0xff]
      %v3118 = vld [vmem:[%s3114 + $0x20] sm:$0xff]
      %v3119 = vld [vmem:[%s3114 + $0x30] sm:$0xff]
      %v3120 = vld [vmem:[%s3114 + $0x38] sm:$0xff]
      %v3121 = vld [vmem:[%s3114 + $0x48] sm:$0xff]
      %v3122 = vld [vmem:[%s3114 + $0x50] sm:$0xff]
      %s3123 = sadd.s32 %s2612, 3840
      %s3124 = scalar_lea.vmem [#allocation7], %s3123
      %v3125 = vld [vmem:[%s3124] sm:$0xff]
      %v3126 = vld [vmem:[%s3124 + $0x8] sm:$0xff]
      %v3127 = vld [vmem:[%s3124 + $0x10] sm:$0xff]
      %v3128 = vld [vmem:[%s3124 + $0x18] sm:$0xff]
      %v3129 = vld [vmem:[%s3124 + $0x20] sm:$0xff]
      %v3130 = vld [vmem:[%s3124 + $0x28] sm:$0xff]
      %v3131 = vld [vmem:[%s3124 + $0x30] sm:$0xff]
      %v3132 = vld [vmem:[%s3124 + $0x38] sm:$0xff]
      %v3133 = vmul.f32 %v3115, %v3125
      %v3134 = vmul.f32 %v3116, %v3126
      %v3135 = vmul.f32 %v3117, %v3127
      %v3136 = vmul.f32 %v3118, %v3128
      %v3137 = vmul.f32 %v3119, %v3129
      %v3138 = vmul.f32 %v3120, %v3130
      %v3139 = vmul.f32 %v3121, %v3131
      %v3140 = vmul.f32 %v3122, %v3132
      %v3141 = vadd.f32 %v3104, %v3133
      %v3142 = vadd.f32 %v3105, %v3134
      %v3143 = vadd.f32 %v3106, %v3135
      %v3144 = vadd.f32 %v3107, %v3136
      %v3145 = vadd.f32 %v3108, %v3137
      %v3146 = vadd.f32 %v3109, %v3138
      %v3147 = vadd.f32 %v3110, %v3139
      %v3148 = vadd.f32 %v3111, %v3140
      %v3149 = vld [vmem:[%s3114 + $0x1] sm:$0xff]
      %v3150 = vld [vmem:[%s3114 + $0x9] sm:$0xff]
      %v3151 = vld [vmem:[%s3114 + $0x19] sm:$0xff]
      %v3152 = vld [vmem:[%s3114 + $0x21] sm:$0xff]
      %v3153 = vld [vmem:[%s3114 + $0x31] sm:$0xff]
      %v3154 = vld [vmem:[%s3114 + $0x39] sm:$0xff]
      %v3155 = vld [vmem:[%s3114 + $0x49] sm:$0xff]
      %v3156 = vld [vmem:[%s3114 + $0x51] sm:$0xff]
      %s3157 = sadd.s32 %s2612, 4096
      %s3158 = scalar_lea.vmem [#allocation7], %s3157
      %v3159 = vld [vmem:[%s3158] sm:$0xff]
      %v3160 = vld [vmem:[%s3158 + $0x8] sm:$0xff]
      %v3161 = vld [vmem:[%s3158 + $0x10] sm:$0xff]
      %v3162 = vld [vmem:[%s3158 + $0x18] sm:$0xff]
      %v3163 = vld [vmem:[%s3158 + $0x20] sm:$0xff]
      %v3164 = vld [vmem:[%s3158 + $0x28] sm:$0xff]
      %v3165 = vld [vmem:[%s3158 + $0x30] sm:$0xff]
      %v3166 = vld [vmem:[%s3158 + $0x38] sm:$0xff]
      %v3167 = vmul.f32 %v3149, %v3159
      %v3168 = vmul.f32 %v3150, %v3160
      %v3169 = vmul.f32 %v3151, %v3161
      %v3170 = vmul.f32 %v3152, %v3162
      %v3171 = vmul.f32 %v3153, %v3163
      %v3172 = vmul.f32 %v3154, %v3164
      %v3173 = vmul.f32 %v3155, %v3165
      %v3174 = vmul.f32 %v3156, %v3166
      %v3175 = vadd.f32 %v3141, %v3167
      %v3176 = vadd.f32 %v3142, %v3168
      %v3177 = vadd.f32 %v3143, %v3169
      %v3178 = vadd.f32 %v3144, %v3170
      %v3179 = vadd.f32 %v3145, %v3171
      %v3180 = vadd.f32 %v3146, %v3172
      %v3181 = vadd.f32 %v3147, %v3173
      %v3182 = vadd.f32 %v3148, %v3174
      %v3183 = vld [vmem:[%s3114 + $0x2] sm:$0xff]
      %v3184 = vld [vmem:[%s3114 + $0xa] sm:$0xff]
      %v3185 = vld [vmem:[%s3114 + $0x1a] sm:$0xff]
      %v3186 = vld [vmem:[%s3114 + $0x22] sm:$0xff]
      %v3187 = vld [vmem:[%s3114 + $0x32] sm:$0xff]
      %v3188 = vld [vmem:[%s3114 + $0x3a] sm:$0xff]
      %v3189 = vld [vmem:[%s3114 + $0x4a] sm:$0xff]
      %v3190 = vld [vmem:[%s3114 + $0x52] sm:$0xff]
      %s3191 = sadd.s32 %s2612, 4352
      %s3192 = scalar_lea.vmem [#allocation7], %s3191
      %v3193 = vld [vmem:[%s3192] sm:$0xff]
      %v3194 = vld [vmem:[%s3192 + $0x8] sm:$0xff]
      %v3195 = vld [vmem:[%s3192 + $0x10] sm:$0xff]
      %v3196 = vld [vmem:[%s3192 + $0x18] sm:$0xff]
      %v3197 = vld [vmem:[%s3192 + $0x20] sm:$0xff]
      %v3198 = vld [vmem:[%s3192 + $0x28] sm:$0xff]
      %v3199 = vld [vmem:[%s3192 + $0x30] sm:$0xff]
      %v3200 = vld [vmem:[%s3192 + $0x38] sm:$0xff]
      %v3201 = vmul.f32 %v3183, %v3193
      %v3202 = vmul.f32 %v3184, %v3194
      %v3203 = vmul.f32 %v3185, %v3195
      %v3204 = vmul.f32 %v3186, %v3196
      %v3205 = vmul.f32 %v3187, %v3197
      %v3206 = vmul.f32 %v3188, %v3198
      %v3207 = vmul.f32 %v3189, %v3199
      %v3208 = vmul.f32 %v3190, %v3200
      %v3209 = vadd.f32 %v3175, %v3201
      %v3210 = vadd.f32 %v3176, %v3202
      %v3211 = vadd.f32 %v3177, %v3203
      %v3212 = vadd.f32 %v3178, %v3204
      %v3213 = vadd.f32 %v3179, %v3205
      %v3214 = vadd.f32 %v3180, %v3206
      %v3215 = vadd.f32 %v3181, %v3207
      %v3216 = vadd.f32 %v3182, %v3208
      %v3217 = vld [vmem:[%s3114 + $0x3] sm:$0xff]
      %v3218 = vld [vmem:[%s3114 + $0xb] sm:$0xff]
      %v3219 = vld [vmem:[%s3114 + $0x1b] sm:$0xff]
      %v3220 = vld [vmem:[%s3114 + $0x23] sm:$0xff]
      %v3221 = vld [vmem:[%s3114 + $0x33] sm:$0xff]
      %v3222 = vld [vmem:[%s3114 + $0x3b] sm:$0xff]
      %v3223 = vld [vmem:[%s3114 + $0x4b] sm:$0xff]
      %v3224 = vld [vmem:[%s3114 + $0x53] sm:$0xff]
      %s3225 = sadd.s32 %s2612, 4608
      %s3226 = scalar_lea.vmem [#allocation7], %s3225
      %v3227 = vld [vmem:[%s3226] sm:$0xff]
      %v3228 = vld [vmem:[%s3226 + $0x8] sm:$0xff]
      %v3229 = vld [vmem:[%s3226 + $0x10] sm:$0xff]
      %v3230 = vld [vmem:[%s3226 + $0x18] sm:$0xff]
      %v3231 = vld [vmem:[%s3226 + $0x20] sm:$0xff]
      %v3232 = vld [vmem:[%s3226 + $0x28] sm:$0xff]
      %v3233 = vld [vmem:[%s3226 + $0x30] sm:$0xff]
      %v3234 = vld [vmem:[%s3226 + $0x38] sm:$0xff]
      %v3235 = vmul.f32 %v3217, %v3227
      %v3236 = vmul.f32 %v3218, %v3228
      %v3237 = vmul.f32 %v3219, %v3229
      %v3238 = vmul.f32 %v3220, %v3230
      %v3239 = vmul.f32 %v3221, %v3231
      %v3240 = vmul.f32 %v3222, %v3232
      %v3241 = vmul.f32 %v3223, %v3233
      %v3242 = vmul.f32 %v3224, %v3234
      %v3243 = vadd.f32 %v3209, %v3235
      %v3244 = vadd.f32 %v3210, %v3236
      %v3245 = vadd.f32 %v3211, %v3237
      %v3246 = vadd.f32 %v3212, %v3238
      %v3247 = vadd.f32 %v3213, %v3239
      %v3248 = vadd.f32 %v3214, %v3240
      %v3249 = vadd.f32 %v3215, %v3241
      %v3250 = vadd.f32 %v3216, %v3242
      %v3251 = vld [vmem:[%s3114 + $0x4] sm:$0xff]
      %v3252 = vld [vmem:[%s3114 + $0xc] sm:$0xff]
      %v3253 = vld [vmem:[%s3114 + $0x1c] sm:$0xff]
      %v3254 = vld [vmem:[%s3114 + $0x24] sm:$0xff]
      %v3255 = vld [vmem:[%s3114 + $0x34] sm:$0xff]
      %v3256 = vld [vmem:[%s3114 + $0x3c] sm:$0xff]
      %v3257 = vld [vmem:[%s3114 + $0x4c] sm:$0xff]
      %v3258 = vld [vmem:[%s3114 + $0x54] sm:$0xff]
      %s3259 = sadd.s32 %s2612, 4864
      %s3260 = scalar_lea.vmem [#allocation7], %s3259
      %v3261 = vld [vmem:[%s3260] sm:$0xff]
      %v3262 = vld [vmem:[%s3260 + $0x8] sm:$0xff]
      %v3263 = vld [vmem:[%s3260 + $0x10] sm:$0xff]
      %v3264 = vld [vmem:[%s3260 + $0x18] sm:$0xff]
      %v3265 = vld [vmem:[%s3260 + $0x20] sm:$0xff]
      %v3266 = vld [vmem:[%s3260 + $0x28] sm:$0xff]
      %v3267 = vld [vmem:[%s3260 + $0x30] sm:$0xff]
      %v3268 = vld [vmem:[%s3260 + $0x38] sm:$0xff]
      %v3269 = vmul.f32 %v3251, %v3261
      %v3270 = vmul.f32 %v3252, %v3262
      %v3271 = vmul.f32 %v3253, %v3263
      %v3272 = vmul.f32 %v3254, %v3264
      %v3273 = vmul.f32 %v3255, %v3265
      %v3274 = vmul.f32 %v3256, %v3266
      %v3275 = vmul.f32 %v3257, %v3267
      %v3276 = vmul.f32 %v3258, %v3268
      %v3277 = vadd.f32 %v3243, %v3269
      %v3278 = vadd.f32 %v3244, %v3270
      %v3279 = vadd.f32 %v3245, %v3271
      %v3280 = vadd.f32 %v3246, %v3272
      %v3281 = vadd.f32 %v3247, %v3273
      %v3282 = vadd.f32 %v3248, %v3274
      %v3283 = vadd.f32 %v3249, %v3275
      %v3284 = vadd.f32 %v3250, %v3276
      %s3285 = sadd.s32 %s2601, 4
      %s3286 = smul.u32 %s3285, 24
      %s3287 = scalar_lea.vmem [#allocation3], %s3286
      %v3288 = vld [vmem:[%s3287] sm:$0xff]
      %v3289 = vld [vmem:[%s3287 + $0x8] sm:$0xff]
      %v3290 = vld [vmem:[%s3287 + $0x18] sm:$0xff]
      %v3291 = vld [vmem:[%s3287 + $0x20] sm:$0xff]
      %v3292 = vld [vmem:[%s3287 + $0x30] sm:$0xff]
      %v3293 = vld [vmem:[%s3287 + $0x38] sm:$0xff]
      %v3294 = vld [vmem:[%s3287 + $0x48] sm:$0xff]
      %v3295 = vld [vmem:[%s3287 + $0x50] sm:$0xff]
      %s3296 = sadd.s32 %s2612, 5120
      %s3297 = scalar_lea.vmem [#allocation7], %s3296
      %v3298 = vld [vmem:[%s3297] sm:$0xff]
      %v3299 = vld [vmem:[%s3297 + $0x8] sm:$0xff]
      %v3300 = vld [vmem:[%s3297 + $0x10] sm:$0xff]
      %v3301 = vld [vmem:[%s3297 + $0x18] sm:$0xff]
      %v3302 = vld [vmem:[%s3297 + $0x20] sm:$0xff]
      %v3303 = vld [vmem:[%s3297 + $0x28] sm:$0xff]
      %v3304 = vld [vmem:[%s3297 + $0x30] sm:$0xff]
      %v3305 = vld [vmem:[%s3297 + $0x38] sm:$0xff]
      %v3306 = vmul.f32 %v3288, %v3298
      %v3307 = vmul.f32 %v3289, %v3299
      %v3308 = vmul.f32 %v3290, %v3300
      %v3309 = vmul.f32 %v3291, %v3301
      %v3310 = vmul.f32 %v3292, %v3302
      %v3311 = vmul.f32 %v3293, %v3303
      %v3312 = vmul.f32 %v3294, %v3304
      %v3313 = vmul.f32 %v3295, %v3305
      %v3314 = vadd.f32 %v3277, %v3306
      %v3315 = vadd.f32 %v3278, %v3307
      %v3316 = vadd.f32 %v3279, %v3308
      %v3317 = vadd.f32 %v3280, %v3309
      %v3318 = vadd.f32 %v3281, %v3310
      %v3319 = vadd.f32 %v3282, %v3311
      %v3320 = vadd.f32 %v3283, %v3312
      %v3321 = vadd.f32 %v3284, %v3313
      %v3322 = vld [vmem:[%s3287 + $0x1] sm:$0xff]
      %v3323 = vld [vmem:[%s3287 + $0x9] sm:$0xff]
      %v3324 = vld [vmem:[%s3287 + $0x19] sm:$0xff]
      %v3325 = vld [vmem:[%s3287 + $0x21] sm:$0xff]
      %v3326 = vld [vmem:[%s3287 + $0x31] sm:$0xff]
      %v3327 = vld [vmem:[%s3287 + $0x39] sm:$0xff]
      %v3328 = vld [vmem:[%s3287 + $0x49] sm:$0xff]
      %v3329 = vld [vmem:[%s3287 + $0x51] sm:$0xff]
      %s3330 = sadd.s32 %s2612, 5376
      %s3331 = scalar_lea.vmem [#allocation7], %s3330
      %v3332 = vld [vmem:[%s3331] sm:$0xff]
      %v3333 = vld [vmem:[%s3331 + $0x8] sm:$0xff]
      %v3334 = vld [vmem:[%s3331 + $0x10] sm:$0xff]
      %v3335 = vld [vmem:[%s3331 + $0x18] sm:$0xff]
      %v3336 = vld [vmem:[%s3331 + $0x20] sm:$0xff]
      %v3337 = vld [vmem:[%s3331 + $0x28] sm:$0xff]
      %v3338 = vld [vmem:[%s3331 + $0x30] sm:$0xff]
      %v3339 = vld [vmem:[%s3331 + $0x38] sm:$0xff]
      %v3340 = vmul.f32 %v3322, %v3332
      %v3341 = vmul.f32 %v3323, %v3333
      %v3342 = vmul.f32 %v3324, %v3334
      %v3343 = vmul.f32 %v3325, %v3335
      %v3344 = vmul.f32 %v3326, %v3336
      %v3345 = vmul.f32 %v3327, %v3337
      %v3346 = vmul.f32 %v3328, %v3338
      %v3347 = vmul.f32 %v3329, %v3339
      %v3348 = vadd.f32 %v3314, %v3340
      %v3349 = vadd.f32 %v3315, %v3341
      %v3350 = vadd.f32 %v3316, %v3342
      %v3351 = vadd.f32 %v3317, %v3343
      %v3352 = vadd.f32 %v3318, %v3344
      %v3353 = vadd.f32 %v3319, %v3345
      %v3354 = vadd.f32 %v3320, %v3346
      %v3355 = vadd.f32 %v3321, %v3347
      %v3356 = vld [vmem:[%s3287 + $0x2] sm:$0xff]
      %v3357 = vld [vmem:[%s3287 + $0xa] sm:$0xff]
      %v3358 = vld [vmem:[%s3287 + $0x1a] sm:$0xff]
      %v3359 = vld [vmem:[%s3287 + $0x22] sm:$0xff]
      %v3360 = vld [vmem:[%s3287 + $0x32] sm:$0xff]
      %v3361 = vld [vmem:[%s3287 + $0x3a] sm:$0xff]
      %v3362 = vld [vmem:[%s3287 + $0x4a] sm:$0xff]
      %v3363 = vld [vmem:[%s3287 + $0x52] sm:$0xff]
      %s3364 = sadd.s32 %s2612, 5632
      %s3365 = scalar_lea.vmem [#allocation7], %s3364
      %v3366 = vld [vmem:[%s3365] sm:$0xff]
      %v3367 = vld [vmem:[%s3365 + $0x8] sm:$0xff]
      %v3368 = vld [vmem:[%s3365 + $0x10] sm:$0xff]
      %v3369 = vld [vmem:[%s3365 + $0x18] sm:$0xff]
      %v3370 = vld [vmem:[%s3365 + $0x20] sm:$0xff]
      %v3371 = vld [vmem:[%s3365 + $0x28] sm:$0xff]
      %v3372 = vld [vmem:[%s3365 + $0x30] sm:$0xff]
      %v3373 = vld [vmem:[%s3365 + $0x38] sm:$0xff]
      %v3374 = vmul.f32 %v3356, %v3366
      %v3375 = vmul.f32 %v3357, %v3367
      %v3376 = vmul.f32 %v3358, %v3368
      %v3377 = vmul.f32 %v3359, %v3369
      %v3378 = vmul.f32 %v3360, %v3370
      %v3379 = vmul.f32 %v3361, %v3371
      %v3380 = vmul.f32 %v3362, %v3372
      %v3381 = vmul.f32 %v3363, %v3373
      %v3382 = vadd.f32 %v3348, %v3374
      %v3383 = vadd.f32 %v3349, %v3375
      %v3384 = vadd.f32 %v3350, %v3376
      %v3385 = vadd.f32 %v3351, %v3377
      %v3386 = vadd.f32 %v3352, %v3378
      %v3387 = vadd.f32 %v3353, %v3379
      %v3388 = vadd.f32 %v3354, %v3380
      %v3389 = vadd.f32 %v3355, %v3381
      %v3390 = vld [vmem:[%s3287 + $0x3] sm:$0xff]
      %v3391 = vld [vmem:[%s3287 + $0xb] sm:$0xff]
      %v3392 = vld [vmem:[%s3287 + $0x1b] sm:$0xff]
      %v3393 = vld [vmem:[%s3287 + $0x23] sm:$0xff]
      %v3394 = vld [vmem:[%s3287 + $0x33] sm:$0xff]
      %v3395 = vld [vmem:[%s3287 + $0x3b] sm:$0xff]
      %v3396 = vld [vmem:[%s3287 + $0x4b] sm:$0xff]
      %v3397 = vld [vmem:[%s3287 + $0x53] sm:$0xff]
      %s3398 = sadd.s32 %s2612, 5888
      %s3399 = scalar_lea.vmem [#allocation7], %s3398
      %v3400 = vld [vmem:[%s3399] sm:$0xff]
      %v3401 = vld [vmem:[%s3399 + $0x8] sm:$0xff]
      %v3402 = vld [vmem:[%s3399 + $0x10] sm:$0xff]
      %v3403 = vld [vmem:[%s3399 + $0x18] sm:$0xff]
      %v3404 = vld [vmem:[%s3399 + $0x20] sm:$0xff]
      %v3405 = vld [vmem:[%s3399 + $0x28] sm:$0xff]
      %v3406 = vld [vmem:[%s3399 + $0x30] sm:$0xff]
      %v3407 = vld [vmem:[%s3399 + $0x38] sm:$0xff]
      %v3408 = vmul.f32 %v3390, %v3400
      %v3409 = vmul.f32 %v3391, %v3401
      %v3410 = vmul.f32 %v3392, %v3402
      %v3411 = vmul.f32 %v3393, %v3403
      %v3412 = vmul.f32 %v3394, %v3404
      %v3413 = vmul.f32 %v3395, %v3405
      %v3414 = vmul.f32 %v3396, %v3406
      %v3415 = vmul.f32 %v3397, %v3407
      %v3416 = vadd.f32 %v3382, %v3408
      %v3417 = vadd.f32 %v3383, %v3409
      %v3418 = vadd.f32 %v3384, %v3410
      %v3419 = vadd.f32 %v3385, %v3411
      %v3420 = vadd.f32 %v3386, %v3412
      %v3421 = vadd.f32 %v3387, %v3413
      %v3422 = vadd.f32 %v3388, %v3414
      %v3423 = vadd.f32 %v3389, %v3415
      %v3424 = vld [vmem:[%s3287 + $0x4] sm:$0xff]
      %v3425 = vld [vmem:[%s3287 + $0xc] sm:$0xff]
      %v3426 = vld [vmem:[%s3287 + $0x1c] sm:$0xff]
      %v3427 = vld [vmem:[%s3287 + $0x24] sm:$0xff]
      %v3428 = vld [vmem:[%s3287 + $0x34] sm:$0xff]
      %v3429 = vld [vmem:[%s3287 + $0x3c] sm:$0xff]
      %v3430 = vld [vmem:[%s3287 + $0x4c] sm:$0xff]
      %v3431 = vld [vmem:[%s3287 + $0x54] sm:$0xff]
      %s3432 = sadd.s32 %s2612, 6144
      %s3433 = scalar_lea.vmem [#allocation7], %s3432
      %v3434 = vld [vmem:[%s3433] sm:$0xff]
      %v3435 = vld [vmem:[%s3433 + $0x8] sm:$0xff]
      %v3436 = vld [vmem:[%s3433 + $0x10] sm:$0xff]
      %v3437 = vld [vmem:[%s3433 + $0x18] sm:$0xff]
      %v3438 = vld [vmem:[%s3433 + $0x20] sm:$0xff]
      %v3439 = vld [vmem:[%s3433 + $0x28] sm:$0xff]
      %v3440 = vld [vmem:[%s3433 + $0x30] sm:$0xff]
      %v3441 = vld [vmem:[%s3433 + $0x38] sm:$0xff]
      %v3442 = vmul.f32 %v3424, %v3434
      %v3443 = vmul.f32 %v3425, %v3435
      %v3444 = vmul.f32 %v3426, %v3436
      %v3445 = vmul.f32 %v3427, %v3437
      %v3446 = vmul.f32 %v3428, %v3438
      %v3447 = vmul.f32 %v3429, %v3439
      %v3448 = vmul.f32 %v3430, %v3440
      %v3449 = vmul.f32 %v3431, %v3441
      %v3450 = vadd.f32 %v3416, %v3442
      %v3451 = vadd.f32 %v3417, %v3443
      %v3452 = vadd.f32 %v3418, %v3444
      %v3453 = vadd.f32 %v3419, %v3445
      %v3454 = vadd.f32 %v3420, %v3446
      %v3455 = vadd.f32 %v3421, %v3447
      %v3456 = vadd.f32 %v3422, %v3448
      %v3457 = vadd.f32 %v3423, %v3449
      %s3458 = scalar_lea.vmem [#allocation2], %s2602
      %3459 = vst [vmem:[%s3458] sm:$0xff] %v3450
      %3460 = vst [vmem:[%s3458 + $0x8] sm:$0xff] %v3451
      %3461 = vst [vmem:[%s3458 + $0x18] sm:$0xff] %v3452
      %3462 = vst [vmem:[%s3458 + $0x20] sm:$0xff] %v3453
      %3463 = vst [vmem:[%s3458 + $0x30] sm:$0xff] %v3454
      %3464 = vst [vmem:[%s3458 + $0x38] sm:$0xff] %v3455
      %3465 = vst [vmem:[%s3458 + $0x48] sm:$0xff] %v3456
      %3466 = vst [vmem:[%s3458 + $0x50] sm:$0xff] %v3457
    $region52: #{_lambda_.1} parent=1 // loop_footer
      %s2600 = sadd.s32 1, %s2596
    $region53: #{_lambda_.1} parent=1 // loop_footer_branch
      %2595 = sbr.rel target = $region49
    $region54: #{_lambda_.1} parent=1 // loop_exit
      _
    loop: start=0, step=1, limit=3
    $region55: #{_lambda_.1} parent=1 // loop_pre_header
      _
    $region56: #{_lambda_.1} parent=1 // loop_header
      %s3468 = sphi 0, %s3472
      %p3469 = scmp.ge.s32.totalorder %s3468, 3
    $region57: #{_lambda_.1} parent=1 // loop_header_branch
      %3471 = sbr.rel (%p3469) target = $region61
    $region58: #{_lambda_.1} parent=1 // loop_body
      %s3473 = smul.u32 %s3468, 4
      %s3474 = smul.u32 %s3473, 24
      %s3475 = scalar_lea.vmem [#allocation2], %s3474
      %v3476 = vld [vmem:[%s3475] sm:$0xff]
      %v3477 = vld [vmem:[%s3475 + $0x8] sm:$0xf]
      %v3478 = vld [vmem:[%s3475 + $0x18] sm:$0xff]
      %v3479 = vld [vmem:[%s3475 + $0x20] sm:$0xf]
      %v3480 = vld [vmem:[%s3475 + $0x30] sm:$0xff]
      %v3481 = vld [vmem:[%s3475 + $0x38] sm:$0xf]
      %v3482 = vld [vmem:[%s3475 + $0x48] sm:$0xff]
      %v3483 = vld [vmem:[%s3475 + $0x50] sm:$0xf]
      %s3484 = smul.u32 %s3473, 16
      %s3485 = scalar_lea.vmem %s4, %s3484
      %v3486 = vld [vmem:[%s3485] sm:$0xff]
      %v3487 = vld [vmem:[%s3485 + $0x8] sm:$0xf]
      %v3488 = vld [vmem:[%s3485 + $0x10] sm:$0xff]
      %v3489 = vld [vmem:[%s3485 + $0x18] sm:$0xf]
      %v3490 = vld [vmem:[%s3485 + $0x20] sm:$0xff]
      %v3491 = vld [vmem:[%s3485 + $0x28] sm:$0xf]
      %v3492 = vld [vmem:[%s3485 + $0x30] sm:$0xff]
      %v3493 = vld [vmem:[%s3485 + $0x38] sm:$0xf]
      %v3494 = vmul.f32 %v3476, %v3486
      %v3495 = vmul.f32 %v3477, %v3487
      %v3496 = vmul.f32 %v3478, %v3488
      %v3497 = vmul.f32 %v3479, %v3489
      %v3498 = vmul.f32 %v3480, %v3490
      %v3499 = vmul.f32 %v3481, %v3491
      %v3500 = vmul.f32 %v3482, %v3492
      %v3501 = vmul.f32 %v3483, %v3493
      %v3502 = vld [vmem:[%s3475 + $0x1] sm:$0xff]
      %v3503 = vld [vmem:[%s3475 + $0x9] sm:$0xf]
      %v3504 = vld [vmem:[%s3475 + $0x19] sm:$0xff]
      %v3505 = vld [vmem:[%s3475 + $0x21] sm:$0xf]
      %v3506 = vld [vmem:[%s3475 + $0x31] sm:$0xff]
      %v3507 = vld [vmem:[%s3475 + $0x39] sm:$0xf]
      %v3508 = vld [vmem:[%s3475 + $0x49] sm:$0xff]
      %v3509 = vld [vmem:[%s3475 + $0x51] sm:$0xf]
      %s3510 = sadd.s32 %s3484, 192
      %s3511 = scalar_lea.vmem %s4, %s3510
      %v3512 = vld [vmem:[%s3511] sm:$0xff]
      %v3513 = vld [vmem:[%s3511 + $0x8] sm:$0xf]
      %v3514 = vld [vmem:[%s3511 + $0x10] sm:$0xff]
      %v3515 = vld [vmem:[%s3511 + $0x18] sm:$0xf]
      %v3516 = vld [vmem:[%s3511 + $0x20] sm:$0xff]
      %v3517 = vld [vmem:[%s3511 + $0x28] sm:$0xf]
      %v3518 = vld [vmem:[%s3511 + $0x30] sm:$0xff]
      %v3519 = vld [vmem:[%s3511 + $0x38] sm:$0xf]
      %v3520 = vmul.f32 %v3502, %v3512
      %v3521 = vmul.f32 %v3503, %v3513
      %v3522 = vmul.f32 %v3504, %v3514
      %v3523 = vmul.f32 %v3505, %v3515
      %v3524 = vmul.f32 %v3506, %v3516
      %v3525 = vmul.f32 %v3507, %v3517
      %v3526 = vmul.f32 %v3508, %v3518
      %v3527 = vmul.f32 %v3509, %v3519
      %v3528 = vadd.f32 %v3494, %v3520
      %v3529 = vadd.f32 %v3495, %v3521
      %v3530 = vadd.f32 %v3496, %v3522
      %v3531 = vadd.f32 %v3497, %v3523
      %v3532 = vadd.f32 %v3498, %v3524
      %v3533 = vadd.f32 %v3499, %v3525
      %v3534 = vadd.f32 %v3500, %v3526
      %v3535 = vadd.f32 %v3501, %v3527
      %v3536 = vld [vmem:[%s3475 + $0x2] sm:$0xff]
      %v3537 = vld [vmem:[%s3475 + $0xa] sm:$0xf]
      %v3538 = vld [vmem:[%s3475 + $0x1a] sm:$0xff]
      %v3539 = vld [vmem:[%s3475 + $0x22] sm:$0xf]
      %v3540 = vld [vmem:[%s3475 + $0x32] sm:$0xff]
      %v3541 = vld [vmem:[%s3475 + $0x3a] sm:$0xf]
      %v3542 = vld [vmem:[%s3475 + $0x4a] sm:$0xff]
      %v3543 = vld [vmem:[%s3475 + $0x52] sm:$0xf]
      %s3544 = sadd.s32 %s3484, 384
      %s3545 = scalar_lea.vmem %s4, %s3544
      %v3546 = vld [vmem:[%s3545] sm:$0xff]
      %v3547 = vld [vmem:[%s3545 + $0x8] sm:$0xf]
      %v3548 = vld [vmem:[%s3545 + $0x10] sm:$0xff]
      %v3549 = vld [vmem:[%s3545 + $0x18] sm:$0xf]
      %v3550 = vld [vmem:[%s3545 + $0x20] sm:$0xff]
      %v3551 = vld [vmem:[%s3545 + $0x28] sm:$0xf]
      %v3552 = vld [vmem:[%s3545 + $0x30] sm:$0xff]
      %v3553 = vld [vmem:[%s3545 + $0x38] sm:$0xf]
      %v3554 = vmul.f32 %v3536, %v3546
      %v3555 = vmul.f32 %v3537, %v3547
      %v3556 = vmul.f32 %v3538, %v3548
      %v3557 = vmul.f32 %v3539, %v3549
      %v3558 = vmul.f32 %v3540, %v3550
      %v3559 = vmul.f32 %v3541, %v3551
      %v3560 = vmul.f32 %v3542, %v3552
      %v3561 = vmul.f32 %v3543, %v3553
      %v3562 = vadd.f32 %v3528, %v3554
      %v3563 = vadd.f32 %v3529, %v3555
      %v3564 = vadd.f32 %v3530, %v3556
      %v3565 = vadd.f32 %v3531, %v3557
      %v3566 = vadd.f32 %v3532, %v3558
      %v3567 = vadd.f32 %v3533, %v3559
      %v3568 = vadd.f32 %v3534, %v3560
      %v3569 = vadd.f32 %v3535, %v3561
      %v3570 = vld [vmem:[%s3475 + $0x3] sm:$0xff]
      %v3571 = vld [vmem:[%s3475 + $0xb] sm:$0xf]
      %v3572 = vld [vmem:[%s3475 + $0x1b] sm:$0xff]
      %v3573 = vld [vmem:[%s3475 + $0x23] sm:$0xf]
      %v3574 = vld [vmem:[%s3475 + $0x33] sm:$0xff]
      %v3575 = vld [vmem:[%s3475 + $0x3b] sm:$0xf]
      %v3576 = vld [vmem:[%s3475 + $0x4b] sm:$0xff]
      %v3577 = vld [vmem:[%s3475 + $0x53] sm:$0xf]
      %s3578 = sadd.s32 %s3484, 576
      %s3579 = scalar_lea.vmem %s4, %s3578
      %v3580 = vld [vmem:[%s3579] sm:$0xff]
      %v3581 = vld [vmem:[%s3579 + $0x8] sm:$0xf]
      %v3582 = vld [vmem:[%s3579 + $0x10] sm:$0xff]
      %v3583 = vld [vmem:[%s3579 + $0x18] sm:$0xf]
      %v3584 = vld [vmem:[%s3579 + $0x20] sm:$0xff]
      %v3585 = vld [vmem:[%s3579 + $0x28] sm:$0xf]
      %v3586 = vld [vmem:[%s3579 + $0x30] sm:$0xff]
      %v3587 = vld [vmem:[%s3579 + $0x38] sm:$0xf]
      %v3588 = vmul.f32 %v3570, %v3580
      %v3589 = vmul.f32 %v3571, %v3581
      %v3590 = vmul.f32 %v3572, %v3582
      %v3591 = vmul.f32 %v3573, %v3583
      %v3592 = vmul.f32 %v3574, %v3584
      %v3593 = vmul.f32 %v3575, %v3585
      %v3594 = vmul.f32 %v3576, %v3586
      %v3595 = vmul.f32 %v3577, %v3587
      %v3596 = vadd.f32 %v3562, %v3588
      %v3597 = vadd.f32 %v3563, %v3589
      %v3598 = vadd.f32 %v3564, %v3590
      %v3599 = vadd.f32 %v3565, %v3591
      %v3600 = vadd.f32 %v3566, %v3592
      %v3601 = vadd.f32 %v3567, %v3593
      %v3602 = vadd.f32 %v3568, %v3594
      %v3603 = vadd.f32 %v3569, %v3595
      %v3604 = vld [vmem:[%s3475 + $0x4] sm:$0xff]
      %v3605 = vld [vmem:[%s3475 + $0xc] sm:$0xf]
      %v3606 = vld [vmem:[%s3475 + $0x1c] sm:$0xff]
      %v3607 = vld [vmem:[%s3475 + $0x24] sm:$0xf]
      %v3608 = vld [vmem:[%s3475 + $0x34] sm:$0xff]
      %v3609 = vld [vmem:[%s3475 + $0x3c] sm:$0xf]
      %v3610 = vld [vmem:[%s3475 + $0x4c] sm:$0xff]
      %v3611 = vld [vmem:[%s3475 + $0x54] sm:$0xf]
      %s3612 = sadd.s32 %s3484, 768
      %s3613 = scalar_lea.vmem %s4, %s3612
      %v3614 = vld [vmem:[%s3613] sm:$0xff]
      %v3615 = vld [vmem:[%s3613 + $0x8] sm:$0xf]
      %v3616 = vld [vmem:[%s3613 + $0x10] sm:$0xff]
      %v3617 = vld [vmem:[%s3613 + $0x18] sm:$0xf]
      %v3618 = vld [vmem:[%s3613 + $0x20] sm:$0xff]
      %v3619 = vld [vmem:[%s3613 + $0x28] sm:$0xf]
      %v3620 = vld [vmem:[%s3613 + $0x30] sm:$0xff]
      %v3621 = vld [vmem:[%s3613 + $0x38] sm:$0xf]
      %v3622 = vmul.f32 %v3604, %v3614
      %v3623 = vmul.f32 %v3605, %v3615
      %v3624 = vmul.f32 %v3606, %v3616
      %v3625 = vmul.f32 %v3607, %v3617
      %v3626 = vmul.f32 %v3608, %v3618
      %v3627 = vmul.f32 %v3609, %v3619
      %v3628 = vmul.f32 %v3610, %v3620
      %v3629 = vmul.f32 %v3611, %v3621
      %v3630 = vadd.f32 %v3596, %v3622
      %v3631 = vadd.f32 %v3597, %v3623
      %v3632 = vadd.f32 %v3598, %v3624
      %v3633 = vadd.f32 %v3599, %v3625
      %v3634 = vadd.f32 %v3600, %v3626
      %v3635 = vadd.f32 %v3601, %v3627
      %v3636 = vadd.f32 %v3602, %v3628
      %v3637 = vadd.f32 %v3603, %v3629
      %s3638 = sadd.s32 %s3473, 1
      %s3639 = smul.u32 %s3638, 24
      %s3640 = scalar_lea.vmem [#allocation2], %s3639
      %v3641 = vld [vmem:[%s3640] sm:$0xff]
      %v3642 = vld [vmem:[%s3640 + $0x8] sm:$0xf]
      %v3643 = vld [vmem:[%s3640 + $0x18] sm:$0xff]
      %v3644 = vld [vmem:[%s3640 + $0x20] sm:$0xf]
      %v3645 = vld [vmem:[%s3640 + $0x30] sm:$0xff]
      %v3646 = vld [vmem:[%s3640 + $0x38] sm:$0xf]
      %v3647 = vld [vmem:[%s3640 + $0x48] sm:$0xff]
      %v3648 = vld [vmem:[%s3640 + $0x50] sm:$0xf]
      %s3649 = sadd.s32 %s3484, 960
      %s3650 = scalar_lea.vmem %s4, %s3649
      %v3651 = vld [vmem:[%s3650] sm:$0xff]
      %v3652 = vld [vmem:[%s3650 + $0x8] sm:$0xf]
      %v3653 = vld [vmem:[%s3650 + $0x10] sm:$0xff]
      %v3654 = vld [vmem:[%s3650 + $0x18] sm:$0xf]
      %v3655 = vld [vmem:[%s3650 + $0x20] sm:$0xff]
      %v3656 = vld [vmem:[%s3650 + $0x28] sm:$0xf]
      %v3657 = vld [vmem:[%s3650 + $0x30] sm:$0xff]
      %v3658 = vld [vmem:[%s3650 + $0x38] sm:$0xf]
      %v3659 = vmul.f32 %v3641, %v3651
      %v3660 = vmul.f32 %v3642, %v3652
      %v3661 = vmul.f32 %v3643, %v3653
      %v3662 = vmul.f32 %v3644, %v3654
      %v3663 = vmul.f32 %v3645, %v3655
      %v3664 = vmul.f32 %v3646, %v3656
      %v3665 = vmul.f32 %v3647, %v3657
      %v3666 = vmul.f32 %v3648, %v3658
      %v3667 = vadd.f32 %v3630, %v3659
      %v3668 = vadd.f32 %v3631, %v3660
      %v3669 = vadd.f32 %v3632, %v3661
      %v3670 = vadd.f32 %v3633, %v3662
      %v3671 = vadd.f32 %v3634, %v3663
      %v3672 = vadd.f32 %v3635, %v3664
      %v3673 = vadd.f32 %v3636, %v3665
      %v3674 = vadd.f32 %v3637, %v3666
      %v3675 = vld [vmem:[%s3640 + $0x1] sm:$0xff]
      %v3676 = vld [vmem:[%s3640 + $0x9] sm:$0xf]
      %v3677 = vld [vmem:[%s3640 + $0x19] sm:$0xff]
      %v3678 = vld [vmem:[%s3640 + $0x21] sm:$0xf]
      %v3679 = vld [vmem:[%s3640 + $0x31] sm:$0xff]
      %v3680 = vld [vmem:[%s3640 + $0x39] sm:$0xf]
      %v3681 = vld [vmem:[%s3640 + $0x49] sm:$0xff]
      %v3682 = vld [vmem:[%s3640 + $0x51] sm:$0xf]
      %s3683 = sadd.s32 %s3484, 1152
      %s3684 = scalar_lea.vmem %s4, %s3683
      %v3685 = vld [vmem:[%s3684] sm:$0xff]
      %v3686 = vld [vmem:[%s3684 + $0x8] sm:$0xf]
      %v3687 = vld [vmem:[%s3684 + $0x10] sm:$0xff]
      %v3688 = vld [vmem:[%s3684 + $0x18] sm:$0xf]
      %v3689 = vld [vmem:[%s3684 + $0x20] sm:$0xff]
      %v3690 = vld [vmem:[%s3684 + $0x28] sm:$0xf]
      %v3691 = vld [vmem:[%s3684 + $0x30] sm:$0xff]
      %v3692 = vld [vmem:[%s3684 + $0x38] sm:$0xf]
      %v3693 = vmul.f32 %v3675, %v3685
      %v3694 = vmul.f32 %v3676, %v3686
      %v3695 = vmul.f32 %v3677, %v3687
      %v3696 = vmul.f32 %v3678, %v3688
      %v3697 = vmul.f32 %v3679, %v3689
      %v3698 = vmul.f32 %v3680, %v3690
      %v3699 = vmul.f32 %v3681, %v3691
      %v3700 = vmul.f32 %v3682, %v3692
      %v3701 = vadd.f32 %v3667, %v3693
      %v3702 = vadd.f32 %v3668, %v3694
      %v3703 = vadd.f32 %v3669, %v3695
      %v3704 = vadd.f32 %v3670, %v3696
      %v3705 = vadd.f32 %v3671, %v3697
      %v3706 = vadd.f32 %v3672, %v3698
      %v3707 = vadd.f32 %v3673, %v3699
      %v3708 = vadd.f32 %v3674, %v3700
      %v3709 = vld [vmem:[%s3640 + $0x2] sm:$0xff]
      %v3710 = vld [vmem:[%s3640 + $0xa] sm:$0xf]
      %v3711 = vld [vmem:[%s3640 + $0x1a] sm:$0xff]
      %v3712 = vld [vmem:[%s3640 + $0x22] sm:$0xf]
      %v3713 = vld [vmem:[%s3640 + $0x32] sm:$0xff]
      %v3714 = vld [vmem:[%s3640 + $0x3a] sm:$0xf]
      %v3715 = vld [vmem:[%s3640 + $0x4a] sm:$0xff]
      %v3716 = vld [vmem:[%s3640 + $0x52] sm:$0xf]
      %s3717 = sadd.s32 %s3484, 1344
      %s3718 = scalar_lea.vmem %s4, %s3717
      %v3719 = vld [vmem:[%s3718] sm:$0xff]
      %v3720 = vld [vmem:[%s3718 + $0x8] sm:$0xf]
      %v3721 = vld [vmem:[%s3718 + $0x10] sm:$0xff]
      %v3722 = vld [vmem:[%s3718 + $0x18] sm:$0xf]
      %v3723 = vld [vmem:[%s3718 + $0x20] sm:$0xff]
      %v3724 = vld [vmem:[%s3718 + $0x28] sm:$0xf]
      %v3725 = vld [vmem:[%s3718 + $0x30] sm:$0xff]
      %v3726 = vld [vmem:[%s3718 + $0x38] sm:$0xf]
      %v3727 = vmul.f32 %v3709, %v3719
      %v3728 = vmul.f32 %v3710, %v3720
      %v3729 = vmul.f32 %v3711, %v3721
      %v3730 = vmul.f32 %v3712, %v3722
      %v3731 = vmul.f32 %v3713, %v3723
      %v3732 = vmul.f32 %v3714, %v3724
      %v3733 = vmul.f32 %v3715, %v3725
      %v3734 = vmul.f32 %v3716, %v3726
      %v3735 = vadd.f32 %v3701, %v3727
      %v3736 = vadd.f32 %v3702, %v3728
      %v3737 = vadd.f32 %v3703, %v3729
      %v3738 = vadd.f32 %v3704, %v3730
      %v3739 = vadd.f32 %v3705, %v3731
      %v3740 = vadd.f32 %v3706, %v3732
      %v3741 = vadd.f32 %v3707, %v3733
      %v3742 = vadd.f32 %v3708, %v3734
      %v3743 = vld [vmem:[%s3640 + $0x3] sm:$0xff]
      %v3744 = vld [vmem:[%s3640 + $0xb] sm:$0xf]
      %v3745 = vld [vmem:[%s3640 + $0x1b] sm:$0xff]
      %v3746 = vld [vmem:[%s3640 + $0x23] sm:$0xf]
      %v3747 = vld [vmem:[%s3640 + $0x33] sm:$0xff]
      %v3748 = vld [vmem:[%s3640 + $0x3b] sm:$0xf]
      %v3749 = vld [vmem:[%s3640 + $0x4b] sm:$0xff]
      %v3750 = vld [vmem:[%s3640 + $0x53] sm:$0xf]
      %s3751 = sadd.s32 %s3484, 1536
      %s3752 = scalar_lea.vmem %s4, %s3751
      %v3753 = vld [vmem:[%s3752] sm:$0xff]
      %v3754 = vld [vmem:[%s3752 + $0x8] sm:$0xf]
      %v3755 = vld [vmem:[%s3752 + $0x10] sm:$0xff]
      %v3756 = vld [vmem:[%s3752 + $0x18] sm:$0xf]
      %v3757 = vld [vmem:[%s3752 + $0x20] sm:$0xff]
      %v3758 = vld [vmem:[%s3752 + $0x28] sm:$0xf]
      %v3759 = vld [vmem:[%s3752 + $0x30] sm:$0xff]
      %v3760 = vld [vmem:[%s3752 + $0x38] sm:$0xf]
      %v3761 = vmul.f32 %v3743, %v3753
      %v3762 = vmul.f32 %v3744, %v3754
      %v3763 = vmul.f32 %v3745, %v3755
      %v3764 = vmul.f32 %v3746, %v3756
      %v3765 = vmul.f32 %v3747, %v3757
      %v3766 = vmul.f32 %v3748, %v3758
      %v3767 = vmul.f32 %v3749, %v3759
      %v3768 = vmul.f32 %v3750, %v3760
      %v3769 = vadd.f32 %v3735, %v3761
      %v3770 = vadd.f32 %v3736, %v3762
      %v3771 = vadd.f32 %v3737, %v3763
      %v3772 = vadd.f32 %v3738, %v3764
      %v3773 = vadd.f32 %v3739, %v3765
      %v3774 = vadd.f32 %v3740, %v3766
      %v3775 = vadd.f32 %v3741, %v3767
      %v3776 = vadd.f32 %v3742, %v3768
      %v3777 = vld [vmem:[%s3640 + $0x4] sm:$0xff]
      %v3778 = vld [vmem:[%s3640 + $0xc] sm:$0xf]
      %v3779 = vld [vmem:[%s3640 + $0x1c] sm:$0xff]
      %v3780 = vld [vmem:[%s3640 + $0x24] sm:$0xf]
      %v3781 = vld [vmem:[%s3640 + $0x34] sm:$0xff]
      %v3782 = vld [vmem:[%s3640 + $0x3c] sm:$0xf]
      %v3783 = vld [vmem:[%s3640 + $0x4c] sm:$0xff]
      %v3784 = vld [vmem:[%s3640 + $0x54] sm:$0xf]
      %s3785 = sadd.s32 %s3484, 1728
      %s3786 = scalar_lea.vmem %s4, %s3785
      %v3787 = vld [vmem:[%s3786] sm:$0xff]
      %v3788 = vld [vmem:[%s3786 + $0x8] sm:$0xf]
      %v3789 = vld [vmem:[%s3786 + $0x10] sm:$0xff]
      %v3790 = vld [vmem:[%s3786 + $0x18] sm:$0xf]
      %v3791 = vld [vmem:[%s3786 + $0x20] sm:$0xff]
      %v3792 = vld [vmem:[%s3786 + $0x28] sm:$0xf]
      %v3793 = vld [vmem:[%s3786 + $0x30] sm:$0xff]
      %v3794 = vld [vmem:[%s3786 + $0x38] sm:$0xf]
      %v3795 = vmul.f32 %v3777, %v3787
      %v3796 = vmul.f32 %v3778, %v3788
      %v3797 = vmul.f32 %v3779, %v3789
      %v3798 = vmul.f32 %v3780, %v3790
      %v3799 = vmul.f32 %v3781, %v3791
      %v3800 = vmul.f32 %v3782, %v3792
      %v3801 = vmul.f32 %v3783, %v3793
      %v3802 = vmul.f32 %v3784, %v3794
      %v3803 = vadd.f32 %v3769, %v3795
      %v3804 = vadd.f32 %v3770, %v3796
      %v3805 = vadd.f32 %v3771, %v3797
      %v3806 = vadd.f32 %v3772, %v3798
      %v3807 = vadd.f32 %v3773, %v3799
      %v3808 = vadd.f32 %v3774, %v3800
      %v3809 = vadd.f32 %v3775, %v3801
      %v3810 = vadd.f32 %v3776, %v3802
      %s3811 = sadd.s32 %s3473, 2
      %s3812 = smul.u32 %s3811, 24
      %s3813 = scalar_lea.vmem [#allocation2], %s3812
      %v3814 = vld [vmem:[%s3813] sm:$0xff]
      %v3815 = vld [vmem:[%s3813 + $0x8] sm:$0xf]
      %v3816 = vld [vmem:[%s3813 + $0x18] sm:$0xff]
      %v3817 = vld [vmem:[%s3813 + $0x20] sm:$0xf]
      %v3818 = vld [vmem:[%s3813 + $0x30] sm:$0xff]
      %v3819 = vld [vmem:[%s3813 + $0x38] sm:$0xf]
      %v3820 = vld [vmem:[%s3813 + $0x48] sm:$0xff]
      %v3821 = vld [vmem:[%s3813 + $0x50] sm:$0xf]
      %s3822 = sadd.s32 %s3484, 1920
      %s3823 = scalar_lea.vmem %s4, %s3822
      %v3824 = vld [vmem:[%s3823] sm:$0xff]
      %v3825 = vld [vmem:[%s3823 + $0x8] sm:$0xf]
      %v3826 = vld [vmem:[%s3823 + $0x10] sm:$0xff]
      %v3827 = vld [vmem:[%s3823 + $0x18] sm:$0xf]
      %v3828 = vld [vmem:[%s3823 + $0x20] sm:$0xff]
      %v3829 = vld [vmem:[%s3823 + $0x28] sm:$0xf]
      %v3830 = vld [vmem:[%s3823 + $0x30] sm:$0xff]
      %v3831 = vld [vmem:[%s3823 + $0x38] sm:$0xf]
      %v3832 = vmul.f32 %v3814, %v3824
      %v3833 = vmul.f32 %v3815, %v3825
      %v3834 = vmul.f32 %v3816, %v3826
      %v3835 = vmul.f32 %v3817, %v3827
      %v3836 = vmul.f32 %v3818, %v3828
      %v3837 = vmul.f32 %v3819, %v3829
      %v3838 = vmul.f32 %v3820, %v3830
      %v3839 = vmul.f32 %v3821, %v3831
      %v3840 = vadd.f32 %v3803, %v3832
      %v3841 = vadd.f32 %v3804, %v3833
      %v3842 = vadd.f32 %v3805, %v3834
      %v3843 = vadd.f32 %v3806, %v3835
      %v3844 = vadd.f32 %v3807, %v3836
      %v3845 = vadd.f32 %v3808, %v3837
      %v3846 = vadd.f32 %v3809, %v3838
      %v3847 = vadd.f32 %v3810, %v3839
      %v3848 = vld [vmem:[%s3813 + $0x1] sm:$0xff]
      %v3849 = vld [vmem:[%s3813 + $0x9] sm:$0xf]
      %v3850 = vld [vmem:[%s3813 + $0x19] sm:$0xff]
      %v3851 = vld [vmem:[%s3813 + $0x21] sm:$0xf]
      %v3852 = vld [vmem:[%s3813 + $0x31] sm:$0xff]
      %v3853 = vld [vmem:[%s3813 + $0x39] sm:$0xf]
      %v3854 = vld [vmem:[%s3813 + $0x49] sm:$0xff]
      %v3855 = vld [vmem:[%s3813 + $0x51] sm:$0xf]
      %s3856 = sadd.s32 %s3484, 2112
      %s3857 = scalar_lea.vmem %s4, %s3856
      %v3858 = vld [vmem:[%s3857] sm:$0xff]
      %v3859 = vld [vmem:[%s3857 + $0x8] sm:$0xf]
      %v3860 = vld [vmem:[%s3857 + $0x10] sm:$0xff]
      %v3861 = vld [vmem:[%s3857 + $0x18] sm:$0xf]
      %v3862 = vld [vmem:[%s3857 + $0x20] sm:$0xff]
      %v3863 = vld [vmem:[%s3857 + $0x28] sm:$0xf]
      %v3864 = vld [vmem:[%s3857 + $0x30] sm:$0xff]
      %v3865 = vld [vmem:[%s3857 + $0x38] sm:$0xf]
      %v3866 = vmul.f32 %v3848, %v3858
      %v3867 = vmul.f32 %v3849, %v3859
      %v3868 = vmul.f32 %v3850, %v3860
      %v3869 = vmul.f32 %v3851, %v3861
      %v3870 = vmul.f32 %v3852, %v3862
      %v3871 = vmul.f32 %v3853, %v3863
      %v3872 = vmul.f32 %v3854, %v3864
      %v3873 = vmul.f32 %v3855, %v3865
      %v3874 = vadd.f32 %v3840, %v3866
      %v3875 = vadd.f32 %v3841, %v3867
      %v3876 = vadd.f32 %v3842, %v3868
      %v3877 = vadd.f32 %v3843, %v3869
      %v3878 = vadd.f32 %v3844, %v3870
      %v3879 = vadd.f32 %v3845, %v3871
      %v3880 = vadd.f32 %v3846, %v3872
      %v3881 = vadd.f32 %v3847, %v3873
      %v3882 = vld [vmem:[%s3813 + $0x2] sm:$0xff]
      %v3883 = vld [vmem:[%s3813 + $0xa] sm:$0xf]
      %v3884 = vld [vmem:[%s3813 + $0x1a] sm:$0xff]
      %v3885 = vld [vmem:[%s3813 + $0x22] sm:$0xf]
      %v3886 = vld [vmem:[%s3813 + $0x32] sm:$0xff]
      %v3887 = vld [vmem:[%s3813 + $0x3a] sm:$0xf]
      %v3888 = vld [vmem:[%s3813 + $0x4a] sm:$0xff]
      %v3889 = vld [vmem:[%s3813 + $0x52] sm:$0xf]
      %s3890 = sadd.s32 %s3484, 2304
      %s3891 = scalar_lea.vmem %s4, %s3890
      %v3892 = vld [vmem:[%s3891] sm:$0xff]
      %v3893 = vld [vmem:[%s3891 + $0x8] sm:$0xf]
      %v3894 = vld [vmem:[%s3891 + $0x10] sm:$0xff]
      %v3895 = vld [vmem:[%s3891 + $0x18] sm:$0xf]
      %v3896 = vld [vmem:[%s3891 + $0x20] sm:$0xff]
      %v3897 = vld [vmem:[%s3891 + $0x28] sm:$0xf]
      %v3898 = vld [vmem:[%s3891 + $0x30] sm:$0xff]
      %v3899 = vld [vmem:[%s3891 + $0x38] sm:$0xf]
      %v3900 = vmul.f32 %v3882, %v3892
      %v3901 = vmul.f32 %v3883, %v3893
      %v3902 = vmul.f32 %v3884, %v3894
      %v3903 = vmul.f32 %v3885, %v3895
      %v3904 = vmul.f32 %v3886, %v3896
      %v3905 = vmul.f32 %v3887, %v3897
      %v3906 = vmul.f32 %v3888, %v3898
      %v3907 = vmul.f32 %v3889, %v3899
      %v3908 = vadd.f32 %v3874, %v3900
      %v3909 = vadd.f32 %v3875, %v3901
      %v3910 = vadd.f32 %v3876, %v3902
      %v3911 = vadd.f32 %v3877, %v3903
      %v3912 = vadd.f32 %v3878, %v3904
      %v3913 = vadd.f32 %v3879, %v3905
      %v3914 = vadd.f32 %v3880, %v3906
      %v3915 = vadd.f32 %v3881, %v3907
      %v3916 = vld [vmem:[%s3813 + $0x3] sm:$0xff]
      %v3917 = vld [vmem:[%s3813 + $0xb] sm:$0xf]
      %v3918 = vld [vmem:[%s3813 + $0x1b] sm:$0xff]
      %v3919 = vld [vmem:[%s3813 + $0x23] sm:$0xf]
      %v3920 = vld [vmem:[%s3813 + $0x33] sm:$0xff]
      %v3921 = vld [vmem:[%s3813 + $0x3b] sm:$0xf]
      %v3922 = vld [vmem:[%s3813 + $0x4b] sm:$0xff]
      %v3923 = vld [vmem:[%s3813 + $0x53] sm:$0xf]
      %s3924 = sadd.s32 %s3484, 2496
      %s3925 = scalar_lea.vmem %s4, %s3924
      %v3926 = vld [vmem:[%s3925] sm:$0xff]
      %v3927 = vld [vmem:[%s3925 + $0x8] sm:$0xf]
      %v3928 = vld [vmem:[%s3925 + $0x10] sm:$0xff]
      %v3929 = vld [vmem:[%s3925 + $0x18] sm:$0xf]
      %v3930 = vld [vmem:[%s3925 + $0x20] sm:$0xff]
      %v3931 = vld [vmem:[%s3925 + $0x28] sm:$0xf]
      %v3932 = vld [vmem:[%s3925 + $0x30] sm:$0xff]
      %v3933 = vld [vmem:[%s3925 + $0x38] sm:$0xf]
      %v3934 = vmul.f32 %v3916, %v3926
      %v3935 = vmul.f32 %v3917, %v3927
      %v3936 = vmul.f32 %v3918, %v3928
      %v3937 = vmul.f32 %v3919, %v3929
      %v3938 = vmul.f32 %v3920, %v3930
      %v3939 = vmul.f32 %v3921, %v3931
      %v3940 = vmul.f32 %v3922, %v3932
      %v3941 = vmul.f32 %v3923, %v3933
      %v3942 = vadd.f32 %v3908, %v3934
      %v3943 = vadd.f32 %v3909, %v3935
      %v3944 = vadd.f32 %v3910, %v3936
      %v3945 = vadd.f32 %v3911, %v3937
      %v3946 = vadd.f32 %v3912, %v3938
      %v3947 = vadd.f32 %v3913, %v3939
      %v3948 = vadd.f32 %v3914, %v3940
      %v3949 = vadd.f32 %v3915, %v3941
      %v3950 = vld [vmem:[%s3813 + $0x4] sm:$0xff]
      %v3951 = vld [vmem:[%s3813 + $0xc] sm:$0xf]
      %v3952 = vld [vmem:[%s3813 + $0x1c] sm:$0xff]
      %v3953 = vld [vmem:[%s3813 + $0x24] sm:$0xf]
      %v3954 = vld [vmem:[%s3813 + $0x34] sm:$0xff]
      %v3955 = vld [vmem:[%s3813 + $0x3c] sm:$0xf]
      %v3956 = vld [vmem:[%s3813 + $0x4c] sm:$0xff]
      %v3957 = vld [vmem:[%s3813 + $0x54] sm:$0xf]
      %s3958 = sadd.s32 %s3484, 2688
      %s3959 = scalar_lea.vmem %s4, %s3958
      %v3960 = vld [vmem:[%s3959] sm:$0xff]
      %v3961 = vld [vmem:[%s3959 + $0x8] sm:$0xf]
      %v3962 = vld [vmem:[%s3959 + $0x10] sm:$0xff]
      %v3963 = vld [vmem:[%s3959 + $0x18] sm:$0xf]
      %v3964 = vld [vmem:[%s3959 + $0x20] sm:$0xff]
      %v3965 = vld [vmem:[%s3959 + $0x28] sm:$0xf]
      %v3966 = vld [vmem:[%s3959 + $0x30] sm:$0xff]
      %v3967 = vld [vmem:[%s3959 + $0x38] sm:$0xf]
      %v3968 = vmul.f32 %v3950, %v3960
      %v3969 = vmul.f32 %v3951, %v3961
      %v3970 = vmul.f32 %v3952, %v3962
      %v3971 = vmul.f32 %v3953, %v3963
      %v3972 = vmul.f32 %v3954, %v3964
      %v3973 = vmul.f32 %v3955, %v3965
      %v3974 = vmul.f32 %v3956, %v3966
      %v3975 = vmul.f32 %v3957, %v3967
      %v3976 = vadd.f32 %v3942, %v3968
      %v3977 = vadd.f32 %v3943, %v3969
      %v3978 = vadd.f32 %v3944, %v3970
      %v3979 = vadd.f32 %v3945, %v3971
      %v3980 = vadd.f32 %v3946, %v3972
      %v3981 = vadd.f32 %v3947, %v3973
      %v3982 = vadd.f32 %v3948, %v3974
      %v3983 = vadd.f32 %v3949, %v3975
      %s3984 = sadd.s32 %s3473, 3
      %s3985 = smul.u32 %s3984, 24
      %s3986 = scalar_lea.vmem [#allocation2], %s3985
      %v3987 = vld [vmem:[%s3986] sm:$0xff]
      %v3988 = vld [vmem:[%s3986 + $0x8] sm:$0xf]
      %v3989 = vld [vmem:[%s3986 + $0x18] sm:$0xff]
      %v3990 = vld [vmem:[%s3986 + $0x20] sm:$0xf]
      %v3991 = vld [vmem:[%s3986 + $0x30] sm:$0xff]
      %v3992 = vld [vmem:[%s3986 + $0x38] sm:$0xf]
      %v3993 = vld [vmem:[%s3986 + $0x48] sm:$0xff]
      %v3994 = vld [vmem:[%s3986 + $0x50] sm:$0xf]
      %s3995 = sadd.s32 %s3484, 2880
      %s3996 = scalar_lea.vmem %s4, %s3995
      %v3997 = vld [vmem:[%s3996] sm:$0xff]
      %v3998 = vld [vmem:[%s3996 + $0x8] sm:$0xf]
      %v3999 = vld [vmem:[%s3996 + $0x10] sm:$0xff]
      %v4000 = vld [vmem:[%s3996 + $0x18] sm:$0xf]
      %v4001 = vld [vmem:[%s3996 + $0x20] sm:$0xff]
      %v4002 = vld [vmem:[%s3996 + $0x28] sm:$0xf]
      %v4003 = vld [vmem:[%s3996 + $0x30] sm:$0xff]
      %v4004 = vld [vmem:[%s3996 + $0x38] sm:$0xf]
      %v4005 = vmul.f32 %v3987, %v3997
      %v4006 = vmul.f32 %v3988, %v3998
      %v4007 = vmul.f32 %v3989, %v3999
      %v4008 = vmul.f32 %v3990, %v4000
      %v4009 = vmul.f32 %v3991, %v4001
      %v4010 = vmul.f32 %v3992, %v4002
      %v4011 = vmul.f32 %v3993, %v4003
      %v4012 = vmul.f32 %v3994, %v4004
      %v4013 = vadd.f32 %v3976, %v4005
      %v4014 = vadd.f32 %v3977, %v4006
      %v4015 = vadd.f32 %v3978, %v4007
      %v4016 = vadd.f32 %v3979, %v4008
      %v4017 = vadd.f32 %v3980, %v4009
      %v4018 = vadd.f32 %v3981, %v4010
      %v4019 = vadd.f32 %v3982, %v4011
      %v4020 = vadd.f32 %v3983, %v4012
      %v4021 = vld [vmem:[%s3986 + $0x1] sm:$0xff]
      %v4022 = vld [vmem:[%s3986 + $0x9] sm:$0xf]
      %v4023 = vld [vmem:[%s3986 + $0x19] sm:$0xff]
      %v4024 = vld [vmem:[%s3986 + $0x21] sm:$0xf]
      %v4025 = vld [vmem:[%s3986 + $0x31] sm:$0xff]
      %v4026 = vld [vmem:[%s3986 + $0x39] sm:$0xf]
      %v4027 = vld [vmem:[%s3986 + $0x49] sm:$0xff]
      %v4028 = vld [vmem:[%s3986 + $0x51] sm:$0xf]
      %s4029 = sadd.s32 %s3484, 3072
      %s4030 = scalar_lea.vmem %s4, %s4029
      %v4031 = vld [vmem:[%s4030] sm:$0xff]
      %v4032 = vld [vmem:[%s4030 + $0x8] sm:$0xf]
      %v4033 = vld [vmem:[%s4030 + $0x10] sm:$0xff]
      %v4034 = vld [vmem:[%s4030 + $0x18] sm:$0xf]
      %v4035 = vld [vmem:[%s4030 + $0x20] sm:$0xff]
      %v4036 = vld [vmem:[%s4030 + $0x28] sm:$0xf]
      %v4037 = vld [vmem:[%s4030 + $0x30] sm:$0xff]
      %v4038 = vld [vmem:[%s4030 + $0x38] sm:$0xf]
      %v4039 = vmul.f32 %v4021, %v4031
      %v4040 = vmul.f32 %v4022, %v4032
      %v4041 = vmul.f32 %v4023, %v4033
      %v4042 = vmul.f32 %v4024, %v4034
      %v4043 = vmul.f32 %v4025, %v4035
      %v4044 = vmul.f32 %v4026, %v4036
      %v4045 = vmul.f32 %v4027, %v4037
      %v4046 = vmul.f32 %v4028, %v4038
      %v4047 = vadd.f32 %v4013, %v4039
      %v4048 = vadd.f32 %v4014, %v4040
      %v4049 = vadd.f32 %v4015, %v4041
      %v4050 = vadd.f32 %v4016, %v4042
      %v4051 = vadd.f32 %v4017, %v4043
      %v4052 = vadd.f32 %v4018, %v4044
      %v4053 = vadd.f32 %v4019, %v4045
      %v4054 = vadd.f32 %v4020, %v4046
      %v4055 = vld [vmem:[%s3986 + $0x2] sm:$0xff]
      %v4056 = vld [vmem:[%s3986 + $0xa] sm:$0xf]
      %v4057 = vld [vmem:[%s3986 + $0x1a] sm:$0xff]
      %v4058 = vld [vmem:[%s3986 + $0x22] sm:$0xf]
      %v4059 = vld [vmem:[%s3986 + $0x32] sm:$0xff]
      %v4060 = vld [vmem:[%s3986 + $0x3a] sm:$0xf]
      %v4061 = vld [vmem:[%s3986 + $0x4a] sm:$0xff]
      %v4062 = vld [vmem:[%s3986 + $0x52] sm:$0xf]
      %s4063 = sadd.s32 %s3484, 3264
      %s4064 = scalar_lea.vmem %s4, %s4063
      %v4065 = vld [vmem:[%s4064] sm:$0xff]
      %v4066 = vld [vmem:[%s4064 + $0x8] sm:$0xf]
      %v4067 = vld [vmem:[%s4064 + $0x10] sm:$0xff]
      %v4068 = vld [vmem:[%s4064 + $0x18] sm:$0xf]
      %v4069 = vld [vmem:[%s4064 + $0x20] sm:$0xff]
      %v4070 = vld [vmem:[%s4064 + $0x28] sm:$0xf]
      %v4071 = vld [vmem:[%s4064 + $0x30] sm:$0xff]
      %v4072 = vld [vmem:[%s4064 + $0x38] sm:$0xf]
      %v4073 = vmul.f32 %v4055, %v4065
      %v4074 = vmul.f32 %v4056, %v4066
      %v4075 = vmul.f32 %v4057, %v4067
      %v4076 = vmul.f32 %v4058, %v4068
      %v4077 = vmul.f32 %v4059, %v4069
      %v4078 = vmul.f32 %v4060, %v4070
      %v4079 = vmul.f32 %v4061, %v4071
      %v4080 = vmul.f32 %v4062, %v4072
      %v4081 = vadd.f32 %v4047, %v4073
      %v4082 = vadd.f32 %v4048, %v4074
      %v4083 = vadd.f32 %v4049, %v4075
      %v4084 = vadd.f32 %v4050, %v4076
      %v4085 = vadd.f32 %v4051, %v4077
      %v4086 = vadd.f32 %v4052, %v4078
      %v4087 = vadd.f32 %v4053, %v4079
      %v4088 = vadd.f32 %v4054, %v4080
      %v4089 = vld [vmem:[%s3986 + $0x3] sm:$0xff]
      %v4090 = vld [vmem:[%s3986 + $0xb] sm:$0xf]
      %v4091 = vld [vmem:[%s3986 + $0x1b] sm:$0xff]
      %v4092 = vld [vmem:[%s3986 + $0x23] sm:$0xf]
      %v4093 = vld [vmem:[%s3986 + $0x33] sm:$0xff]
      %v4094 = vld [vmem:[%s3986 + $0x3b] sm:$0xf]
      %v4095 = vld [vmem:[%s3986 + $0x4b] sm:$0xff]
      %v4096 = vld [vmem:[%s3986 + $0x53] sm:$0xf]
      %s4097 = sadd.s32 %s3484, 3456
      %s4098 = scalar_lea.vmem %s4, %s4097
      %v4099 = vld [vmem:[%s4098] sm:$0xff]
      %v4100 = vld [vmem:[%s4098 + $0x8] sm:$0xf]
      %v4101 = vld [vmem:[%s4098 + $0x10] sm:$0xff]
      %v4102 = vld [vmem:[%s4098 + $0x18] sm:$0xf]
      %v4103 = vld [vmem:[%s4098 + $0x20] sm:$0xff]
      %v4104 = vld [vmem:[%s4098 + $0x28] sm:$0xf]
      %v4105 = vld [vmem:[%s4098 + $0x30] sm:$0xff]
      %v4106 = vld [vmem:[%s4098 + $0x38] sm:$0xf]
      %v4107 = vmul.f32 %v4089, %v4099
      %v4108 = vmul.f32 %v4090, %v4100
      %v4109 = vmul.f32 %v4091, %v4101
      %v4110 = vmul.f32 %v4092, %v4102
      %v4111 = vmul.f32 %v4093, %v4103
      %v4112 = vmul.f32 %v4094, %v4104
      %v4113 = vmul.f32 %v4095, %v4105
      %v4114 = vmul.f32 %v4096, %v4106
      %v4115 = vadd.f32 %v4081, %v4107
      %v4116 = vadd.f32 %v4082, %v4108
      %v4117 = vadd.f32 %v4083, %v4109
      %v4118 = vadd.f32 %v4084, %v4110
      %v4119 = vadd.f32 %v4085, %v4111
      %v4120 = vadd.f32 %v4086, %v4112
      %v4121 = vadd.f32 %v4087, %v4113
      %v4122 = vadd.f32 %v4088, %v4114
      %v4123 = vld [vmem:[%s3986 + $0x4] sm:$0xff]
      %v4124 = vld [vmem:[%s3986 + $0xc] sm:$0xf]
      %v4125 = vld [vmem:[%s3986 + $0x1c] sm:$0xff]
      %v4126 = vld [vmem:[%s3986 + $0x24] sm:$0xf]
      %v4127 = vld [vmem:[%s3986 + $0x34] sm:$0xff]
      %v4128 = vld [vmem:[%s3986 + $0x3c] sm:$0xf]
      %v4129 = vld [vmem:[%s3986 + $0x4c] sm:$0xff]
      %v4130 = vld [vmem:[%s3986 + $0x54] sm:$0xf]
      %s4131 = sadd.s32 %s3484, 3648
      %s4132 = scalar_lea.vmem %s4, %s4131
      %v4133 = vld [vmem:[%s4132] sm:$0xff]
      %v4134 = vld [vmem:[%s4132 + $0x8] sm:$0xf]
      %v4135 = vld [vmem:[%s4132 + $0x10] sm:$0xff]
      %v4136 = vld [vmem:[%s4132 + $0x18] sm:$0xf]
      %v4137 = vld [vmem:[%s4132 + $0x20] sm:$0xff]
      %v4138 = vld [vmem:[%s4132 + $0x28] sm:$0xf]
      %v4139 = vld [vmem:[%s4132 + $0x30] sm:$0xff]
      %v4140 = vld [vmem:[%s4132 + $0x38] sm:$0xf]
      %v4141 = vmul.f32 %v4123, %v4133
      %v4142 = vmul.f32 %v4124, %v4134
      %v4143 = vmul.f32 %v4125, %v4135
      %v4144 = vmul.f32 %v4126, %v4136
      %v4145 = vmul.f32 %v4127, %v4137
      %v4146 = vmul.f32 %v4128, %v4138
      %v4147 = vmul.f32 %v4129, %v4139
      %v4148 = vmul.f32 %v4130, %v4140
      %v4149 = vadd.f32 %v4115, %v4141
      %v4150 = vadd.f32 %v4116, %v4142
      %v4151 = vadd.f32 %v4117, %v4143
      %v4152 = vadd.f32 %v4118, %v4144
      %v4153 = vadd.f32 %v4119, %v4145
      %v4154 = vadd.f32 %v4120, %v4146
      %v4155 = vadd.f32 %v4121, %v4147
      %v4156 = vadd.f32 %v4122, %v4148
      %s4157 = sadd.s32 %s3473, 4
      %s4158 = smul.u32 %s4157, 24
      %s4159 = scalar_lea.vmem [#allocation2], %s4158
      %v4160 = vld [vmem:[%s4159] sm:$0xff]
      %v4161 = vld [vmem:[%s4159 + $0x8] sm:$0xf]
      %v4162 = vld [vmem:[%s4159 + $0x18] sm:$0xff]
      %v4163 = vld [vmem:[%s4159 + $0x20] sm:$0xf]
      %v4164 = vld [vmem:[%s4159 + $0x30] sm:$0xff]
      %v4165 = vld [vmem:[%s4159 + $0x38] sm:$0xf]
      %v4166 = vld [vmem:[%s4159 + $0x48] sm:$0xff]
      %v4167 = vld [vmem:[%s4159 + $0x50] sm:$0xf]
      %s4168 = sadd.s32 %s3484, 3840
      %s4169 = scalar_lea.vmem %s4, %s4168
      %v4170 = vld [vmem:[%s4169] sm:$0xff]
      %v4171 = vld [vmem:[%s4169 + $0x8] sm:$0xf]
      %v4172 = vld [vmem:[%s4169 + $0x10] sm:$0xff]
      %v4173 = vld [vmem:[%s4169 + $0x18] sm:$0xf]
      %v4174 = vld [vmem:[%s4169 + $0x20] sm:$0xff]
      %v4175 = vld [vmem:[%s4169 + $0x28] sm:$0xf]
      %v4176 = vld [vmem:[%s4169 + $0x30] sm:$0xff]
      %v4177 = vld [vmem:[%s4169 + $0x38] sm:$0xf]
      %v4178 = vmul.f32 %v4160, %v4170
      %v4179 = vmul.f32 %v4161, %v4171
      %v4180 = vmul.f32 %v4162, %v4172
      %v4181 = vmul.f32 %v4163, %v4173
      %v4182 = vmul.f32 %v4164, %v4174
      %v4183 = vmul.f32 %v4165, %v4175
      %v4184 = vmul.f32 %v4166, %v4176
      %v4185 = vmul.f32 %v4167, %v4177
      %v4186 = vadd.f32 %v4149, %v4178
      %v4187 = vadd.f32 %v4150, %v4179
      %v4188 = vadd.f32 %v4151, %v4180
      %v4189 = vadd.f32 %v4152, %v4181
      %v4190 = vadd.f32 %v4153, %v4182
      %v4191 = vadd.f32 %v4154, %v4183
      %v4192 = vadd.f32 %v4155, %v4184
      %v4193 = vadd.f32 %v4156, %v4185
      %v4194 = vld [vmem:[%s4159 + $0x1] sm:$0xff]
      %v4195 = vld [vmem:[%s4159 + $0x9] sm:$0xf]
      %v4196 = vld [vmem:[%s4159 + $0x19] sm:$0xff]
      %v4197 = vld [vmem:[%s4159 + $0x21] sm:$0xf]
      %v4198 = vld [vmem:[%s4159 + $0x31] sm:$0xff]
      %v4199 = vld [vmem:[%s4159 + $0x39] sm:$0xf]
      %v4200 = vld [vmem:[%s4159 + $0x49] sm:$0xff]
      %v4201 = vld [vmem:[%s4159 + $0x51] sm:$0xf]
      %s4202 = sadd.s32 %s3484, 4032
      %s4203 = scalar_lea.vmem %s4, %s4202
      %v4204 = vld [vmem:[%s4203] sm:$0xff]
      %v4205 = vld [vmem:[%s4203 + $0x8] sm:$0xf]
      %v4206 = vld [vmem:[%s4203 + $0x10] sm:$0xff]
      %v4207 = vld [vmem:[%s4203 + $0x18] sm:$0xf]
      %v4208 = vld [vmem:[%s4203 + $0x20] sm:$0xff]
      %v4209 = vld [vmem:[%s4203 + $0x28] sm:$0xf]
      %v4210 = vld [vmem:[%s4203 + $0x30] sm:$0xff]
      %v4211 = vld [vmem:[%s4203 + $0x38] sm:$0xf]
      %v4212 = vmul.f32 %v4194, %v4204
      %v4213 = vmul.f32 %v4195, %v4205
      %v4214 = vmul.f32 %v4196, %v4206
      %v4215 = vmul.f32 %v4197, %v4207
      %v4216 = vmul.f32 %v4198, %v4208
      %v4217 = vmul.f32 %v4199, %v4209
      %v4218 = vmul.f32 %v4200, %v4210
      %v4219 = vmul.f32 %v4201, %v4211
      %v4220 = vadd.f32 %v4186, %v4212
      %v4221 = vadd.f32 %v4187, %v4213
      %v4222 = vadd.f32 %v4188, %v4214
      %v4223 = vadd.f32 %v4189, %v4215
      %v4224 = vadd.f32 %v4190, %v4216
      %v4225 = vadd.f32 %v4191, %v4217
      %v4226 = vadd.f32 %v4192, %v4218
      %v4227 = vadd.f32 %v4193, %v4219
      %v4228 = vld [vmem:[%s4159 + $0x2] sm:$0xff]
      %v4229 = vld [vmem:[%s4159 + $0xa] sm:$0xf]
      %v4230 = vld [vmem:[%s4159 + $0x1a] sm:$0xff]
      %v4231 = vld [vmem:[%s4159 + $0x22] sm:$0xf]
      %v4232 = vld [vmem:[%s4159 + $0x32] sm:$0xff]
      %v4233 = vld [vmem:[%s4159 + $0x3a] sm:$0xf]
      %v4234 = vld [vmem:[%s4159 + $0x4a] sm:$0xff]
      %v4235 = vld [vmem:[%s4159 + $0x52] sm:$0xf]
      %s4236 = sadd.s32 %s3484, 4224
      %s4237 = scalar_lea.vmem %s4, %s4236
      %v4238 = vld [vmem:[%s4237] sm:$0xff]
      %v4239 = vld [vmem:[%s4237 + $0x8] sm:$0xf]
      %v4240 = vld [vmem:[%s4237 + $0x10] sm:$0xff]
      %v4241 = vld [vmem:[%s4237 + $0x18] sm:$0xf]
      %v4242 = vld [vmem:[%s4237 + $0x20] sm:$0xff]
      %v4243 = vld [vmem:[%s4237 + $0x28] sm:$0xf]
      %v4244 = vld [vmem:[%s4237 + $0x30] sm:$0xff]
      %v4245 = vld [vmem:[%s4237 + $0x38] sm:$0xf]
      %v4246 = vmul.f32 %v4228, %v4238
      %v4247 = vmul.f32 %v4229, %v4239
      %v4248 = vmul.f32 %v4230, %v4240
      %v4249 = vmul.f32 %v4231, %v4241
      %v4250 = vmul.f32 %v4232, %v4242
      %v4251 = vmul.f32 %v4233, %v4243
      %v4252 = vmul.f32 %v4234, %v4244
      %v4253 = vmul.f32 %v4235, %v4245
      %v4254 = vadd.f32 %v4220, %v4246
      %v4255 = vadd.f32 %v4221, %v4247
      %v4256 = vadd.f32 %v4222, %v4248
      %v4257 = vadd.f32 %v4223, %v4249
      %v4258 = vadd.f32 %v4224, %v4250
      %v4259 = vadd.f32 %v4225, %v4251
      %v4260 = vadd.f32 %v4226, %v4252
      %v4261 = vadd.f32 %v4227, %v4253
      %v4262 = vld [vmem:[%s4159 + $0x3] sm:$0xff]
      %v4263 = vld [vmem:[%s4159 + $0xb] sm:$0xf]
      %v4264 = vld [vmem:[%s4159 + $0x1b] sm:$0xff]
      %v4265 = vld [vmem:[%s4159 + $0x23] sm:$0xf]
      %v4266 = vld [vmem:[%s4159 + $0x33] sm:$0xff]
      %v4267 = vld [vmem:[%s4159 + $0x3b] sm:$0xf]
      %v4268 = vld [vmem:[%s4159 + $0x4b] sm:$0xff]
      %v4269 = vld [vmem:[%s4159 + $0x53] sm:$0xf]
      %s4270 = sadd.s32 %s3484, 4416
      %s4271 = scalar_lea.vmem %s4, %s4270
      %v4272 = vld [vmem:[%s4271] sm:$0xff]
      %v4273 = vld [vmem:[%s4271 + $0x8] sm:$0xf]
      %v4274 = vld [vmem:[%s4271 + $0x10] sm:$0xff]
      %v4275 = vld [vmem:[%s4271 + $0x18] sm:$0xf]
      %v4276 = vld [vmem:[%s4271 + $0x20] sm:$0xff]
      %v4277 = vld [vmem:[%s4271 + $0x28] sm:$0xf]
      %v4278 = vld [vmem:[%s4271 + $0x30] sm:$0xff]
      %v4279 = vld [vmem:[%s4271 + $0x38] sm:$0xf]
      %v4280 = vmul.f32 %v4262, %v4272
      %v4281 = vmul.f32 %v4263, %v4273
      %v4282 = vmul.f32 %v4264, %v4274
      %v4283 = vmul.f32 %v4265, %v4275
      %v4284 = vmul.f32 %v4266, %v4276
      %v4285 = vmul.f32 %v4267, %v4277
      %v4286 = vmul.f32 %v4268, %v4278
      %v4287 = vmul.f32 %v4269, %v4279
      %v4288 = vadd.f32 %v4254, %v4280
      %v4289 = vadd.f32 %v4255, %v4281
      %v4290 = vadd.f32 %v4256, %v4282
      %v4291 = vadd.f32 %v4257, %v4283
      %v4292 = vadd.f32 %v4258, %v4284
      %v4293 = vadd.f32 %v4259, %v4285
      %v4294 = vadd.f32 %v4260, %v4286
      %v4295 = vadd.f32 %v4261, %v4287
      %v4296 = vld [vmem:[%s4159 + $0x4] sm:$0xff]
      %v4297 = vld [vmem:[%s4159 + $0xc] sm:$0xf]
      %v4298 = vld [vmem:[%s4159 + $0x1c] sm:$0xff]
      %v4299 = vld [vmem:[%s4159 + $0x24] sm:$0xf]
      %v4300 = vld [vmem:[%s4159 + $0x34] sm:$0xff]
      %v4301 = vld [vmem:[%s4159 + $0x3c] sm:$0xf]
      %v4302 = vld [vmem:[%s4159 + $0x4c] sm:$0xff]
      %v4303 = vld [vmem:[%s4159 + $0x54] sm:$0xf]
      %s4304 = sadd.s32 %s3484, 4608
      %s4305 = scalar_lea.vmem %s4, %s4304
      %v4306 = vld [vmem:[%s4305] sm:$0xff]
      %v4307 = vld [vmem:[%s4305 + $0x8] sm:$0xf]
      %v4308 = vld [vmem:[%s4305 + $0x10] sm:$0xff]
      %v4309 = vld [vmem:[%s4305 + $0x18] sm:$0xf]
      %v4310 = vld [vmem:[%s4305 + $0x20] sm:$0xff]
      %v4311 = vld [vmem:[%s4305 + $0x28] sm:$0xf]
      %v4312 = vld [vmem:[%s4305 + $0x30] sm:$0xff]
      %v4313 = vld [vmem:[%s4305 + $0x38] sm:$0xf]
      %v4314 = vmul.f32 %v4296, %v4306
      %v4315 = vmul.f32 %v4297, %v4307
      %v4316 = vmul.f32 %v4298, %v4308
      %v4317 = vmul.f32 %v4299, %v4309
      %v4318 = vmul.f32 %v4300, %v4310
      %v4319 = vmul.f32 %v4301, %v4311
      %v4320 = vmul.f32 %v4302, %v4312
      %v4321 = vmul.f32 %v4303, %v4313
      %v4322 = vadd.f32 %v4288, %v4314
      %v4323 = vadd.f32 %v4289, %v4315
      %v4324 = vadd.f32 %v4290, %v4316
      %v4325 = vadd.f32 %v4291, %v4317
      %v4326 = vadd.f32 %v4292, %v4318
      %v4327 = vadd.f32 %v4293, %v4319
      %v4328 = vadd.f32 %v4294, %v4320
      %v4329 = vadd.f32 %v4295, %v4321
      %s4330 = scalar_lea.vmem [#allocation3], %s3474
      %4331 = vst [vmem:[%s4330] sm:$0xff] %v4322
      %4332 = vst [vmem:[%s4330 + $0x8] sm:$0xf] %v4323
      %4333 = vst [vmem:[%s4330 + $0x18] sm:$0xff] %v4324
      %4334 = vst [vmem:[%s4330 + $0x20] sm:$0xf] %v4325
      %4335 = vst [vmem:[%s4330 + $0x30] sm:$0xff] %v4326
      %4336 = vst [vmem:[%s4330 + $0x38] sm:$0xf] %v4327
      %4337 = vst [vmem:[%s4330 + $0x48] sm:$0xff] %v4328
      %4338 = vst [vmem:[%s4330 + $0x50] sm:$0xf] %v4329
    $region59: #{_lambda_.1} parent=1 // loop_footer
      %s3472 = sadd.s32 1, %s3468
    $region60: #{_lambda_.1} parent=1 // loop_footer_branch
      %3467 = sbr.rel target = $region56
    $region61: #{_lambda_.1} parent=1 // loop_exit
      _
    loop: start=0, step=1, limit=5
    $region62: #{_lambda_.1} parent=1 // loop_pre_header
      _
    $region63: #{_lambda_.1} parent=1 // loop_header
      %s4340 = sphi 0, %s4344
      %p4341 = scmp.ge.s32.totalorder %s4340, 5
    $region64: #{_lambda_.1} parent=1 // loop_header_branch
      %4343 = sbr.rel (%p4341) target = $region68
    $region65: #{_lambda_.1} parent=1 // loop_body
      %s4345 = smul.u32 %s4340, 2
      %s4346 = smul.u32 %s4345, 24
      %s4347 = scalar_lea.vmem [#allocation3], %s4346
      %v4348 = vld [vmem:[%s4347] sm:$0xff]
      %v4349 = vld [vmem:[%s4347 + $0x8] sm:$0x3]
      %v4350 = vld [vmem:[%s4347 + $0x18] sm:$0xff]
      %v4351 = vld [vmem:[%s4347 + $0x20] sm:$0x3]
      %s4352 = smul.u32 %s4345, 16
      %s4353 = scalar_lea.vmem %s5, %s4352
      %v4354 = vld [vmem:[%s4353] sm:$0xff]
      %v4355 = vld [vmem:[%s4353 + $0x8] sm:$0x3]
      %v4356 = vld [vmem:[%s4353 + $0x10] sm:$0xff]
      %v4357 = vld [vmem:[%s4353 + $0x18] sm:$0x3]
      %v4358 = vmul.f32 %v4348, %v4354
      %v4359 = vmul.f32 %v4349, %v4355
      %v4360 = vmul.f32 %v4350, %v4356
      %v4361 = vmul.f32 %v4351, %v4357
      %v4362 = vld [vmem:[%s4347 + $0x1] sm:$0xff]
      %v4363 = vld [vmem:[%s4347 + $0x9] sm:$0x3]
      %v4364 = vld [vmem:[%s4347 + $0x19] sm:$0xff]
      %v4365 = vld [vmem:[%s4347 + $0x21] sm:$0x3]
      %s4366 = sadd.s32 %s4352, 160
      %s4367 = scalar_lea.vmem %s5, %s4366
      %v4368 = vld [vmem:[%s4367] sm:$0xff]
      %v4369 = vld [vmem:[%s4367 + $0x8] sm:$0x3]
      %v4370 = vld [vmem:[%s4367 + $0x10] sm:$0xff]
      %v4371 = vld [vmem:[%s4367 + $0x18] sm:$0x3]
      %v4372 = vmul.f32 %v4362, %v4368
      %v4373 = vmul.f32 %v4363, %v4369
      %v4374 = vmul.f32 %v4364, %v4370
      %v4375 = vmul.f32 %v4365, %v4371
      %v4376 = vadd.f32 %v4358, %v4372
      %v4377 = vadd.f32 %v4359, %v4373
      %v4378 = vadd.f32 %v4360, %v4374
      %v4379 = vadd.f32 %v4361, %v4375
      %v4380 = vld [vmem:[%s4347 + $0x2] sm:$0xff]
      %v4381 = vld [vmem:[%s4347 + $0xa] sm:$0x3]
      %v4382 = vld [vmem:[%s4347 + $0x1a] sm:$0xff]
      %v4383 = vld [vmem:[%s4347 + $0x22] sm:$0x3]
      %s4384 = sadd.s32 %s4352, 320
      %s4385 = scalar_lea.vmem %s5, %s4384
      %v4386 = vld [vmem:[%s4385] sm:$0xff]
      %v4387 = vld [vmem:[%s4385 + $0x8] sm:$0x3]
      %v4388 = vld [vmem:[%s4385 + $0x10] sm:$0xff]
      %v4389 = vld [vmem:[%s4385 + $0x18] sm:$0x3]
      %v4390 = vmul.f32 %v4380, %v4386
      %v4391 = vmul.f32 %v4381, %v4387
      %v4392 = vmul.f32 %v4382, %v4388
      %v4393 = vmul.f32 %v4383, %v4389
      %v4394 = vadd.f32 %v4376, %v4390
      %v4395 = vadd.f32 %v4377, %v4391
      %v4396 = vadd.f32 %v4378, %v4392
      %v4397 = vadd.f32 %v4379, %v4393
      %s4398 = sadd.s32 %s4345, 1
      %s4399 = smul.u32 %s4398, 24
      %s4400 = scalar_lea.vmem [#allocation3], %s4399
      %v4401 = vld [vmem:[%s4400] sm:$0xff]
      %v4402 = vld [vmem:[%s4400 + $0x8] sm:$0x3]
      %v4403 = vld [vmem:[%s4400 + $0x18] sm:$0xff]
      %v4404 = vld [vmem:[%s4400 + $0x20] sm:$0x3]
      %s4405 = sadd.s32 %s4352, 480
      %s4406 = scalar_lea.vmem %s5, %s4405
      %v4407 = vld [vmem:[%s4406] sm:$0xff]
      %v4408 = vld [vmem:[%s4406 + $0x8] sm:$0x3]
      %v4409 = vld [vmem:[%s4406 + $0x10] sm:$0xff]
      %v4410 = vld [vmem:[%s4406 + $0x18] sm:$0x3]
      %v4411 = vmul.f32 %v4401, %v4407
      %v4412 = vmul.f32 %v4402, %v4408
      %v4413 = vmul.f32 %v4403, %v4409
      %v4414 = vmul.f32 %v4404, %v4410
      %v4415 = vadd.f32 %v4394, %v4411
      %v4416 = vadd.f32 %v4395, %v4412
      %v4417 = vadd.f32 %v4396, %v4413
      %v4418 = vadd.f32 %v4397, %v4414
      %v4419 = vld [vmem:[%s4400 + $0x1] sm:$0xff]
      %v4420 = vld [vmem:[%s4400 + $0x9] sm:$0x3]
      %v4421 = vld [vmem:[%s4400 + $0x19] sm:$0xff]
      %v4422 = vld [vmem:[%s4400 + $0x21] sm:$0x3]
      %s4423 = sadd.s32 %s4352, 640
      %s4424 = scalar_lea.vmem %s5, %s4423
      %v4425 = vld [vmem:[%s4424] sm:$0xff]
      %v4426 = vld [vmem:[%s4424 + $0x8] sm:$0x3]
      %v4427 = vld [vmem:[%s4424 + $0x10] sm:$0xff]
      %v4428 = vld [vmem:[%s4424 + $0x18] sm:$0x3]
      %v4429 = vmul.f32 %v4419, %v4425
      %v4430 = vmul.f32 %v4420, %v4426
      %v4431 = vmul.f32 %v4421, %v4427
      %v4432 = vmul.f32 %v4422, %v4428
      %v4433 = vadd.f32 %v4415, %v4429
      %v4434 = vadd.f32 %v4416, %v4430
      %v4435 = vadd.f32 %v4417, %v4431
      %v4436 = vadd.f32 %v4418, %v4432
      %v4437 = vld [vmem:[%s4400 + $0x2] sm:$0xff]
      %v4438 = vld [vmem:[%s4400 + $0xa] sm:$0x3]
      %v4439 = vld [vmem:[%s4400 + $0x1a] sm:$0xff]
      %v4440 = vld [vmem:[%s4400 + $0x22] sm:$0x3]
      %s4441 = sadd.s32 %s4352, 800
      %s4442 = scalar_lea.vmem %s5, %s4441
      %v4443 = vld [vmem:[%s4442] sm:$0xff]
      %v4444 = vld [vmem:[%s4442 + $0x8] sm:$0x3]
      %v4445 = vld [vmem:[%s4442 + $0x10] sm:$0xff]
      %v4446 = vld [vmem:[%s4442 + $0x18] sm:$0x3]
      %v4447 = vmul.f32 %v4437, %v4443
      %v4448 = vmul.f32 %v4438, %v4444
      %v4449 = vmul.f32 %v4439, %v4445
      %v4450 = vmul.f32 %v4440, %v4446
      %v4451 = vadd.f32 %v4433, %v4447
      %v4452 = vadd.f32 %v4434, %v4448
      %v4453 = vadd.f32 %v4435, %v4449
      %v4454 = vadd.f32 %v4436, %v4450
      %s4455 = sadd.s32 %s4345, 2
      %s4456 = smul.u32 %s4455, 24
      %s4457 = scalar_lea.vmem [#allocation3], %s4456
      %v4458 = vld [vmem:[%s4457] sm:$0xff]
      %v4459 = vld [vmem:[%s4457 + $0x8] sm:$0x3]
      %v4460 = vld [vmem:[%s4457 + $0x18] sm:$0xff]
      %v4461 = vld [vmem:[%s4457 + $0x20] sm:$0x3]
      %s4462 = sadd.s32 %s4352, 960
      %s4463 = scalar_lea.vmem %s5, %s4462
      %v4464 = vld [vmem:[%s4463] sm:$0xff]
      %v4465 = vld [vmem:[%s4463 + $0x8] sm:$0x3]
      %v4466 = vld [vmem:[%s4463 + $0x10] sm:$0xff]
      %v4467 = vld [vmem:[%s4463 + $0x18] sm:$0x3]
      %v4468 = vmul.f32 %v4458, %v4464
      %v4469 = vmul.f32 %v4459, %v4465
      %v4470 = vmul.f32 %v4460, %v4466
      %v4471 = vmul.f32 %v4461, %v4467
      %v4472 = vadd.f32 %v4451, %v4468
      %v4473 = vadd.f32 %v4452, %v4469
      %v4474 = vadd.f32 %v4453, %v4470
      %v4475 = vadd.f32 %v4454, %v4471
      %v4476 = vld [vmem:[%s4457 + $0x1] sm:$0xff]
      %v4477 = vld [vmem:[%s4457 + $0x9] sm:$0x3]
      %v4478 = vld [vmem:[%s4457 + $0x19] sm:$0xff]
      %v4479 = vld [vmem:[%s4457 + $0x21] sm:$0x3]
      %s4480 = sadd.s32 %s4352, 1120
      %s4481 = scalar_lea.vmem %s5, %s4480
      %v4482 = vld [vmem:[%s4481] sm:$0xff]
      %v4483 = vld [vmem:[%s4481 + $0x8] sm:$0x3]
      %v4484 = vld [vmem:[%s4481 + $0x10] sm:$0xff]
      %v4485 = vld [vmem:[%s4481 + $0x18] sm:$0x3]
      %v4486 = vmul.f32 %v4476, %v4482
      %v4487 = vmul.f32 %v4477, %v4483
      %v4488 = vmul.f32 %v4478, %v4484
      %v4489 = vmul.f32 %v4479, %v4485
      %v4490 = vadd.f32 %v4472, %v4486
      %v4491 = vadd.f32 %v4473, %v4487
      %v4492 = vadd.f32 %v4474, %v4488
      %v4493 = vadd.f32 %v4475, %v4489
      %v4494 = vld [vmem:[%s4457 + $0x2] sm:$0xff]
      %v4495 = vld [vmem:[%s4457 + $0xa] sm:$0x3]
      %v4496 = vld [vmem:[%s4457 + $0x1a] sm:$0xff]
      %v4497 = vld [vmem:[%s4457 + $0x22] sm:$0x3]
      %s4498 = sadd.s32 %s4352, 1280
      %s4499 = scalar_lea.vmem %s5, %s4498
      %v4500 = vld [vmem:[%s4499] sm:$0xff]
      %v4501 = vld [vmem:[%s4499 + $0x8] sm:$0x3]
      %v4502 = vld [vmem:[%s4499 + $0x10] sm:$0xff]
      %v4503 = vld [vmem:[%s4499 + $0x18] sm:$0x3]
      %v4504 = vmul.f32 %v4494, %v4500
      %v4505 = vmul.f32 %v4495, %v4501
      %v4506 = vmul.f32 %v4496, %v4502
      %v4507 = vmul.f32 %v4497, %v4503
      %v4508 = vadd.f32 %v4490, %v4504
      %v4509 = vadd.f32 %v4491, %v4505
      %v4510 = vadd.f32 %v4492, %v4506
      %v4511 = vadd.f32 %v4493, %v4507
      %s4512 = scalar_lea.vmem [#allocation9], %s4352
      %4513 = vst [vmem:[%s4512] sm:$0xff] %v4508
      %4514 = vst [vmem:[%s4512 + $0x8] sm:$0x3] %v4509
      %4515 = vst [vmem:[%s4512 + $0x10] sm:$0xff] %v4510
      %4516 = vst [vmem:[%s4512 + $0x18] sm:$0x3] %v4511
    $region66: #{_lambda_.1} parent=1 // loop_footer
      %s4344 = sadd.s32 1, %s4340
    $region67: #{_lambda_.1} parent=1 // loop_footer_branch
      %4339 = sbr.rel target = $region63
    $region68: #{_lambda_.1} parent=1 // loop_exit
      _
    // Predicated region
    $region69: #{_lambda_.1} parent=1 // pred_check
      _
    $region70: #{_lambda_.1} parent=1 // pred_check_branch
      %4518 = sbr.rel (0) target = $region72
    $region71: #{_lambda_.1} parent=1 // pred_region
      %s4520 = ssub.s32 2560, 2560
      %4521 = vsyncadd [#allocation6], %s4520
      %s4522 = sshll.u32 [#allocation9], 4
      %s4523 = int_to_ptr.vmem [resolvable:$true] %s4522
      %4528 = dma.vmem_to_hbm [thread:$0]  %s4523, 2560, %s6, [#allocation6], 128, 128, 8
    $region72: #{_lambda_.1} parent=1 // pred_fallthru
      _
    // Predicated region
    $region73: #{_lambda_.1} parent=1 // pred_check
      _
    $region74: #{_lambda_.1} parent=1 // pred_check_branch
      %4530 = sbr.rel (0) target = $region76
    $region75: #{_lambda_.1} parent=1 // pred_region
      %4531 = dma.done [#allocation6], 2560
    $region76: #{_lambda_.1} parent=1 // pred_fallthru
      _
    %4532 = vsyncpa [#allocation5], 1
    %4533 = vsyncpa [#allocation8], 1
    %4534 = vsyncpa [#allocation6], 1

</llo_original>
